<compile_context>
chip_gen: v5e
topology: v5e:2x2
jax: 0.10.0
libtpu: 0.0.40
codegen_flags: <defaults>
</compile_context>

<pallas_src>
import functools

import jax
import jax.numpy as jnp
from jax.experimental import pallas as pl
from jax.experimental.pallas import tpu as pltpu


# ---------------------------------------------------------------------------
# In-kernel helpers
# ---------------------------------------------------------------------------

def _conv3x3_acc(src_pad_ref, w_ref, H, W):
    """3x3 'same' convolution as 9 accumulated MXU matmuls.

    src_pad_ref : (H+2, W+2, cin) VMEM ref, bf16, 1-px border is zero.
    w_ref       : (9, cin, cout)  VMEM ref, bf16, tap-major (kh*3+kw).
    returns     : (H*W, cout) f32 accumulator.
    """
    cin = src_pad_ref.shape[-1]
    acc = None
    for t in range(9):                       # static unroll: 9 small MXU dots
        dh, dw = divmod(t, 3)
        tap = src_pad_ref[dh:dh + H, dw:dw + W, :].reshape(H * W, cin)  # bf16
        d = jnp.dot(tap, w_ref[t], preferred_element_type=jnp.float32)
        acc = d if acc is None else acc + d
    return acc


def _silu(y):
    # EUP-friendly SiLU (sigmoid -> logistic on the transcendental unit).
    return y * jax.nn.sigmoid(y)


# ---------------------------------------------------------------------------
# Fused bottleneck kernel: one whole (image) per grid step
# ---------------------------------------------------------------------------

def _bottleneck_kernel(x_ref, w1_ref, b1_ref, w2_ref, b2_ref, o_ref,
                       xpad_ref, apad_ref, *, H, W, add):
    """cv1(3x3)+BN+SiLU -> cv2(3x3)+BN+SiLU -> (+x) for one image.

    x_ref  : (1, H, W, c1)  bf16 input block (auto-pipelined from HBM).
    w1_ref : (9, c1, c_)    bf16 (BN scale folded);  b1_ref: (1, c_)  f32.
    w2_ref : (9, c_, c2)    bf16 (BN scale folded);  b2_ref: (1, c2)  f32.
    o_ref  : (1, H, W, c2)  f32 output block.
    xpad_ref : VMEM (H+2, W+2, c1) bf16 scratch (zero-bordered input).
    apad_ref : VMEM (H+2, W+2, c_) bf16 scratch (zero-bordered cv1 output).
    """
    c1 = x_ref.shape[-1]
    c2 = w2_ref.shape[-1]

    # Re-initialize the padded scratches every step (cheap at these sizes) so
    # each grid step is fully independent -> the batch axis can be "parallel"
    # (megacore) without any cross-step scratch carry.  The zero border is
    # exactly the conv's zero padding; interiors are overwritten below.
    xpad_ref[...] = jnp.zeros_like(xpad_ref)
    apad_ref[...] = jnp.zeros_like(apad_ref)

    # Input halo: copy the (already VMEM-resident) image into the interior.
    xpad_ref[1:H + 1, 1:W + 1, :] = x_ref[0]

    # ---- cv1: 3x3 conv (9 accumulated bf16 matmuls, f32 accum) + BN + SiLU --
    a = _silu(_conv3x3_acc(xpad_ref, w1_ref, H, W) + b1_ref[...])   # (H*W, c_)
    c_mid = a.shape[-1]
    apad_ref[1:H + 1, 1:W + 1, :] = a.reshape(H, W, c_mid).astype(apad_ref.dtype)

    # ---- cv2: 3x3 conv + BN + SiLU (+ residual into the f32 accumulator) ----
    y = _silu(_conv3x3_acc(apad_ref, w2_ref, H, W) + b2_ref[...])   # (H*W, c2)
    if add:  # shortcut requires c1 == c2; add in f32 before the final cast
        y = y + x_ref[0].reshape(H * W, c1).astype(jnp.float32)

    o_ref[...] = y.reshape(1, H, W, c2).astype(o_ref.dtype)


# ---------------------------------------------------------------------------
# Wrapper
# ---------------------------------------------------------------------------

def c2f_bottleneck_forward(x_nchw, params, *, shortcut=True):
    N, c1, H, W = x_nchw.shape

    # Fold BN scale into the conv weights (HWIO * [cout]); bias already folded.
    w1 = (params["cv1"]["w"] * params["cv1"]["scale"])
    w2 = (params["cv2"]["w"] * params["cv2"]["scale"])
    c_ = w1.shape[-1]
    c2 = w2.shape[-1]
    add = bool(shortcut and c1 == c2)

    # NCHW -> NHWC (channels on lanes) + bf16 storage.  No jnp.pad: the halo
    # is synthesized inside the kernel, so the input is read from HBM once.
    x = jnp.transpose(x_nchw, (0, 2, 3, 1)).astype(jnp.bfloat16)

    w1f = w1.reshape(9, c1, c_).astype(jnp.bfloat16)     # tap-major weights
    w2f = w2.reshape(9, c_, c2).astype(jnp.bfloat16)
    b1f = params["cv1"]["bias"].reshape(1, c_).astype(jnp.float32)
    b2f = params["cv2"]["bias"].reshape(1, c2).astype(jnp.float32)

    kernel = functools.partial(_bottleneck_kernel, H=H, W=W, add=add)

    out_nhwc = pl.pallas_call(
        kernel,
        out_shape=jax.ShapeDtypeStruct((N, H, W, c2), jnp.float32),
        grid=(N,),
        in_specs=[
            pl.BlockSpec((1, H, W, c1), lambda n: (n, 0, 0, 0)),   # image n
            pl.BlockSpec((9, c1, c_), lambda n: (0, 0, 0)),        # w1 (folded)
            pl.BlockSpec((1, c_), lambda n: (0, 0)),               # b1
            pl.BlockSpec((9, c_, c2), lambda n: (0, 0, 0)),        # w2 (folded)
            pl.BlockSpec((1, c2), lambda n: (0, 0)),               # b2
        ],
        out_specs=pl.BlockSpec((1, H, W, c2), lambda n: (n, 0, 0, 0)),
        scratch_shapes=[
            pltpu.VMEM((H + 2, W + 2, c1), jnp.bfloat16),          # padded x
            pltpu.VMEM((H + 2, W + 2, c_), jnp.bfloat16),          # padded cv1
        ],
        compiler_params=pltpu.CompilerParams(
            dimension_semantics=("parallel",)),
    )(x, w1f, b1f, w2f, b2f)

    return jnp.transpose(out_nhwc, (0, 3, 1, 2)).astype(x_nchw.dtype)


# ---------------------------------------------------------------------------
# Parameter init (deterministic, synthetic -- BN folded to scale/bias)
# ---------------------------------------------------------------------------

def init_conv_params(key, cin, cout, k):
    k1, k2, k3, k4, k5 = jax.random.split(key, 5)
    fan_in = cin * k * k
    w = jax.random.normal(k1, (k, k, cin, cout), jnp.float32) / jnp.sqrt(fan_in)
    gamma = jax.random.uniform(k2, (cout,), jnp.float32, 0.5, 1.5)
    beta = 0.1 * jax.random.normal(k3, (cout,), jnp.float32)
    mean = 0.1 * jax.random.normal(k4, (cout,), jnp.float32)
    var = jax.random.uniform(k5, (cout,), jnp.float32, 0.5, 1.5)
    eps = 1e-5  # nn.BatchNorm2d default
    scale = gamma / jnp.sqrt(var + eps)
    bias = beta - mean * scale
    return {"w": w, "scale": scale, "bias": bias}


# ---------------------------------------------------------------------------
# Pure-JAX references (full-f32, and one matched to the kernel's bf16 storage)
# ---------------------------------------------------------------------------

def c2f_bottleneck_ref(x_nchw, params, shortcut=True, compute_dtype=jnp.float32):
    x = jnp.transpose(x_nchw, (0, 2, 3, 1))
    xd = x.astype(compute_dtype)

    def conv_bn_silu(inp, p):
        w = (p["w"] * p["scale"]).astype(compute_dtype)
        y = jax.lax.conv_general_dilated(
            inp, w, (1, 1), [(1, 1), (1, 1)],
            dimension_numbers=("NHWC", "HWIO", "NHWC"),
            preferred_element_type=jnp.float32,
            precision=jax.lax.Precision.HIGHEST)
        y = y + p["bias"]
        return y * jax.nn.sigmoid(y)

    a = conv_bn_silu(xd, params["cv1"]).astype(compute_dtype)
    y = conv_bn_silu(a, params["cv2"])
    if shortcut and x.shape[-1] == y.shape[-1]:
        y = y + xd.astype(jnp.float32)
    return jnp.transpose(y, (0, 3, 1, 2))


# ---------------------------------------------------------------------------

if __name__ == "__main__":
    key = jax.random.PRNGKey(0)
    N, c1, c2, H, W = 2, 16, 16, 16, 16   # shortcut=True and c1 == c2 -> residual add
    e = 0.5
    c_ = int(c2 * e)                      # hidden channels of the bottleneck

    kx, kcv1, kcv2 = jax.random.split(key, 3)
    params = {
        "cv1": init_conv_params(kcv1, c1, c_, 3),   # Conv(c1, c_, k=3)
        "cv2": init_conv_params(kcv2, c_, c2, 3),   # Conv(c_, c2, k=3)
    }
    x = jax.random.normal(kx, (N, c1, H, W), jnp.float32)   # NCHW like PyTorch

    fwd = jax.jit(c2f_bottleneck_forward)
    out = jax.block_until_ready(fwd(x, params))
    assert out.shape == (N, c2, H, W), out.shape

    # Tight check against a reference with identical bf16 storage points
    # (bf16*bf16 products are exact in f32, so only accumulation order differs).
    ref_match = c2f_bottleneck_ref(x, params, compute_dtype=jnp.bfloat16)
    err_match = float(jnp.max(jnp.abs(out - ref_match)))
    assert err_match < 5e-3, f"bf16-matched max abs err too large: {err_match}"

    # Loose sanity check against the full-f32 reference (bf16 storage error).
    ref_f32 = c2f_bottleneck_ref(x, params, compute_dtype=jnp.float32)
    err_f32 = float(jnp.max(jnp.abs(out - ref_f32)))
    assert err_f32 < 1e-1, f"f32-reference max abs err too large: {err_f32}"

    print("KERNEL_OK")
</pallas_src>

<mosaic_0001>
module attributes {stable_mosaic.version = 11 : i64} {
  func.func @_bottleneck_kernel(%arg0: i32, %arg1: memref<1x16x16x16xbf16, #tpu.memory_space<vmem>>, %arg2: memref<9x16x8xbf16, #tpu.memory_space<vmem>>, %arg3: memref<1x8xf32, #tpu.memory_space<vmem>>, %arg4: memref<9x8x16xbf16, #tpu.memory_space<vmem>>, %arg5: memref<1x16xf32, #tpu.memory_space<vmem>>, %arg6: memref<1x16x16x16xf32, #tpu.memory_space<vmem>>, %arg7: memref<18x18x16xbf16, #tpu.memory_space<vmem>>, %arg8: memref<18x18x8xbf16, #tpu.memory_space<vmem>>) attributes {dimension_semantics = [#tpu.dimension_semantics<parallel>], iteration_bounds = array<i64: 2>, scalar_prefetch = 0 : i64, scratch_operands = 2 : i64, tpu.core_type = #tpu.core_type<tc>, window_params = [{transform_indices = @transform_0, window_bounds = array<i64: 1, 16, 16, 16>}, {pipeline_mode = #tpu.pipeline_mode<synchronous>, transform_indices = @transform_1, window_bounds = array<i64: 9, 16, 8>}, {pipeline_mode = #tpu.pipeline_mode<synchronous>, transform_indices = @transform_2, window_bounds = array<i64: 1, 8>}, {pipeline_mode = #tpu.pipeline_mode<synchronous>, transform_indices = @transform_3, window_bounds = array<i64: 9, 8, 16>}, {pipeline_mode = #tpu.pipeline_mode<synchronous>, transform_indices = @transform_4, window_bounds = array<i64: 1, 16>}, {transform_indices = @transform_5, window_bounds = array<i64: 1, 16, 16, 16>}]} {
    %cst = arith.constant 0.000000e+00 : bf16
    %0 = vector.broadcast %cst : bf16 to vector<18x18x16xbf16>
    %c0 = arith.constant 0 : index
    %c0_0 = arith.constant 0 : index
    %c0_1 = arith.constant 0 : index
    %1 = vector.load %arg7[%c0, %c0_0, %c0_1] : memref<18x18x16xbf16, #tpu.memory_space<vmem>>, vector<18x18x16xbf16>
    tpu.vector_store %arg7[%c0, %c0_0, %c0_1], %0 {strides = array<i32>} : memref<18x18x16xbf16, #tpu.memory_space<vmem>>, vector<18x18x16xbf16>,
    %cst_2 = arith.constant 0.000000e+00 : bf16
    %2 = vector.broadcast %cst_2 : bf16 to vector<18x18x8xbf16>
    %c0_3 = arith.constant 0 : index
    %c0_4 = arith.constant 0 : index
    %c0_5 = arith.constant 0 : index
    %3 = vector.load %arg8[%c0_3, %c0_4, %c0_5] : memref<18x18x8xbf16, #tpu.memory_space<vmem>>, vector<18x18x8xbf16>
    tpu.vector_store %arg8[%c0_3, %c0_4, %c0_5], %2 {strides = array<i32>} : memref<18x18x8xbf16, #tpu.memory_space<vmem>>, vector<18x18x8xbf16>,
    %c0_6 = arith.constant 0 : index
    %c0_7 = arith.constant 0 : index
    %c0_8 = arith.constant 0 : index
    %c0_9 = arith.constant 0 : index
    %4 = vector.load %arg1[%c0_6, %c0_7, %c0_8, %c0_9] : memref<1x16x16x16xbf16, #tpu.memory_space<vmem>>, vector<1x16x16x16xbf16>
    %5 = vector.shape_cast %4 : vector<1x16x16x16xbf16> to vector<16x16x16xbf16>
    %c1 = arith.constant 1 : index
    %c1_10 = arith.constant 1 : index
    %c0_11 = arith.constant 0 : index
    %6 = vector.load %arg7[%c1, %c1_10, %c0_11] : memref<18x18x16xbf16, #tpu.memory_space<vmem>>, vector<16x16x16xbf16>
    tpu.vector_store %arg7[%c1, %c1_10, %c0_11], %5 {strides = array<i32>} : memref<18x18x16xbf16, #tpu.memory_space<vmem>>, vector<16x16x16xbf16>,
    %c0_12 = arith.constant 0 : index
    %c0_13 = arith.constant 0 : index
    %c0_14 = arith.constant 0 : index
    %7 = vector.load %arg7[%c0_12, %c0_13, %c0_14] : memref<18x18x16xbf16, #tpu.memory_space<vmem>>, vector<16x16x16xbf16>
    %8 = vector.shape_cast %7 : vector<16x16x16xbf16> to vector<256x16xbf16>
    %c0_15 = arith.constant 0 : index
    %c0_16 = arith.constant 0 : index
    %c0_17 = arith.constant 0 : index
    %9 = vector.load %arg2[%c0_15, %c0_16, %c0_17] : memref<9x16x8xbf16, #tpu.memory_space<vmem>>, vector<1x16x8xbf16>
    %10 = vector.shape_cast %9 : vector<1x16x8xbf16> to vector<16x8xbf16>
    %cst_18 = arith.constant dense<0.000000e+00> : vector<256x8xf32>
    %11 = tpu.matmul %8, %10, %cst_18 {dimension_numbers = #tpu.dot_dimension_numbers<[1], [0], [0], [1], [0, 0, 1, 1], [], []>} : vector<256x16xbf16>, vector<16x8xbf16>, vector<256x8xf32> -> vector<256x8xf32>
    %c0_19 = arith.constant 0 : index
    %c1_20 = arith.constant 1 : index
    %c0_21 = arith.constant 0 : index
    %12 = vector.load %arg7[%c0_19, %c1_20, %c0_21] : memref<18x18x16xbf16, #tpu.memory_space<vmem>>, vector<16x16x16xbf16>
    %13 = vector.shape_cast %12 : vector<16x16x16xbf16> to vector<256x16xbf16>
    %c1_22 = arith.constant 1 : index
    %c0_23 = arith.constant 0 : index
    %c0_24 = arith.constant 0 : index
    %14 = vector.load %arg2[%c1_22, %c0_23, %c0_24] : memref<9x16x8xbf16, #tpu.memory_space<vmem>>, vector<1x16x8xbf16>
    %15 = vector.shape_cast %14 : vector<1x16x8xbf16> to vector<16x8xbf16>
    %cst_25 = arith.constant dense<0.000000e+00> : vector<256x8xf32>
    %16 = tpu.matmul %13, %15, %cst_25 {dimension_numbers = #tpu.dot_dimension_numbers<[1], [0], [0], [1], [0, 0, 1, 1], [], []>} : vector<256x16xbf16>, vector<16x8xbf16>, vector<256x8xf32> -> vector<256x8xf32>
    %17 = arith.addf %11, %16 : vector<256x8xf32>
    %c0_26 = arith.constant 0 : index
    %c2 = arith.constant 2 : index
    %c0_27 = arith.constant 0 : index
    %18 = vector.load %arg7[%c0_26, %c2, %c0_27] : memref<18x18x16xbf16, #tpu.memory_space<vmem>>, vector<16x16x16xbf16>
    %19 = vector.shape_cast %18 : vector<16x16x16xbf16> to vector<256x16xbf16>
    %c2_28 = arith.constant 2 : index
    %c0_29 = arith.constant 0 : index
    %c0_30 = arith.constant 0 : index
    %20 = vector.load %arg2[%c2_28, %c0_29, %c0_30] : memref<9x16x8xbf16, #tpu.memory_space<vmem>>, vector<1x16x8xbf16>
    %21 = vector.shape_cast %20 : vector<1x16x8xbf16> to vector<16x8xbf16>
    %cst_31 = arith.constant dense<0.000000e+00> : vector<256x8xf32>
    %22 = tpu.matmul %19, %21, %cst_31 {dimension_numbers = #tpu.dot_dimension_numbers<[1], [0], [0], [1], [0, 0, 1, 1], [], []>} : vector<256x16xbf16>, vector<16x8xbf16>, vector<256x8xf32> -> vector<256x8xf32>
    %23 = arith.addf %17, %22 : vector<256x8xf32>
    %c1_32 = arith.constant 1 : index
    %c0_33 = arith.constant 0 : index
    %c0_34 = arith.constant 0 : index
    %24 = vector.load %arg7[%c1_32, %c0_33, %c0_34] : memref<18x18x16xbf16, #tpu.memory_space<vmem>>, vector<16x16x16xbf16>
    %25 = vector.shape_cast %24 : vector<16x16x16xbf16> to vector<256x16xbf16>
    %c3 = arith.constant 3 : index
    %c0_35 = arith.constant 0 : index
    %c0_36 = arith.constant 0 : index
    %26 = vector.load %arg2[%c3, %c0_35, %c0_36] : memref<9x16x8xbf16, #tpu.memory_space<vmem>>, vector<1x16x8xbf16>
    %27 = vector.shape_cast %26 : vector<1x16x8xbf16> to vector<16x8xbf16>
    %cst_37 = arith.constant dense<0.000000e+00> : vector<256x8xf32>
    %28 = tpu.matmul %25, %27, %cst_37 {dimension_numbers = #tpu.dot_dimension_numbers<[1], [0], [0], [1], [0, 0, 1, 1], [], []>} : vector<256x16xbf16>, vector<16x8xbf16>, vector<256x8xf32> -> vector<256x8xf32>
    %29 = arith.addf %23, %28 : vector<256x8xf32>
    %c1_38 = arith.constant 1 : index
    %c1_39 = arith.constant 1 : index
    %c0_40 = arith.constant 0 : index
    %30 = vector.load %arg7[%c1_38, %c1_39, %c0_40] : memref<18x18x16xbf16, #tpu.memory_space<vmem>>, vector<16x16x16xbf16>
    %31 = vector.shape_cast %30 : vector<16x16x16xbf16> to vector<256x16xbf16>
    %c4 = arith.constant 4 : index
    %c0_41 = arith.constant 0 : index
    %c0_42 = arith.constant 0 : index
    %32 = vector.load %arg2[%c4, %c0_41, %c0_42] : memref<9x16x8xbf16, #tpu.memory_space<vmem>>, vector<1x16x8xbf16>
    %33 = vector.shape_cast %32 : vector<1x16x8xbf16> to vector<16x8xbf16>
    %cst_43 = arith.constant dense<0.000000e+00> : vector<256x8xf32>
    %34 = tpu.matmul %31, %33, %cst_43 {dimension_numbers = #tpu.dot_dimension_numbers<[1], [0], [0], [1], [0, 0, 1, 1], [], []>} : vector<256x16xbf16>, vector<16x8xbf16>, vector<256x8xf32> -> vector<256x8xf32>
    %35 = arith.addf %29, %34 : vector<256x8xf32>
    %c1_44 = arith.constant 1 : index
    %c2_45 = arith.constant 2 : index
    %c0_46 = arith.constant 0 : index
    %36 = vector.load %arg7[%c1_44, %c2_45, %c0_46] : memref<18x18x16xbf16, #tpu.memory_space<vmem>>, vector<16x16x16xbf16>
    %37 = vector.shape_cast %36 : vector<16x16x16xbf16> to vector<256x16xbf16>
    %c5 = arith.constant 5 : index
    %c0_47 = arith.constant 0 : index
    %c0_48 = arith.constant 0 : index
    %38 = vector.load %arg2[%c5, %c0_47, %c0_48] : memref<9x16x8xbf16, #tpu.memory_space<vmem>>, vector<1x16x8xbf16>
    %39 = vector.shape_cast %38 : vector<1x16x8xbf16> to vector<16x8xbf16>
    %cst_49 = arith.constant dense<0.000000e+00> : vector<256x8xf32>
    %40 = tpu.matmul %37, %39, %cst_49 {dimension_numbers = #tpu.dot_dimension_numbers<[1], [0], [0], [1], [0, 0, 1, 1], [], []>} : vector<256x16xbf16>, vector<16x8xbf16>, vector<256x8xf32> -> vector<256x8xf32>
    %41 = arith.addf %35, %40 : vector<256x8xf32>
    %c2_50 = arith.constant 2 : index
    %c0_51 = arith.constant 0 : index
    %c0_52 = arith.constant 0 : index
    %42 = vector.load %arg7[%c2_50, %c0_51, %c0_52] : memref<18x18x16xbf16, #tpu.memory_space<vmem>>, vector<16x16x16xbf16>
    %43 = vector.shape_cast %42 : vector<16x16x16xbf16> to vector<256x16xbf16>
    %c6 = arith.constant 6 : index
    %c0_53 = arith.constant 0 : index
    %c0_54 = arith.constant 0 : index
    %44 = vector.load %arg2[%c6, %c0_53, %c0_54] : memref<9x16x8xbf16, #tpu.memory_space<vmem>>, vector<1x16x8xbf16>
    %45 = vector.shape_cast %44 : vector<1x16x8xbf16> to vector<16x8xbf16>
    %cst_55 = arith.constant dense<0.000000e+00> : vector<256x8xf32>
    %46 = tpu.matmul %43, %45, %cst_55 {dimension_numbers = #tpu.dot_dimension_numbers<[1], [0], [0], [1], [0, 0, 1, 1], [], []>} : vector<256x16xbf16>, vector<16x8xbf16>, vector<256x8xf32> -> vector<256x8xf32>
    %47 = arith.addf %41, %46 : vector<256x8xf32>
    %c2_56 = arith.constant 2 : index
    %c1_57 = arith.constant 1 : index
    %c0_58 = arith.constant 0 : index
    %48 = vector.load %arg7[%c2_56, %c1_57, %c0_58] : memref<18x18x16xbf16, #tpu.memory_space<vmem>>, vector<16x16x16xbf16>
    %49 = vector.shape_cast %48 : vector<16x16x16xbf16> to vector<256x16xbf16>
    %c7 = arith.constant 7 : index
    %c0_59 = arith.constant 0 : index
    %c0_60 = arith.constant 0 : index
    %50 = vector.load %arg2[%c7, %c0_59, %c0_60] : memref<9x16x8xbf16, #tpu.memory_space<vmem>>, vector<1x16x8xbf16>
    %51 = vector.shape_cast %50 : vector<1x16x8xbf16> to vector<16x8xbf16>
    %cst_61 = arith.constant dense<0.000000e+00> : vector<256x8xf32>
    %52 = tpu.matmul %49, %51, %cst_61 {dimension_numbers = #tpu.dot_dimension_numbers<[1], [0], [0], [1], [0, 0, 1, 1], [], []>} : vector<256x16xbf16>, vector<16x8xbf16>, vector<256x8xf32> -> vector<256x8xf32>
    %53 = arith.addf %47, %52 : vector<256x8xf32>
    %c2_62 = arith.constant 2 : index
    %c2_63 = arith.constant 2 : index
    %c0_64 = arith.constant 0 : index
    %54 = vector.load %arg7[%c2_62, %c2_63, %c0_64] : memref<18x18x16xbf16, #tpu.memory_space<vmem>>, vector<16x16x16xbf16>
    %55 = vector.shape_cast %54 : vector<16x16x16xbf16> to vector<256x16xbf16>
    %c8 = arith.constant 8 : index
    %c0_65 = arith.constant 0 : index
    %c0_66 = arith.constant 0 : index
    %56 = vector.load %arg2[%c8, %c0_65, %c0_66] : memref<9x16x8xbf16, #tpu.memory_space<vmem>>, vector<1x16x8xbf16>
    %57 = vector.shape_cast %56 : vector<1x16x8xbf16> to vector<16x8xbf16>
    %cst_67 = arith.constant dense<0.000000e+00> : vector<256x8xf32>
    %58 = tpu.matmul %55, %57, %cst_67 {dimension_numbers = #tpu.dot_dimension_numbers<[1], [0], [0], [1], [0, 0, 1, 1], [], []>} : vector<256x16xbf16>, vector<16x8xbf16>, vector<256x8xf32> -> vector<256x8xf32>
    %59 = arith.addf %53, %58 : vector<256x8xf32>
    %c0_68 = arith.constant 0 : index
    %c0_69 = arith.constant 0 : index
    %60 = vector.load %arg3[%c0_68, %c0_69] : memref<1x8xf32, #tpu.memory_space<vmem>>, vector<1x8xf32>
    %61 = vector.broadcast %60 : vector<1x8xf32> to vector<256x8xf32>
    %62 = arith.addf %59, %61 : vector<256x8xf32>
    %63 = arith.negf %62 : vector<256x8xf32>
    %64 = math.exp %63 : vector<256x8xf32>
    %cst_70 = arith.constant 1.000000e+00 : f32
    %65 = vector.broadcast %cst_70 : f32 to vector<256x8xf32>
    %66 = arith.addf %65, %64 : vector<256x8xf32>
    %67 = arith.divf %65, %66 : vector<256x8xf32>
    %68 = arith.mulf %62, %67 : vector<256x8xf32>
    %69 = vector.shape_cast %68 : vector<256x8xf32> to vector<16x16x8xf32>
    %70 = arith.truncf %69 : vector<16x16x8xf32> to vector<16x16x8xbf16>
    %c1_71 = arith.constant 1 : index
    %c1_72 = arith.constant 1 : index
    %c0_73 = arith.constant 0 : index
    %71 = vector.load %arg8[%c1_71, %c1_72, %c0_73] : memref<18x18x8xbf16, #tpu.memory_space<vmem>>, vector<16x16x8xbf16>
    tpu.vector_store %arg8[%c1_71, %c1_72, %c0_73], %70 {strides = array<i32>} : memref<18x18x8xbf16, #tpu.memory_space<vmem>>, vector<16x16x8xbf16>,
    %c0_74 = arith.constant 0 : index
    %c0_75 = arith.constant 0 : index
    %c0_76 = arith.constant 0 : index
    %72 = vector.load %arg8[%c0_74, %c0_75, %c0_76] : memref<18x18x8xbf16, #tpu.memory_space<vmem>>, vector<16x16x8xbf16>
    %73 = vector.shape_cast %72 : vector<16x16x8xbf16> to vector<256x8xbf16>
    %c0_77 = arith.constant 0 : index
    %c0_78 = arith.constant 0 : index
    %c0_79 = arith.constant 0 : index
    %74 = vector.load %arg4[%c0_77, %c0_78, %c0_79] : memref<9x8x16xbf16, #tpu.memory_space<vmem>>, vector<1x8x16xbf16>
    %75 = vector.shape_cast %74 : vector<1x8x16xbf16> to vector<8x16xbf16>
    %cst_80 = arith.constant dense<0.000000e+00> : vector<256x16xf32>
    %76 = tpu.matmul %73, %75, %cst_80 {dimension_numbers = #tpu.dot_dimension_numbers<[1], [0], [0], [1], [0, 0, 1, 1], [], []>} : vector<256x8xbf16>, vector<8x16xbf16>, vector<256x16xf32> -> vector<256x16xf32>
    %c0_81 = arith.constant 0 : index
    %c1_82 = arith.constant 1 : index
    %c0_83 = arith.constant 0 : index
    %77 = vector.load %arg8[%c0_81, %c1_82, %c0_83] : memref<18x18x8xbf16, #tpu.memory_space<vmem>>, vector<16x16x8xbf16>
    %78 = vector.shape_cast %77 : vector<16x16x8xbf16> to vector<256x8xbf16>
    %c1_84 = arith.constant 1 : index
    %c0_85 = arith.constant 0 : index
    %c0_86 = arith.constant 0 : index
    %79 = vector.load %arg4[%c1_84, %c0_85, %c0_86] : memref<9x8x16xbf16, #tpu.memory_space<vmem>>, vector<1x8x16xbf16>
    %80 = vector.shape_cast %79 : vector<1x8x16xbf16> to vector<8x16xbf16>
    %cst_87 = arith.constant dense<0.000000e+00> : vector<256x16xf32>
    %81 = tpu.matmul %78, %80, %cst_87 {dimension_numbers = #tpu.dot_dimension_numbers<[1], [0], [0], [1], [0, 0, 1, 1], [], []>} : vector<256x8xbf16>, vector<8x16xbf16>, vector<256x16xf32> -> vector<256x16xf32>
    %82 = arith.addf %76, %81 : vector<256x16xf32>
    %c0_88 = arith.constant 0 : index
    %c2_89 = arith.constant 2 : index
    %c0_90 = arith.constant 0 : index
    %83 = vector.load %arg8[%c0_88, %c2_89, %c0_90] : memref<18x18x8xbf16, #tpu.memory_space<vmem>>, vector<16x16x8xbf16>
    %84 = vector.shape_cast %83 : vector<16x16x8xbf16> to vector<256x8xbf16>
    %c2_91 = arith.constant 2 : index
    %c0_92 = arith.constant 0 : index
    %c0_93 = arith.constant 0 : index
    %85 = vector.load %arg4[%c2_91, %c0_92, %c0_93] : memref<9x8x16xbf16, #tpu.memory_space<vmem>>, vector<1x8x16xbf16>
    %86 = vector.shape_cast %85 : vector<1x8x16xbf16> to vector<8x16xbf16>
    %cst_94 = arith.constant dense<0.000000e+00> : vector<256x16xf32>
    %87 = tpu.matmul %84, %86, %cst_94 {dimension_numbers = #tpu.dot_dimension_numbers<[1], [0], [0], [1], [0, 0, 1, 1], [], []>} : vector<256x8xbf16>, vector<8x16xbf16>, vector<256x16xf32> -> vector<256x16xf32>
    %88 = arith.addf %82, %87 : vector<256x16xf32>
    %c1_95 = arith.constant 1 : index
    %c0_96 = arith.constant 0 : index
    %c0_97 = arith.constant 0 : index
    %89 = vector.load %arg8[%c1_95, %c0_96, %c0_97] : memref<18x18x8xbf16, #tpu.memory_space<vmem>>, vector<16x16x8xbf16>
    %90 = vector.shape_cast %89 : vector<16x16x8xbf16> to vector<256x8xbf16>
    %c3_98 = arith.constant 3 : index
    %c0_99 = arith.constant 0 : index
    %c0_100 = arith.constant 0 : index
    %91 = vector.load %arg4[%c3_98, %c0_99, %c0_100] : memref<9x8x16xbf16, #tpu.memory_space<vmem>>, vector<1x8x16xbf16>
    %92 = vector.shape_cast %91 : vector<1x8x16xbf16> to vector<8x16xbf16>
    %cst_101 = arith.constant dense<0.000000e+00> : vector<256x16xf32>
    %93 = tpu.matmul %90, %92, %cst_101 {dimension_numbers = #tpu.dot_dimension_numbers<[1], [0], [0], [1], [0, 0, 1, 1], [], []>} : vector<256x8xbf16>, vector<8x16xbf16>, vector<256x16xf32> -> vector<256x16xf32>
    %94 = arith.addf %88, %93 : vector<256x16xf32>
    %c1_102 = arith.constant 1 : index
    %c1_103 = arith.constant 1 : index
    %c0_104 = arith.constant 0 : index
    %95 = vector.load %arg8[%c1_102, %c1_103, %c0_104] : memref<18x18x8xbf16, #tpu.memory_space<vmem>>, vector<16x16x8xbf16>
    %96 = vector.shape_cast %95 : vector<16x16x8xbf16> to vector<256x8xbf16>
    %c4_105 = arith.constant 4 : index
    %c0_106 = arith.constant 0 : index
    %c0_107 = arith.constant 0 : index
    %97 = vector.load %arg4[%c4_105, %c0_106, %c0_107] : memref<9x8x16xbf16, #tpu.memory_space<vmem>>, vector<1x8x16xbf16>
    %98 = vector.shape_cast %97 : vector<1x8x16xbf16> to vector<8x16xbf16>
    %cst_108 = arith.constant dense<0.000000e+00> : vector<256x16xf32>
    %99 = tpu.matmul %96, %98, %cst_108 {dimension_numbers = #tpu.dot_dimension_numbers<[1], [0], [0], [1], [0, 0, 1, 1], [], []>} : vector<256x8xbf16>, vector<8x16xbf16>, vector<256x16xf32> -> vector<256x16xf32>
    %100 = arith.addf %94, %99 : vector<256x16xf32>
    %c1_109 = arith.constant 1 : index
    %c2_110 = arith.constant 2 : index
    %c0_111 = arith.constant 0 : index
    %101 = vector.load %arg8[%c1_109, %c2_110, %c0_111] : memref<18x18x8xbf16, #tpu.memory_space<vmem>>, vector<16x16x8xbf16>
    %102 = vector.shape_cast %101 : vector<16x16x8xbf16> to vector<256x8xbf16>
    %c5_112 = arith.constant 5 : index
    %c0_113 = arith.constant 0 : index
    %c0_114 = arith.constant 0 : index
    %103 = vector.load %arg4[%c5_112, %c0_113, %c0_114] : memref<9x8x16xbf16, #tpu.memory_space<vmem>>, vector<1x8x16xbf16>
    %104 = vector.shape_cast %103 : vector<1x8x16xbf16> to vector<8x16xbf16>
    %cst_115 = arith.constant dense<0.000000e+00> : vector<256x16xf32>
    %105 = tpu.matmul %102, %104, %cst_115 {dimension_numbers = #tpu.dot_dimension_numbers<[1], [0], [0], [1], [0, 0, 1, 1], [], []>} : vector<256x8xbf16>, vector<8x16xbf16>, vector<256x16xf32> -> vector<256x16xf32>
    %106 = arith.addf %100, %105 : vector<256x16xf32>
    %c2_116 = arith.constant 2 : index
    %c0_117 = arith.constant 0 : index
    %c0_118 = arith.constant 0 : index
    %107 = vector.load %arg8[%c2_116, %c0_117, %c0_118] : memref<18x18x8xbf16, #tpu.memory_space<vmem>>, vector<16x16x8xbf16>
    %108 = vector.shape_cast %107 : vector<16x16x8xbf16> to vector<256x8xbf16>
    %c6_119 = arith.constant 6 : index
    %c0_120 = arith.constant 0 : index
    %c0_121 = arith.constant 0 : index
    %109 = vector.load %arg4[%c6_119, %c0_120, %c0_121] : memref<9x8x16xbf16, #tpu.memory_space<vmem>>, vector<1x8x16xbf16>
    %110 = vector.shape_cast %109 : vector<1x8x16xbf16> to vector<8x16xbf16>
    %cst_122 = arith.constant dense<0.000000e+00> : vector<256x16xf32>
    %111 = tpu.matmul %108, %110, %cst_122 {dimension_numbers = #tpu.dot_dimension_numbers<[1], [0], [0], [1], [0, 0, 1, 1], [], []>} : vector<256x8xbf16>, vector<8x16xbf16>, vector<256x16xf32> -> vector<256x16xf32>
    %112 = arith.addf %106, %111 : vector<256x16xf32>
    %c2_123 = arith.constant 2 : index
    %c1_124 = arith.constant 1 : index
    %c0_125 = arith.constant 0 : index
    %113 = vector.load %arg8[%c2_123, %c1_124, %c0_125] : memref<18x18x8xbf16, #tpu.memory_space<vmem>>, vector<16x16x8xbf16>
    %114 = vector.shape_cast %113 : vector<16x16x8xbf16> to vector<256x8xbf16>
    %c7_126 = arith.constant 7 : index
    %c0_127 = arith.constant 0 : index
    %c0_128 = arith.constant 0 : index
    %115 = vector.load %arg4[%c7_126, %c0_127, %c0_128] : memref<9x8x16xbf16, #tpu.memory_space<vmem>>, vector<1x8x16xbf16>
    %116 = vector.shape_cast %115 : vector<1x8x16xbf16> to vector<8x16xbf16>
    %cst_129 = arith.constant dense<0.000000e+00> : vector<256x16xf32>
    %117 = tpu.matmul %114, %116, %cst_129 {dimension_numbers = #tpu.dot_dimension_numbers<[1], [0], [0], [1], [0, 0, 1, 1], [], []>} : vector<256x8xbf16>, vector<8x16xbf16>, vector<256x16xf32> -> vector<256x16xf32>
    %118 = arith.addf %112, %117 : vector<256x16xf32>
    %c2_130 = arith.constant 2 : index
    %c2_131 = arith.constant 2 : index
    %c0_132 = arith.constant 0 : index
    %119 = vector.load %arg8[%c2_130, %c2_131, %c0_132] : memref<18x18x8xbf16, #tpu.memory_space<vmem>>, vector<16x16x8xbf16>
    %120 = vector.shape_cast %119 : vector<16x16x8xbf16> to vector<256x8xbf16>
    %c8_133 = arith.constant 8 : index
    %c0_134 = arith.constant 0 : index
    %c0_135 = arith.constant 0 : index
    %121 = vector.load %arg4[%c8_133, %c0_134, %c0_135] : memref<9x8x16xbf16, #tpu.memory_space<vmem>>, vector<1x8x16xbf16>
    %122 = vector.shape_cast %121 : vector<1x8x16xbf16> to vector<8x16xbf16>
    %cst_136 = arith.constant dense<0.000000e+00> : vector<256x16xf32>
    %123 = tpu.matmul %120, %122, %cst_136 {dimension_numbers = #tpu.dot_dimension_numbers<[1], [0], [0], [1], [0, 0, 1, 1], [], []>} : vector<256x8xbf16>, vector<8x16xbf16>, vector<256x16xf32> -> vector<256x16xf32>
    %124 = arith.addf %118, %123 : vector<256x16xf32>
    %c0_137 = arith.constant 0 : index
    %c0_138 = arith.constant 0 : index
    %125 = vector.load %arg5[%c0_137, %c0_138] : memref<1x16xf32, #tpu.memory_space<vmem>>, vector<1x16xf32>
    %126 = vector.broadcast %125 : vector<1x16xf32> to vector<256x16xf32>
    %127 = arith.addf %124, %126 : vector<256x16xf32>
    %128 = arith.negf %127 : vector<256x16xf32>
    %129 = math.exp %128 : vector<256x16xf32>
    %cst_139 = arith.constant 1.000000e+00 : f32
    %130 = vector.broadcast %cst_139 : f32 to vector<256x16xf32>
    %131 = arith.addf %130, %129 : vector<256x16xf32>
    %132 = arith.divf %130, %131 : vector<256x16xf32>
    %133 = arith.mulf %127, %132 : vector<256x16xf32>
    %c0_140 = arith.constant 0 : index
    %c0_141 = arith.constant 0 : index
    %c0_142 = arith.constant 0 : index
    %c0_143 = arith.constant 0 : index
    %134 = vector.load %arg1[%c0_140, %c0_141, %c0_142, %c0_143] : memref<1x16x16x16xbf16, #tpu.memory_space<vmem>>, vector<1x16x16x16xbf16>
    %135 = vector.shape_cast %134 : vector<1x16x16x16xbf16> to vector<16x16x16xbf16>
    %136 = vector.shape_cast %135 : vector<16x16x16xbf16> to vector<256x16xbf16>
    %137 = arith.extf %136 : vector<256x16xbf16> to vector<256x16xf32>
    %138 = arith.addf %133, %137 : vector<256x16xf32>
    %139 = vector.shape_cast %138 : vector<256x16xf32> to vector<1x16x16x16xf32>
    %c0_144 = arith.constant 0 : index
    %c0_145 = arith.constant 0 : index
    %c0_146 = arith.constant 0 : index
    %c0_147 = arith.constant 0 : index
    %140 = vector.load %arg6[%c0_144, %c0_145, %c0_146, %c0_147] : memref<1x16x16x16xf32, #tpu.memory_space<vmem>>, vector<1x16x16x16xf32>
    tpu.vector_store %arg6[%c0_144, %c0_145, %c0_146, %c0_147], %139 {strides = array<i32>} : memref<1x16x16x16xf32, #tpu.memory_space<vmem>>, vector<1x16x16x16xf32>,
    return
  }
  func.func @transform_0(%arg0: i32) -> (i32, i32, i32, i32) {
    %c0_i32 = arith.constant 0 : i32
    %c0_i32_0 = arith.constant 0 : i32
    %c0_i32_1 = arith.constant 0 : i32
    %c0_i32_2 = arith.constant 0 : i32
    return %arg0, %c0_i32, %c0_i32_0, %c0_i32_1 : i32, i32, i32, i32
  }
  func.func @transform_1(%arg0: i32) -> (i32, i32, i32) {
    %c0_i32 = arith.constant 0 : i32
    %c0_i32_0 = arith.constant 0 : i32
    %c0_i32_1 = arith.constant 0 : i32
    %c0_i32_2 = arith.constant 0 : i32
    return %c0_i32, %c0_i32_0, %c0_i32_1 : i32, i32, i32
  }
  func.func @transform_2(%arg0: i32) -> (i32, i32) {
    %c0_i32 = arith.constant 0 : i32
    %c0_i32_0 = arith.constant 0 : i32
    %c0_i32_1 = arith.constant 0 : i32
    return %c0_i32, %c0_i32_0 : i32, i32
  }
  func.func @transform_3(%arg0: i32) -> (i32, i32, i32) {
    %c0_i32 = arith.constant 0 : i32
    %c0_i32_0 = arith.constant 0 : i32
    %c0_i32_1 = arith.constant 0 : i32
    %c0_i32_2 = arith.constant 0 : i32
    return %c0_i32, %c0_i32_0, %c0_i32_1 : i32, i32, i32
  }
  func.func @transform_4(%arg0: i32) -> (i32, i32) {
    %c0_i32 = arith.constant 0 : i32
    %c0_i32_0 = arith.constant 0 : i32
    %c0_i32_1 = arith.constant 0 : i32
    return %c0_i32, %c0_i32_0 : i32, i32
  }
  func.func @transform_5(%arg0: i32) -> (i32, i32, i32, i32) {
    %c0_i32 = arith.constant 0 : i32
    %c0_i32_0 = arith.constant 0 : i32
    %c0_i32_1 = arith.constant 0 : i32
    %c0_i32_2 = arith.constant 0 : i32
    return %arg0, %c0_i32, %c0_i32_0, %c0_i32_1 : i32, i32, i32, i32
  }
}

</mosaic_0001>

<llo_original>
// kernel: c2f_bottleneck_forward.1
$region0: #{c2f_bottleneck_forward.1}
  #allocation0 [shape = 'u32[]', space=smem, size = 0x4, offset = 0x4, fixed_abs, tag = 'smem constant byte address 0x4 - core index']
  #allocation1 [shape = 'u32[72,128]{1,0:T(1,128)}', space=vmem, size = 0x9000, scoped, tag = 'internal scratch']
  #allocation2 [shape = 'bf16[18,18,16]{2,1,0:T(8,128)(2,1)}', space=vmem, size = 0x1b000, scoped, tag = 'scratch operand']
  #allocation3 [shape = 'bf16[18,18,8]{2,1,0:T(8,128)(2,1)}', space=vmem, size = 0x1b000, scoped, tag = 'scratch operand']
  %s0 = inlined_call_operand.vmem [shape: bf16[2,16,16,16], index: 0, kind: input, shape index: {}]
  %s1 = inlined_call_operand.vmem [shape: bf16[9,16,8], index: 1, kind: input, shape index: {}]
  %s2 = inlined_call_operand.vmem [shape: f32[1,8], index: 2, kind: input, shape index: {}]
  %s3 = inlined_call_operand.vmem [shape: bf16[9,8,16], index: 3, kind: input, shape index: {}]
  %s4 = inlined_call_operand.vmem [shape: f32[1,16], index: 4, kind: input, shape index: {}]
  %s5 = inlined_call_operand.vmem [shape: f32[2,16,16,16], index: 5, kind: output, shape index: {}]
  %s6 = sld [smem:[#allocation0]]
  $region53: #{c2f_bottleneck_forward.1} parent=0
    _
  %s8 = ssub.s32 1, %s6
  %s9 = scalar_select 0, %s8, %s6
  loop: start=0, step=1, limit=4
  $region2: #{c2f_bottleneck_forward.1} parent=0 // loop_pre_header
    _
  $region3: #{c2f_bottleneck_forward.1} parent=0 // loop_header
    %s11 = sphi 0, %s15
    %p12 = scmp.ge.s32.totalorder %s11, 4
    %s21 = sphi 0, %s23
    %s24 = sphi 0, %s21
    %s25 = sphi 0, %s24
    %s41 = sphi 0, %s25
    %s45 = sphi 0, %s45
    %s47 = sphi 0, %s45
    %s48 = sphi 0, %s47
    %s62 = sphi 0, %s48
    %s66 = sphi 0, %s66
    %s68 = sphi 0, %s66
    %s69 = sphi 0, %s68
    %s83 = sphi 0, %s69
    %s87 = sphi 0, %s87
    %s89 = sphi 0, %s87
    %s90 = sphi 0, %s89
    %s104 = sphi 0, %s90
    %s108 = sphi 0, %s108
    %s110 = sphi 0, %s108
    %s111 = sphi 0, %s110
    %s125 = sphi 0, %s111
    %s131 = sphi 0, %s133
    %s134 = sphi 0, %s131
    %s135 = sphi 0, %s134
    %s151 = sphi 0, %s135
  $region4: #{c2f_bottleneck_forward.1} parent=0 // loop_header_branch
    %14 = sbr.rel (%p12) target = $region8
  $region5: #{c2f_bottleneck_forward.1} parent=0 // loop_body
    %s16 = ssub.s32 %s11, 1
    %s17 = ssub.s32 %s11, 2
    %s18 = sadd.s32 %s11, 1
    %s19 = ssub.s32 %s11, %s18
    %p20 = scmp.eq.s32.totalorder %s19, 0
    %s22 = sadd.s32 %s21, 1
    %s23 = scalar_select %p20, %s21, %s22
    %p26 = pneg %p20
    %p27 = scmp.eq.s32.totalorder %s11, 1
    %p28 = por %p26, %p27
    %p29 = scmp.ne.s32.totalorder %s21, %s24
    %p30 = scmp.eq.s32.totalorder %s11, 0
    %p31 = por %p29, %p30
    %p32 = scmp.ne.s32.totalorder %s21, %s24
    %p33 = scmp.eq.s32.totalorder %s16, 1
    %p34 = por %p32, %p33
    %p35 = scmp.ne.s32.totalorder %s24, %s25
    %p36 = scmp.eq.s32.totalorder %s16, 0
    %p37 = por %p35, %p36
    %p38 = scmp.ne.s32.totalorder %s24, %s25
    %p39 = scmp.eq.s32.totalorder %s17, 1
    %p40 = por %p38, %p39
    %p42 = scmp.ne.s32.totalorder %s25, %s41
    %p43 = scmp.eq.s32.totalorder %s17, 0
    %p44 = por %p42, %p43
    %s46 = sadd.s32 %s45, 1
    %p49 = scmp.eq.s32.totalorder %s11, 1
    %p50 = scmp.ne.s32.totalorder %s45, %s47
    %p51 = scmp.eq.s32.totalorder %s11, 0
    %p52 = por %p50, %p51
    %p53 = scmp.ne.s32.totalorder %s45, %s47
    %p54 = scmp.eq.s32.totalorder %s16, 1
    %p55 = por %p53, %p54
    %p56 = scmp.ne.s32.totalorder %s47, %s48
    %p57 = scmp.eq.s32.totalorder %s16, 0
    %p58 = por %p56, %p57
    %p59 = scmp.ne.s32.totalorder %s47, %s48
    %p60 = scmp.eq.s32.totalorder %s17, 1
    %p61 = por %p59, %p60
    %p63 = scmp.ne.s32.totalorder %s48, %s62
    %p64 = scmp.eq.s32.totalorder %s17, 0
    %p65 = por %p63, %p64
    %s67 = sadd.s32 %s66, 1
    %p70 = scmp.eq.s32.totalorder %s11, 1
    %p71 = scmp.ne.s32.totalorder %s66, %s68
    %p72 = scmp.eq.s32.totalorder %s11, 0
    %p73 = por %p71, %p72
    %p74 = scmp.ne.s32.totalorder %s66, %s68
    %p75 = scmp.eq.s32.totalorder %s16, 1
    %p76 = por %p74, %p75
    %p77 = scmp.ne.s32.totalorder %s68, %s69
    %p78 = scmp.eq.s32.totalorder %s16, 0
    %p79 = por %p77, %p78
    %p80 = scmp.ne.s32.totalorder %s68, %s69
    %p81 = scmp.eq.s32.totalorder %s17, 1
    %p82 = por %p80, %p81
    %p84 = scmp.ne.s32.totalorder %s69, %s83
    %p85 = scmp.eq.s32.totalorder %s17, 0
    %p86 = por %p84, %p85
    %s88 = sadd.s32 %s87, 1
    %p91 = scmp.eq.s32.totalorder %s11, 1
    %p92 = scmp.ne.s32.totalorder %s87, %s89
    %p93 = scmp.eq.s32.totalorder %s11, 0
    %p94 = por %p92, %p93
    %p95 = scmp.ne.s32.totalorder %s87, %s89
    %p96 = scmp.eq.s32.totalorder %s16, 1
    %p97 = por %p95, %p96
    %p98 = scmp.ne.s32.totalorder %s89, %s90
    %p99 = scmp.eq.s32.totalorder %s16, 0
    %p100 = por %p98, %p99
    %p101 = scmp.ne.s32.totalorder %s89, %s90
    %p102 = scmp.eq.s32.totalorder %s17, 1
    %p103 = por %p101, %p102
    %p105 = scmp.ne.s32.totalorder %s90, %s104
    %p106 = scmp.eq.s32.totalorder %s17, 0
    %p107 = por %p105, %p106
    %s109 = sadd.s32 %s108, 1
    %p112 = scmp.eq.s32.totalorder %s11, 1
    %p113 = scmp.ne.s32.totalorder %s108, %s110
    %p114 = scmp.eq.s32.totalorder %s11, 0
    %p115 = por %p113, %p114
    %p116 = scmp.ne.s32.totalorder %s108, %s110
    %p117 = scmp.eq.s32.totalorder %s16, 1
    %p118 = por %p116, %p117
    %p119 = scmp.ne.s32.totalorder %s110, %s111
    %p120 = scmp.eq.s32.totalorder %s16, 0
    %p121 = por %p119, %p120
    %p122 = scmp.ne.s32.totalorder %s110, %s111
    %p123 = scmp.eq.s32.totalorder %s17, 1
    %p124 = por %p122, %p123
    %p126 = scmp.ne.s32.totalorder %s111, %s125
    %p127 = scmp.eq.s32.totalorder %s17, 0
    %p128 = por %p126, %p127
    %s129 = ssub.s32 %s11, %s18
    %p130 = scmp.eq.s32.totalorder %s129, 0
    %s132 = sadd.s32 %s131, 1
    %s133 = scalar_select %p130, %s131, %s132
    %p136 = pneg %p130
    %p137 = scmp.eq.s32.totalorder %s11, 1
    %p138 = por %p136, %p137
    %p139 = scmp.ne.s32.totalorder %s131, %s134
    %p140 = scmp.eq.s32.totalorder %s11, 0
    %p141 = por %p139, %p140
    %p142 = scmp.ne.s32.totalorder %s131, %s134
    %p143 = scmp.eq.s32.totalorder %s16, 1
    %p144 = por %p142, %p143
    %p145 = scmp.ne.s32.totalorder %s134, %s135
    %p146 = scmp.eq.s32.totalorder %s16, 0
    %p147 = por %p145, %p146
    %p148 = scmp.ne.s32.totalorder %s134, %s135
    %p149 = scmp.eq.s32.totalorder %s17, 1
    %p150 = por %p148, %p149
    %p152 = scmp.ne.s32.totalorder %s135, %s151
    %p153 = scmp.eq.s32.totalorder %s17, 0
    %p154 = por %p152, %p153
    %p155 = scmp.le.s32.totalorder 1, %s11
    %p156 = scmp.lt.s32.totalorder %s11, 3
    %p157 = pnand %p155, %p156
    %p158 = pneg %p157
    // Predicated region
    $region9: #{c2f_bottleneck_forward.1} parent=5 // pred_check
      _
    $region10: #{c2f_bottleneck_forward.1} parent=5 // pred_check_branch
      %160 = sbr.rel (%p157) target = $region12
    $region11: #{c2f_bottleneck_forward.1} parent=5 // pred_region
      %s161 = ssub.s32 %s11, 1
      // Predicated region
      $region13: #{c2f_bottleneck_forward.1} parent=11 // pred_check
        %p162 = pneg %p58
      $region14: #{c2f_bottleneck_forward.1} parent=11 // pred_check_branch
        %164 = sbr.rel (%p162) target = $region16
      $region15: #{c2f_bottleneck_forward.1} parent=11 // pred_region
        _
      $region16: #{c2f_bottleneck_forward.1} parent=11 // pred_fallthru
        _
      // Predicated region
      $region17: #{c2f_bottleneck_forward.1} parent=11 // pred_check
        %p165 = pneg %p79
      $region18: #{c2f_bottleneck_forward.1} parent=11 // pred_check_branch
        %167 = sbr.rel (%p165) target = $region20
      $region19: #{c2f_bottleneck_forward.1} parent=11 // pred_region
        _
      $region20: #{c2f_bottleneck_forward.1} parent=11 // pred_fallthru
        _
      // Predicated region
      $region21: #{c2f_bottleneck_forward.1} parent=11 // pred_check
        %p168 = pneg %p100
      $region22: #{c2f_bottleneck_forward.1} parent=11 // pred_check_branch
        %170 = sbr.rel (%p168) target = $region24
      $region23: #{c2f_bottleneck_forward.1} parent=11 // pred_region
        _
      $region24: #{c2f_bottleneck_forward.1} parent=11 // pred_fallthru
        _
      // Predicated region
      $region25: #{c2f_bottleneck_forward.1} parent=11 // pred_check
        %p171 = pneg %p121
      $region26: #{c2f_bottleneck_forward.1} parent=11 // pred_check_branch
        %173 = sbr.rel (%p171) target = $region28
      $region27: #{c2f_bottleneck_forward.1} parent=11 // pred_region
        _
      $region28: #{c2f_bottleneck_forward.1} parent=11 // pred_fallthru
        _
    $region12: #{c2f_bottleneck_forward.1} parent=5 // pred_fallthru
      _
    %p174 = scmp.lt.s32.totalorder %s11, 2
    // Predicated region
    $region29: #{c2f_bottleneck_forward.1} parent=5 // pred_check
      %p175 = pneg %p174
    $region30: #{c2f_bottleneck_forward.1} parent=5 // pred_check_branch
      %177 = sbr.rel (%p175) target = $region32
    $region31: #{c2f_bottleneck_forward.1} parent=5 // pred_region
      // Predicated region
      $region33: #{c2f_bottleneck_forward.1} parent=31 // pred_check
        %p178 = pneg %p31
      $region34: #{c2f_bottleneck_forward.1} parent=31 // pred_check_branch
        %180 = sbr.rel (%p178) target = $region36
      $region35: #{c2f_bottleneck_forward.1} parent=31 // pred_region
        %p181 = scmp.lt.s32.totalorder %s11, 1
        %s182 = scalar_select %p181, %s11, 1
        %s183 = smul.addr %s182, 32
        %s184 = smul.addr %s183, 4
        %s185 = scalar_lea.vmem %s0, %s184
      $region36: #{c2f_bottleneck_forward.1} parent=31 // pred_fallthru
        _
    $region32: #{c2f_bottleneck_forward.1} parent=5 // pred_fallthru
      _
    %p186 = scmp.le.s32.totalorder 1, %s11
    %p187 = scmp.lt.s32.totalorder %s11, 3
    %p188 = pnand %p186, %p187
    %p189 = pneg %p188
    // Predicated region
    $region37: #{c2f_bottleneck_forward.1} parent=5 // pred_check
      _
    $region38: #{c2f_bottleneck_forward.1} parent=5 // pred_check_branch
      %191 = sbr.rel (%p188) target = $region40
    $region39: #{c2f_bottleneck_forward.1} parent=5 // pred_region
      %s192 = ssub.s32 %s11, 1
      %p193 = scmp.lt.s32.totalorder %s16, 1
      %s194 = scalar_select %p193, %s16, 1
      %s195 = smul.addr %s194, 32
      %s196 = smul.addr %s195, 4
      %s197 = scalar_lea.vmem %s0, %s196
      %p198 = pneg %p37
      %p199 = pneg %p34
      %p200 = pneg %p58
      %p201 = pneg %p55
      %p202 = pneg %p79
      %p203 = pneg %p76
      %p204 = pneg %p100
      %p205 = pneg %p97
      %p206 = pneg %p121
      %p207 = pneg %p118
      %p208 = pneg %p147
      %p209 = pneg %p144
      %p210 = scmp.lt.s32.totalorder %s16, 1
      %s211 = scalar_select %p210, %s16, 1
      %s212 = smul.addr %s211, 32
      %s213 = smul.addr %s212, 8
      %s214 = scalar_lea.vmem %s5, %s213
      %p215 = scmp.lt.s32.totalorder %s16, 1
      %s216 = scalar_select %p215, %s16, 1
      %s217 = smul.addr %s216, 32
      %s218 = smul.addr %s217, 4
      %s219 = scalar_lea.vmem %s0, %s218
      %p220 = scmp.lt.s32.totalorder %s16, 1
      %s221 = scalar_select %p220, %s16, 1
      %s222 = smul.addr %s221, 32
      %s223 = smul.addr %s222, 8
      %s224 = scalar_lea.vmem %s5, %s223
      %vm226 = vcmask 125952
      %227 = vst.msk [vmem:[#allocation2] sm:$0xf] %vm226, 0
      %228 = vst.msk [vmem:[#allocation2 + $0x4] sm:$0xf] %vm226, 0
      %vm229 = vcmask 122880
      %230 = vst.msk [vmem:[#allocation2 + $0x8] sm:$0x1] %vm229, 0
      %231 = vst.msk [vmem:[#allocation2 + $0xc] sm:$0xf] %vm226, 0
      %232 = vst.msk [vmem:[#allocation2 + $0x10] sm:$0xf] %vm226, 0
      %233 = vst.msk [vmem:[#allocation2 + $0x14] sm:$0x1] %vm229, 0
      %234 = vst.msk [vmem:[#allocation2 + $0x18] sm:$0xf] %vm226, 0
      %235 = vst.msk [vmem:[#allocation2 + $0x1c] sm:$0xf] %vm226, 0
      %236 = vst.msk [vmem:[#allocation2 + $0x20] sm:$0x1] %vm229, 0
      %237 = vst.msk [vmem:[#allocation2 + $0x24] sm:$0xf] %vm226, 0
      %238 = vst.msk [vmem:[#allocation2 + $0x28] sm:$0xf] %vm226, 0
      %239 = vst.msk [vmem:[#allocation2 + $0x2c] sm:$0x1] %vm229, 0
      %240 = vst.msk [vmem:[#allocation2 + $0x30] sm:$0xf] %vm226, 0
      %241 = vst.msk [vmem:[#allocation2 + $0x34] sm:$0xf] %vm226, 0
      %242 = vst.msk [vmem:[#allocation2 + $0x38] sm:$0x1] %vm229, 0
      %243 = vst.msk [vmem:[#allocation2 + $0x3c] sm:$0xf] %vm226, 0
      %244 = vst.msk [vmem:[#allocation2 + $0x40] sm:$0xf] %vm226, 0
      %245 = vst.msk [vmem:[#allocation2 + $0x44] sm:$0x1] %vm229, 0
      %246 = vst.msk [vmem:[#allocation2 + $0x48] sm:$0xf] %vm226, 0
      %247 = vst.msk [vmem:[#allocation2 + $0x4c] sm:$0xf] %vm226, 0
      %248 = vst.msk [vmem:[#allocation2 + $0x50] sm:$0x1] %vm229, 0
      %249 = vst.msk [vmem:[#allocation2 + $0x54] sm:$0xf] %vm226, 0
      %250 = vst.msk [vmem:[#allocation2 + $0x58] sm:$0xf] %vm226, 0
      %251 = vst.msk [vmem:[#allocation2 + $0x5c] sm:$0x1] %vm229, 0
      %252 = vst.msk [vmem:[#allocation2 + $0x60] sm:$0xf] %vm226, 0
      %253 = vst.msk [vmem:[#allocation2 + $0x64] sm:$0xf] %vm226, 0
      %254 = vst.msk [vmem:[#allocation2 + $0x68] sm:$0x1] %vm229, 0
      %255 = vst.msk [vmem:[#allocation2 + $0x6c] sm:$0xf] %vm226, 0
      %256 = vst.msk [vmem:[#allocation2 + $0x70] sm:$0xf] %vm226, 0
      %257 = vst.msk [vmem:[#allocation2 + $0x74] sm:$0x1] %vm229, 0
      %258 = vst.msk [vmem:[#allocation2 + $0x78] sm:$0xf] %vm226, 0
      %259 = vst.msk [vmem:[#allocation2 + $0x7c] sm:$0xf] %vm226, 0
      %260 = vst.msk [vmem:[#allocation2 + $0x80] sm:$0x1] %vm229, 0
      %261 = vst.msk [vmem:[#allocation2 + $0x84] sm:$0xf] %vm226, 0
      %262 = vst.msk [vmem:[#allocation2 + $0x88] sm:$0xf] %vm226, 0
      %263 = vst.msk [vmem:[#allocation2 + $0x8c] sm:$0x1] %vm229, 0
      %264 = vst.msk [vmem:[#allocation2 + $0x90] sm:$0xf] %vm226, 0
      %265 = vst.msk [vmem:[#allocation2 + $0x94] sm:$0xf] %vm226, 0
      %266 = vst.msk [vmem:[#allocation2 + $0x98] sm:$0x1] %vm229, 0
      %267 = vst.msk [vmem:[#allocation2 + $0x9c] sm:$0xf] %vm226, 0
      %268 = vst.msk [vmem:[#allocation2 + $0xa0] sm:$0xf] %vm226, 0
      %269 = vst.msk [vmem:[#allocation2 + $0xa4] sm:$0x1] %vm229, 0
      %270 = vst.msk [vmem:[#allocation2 + $0xa8] sm:$0xf] %vm226, 0
      %271 = vst.msk [vmem:[#allocation2 + $0xac] sm:$0xf] %vm226, 0
      %272 = vst.msk [vmem:[#allocation2 + $0xb0] sm:$0x1] %vm229, 0
      %273 = vst.msk [vmem:[#allocation2 + $0xb4] sm:$0xf] %vm226, 0
      %274 = vst.msk [vmem:[#allocation2 + $0xb8] sm:$0xf] %vm226, 0
      %275 = vst.msk [vmem:[#allocation2 + $0xbc] sm:$0x1] %vm229, 0
      %276 = vst.msk [vmem:[#allocation2 + $0xc0] sm:$0xf] %vm226, 0
      %277 = vst.msk [vmem:[#allocation2 + $0xc4] sm:$0xf] %vm226, 0
      %278 = vst.msk [vmem:[#allocation2 + $0xc8] sm:$0x1] %vm229, 0
      %279 = vst.msk [vmem:[#allocation2 + $0xcc] sm:$0xf] %vm226, 0
      %280 = vst.msk [vmem:[#allocation2 + $0xd0] sm:$0xf] %vm226, 0
      %281 = vst.msk [vmem:[#allocation2 + $0xd4] sm:$0x1] %vm229, 0
      %vm282 = vcmask 60416
      %283 = vst.msk [vmem:[#allocation3] sm:$0xf] %vm282, 0
      %284 = vst.msk [vmem:[#allocation3 + $0x4] sm:$0xf] %vm282, 0
      %vm285 = vcmask 57344
      %286 = vst.msk [vmem:[#allocation3 + $0x8] sm:$0x1] %vm285, 0
      %287 = vst.msk [vmem:[#allocation3 + $0xc] sm:$0xf] %vm282, 0
      %288 = vst.msk [vmem:[#allocation3 + $0x10] sm:$0xf] %vm282, 0
      %289 = vst.msk [vmem:[#allocation3 + $0x14] sm:$0x1] %vm285, 0
      %290 = vst.msk [vmem:[#allocation3 + $0x18] sm:$0xf] %vm282, 0
      %291 = vst.msk [vmem:[#allocation3 + $0x1c] sm:$0xf] %vm282, 0
      %292 = vst.msk [vmem:[#allocation3 + $0x20] sm:$0x1] %vm285, 0
      %293 = vst.msk [vmem:[#allocation3 + $0x24] sm:$0xf] %vm282, 0
      %294 = vst.msk [vmem:[#allocation3 + $0x28] sm:$0xf] %vm282, 0
      %295 = vst.msk [vmem:[#allocation3 + $0x2c] sm:$0x1] %vm285, 0
      %296 = vst.msk [vmem:[#allocation3 + $0x30] sm:$0xf] %vm282, 0
      %297 = vst.msk [vmem:[#allocation3 + $0x34] sm:$0xf] %vm282, 0
      %298 = vst.msk [vmem:[#allocation3 + $0x38] sm:$0x1] %vm285, 0
      %299 = vst.msk [vmem:[#allocation3 + $0x3c] sm:$0xf] %vm282, 0
      %300 = vst.msk [vmem:[#allocation3 + $0x40] sm:$0xf] %vm282, 0
      %301 = vst.msk [vmem:[#allocation3 + $0x44] sm:$0x1] %vm285, 0
      %302 = vst.msk [vmem:[#allocation3 + $0x48] sm:$0xf] %vm282, 0
      %303 = vst.msk [vmem:[#allocation3 + $0x4c] sm:$0xf] %vm282, 0
      %304 = vst.msk [vmem:[#allocation3 + $0x50] sm:$0x1] %vm285, 0
      %305 = vst.msk [vmem:[#allocation3 + $0x54] sm:$0xf] %vm282, 0
      %306 = vst.msk [vmem:[#allocation3 + $0x58] sm:$0xf] %vm282, 0
      %307 = vst.msk [vmem:[#allocation3 + $0x5c] sm:$0x1] %vm285, 0
      %308 = vst.msk [vmem:[#allocation3 + $0x60] sm:$0xf] %vm282, 0
      %309 = vst.msk [vmem:[#allocation3 + $0x64] sm:$0xf] %vm282, 0
      %310 = vst.msk [vmem:[#allocation3 + $0x68] sm:$0x1] %vm285, 0
      %311 = vst.msk [vmem:[#allocation3 + $0x6c] sm:$0xf] %vm282, 0
      %312 = vst.msk [vmem:[#allocation3 + $0x70] sm:$0xf] %vm282, 0
      %313 = vst.msk [vmem:[#allocation3 + $0x74] sm:$0x1] %vm285, 0
      %314 = vst.msk [vmem:[#allocation3 + $0x78] sm:$0xf] %vm282, 0
      %315 = vst.msk [vmem:[#allocation3 + $0x7c] sm:$0xf] %vm282, 0
      %316 = vst.msk [vmem:[#allocation3 + $0x80] sm:$0x1] %vm285, 0
      %317 = vst.msk [vmem:[#allocation3 + $0x84] sm:$0xf] %vm282, 0
      %318 = vst.msk [vmem:[#allocation3 + $0x88] sm:$0xf] %vm282, 0
      %319 = vst.msk [vmem:[#allocation3 + $0x8c] sm:$0x1] %vm285, 0
      %320 = vst.msk [vmem:[#allocation3 + $0x90] sm:$0xf] %vm282, 0
      %321 = vst.msk [vmem:[#allocation3 + $0x94] sm:$0xf] %vm282, 0
      %322 = vst.msk [vmem:[#allocation3 + $0x98] sm:$0x1] %vm285, 0
      %323 = vst.msk [vmem:[#allocation3 + $0x9c] sm:$0xf] %vm282, 0
      %324 = vst.msk [vmem:[#allocation3 + $0xa0] sm:$0xf] %vm282, 0
      %325 = vst.msk [vmem:[#allocation3 + $0xa4] sm:$0x1] %vm285, 0
      %326 = vst.msk [vmem:[#allocation3 + $0xa8] sm:$0xf] %vm282, 0
      %327 = vst.msk [vmem:[#allocation3 + $0xac] sm:$0xf] %vm282, 0
      %328 = vst.msk [vmem:[#allocation3 + $0xb0] sm:$0x1] %vm285, 0
      %329 = vst.msk [vmem:[#allocation3 + $0xb4] sm:$0xf] %vm282, 0
      %330 = vst.msk [vmem:[#allocation3 + $0xb8] sm:$0xf] %vm282, 0
      %331 = vst.msk [vmem:[#allocation3 + $0xbc] sm:$0x1] %vm285, 0
      %332 = vst.msk [vmem:[#allocation3 + $0xc0] sm:$0xf] %vm282, 0
      %333 = vst.msk [vmem:[#allocation3 + $0xc4] sm:$0xf] %vm282, 0
      %334 = vst.msk [vmem:[#allocation3 + $0xc8] sm:$0x1] %vm285, 0
      %335 = vst.msk [vmem:[#allocation3 + $0xcc] sm:$0xf] %vm282, 0
      %336 = vst.msk [vmem:[#allocation3 + $0xd0] sm:$0xf] %vm282, 0
      %337 = vst.msk [vmem:[#allocation3 + $0xd4] sm:$0x1] %vm285, 0
      %v338 = vld [vmem:[%s219] sm:$0xf]
      %v339 = vld [vmem:[%s219 + $0x4] sm:$0xf]
      %v340 = vld [vmem:[%s219 + $0x8] sm:$0xf]
      %v341 = vld [vmem:[%s219 + $0xc] sm:$0xf]
      %v342 = vld [vmem:[%s219 + $0x10] sm:$0xf]
      %v343 = vld [vmem:[%s219 + $0x14] sm:$0xf]
      %v344 = vld [vmem:[%s219 + $0x18] sm:$0xf]
      %v345 = vld [vmem:[%s219 + $0x1c] sm:$0xf]
      %v346 = vld [vmem:[%s219 + $0x20] sm:$0xf]
      %v347 = vld [vmem:[%s219 + $0x24] sm:$0xf]
      %v348 = vld [vmem:[%s219 + $0x28] sm:$0xf]
      %v349 = vld [vmem:[%s219 + $0x2c] sm:$0xf]
      %v350 = vld [vmem:[%s219 + $0x30] sm:$0xf]
      %v351 = vld [vmem:[%s219 + $0x34] sm:$0xf]
      %v352 = vld [vmem:[%s219 + $0x38] sm:$0xf]
      %v353 = vld [vmem:[%s219 + $0x3c] sm:$0xf]
      %v354 = vld [vmem:[%s219 + $0x40] sm:$0xf]
      %v355 = vld [vmem:[%s219 + $0x44] sm:$0xf]
      %v356 = vld [vmem:[%s219 + $0x48] sm:$0xf]
      %v357 = vld [vmem:[%s219 + $0x4c] sm:$0xf]
      %v358 = vld [vmem:[%s219 + $0x50] sm:$0xf]
      %v359 = vld [vmem:[%s219 + $0x54] sm:$0xf]
      %v360 = vld [vmem:[%s219 + $0x58] sm:$0xf]
      %v361 = vld [vmem:[%s219 + $0x5c] sm:$0xf]
      %v362 = vld [vmem:[%s219 + $0x60] sm:$0xf]
      %v363 = vld [vmem:[%s219 + $0x64] sm:$0xf]
      %v364 = vld [vmem:[%s219 + $0x68] sm:$0xf]
      %v365 = vld [vmem:[%s219 + $0x6c] sm:$0xf]
      %v366 = vld [vmem:[%s219 + $0x70] sm:$0xf]
      %v367 = vld [vmem:[%s219 + $0x74] sm:$0xf]
      %v368 = vld [vmem:[%s219 + $0x78] sm:$0xf]
      %v369 = vld [vmem:[%s219 + $0x7c] sm:$0xf]
      %vm370 = vsmask.f32 256
      %vm371 = vsmask.f32 4368
      %vm372 = vmor %vm370, %vm371
      %v374 = vshrl.u32 %v338, 16
      %v376 = vrot.slane %v374, 7
      %v377 = vshll.u32 %v338, 16
      %v379 = vor.u32 %v376, %v377
      %v380 = vrot.slane %v376, 4
      %v382 = vshrl.u32 %v339, 16
      %v384 = vrot.slane %v382, 7
      %v385 = vshll.u32 %v339, 16
      %v387 = vor.u32 %v384, %v385
      %v388 = vsel %vm372, %v380, %v387
      %v389 = vrot.slane %v384, 4
      %v391 = vshrl.u32 %v340, 16
      %v393 = vrot.slane %v391, 7
      %v394 = vshll.u32 %v340, 16
      %v396 = vor.u32 %v393, %v394
      %v397 = vrot.slane %v393, 4
      %v399 = vshrl.u32 %v341, 16
      %v401 = vrot.slane %v399, 7
      %v402 = vshll.u32 %v341, 16
      %v404 = vor.u32 %v401, %v402
      %v405 = vsel %vm372, %v397, %v404
      %v406 = vrot.slane %v401, 4
      %v408 = vshrl.u32 %v342, 16
      %v410 = vrot.slane %v408, 7
      %v411 = vshll.u32 %v342, 16
      %v413 = vor.u32 %v410, %v411
      %v414 = vrot.slane %v410, 4
      %v416 = vshrl.u32 %v343, 16
      %v418 = vrot.slane %v416, 7
      %v419 = vshll.u32 %v343, 16
      %v421 = vor.u32 %v418, %v419
      %v422 = vsel %vm372, %v414, %v421
      %v423 = vrot.slane %v418, 4
      %v425 = vshrl.u32 %v344, 16
      %v427 = vrot.slane %v425, 7
      %v428 = vshll.u32 %v344, 16
      %v430 = vor.u32 %v427, %v428
      %v431 = vrot.slane %v427, 4
      %v433 = vshrl.u32 %v345, 16
      %v435 = vrot.slane %v433, 7
      %v436 = vshll.u32 %v345, 16
      %v438 = vor.u32 %v435, %v436
      %v439 = vsel %vm372, %v431, %v438
      %v440 = vrot.slane %v435, 4
      %v442 = vshrl.u32 %v346, 16
      %v444 = vrot.slane %v442, 7
      %v445 = vshll.u32 %v346, 16
      %v447 = vor.u32 %v444, %v445
      %v448 = vrot.slane %v444, 4
      %v450 = vshrl.u32 %v347, 16
      %v452 = vrot.slane %v450, 7
      %v453 = vshll.u32 %v347, 16
      %v455 = vor.u32 %v452, %v453
      %v456 = vsel %vm372, %v448, %v455
      %v457 = vrot.slane %v452, 4
      %v459 = vshrl.u32 %v348, 16
      %v461 = vrot.slane %v459, 7
      %v462 = vshll.u32 %v348, 16
      %v464 = vor.u32 %v461, %v462
      %v465 = vrot.slane %v461, 4
      %v467 = vshrl.u32 %v349, 16
      %v469 = vrot.slane %v467, 7
      %v470 = vshll.u32 %v349, 16
      %v472 = vor.u32 %v469, %v470
      %v473 = vsel %vm372, %v465, %v472
      %v474 = vrot.slane %v469, 4
      %v476 = vshrl.u32 %v350, 16
      %v478 = vrot.slane %v476, 7
      %v479 = vshll.u32 %v350, 16
      %v481 = vor.u32 %v478, %v479
      %v482 = vrot.slane %v478, 4
      %v484 = vshrl.u32 %v351, 16
      %v486 = vrot.slane %v484, 7
      %v487 = vshll.u32 %v351, 16
      %v489 = vor.u32 %v486, %v487
      %v490 = vsel %vm372, %v482, %v489
      %v491 = vrot.slane %v486, 4
      %v493 = vshrl.u32 %v352, 16
      %v495 = vrot.slane %v493, 7
      %v496 = vshll.u32 %v352, 16
      %v498 = vor.u32 %v495, %v496
      %v499 = vrot.slane %v495, 4
      %v501 = vshrl.u32 %v353, 16
      %v503 = vrot.slane %v501, 7
      %v504 = vshll.u32 %v353, 16
      %v506 = vor.u32 %v503, %v504
      %v507 = vsel %vm372, %v499, %v506
      %v508 = vrot.slane %v503, 4
      %v510 = vshrl.u32 %v354, 16
      %v512 = vrot.slane %v510, 7
      %v513 = vshll.u32 %v354, 16
      %v515 = vor.u32 %v512, %v513
      %v516 = vrot.slane %v512, 4
      %v518 = vshrl.u32 %v355, 16
      %v520 = vrot.slane %v518, 7
      %v521 = vshll.u32 %v355, 16
      %v523 = vor.u32 %v520, %v521
      %v524 = vsel %vm372, %v516, %v523
      %v525 = vrot.slane %v520, 4
      %v527 = vshrl.u32 %v356, 16
      %v529 = vrot.slane %v527, 7
      %v530 = vshll.u32 %v356, 16
      %v532 = vor.u32 %v529, %v530
      %v533 = vrot.slane %v529, 4
      %v535 = vshrl.u32 %v357, 16
      %v537 = vrot.slane %v535, 7
      %v538 = vshll.u32 %v357, 16
      %v540 = vor.u32 %v537, %v538
      %v541 = vsel %vm372, %v533, %v540
      %v542 = vrot.slane %v537, 4
      %v544 = vshrl.u32 %v358, 16
      %v546 = vrot.slane %v544, 7
      %v547 = vshll.u32 %v358, 16
      %v549 = vor.u32 %v546, %v547
      %v550 = vrot.slane %v546, 4
      %v552 = vshrl.u32 %v359, 16
      %v554 = vrot.slane %v552, 7
      %v555 = vshll.u32 %v359, 16
      %v557 = vor.u32 %v554, %v555
      %v558 = vsel %vm372, %v550, %v557
      %v559 = vrot.slane %v554, 4
      %v561 = vshrl.u32 %v360, 16
      %v563 = vrot.slane %v561, 7
      %v564 = vshll.u32 %v360, 16
      %v566 = vor.u32 %v563, %v564
      %v567 = vrot.slane %v563, 4
      %v569 = vshrl.u32 %v361, 16
      %v571 = vrot.slane %v569, 7
      %v572 = vshll.u32 %v361, 16
      %v574 = vor.u32 %v571, %v572
      %v575 = vsel %vm372, %v567, %v574
      %v576 = vrot.slane %v571, 4
      %v578 = vshrl.u32 %v362, 16
      %v580 = vrot.slane %v578, 7
      %v581 = vshll.u32 %v362, 16
      %v583 = vor.u32 %v580, %v581
      %v584 = vrot.slane %v580, 4
      %v586 = vshrl.u32 %v363, 16
      %v588 = vrot.slane %v586, 7
      %v589 = vshll.u32 %v363, 16
      %v591 = vor.u32 %v588, %v589
      %v592 = vsel %vm372, %v584, %v591
      %v593 = vrot.slane %v588, 4
      %v595 = vshrl.u32 %v364, 16
      %v597 = vrot.slane %v595, 7
      %v598 = vshll.u32 %v364, 16
      %v600 = vor.u32 %v597, %v598
      %v601 = vrot.slane %v597, 4
      %v603 = vshrl.u32 %v365, 16
      %v605 = vrot.slane %v603, 7
      %v606 = vshll.u32 %v365, 16
      %v608 = vor.u32 %v605, %v606
      %v609 = vsel %vm372, %v601, %v608
      %v610 = vrot.slane %v605, 4
      %v612 = vshrl.u32 %v366, 16
      %v614 = vrot.slane %v612, 7
      %v615 = vshll.u32 %v366, 16
      %v617 = vor.u32 %v614, %v615
      %v618 = vrot.slane %v614, 4
      %v620 = vshrl.u32 %v367, 16
      %v622 = vrot.slane %v620, 7
      %v623 = vshll.u32 %v367, 16
      %v625 = vor.u32 %v622, %v623
      %v626 = vsel %vm372, %v618, %v625
      %v627 = vrot.slane %v622, 4
      %v629 = vshrl.u32 %v368, 16
      %v631 = vrot.slane %v629, 7
      %v632 = vshll.u32 %v368, 16
      %v634 = vor.u32 %v631, %v632
      %v635 = vrot.slane %v631, 4
      %v637 = vshrl.u32 %v369, 16
      %v639 = vrot.slane %v637, 7
      %v640 = vshll.u32 %v369, 16
      %v642 = vor.u32 %v639, %v640
      %v643 = vsel %vm372, %v635, %v642
      %v644 = vrot.slane %v639, 4
      %s693 = scalar_lea.vmem [#allocation2], 12
      %vm694 = vcmask 125952
      %vm695 = vsmask.f32 7938
      %vm696 = vmand %vm694, %vm695
      %v697 = vld [vmem:[%s693] sm:$0xf]
      %v698 = vsel %vm696, %v379, %v697
      %699 = vst [vmem:[%s693] sm:$0xf] %v698
      %700 = vst.msk [vmem:[%s693 + $0x4] sm:$0xf] %vm226, %v388
      %vm701 = vcmask 122880
      %vm702 = vmand %vm701, %vm370
      %v703 = vld [vmem:[%s693 + $0x8] sm:$0x1]
      %v704 = vsel %vm702, %v389, %v703
      %705 = vst [vmem:[%s693 + $0x8] sm:$0x1] %v704
      %v706 = vld [vmem:[%s693 + $0xc] sm:$0xf]
      %v707 = vsel %vm696, %v396, %v706
      %708 = vst [vmem:[%s693 + $0xc] sm:$0xf] %v707
      %709 = vst.msk [vmem:[%s693 + $0x10] sm:$0xf] %vm226, %v405
      %v710 = vld [vmem:[%s693 + $0x14] sm:$0x1]
      %v711 = vsel %vm702, %v406, %v710
      %712 = vst [vmem:[%s693 + $0x14] sm:$0x1] %v711
      %v713 = vld [vmem:[%s693 + $0x18] sm:$0xf]
      %v714 = vsel %vm696, %v413, %v713
      %715 = vst [vmem:[%s693 + $0x18] sm:$0xf] %v714
      %716 = vst.msk [vmem:[%s693 + $0x1c] sm:$0xf] %vm226, %v422
      %v717 = vld [vmem:[%s693 + $0x20] sm:$0x1]
      %v718 = vsel %vm702, %v423, %v717
      %719 = vst [vmem:[%s693 + $0x20] sm:$0x1] %v718
      %v720 = vld [vmem:[%s693 + $0x24] sm:$0xf]
      %v721 = vsel %vm696, %v430, %v720
      %722 = vst [vmem:[%s693 + $0x24] sm:$0xf] %v721
      %723 = vst.msk [vmem:[%s693 + $0x28] sm:$0xf] %vm226, %v439
      %v724 = vld [vmem:[%s693 + $0x2c] sm:$0x1]
      %v725 = vsel %vm702, %v440, %v724
      %726 = vst [vmem:[%s693 + $0x2c] sm:$0x1] %v725
      %v727 = vld [vmem:[%s693 + $0x30] sm:$0xf]
      %v728 = vsel %vm696, %v447, %v727
      %729 = vst [vmem:[%s693 + $0x30] sm:$0xf] %v728
      %730 = vst.msk [vmem:[%s693 + $0x34] sm:$0xf] %vm226, %v456
      %v731 = vld [vmem:[%s693 + $0x38] sm:$0x1]
      %v732 = vsel %vm702, %v457, %v731
      %733 = vst [vmem:[%s693 + $0x38] sm:$0x1] %v732
      %v734 = vld [vmem:[%s693 + $0x3c] sm:$0xf]
      %v735 = vsel %vm696, %v464, %v734
      %736 = vst [vmem:[%s693 + $0x3c] sm:$0xf] %v735
      %737 = vst.msk [vmem:[%s693 + $0x40] sm:$0xf] %vm226, %v473
      %v738 = vld [vmem:[%s693 + $0x44] sm:$0x1]
      %v739 = vsel %vm702, %v474, %v738
      %740 = vst [vmem:[%s693 + $0x44] sm:$0x1] %v739
      %v741 = vld [vmem:[%s693 + $0x48] sm:$0xf]
      %v742 = vsel %vm696, %v481, %v741
      %743 = vst [vmem:[%s693 + $0x48] sm:$0xf] %v742
      %744 = vst.msk [vmem:[%s693 + $0x4c] sm:$0xf] %vm226, %v490
      %v745 = vld [vmem:[%s693 + $0x50] sm:$0x1]
      %v746 = vsel %vm702, %v491, %v745
      %747 = vst [vmem:[%s693 + $0x50] sm:$0x1] %v746
      %v748 = vld [vmem:[%s693 + $0x54] sm:$0xf]
      %v749 = vsel %vm696, %v498, %v748
      %750 = vst [vmem:[%s693 + $0x54] sm:$0xf] %v749
      %751 = vst.msk [vmem:[%s693 + $0x58] sm:$0xf] %vm226, %v507
      %v752 = vld [vmem:[%s693 + $0x5c] sm:$0x1]
      %v753 = vsel %vm702, %v508, %v752
      %754 = vst [vmem:[%s693 + $0x5c] sm:$0x1] %v753
      %v755 = vld [vmem:[%s693 + $0x60] sm:$0xf]
      %v756 = vsel %vm696, %v515, %v755
      %757 = vst [vmem:[%s693 + $0x60] sm:$0xf] %v756
      %758 = vst.msk [vmem:[%s693 + $0x64] sm:$0xf] %vm226, %v524
      %v759 = vld [vmem:[%s693 + $0x68] sm:$0x1]
      %v760 = vsel %vm702, %v525, %v759
      %761 = vst [vmem:[%s693 + $0x68] sm:$0x1] %v760
      %v762 = vld [vmem:[%s693 + $0x6c] sm:$0xf]
      %v763 = vsel %vm696, %v532, %v762
      %764 = vst [vmem:[%s693 + $0x6c] sm:$0xf] %v763
      %765 = vst.msk [vmem:[%s693 + $0x70] sm:$0xf] %vm226, %v541
      %v766 = vld [vmem:[%s693 + $0x74] sm:$0x1]
      %v767 = vsel %vm702, %v542, %v766
      %768 = vst [vmem:[%s693 + $0x74] sm:$0x1] %v767
      %v769 = vld [vmem:[%s693 + $0x78] sm:$0xf]
      %v770 = vsel %vm696, %v549, %v769
      %771 = vst [vmem:[%s693 + $0x78] sm:$0xf] %v770
      %772 = vst.msk [vmem:[%s693 + $0x7c] sm:$0xf] %vm226, %v558
      %v773 = vld [vmem:[%s693 + $0x80] sm:$0x1]
      %v774 = vsel %vm702, %v559, %v773
      %775 = vst [vmem:[%s693 + $0x80] sm:$0x1] %v774
      %v776 = vld [vmem:[%s693 + $0x84] sm:$0xf]
      %v777 = vsel %vm696, %v566, %v776
      %778 = vst [vmem:[%s693 + $0x84] sm:$0xf] %v777
      %779 = vst.msk [vmem:[%s693 + $0x88] sm:$0xf] %vm226, %v575
      %v780 = vld [vmem:[%s693 + $0x8c] sm:$0x1]
      %v781 = vsel %vm702, %v576, %v780
      %782 = vst [vmem:[%s693 + $0x8c] sm:$0x1] %v781
      %v783 = vld [vmem:[%s693 + $0x90] sm:$0xf]
      %v784 = vsel %vm696, %v583, %v783
      %785 = vst [vmem:[%s693 + $0x90] sm:$0xf] %v784
      %786 = vst.msk [vmem:[%s693 + $0x94] sm:$0xf] %vm226, %v592
      %v787 = vld [vmem:[%s693 + $0x98] sm:$0x1]
      %v788 = vsel %vm702, %v593, %v787
      %789 = vst [vmem:[%s693 + $0x98] sm:$0x1] %v788
      %v790 = vld [vmem:[%s693 + $0x9c] sm:$0xf]
      %v791 = vsel %vm696, %v600, %v790
      %792 = vst [vmem:[%s693 + $0x9c] sm:$0xf] %v791
      %793 = vst.msk [vmem:[%s693 + $0xa0] sm:$0xf] %vm226, %v609
      %v794 = vld [vmem:[%s693 + $0xa4] sm:$0x1]
      %v795 = vsel %vm702, %v610, %v794
      %796 = vst [vmem:[%s693 + $0xa4] sm:$0x1] %v795
      %v797 = vld [vmem:[%s693 + $0xa8] sm:$0xf]
      %v798 = vsel %vm696, %v617, %v797
      %799 = vst [vmem:[%s693 + $0xa8] sm:$0xf] %v798
      %800 = vst.msk [vmem:[%s693 + $0xac] sm:$0xf] %vm226, %v626
      %v801 = vld [vmem:[%s693 + $0xb0] sm:$0x1]
      %v802 = vsel %vm702, %v627, %v801
      %803 = vst [vmem:[%s693 + $0xb0] sm:$0x1] %v802
      %v804 = vld [vmem:[%s693 + $0xb4] sm:$0xf]
      %v805 = vsel %vm696, %v634, %v804
      %806 = vst [vmem:[%s693 + $0xb4] sm:$0xf] %v805
      %807 = vst.msk [vmem:[%s693 + $0xb8] sm:$0xf] %vm226, %v643
      %v808 = vld [vmem:[%s693 + $0xbc] sm:$0x1]
      %v809 = vsel %vm702, %v644, %v808
      %810 = vst [vmem:[%s693 + $0xbc] sm:$0x1] %v809
      %v811 = vld [vmem:[#allocation2] sm:$0xf]
      %v812 = vld [vmem:[#allocation2 + $0x4] sm:$0xf]
      %v813 = vld [vmem:[#allocation2 + $0xc] sm:$0xf]
      %v814 = vld [vmem:[#allocation2 + $0x10] sm:$0xf]
      %v815 = vld [vmem:[#allocation2 + $0x18] sm:$0xf]
      %v816 = vld [vmem:[#allocation2 + $0x1c] sm:$0xf]
      %v817 = vld [vmem:[#allocation2 + $0x24] sm:$0xf]
      %v818 = vld [vmem:[#allocation2 + $0x28] sm:$0xf]
      %v819 = vld [vmem:[#allocation2 + $0x30] sm:$0xf]
      %v820 = vld [vmem:[#allocation2 + $0x34] sm:$0xf]
      %v821 = vld [vmem:[#allocation2 + $0x3c] sm:$0xf]
      %v822 = vld [vmem:[#allocation2 + $0x40] sm:$0xf]
      %v823 = vld [vmem:[#allocation2 + $0x48] sm:$0xf]
      %v824 = vld [vmem:[#allocation2 + $0x4c] sm:$0xf]
      %v825 = vld [vmem:[#allocation2 + $0x54] sm:$0xf]
      %v826 = vld [vmem:[#allocation2 + $0x58] sm:$0xf]
      %v827 = vld [vmem:[#allocation2 + $0x60] sm:$0xf]
      %v828 = vld [vmem:[#allocation2 + $0x64] sm:$0xf]
      %v829 = vld [vmem:[#allocation2 + $0x6c] sm:$0xf]
      %v830 = vld [vmem:[#allocation2 + $0x70] sm:$0xf]
      %v831 = vld [vmem:[#allocation2 + $0x78] sm:$0xf]
      %v832 = vld [vmem:[#allocation2 + $0x7c] sm:$0xf]
      %v833 = vld [vmem:[#allocation2 + $0x84] sm:$0xf]
      %v834 = vld [vmem:[#allocation2 + $0x88] sm:$0xf]
      %v835 = vld [vmem:[#allocation2 + $0x90] sm:$0xf]
      %v836 = vld [vmem:[#allocation2 + $0x94] sm:$0xf]
      %v837 = vld [vmem:[#allocation2 + $0x9c] sm:$0xf]
      %v838 = vld [vmem:[#allocation2 + $0xa0] sm:$0xf]
      %v839 = vld [vmem:[#allocation2 + $0xa8] sm:$0xf]
      %v840 = vld [vmem:[#allocation2 + $0xac] sm:$0xf]
      %v841 = vld [vmem:[#allocation2 + $0xb4] sm:$0xf]
      %v842 = vld [vmem:[#allocation2 + $0xb8] sm:$0xf]
      %v843 = vld [vmem:[%s1] sm:$0xf]
      %v844 = vld [vmem:[%s1 + $0x4] sm:$0xf]
      %v845 = vld [vmem:[#allocation2 + $0x8] sm:$0x1]
      %v846 = vld [vmem:[#allocation2 + $0x14] sm:$0x1]
      %v847 = vld [vmem:[#allocation2 + $0x20] sm:$0x1]
      %v848 = vld [vmem:[#allocation2 + $0x2c] sm:$0x1]
      %v849 = vld [vmem:[#allocation2 + $0x38] sm:$0x1]
      %v850 = vld [vmem:[#allocation2 + $0x44] sm:$0x1]
      %v851 = vld [vmem:[#allocation2 + $0x50] sm:$0x1]
      %v852 = vld [vmem:[#allocation2 + $0x5c] sm:$0x1]
      %v853 = vld [vmem:[#allocation2 + $0x68] sm:$0x1]
      %v854 = vld [vmem:[#allocation2 + $0x74] sm:$0x1]
      %v855 = vld [vmem:[#allocation2 + $0x80] sm:$0x1]
      %v856 = vld [vmem:[#allocation2 + $0x8c] sm:$0x1]
      %v857 = vld [vmem:[#allocation2 + $0x98] sm:$0x1]
      %v858 = vld [vmem:[#allocation2 + $0xa4] sm:$0x1]
      %v859 = vld [vmem:[#allocation2 + $0xb0] sm:$0x1]
      %v860 = vld [vmem:[#allocation2 + $0xbc] sm:$0x1]
      %vm861 = vsmask.f32 3328
      %vm862 = vsmask.f32 7440
      %vm863 = vmor %vm861, %vm862
      %v865 = vshrl.u32 %v811, 16
      %v867 = vrot.slane %v865, 4
      %v868 = vshll.u32 %v811, 16
      %v870 = vrot.slane %v868, 5
      %v871 = vor.u32 %v867, %v870
      %v872 = vrot.slane %v871, 4
      %v874 = vshll.u32 %v812, 16
      %v876 = vrot.slane %v874, 5
      %v877 = vsel %vm863, %v872, %v876
      %v878 = vshrl.u32 %v812, 16
      %v880 = vrot.slane %v878, 4
      %v881 = vor.u32 %v880, %v876
      %v882 = vrot.slane %v881, 4
      %v884 = vshll.u32 %v845, 16
      %v886 = vrot.slane %v884, 5
      %v887 = vsel %vm863, %v882, %v886
      %v889 = vshrl.u32 %v813, 16
      %v891 = vrot.slane %v889, 4
      %v892 = vshll.u32 %v813, 16
      %v894 = vrot.slane %v892, 5
      %v895 = vor.u32 %v891, %v894
      %v896 = vrot.slane %v895, 4
      %v898 = vshll.u32 %v814, 16
      %v900 = vrot.slane %v898, 5
      %v901 = vsel %vm863, %v896, %v900
      %v902 = vshrl.u32 %v814, 16
      %v904 = vrot.slane %v902, 4
      %v905 = vor.u32 %v904, %v900
      %v906 = vrot.slane %v905, 4
      %v908 = vshll.u32 %v846, 16
      %v910 = vrot.slane %v908, 5
      %v911 = vsel %vm863, %v906, %v910
      %v913 = vshrl.u32 %v815, 16
      %v915 = vrot.slane %v913, 4
      %v916 = vshll.u32 %v815, 16
      %v918 = vrot.slane %v916, 5
      %v919 = vor.u32 %v915, %v918
      %v920 = vrot.slane %v919, 4
      %v922 = vshll.u32 %v816, 16
      %v924 = vrot.slane %v922, 5
      %v925 = vsel %vm863, %v920, %v924
      %v926 = vshrl.u32 %v816, 16
      %v928 = vrot.slane %v926, 4
      %v929 = vor.u32 %v928, %v924
      %v930 = vrot.slane %v929, 4
      %v932 = vshll.u32 %v847, 16
      %v934 = vrot.slane %v932, 5
      %v935 = vsel %vm863, %v930, %v934
      %v937 = vshrl.u32 %v817, 16
      %v939 = vrot.slane %v937, 4
      %v940 = vshll.u32 %v817, 16
      %v942 = vrot.slane %v940, 5
      %v943 = vor.u32 %v939, %v942
      %v944 = vrot.slane %v943, 4
      %v946 = vshll.u32 %v818, 16
      %v948 = vrot.slane %v946, 5
      %v949 = vsel %vm863, %v944, %v948
      %v950 = vshrl.u32 %v818, 16
      %v952 = vrot.slane %v950, 4
      %v953 = vor.u32 %v952, %v948
      %v954 = vrot.slane %v953, 4
      %v956 = vshll.u32 %v848, 16
      %v958 = vrot.slane %v956, 5
      %v959 = vsel %vm863, %v954, %v958
      %v961 = vshrl.u32 %v819, 16
      %v963 = vrot.slane %v961, 4
      %v964 = vshll.u32 %v819, 16
      %v966 = vrot.slane %v964, 5
      %v967 = vor.u32 %v963, %v966
      %v968 = vrot.slane %v967, 4
      %v970 = vshll.u32 %v820, 16
      %v972 = vrot.slane %v970, 5
      %v973 = vsel %vm863, %v968, %v972
      %v974 = vshrl.u32 %v820, 16
      %v976 = vrot.slane %v974, 4
      %v977 = vor.u32 %v976, %v972
      %v978 = vrot.slane %v977, 4
      %v980 = vshll.u32 %v849, 16
      %v982 = vrot.slane %v980, 5
      %v983 = vsel %vm863, %v978, %v982
      %v985 = vshrl.u32 %v821, 16
      %v987 = vrot.slane %v985, 4
      %v988 = vshll.u32 %v821, 16
      %v990 = vrot.slane %v988, 5
      %v991 = vor.u32 %v987, %v990
      %v992 = vrot.slane %v991, 4
      %v994 = vshll.u32 %v822, 16
      %v996 = vrot.slane %v994, 5
      %v997 = vsel %vm863, %v992, %v996
      %v998 = vshrl.u32 %v822, 16
      %v1000 = vrot.slane %v998, 4
      %v1001 = vor.u32 %v1000, %v996
      %v1002 = vrot.slane %v1001, 4
      %v1004 = vshll.u32 %v850, 16
      %v1006 = vrot.slane %v1004, 5
      %v1007 = vsel %vm863, %v1002, %v1006
      %v1009 = vshrl.u32 %v823, 16
      %v1011 = vrot.slane %v1009, 4
      %v1012 = vshll.u32 %v823, 16
      %v1014 = vrot.slane %v1012, 5
      %v1015 = vor.u32 %v1011, %v1014
      %v1016 = vrot.slane %v1015, 4
      %v1018 = vshll.u32 %v824, 16
      %v1020 = vrot.slane %v1018, 5
      %v1021 = vsel %vm863, %v1016, %v1020
      %v1022 = vshrl.u32 %v824, 16
      %v1024 = vrot.slane %v1022, 4
      %v1025 = vor.u32 %v1024, %v1020
      %v1026 = vrot.slane %v1025, 4
      %v1028 = vshll.u32 %v851, 16
      %v1030 = vrot.slane %v1028, 5
      %v1031 = vsel %vm863, %v1026, %v1030
      %v1033 = vshrl.u32 %v825, 16
      %v1035 = vrot.slane %v1033, 4
      %v1036 = vshll.u32 %v825, 16
      %v1038 = vrot.slane %v1036, 5
      %v1039 = vor.u32 %v1035, %v1038
      %v1040 = vrot.slane %v1039, 4
      %v1042 = vshll.u32 %v826, 16
      %v1044 = vrot.slane %v1042, 5
      %v1045 = vsel %vm863, %v1040, %v1044
      %v1046 = vshrl.u32 %v826, 16
      %v1048 = vrot.slane %v1046, 4
      %v1049 = vor.u32 %v1048, %v1044
      %v1050 = vrot.slane %v1049, 4
      %v1052 = vshll.u32 %v852, 16
      %v1054 = vrot.slane %v1052, 5
      %v1055 = vsel %vm863, %v1050, %v1054
      %v1057 = vshrl.u32 %v827, 16
      %v1059 = vrot.slane %v1057, 4
      %v1060 = vshll.u32 %v827, 16
      %v1062 = vrot.slane %v1060, 5
      %v1063 = vor.u32 %v1059, %v1062
      %v1064 = vrot.slane %v1063, 4
      %v1066 = vshll.u32 %v828, 16
      %v1068 = vrot.slane %v1066, 5
      %v1069 = vsel %vm863, %v1064, %v1068
      %v1070 = vshrl.u32 %v828, 16
      %v1072 = vrot.slane %v1070, 4
      %v1073 = vor.u32 %v1072, %v1068
      %v1074 = vrot.slane %v1073, 4
      %v1076 = vshll.u32 %v853, 16
      %v1078 = vrot.slane %v1076, 5
      %v1079 = vsel %vm863, %v1074, %v1078
      %v1081 = vshrl.u32 %v829, 16
      %v1083 = vrot.slane %v1081, 4
      %v1084 = vshll.u32 %v829, 16
      %v1086 = vrot.slane %v1084, 5
      %v1087 = vor.u32 %v1083, %v1086
      %v1088 = vrot.slane %v1087, 4
      %v1090 = vshll.u32 %v830, 16
      %v1092 = vrot.slane %v1090, 5
      %v1093 = vsel %vm863, %v1088, %v1092
      %v1094 = vshrl.u32 %v830, 16
      %v1096 = vrot.slane %v1094, 4
      %v1097 = vor.u32 %v1096, %v1092
      %v1098 = vrot.slane %v1097, 4
      %v1100 = vshll.u32 %v854, 16
      %v1102 = vrot.slane %v1100, 5
      %v1103 = vsel %vm863, %v1098, %v1102
      %v1105 = vshrl.u32 %v831, 16
      %v1107 = vrot.slane %v1105, 4
      %v1108 = vshll.u32 %v831, 16
      %v1110 = vrot.slane %v1108, 5
      %v1111 = vor.u32 %v1107, %v1110
      %v1112 = vrot.slane %v1111, 4
      %v1114 = vshll.u32 %v832, 16
      %v1116 = vrot.slane %v1114, 5
      %v1117 = vsel %vm863, %v1112, %v1116
      %v1118 = vshrl.u32 %v832, 16
      %v1120 = vrot.slane %v1118, 4
      %v1121 = vor.u32 %v1120, %v1116
      %v1122 = vrot.slane %v1121, 4
      %v1124 = vshll.u32 %v855, 16
      %v1126 = vrot.slane %v1124, 5
      %v1127 = vsel %vm863, %v1122, %v1126
      %v1129 = vshrl.u32 %v833, 16
      %v1131 = vrot.slane %v1129, 4
      %v1132 = vshll.u32 %v833, 16
      %v1134 = vrot.slane %v1132, 5
      %v1135 = vor.u32 %v1131, %v1134
      %v1136 = vrot.slane %v1135, 4
      %v1138 = vshll.u32 %v834, 16
      %v1140 = vrot.slane %v1138, 5
      %v1141 = vsel %vm863, %v1136, %v1140
      %v1142 = vshrl.u32 %v834, 16
      %v1144 = vrot.slane %v1142, 4
      %v1145 = vor.u32 %v1144, %v1140
      %v1146 = vrot.slane %v1145, 4
      %v1148 = vshll.u32 %v856, 16
      %v1150 = vrot.slane %v1148, 5
      %v1151 = vsel %vm863, %v1146, %v1150
      %v1153 = vshrl.u32 %v835, 16
      %v1155 = vrot.slane %v1153, 4
      %v1156 = vshll.u32 %v835, 16
      %v1158 = vrot.slane %v1156, 5
      %v1159 = vor.u32 %v1155, %v1158
      %v1160 = vrot.slane %v1159, 4
      %v1162 = vshll.u32 %v836, 16
      %v1164 = vrot.slane %v1162, 5
      %v1165 = vsel %vm863, %v1160, %v1164
      %v1166 = vshrl.u32 %v836, 16
      %v1168 = vrot.slane %v1166, 4
      %v1169 = vor.u32 %v1168, %v1164
      %v1170 = vrot.slane %v1169, 4
      %v1172 = vshll.u32 %v857, 16
      %v1174 = vrot.slane %v1172, 5
      %v1175 = vsel %vm863, %v1170, %v1174
      %v1177 = vshrl.u32 %v837, 16
      %v1179 = vrot.slane %v1177, 4
      %v1180 = vshll.u32 %v837, 16
      %v1182 = vrot.slane %v1180, 5
      %v1183 = vor.u32 %v1179, %v1182
      %v1184 = vrot.slane %v1183, 4
      %v1186 = vshll.u32 %v838, 16
      %v1188 = vrot.slane %v1186, 5
      %v1189 = vsel %vm863, %v1184, %v1188
      %v1190 = vshrl.u32 %v838, 16
      %v1192 = vrot.slane %v1190, 4
      %v1193 = vor.u32 %v1192, %v1188
      %v1194 = vrot.slane %v1193, 4
      %v1196 = vshll.u32 %v858, 16
      %v1198 = vrot.slane %v1196, 5
      %v1199 = vsel %vm863, %v1194, %v1198
      %v1201 = vshrl.u32 %v839, 16
      %v1203 = vrot.slane %v1201, 4
      %v1204 = vshll.u32 %v839, 16
      %v1206 = vrot.slane %v1204, 5
      %v1207 = vor.u32 %v1203, %v1206
      %v1208 = vrot.slane %v1207, 4
      %v1210 = vshll.u32 %v840, 16
      %v1212 = vrot.slane %v1210, 5
      %v1213 = vsel %vm863, %v1208, %v1212
      %v1214 = vshrl.u32 %v840, 16
      %v1216 = vrot.slane %v1214, 4
      %v1217 = vor.u32 %v1216, %v1212
      %v1218 = vrot.slane %v1217, 4
      %v1220 = vshll.u32 %v859, 16
      %v1222 = vrot.slane %v1220, 5
      %v1223 = vsel %vm863, %v1218, %v1222
      %v1225 = vshrl.u32 %v841, 16
      %v1227 = vrot.slane %v1225, 4
      %v1228 = vshll.u32 %v841, 16
      %v1230 = vrot.slane %v1228, 5
      %v1231 = vor.u32 %v1227, %v1230
      %v1232 = vrot.slane %v1231, 4
      %v1234 = vshll.u32 %v842, 16
      %v1236 = vrot.slane %v1234, 5
      %v1237 = vsel %vm863, %v1232, %v1236
      %v1238 = vshrl.u32 %v842, 16
      %v1240 = vrot.slane %v1238, 4
      %v1241 = vor.u32 %v1240, %v1236
      %v1242 = vrot.slane %v1241, 4
      %v1244 = vshll.u32 %v860, 16
      %v1246 = vrot.slane %v1244, 5
      %v1247 = vsel %vm863, %v1242, %v1246
      %s1248 = scalar_lea.vmem %s1, 8
      %v1249 = vld [vmem:[%s1248] sm:$0xf]
      %v1250 = vld [vmem:[%s1248 + $0x4] sm:$0xf]
      %v1251 = vunpack.c.l.b16 %v877
      %v1252 = vunpack.c.l.b16 %v887
      %v1253 = vunpack.c.l.b16 %v901
      %v1254 = vunpack.c.l.b16 %v911
      %v1255 = vunpack.c.l.b16 %v925
      %v1256 = vunpack.c.l.b16 %v935
      %v1257 = vunpack.c.l.b16 %v949
      %v1258 = vunpack.c.l.b16 %v959
      %v1259 = vunpack.c.l.b16 %v973
      %v1260 = vunpack.c.l.b16 %v983
      %v1261 = vunpack.c.l.b16 %v997
      %v1262 = vunpack.c.l.b16 %v1007
      %v1263 = vunpack.c.l.b16 %v1021
      %v1264 = vunpack.c.l.b16 %v1031
      %v1265 = vunpack.c.l.b16 %v1045
      %v1266 = vunpack.c.l.b16 %v1055
      %v1267 = vunpack.c.l.b16 %v1069
      %v1268 = vunpack.c.l.b16 %v1079
      %v1269 = vunpack.c.l.b16 %v1093
      %v1270 = vunpack.c.l.b16 %v1103
      %v1271 = vunpack.c.l.b16 %v1117
      %v1272 = vunpack.c.l.b16 %v1127
      %v1273 = vunpack.c.l.b16 %v1141
      %v1274 = vunpack.c.l.b16 %v1151
      %v1275 = vunpack.c.l.b16 %v1165
      %v1276 = vunpack.c.l.b16 %v1175
      %v1277 = vunpack.c.l.b16 %v1189
      %v1278 = vunpack.c.l.b16 %v1199
      %v1279 = vunpack.c.l.b16 %v1213
      %v1280 = vunpack.c.l.b16 %v1223
      %v1281 = vunpack.c.l.b16 %v1237
      %v1282 = vunpack.c.l.b16 %v1247
      %v1283 = vpack.c.b16 %v1252, %v1251
      %v1284 = vpack.c.b16 %v1254, %v1253
      %v1285 = vpack.c.b16 %v1256, %v1255
      %v1286 = vpack.c.b16 %v1258, %v1257
      %v1287 = vpack.c.b16 %v1260, %v1259
      %v1288 = vpack.c.b16 %v1262, %v1261
      %v1289 = vpack.c.b16 %v1264, %v1263
      %v1290 = vpack.c.b16 %v1266, %v1265
      %v1291 = vpack.c.b16 %v1268, %v1267
      %v1292 = vpack.c.b16 %v1270, %v1269
      %v1293 = vpack.c.b16 %v1272, %v1271
      %v1294 = vpack.c.b16 %v1274, %v1273
      %v1295 = vpack.c.b16 %v1276, %v1275
      %v1296 = vpack.c.b16 %v1278, %v1277
      %v1297 = vpack.c.b16 %v1280, %v1279
      %v1298 = vpack.c.b16 %v1282, %v1281
      %v1301 = vunpack.c.l.b16 %v1249
      %v1302 = vunpack.c.l.b16 %v1250
      %v1303 = vpack.c.b16 %v1302, %v1301
      %vm1305 = vcmask 130048
      %v1307 = vsel %vm1305, %v1283, 0
      %v1310 = vsel %vm1305, %v1284, 0
      %v1313 = vsel %vm1305, %v1285, 0
      %v1316 = vsel %vm1305, %v1286, 0
      %v1319 = vsel %vm1305, %v1287, 0
      %v1322 = vsel %vm1305, %v1288, 0
      %v1325 = vsel %vm1305, %v1289, 0
      %v1328 = vsel %vm1305, %v1290, 0
      %v1331 = vsel %vm1305, %v1291, 0
      %v1334 = vsel %vm1305, %v1292, 0
      %v1337 = vsel %vm1305, %v1293, 0
      %v1340 = vsel %vm1305, %v1294, 0
      %v1343 = vsel %vm1305, %v1295, 0
      %v1346 = vsel %vm1305, %v1296, 0
      %v1349 = vsel %vm1305, %v1297, 0
      %v1352 = vsel %vm1305, %v1298, 0
      %1354 = vmatpush.bf16.msra.mxu0 0
      %1355 = vmatpush.bf16.msra.mxu0 0
      %1356 = vmatpush.bf16.msra.mxu0 0
      %1357 = vmatpush.bf16.msra.mxu0 0
      %1358 = vmatpush.bf16.msra.mxu0 0
      %1359 = vmatpush.bf16.msra.mxu0 0
      %1360 = vmatpush.bf16.msra.mxu0 0
      %1361 = vmatpush.bf16.msra.mxu0 %v1303
      %1362 = vmatmul.bf16.gmra.mxu0 %v1307
      %v1363 = vpop.f32.mrf.mxu0
      %v1364 = vadd.f32 0.0, %v1363
      %v1365 = vpop.f32.mrf.mxu0
      %v1366 = vadd.f32 0.0, %v1365
      %1367 = vmatmul.bf16.gmra.mxu0 %v1310
      %v1368 = vpop.f32.mrf.mxu0
      %v1369 = vadd.f32 0.0, %v1368
      %v1370 = vpop.f32.mrf.mxu0
      %v1371 = vadd.f32 0.0, %v1370
      %1372 = vmatmul.bf16.gmra.mxu0 %v1313
      %v1373 = vpop.f32.mrf.mxu0
      %v1374 = vadd.f32 0.0, %v1373
      %v1375 = vpop.f32.mrf.mxu0
      %v1376 = vadd.f32 0.0, %v1375
      %1377 = vmatmul.bf16.gmra.mxu0 %v1316
      %v1378 = vpop.f32.mrf.mxu0
      %v1379 = vadd.f32 0.0, %v1378
      %v1380 = vpop.f32.mrf.mxu0
      %v1381 = vadd.f32 0.0, %v1380
      %1382 = vmatmul.bf16.gmra.mxu0 %v1319
      %v1383 = vpop.f32.mrf.mxu0
      %v1384 = vadd.f32 0.0, %v1383
      %v1385 = vpop.f32.mrf.mxu0
      %v1386 = vadd.f32 0.0, %v1385
      %1387 = vmatmul.bf16.gmra.mxu0 %v1322
      %v1388 = vpop.f32.mrf.mxu0
      %v1389 = vadd.f32 0.0, %v1388
      %v1390 = vpop.f32.mrf.mxu0
      %v1391 = vadd.f32 0.0, %v1390
      %1392 = vmatmul.bf16.gmra.mxu0 %v1325
      %v1393 = vpop.f32.mrf.mxu0
      %v1394 = vadd.f32 0.0, %v1393
      %v1395 = vpop.f32.mrf.mxu0
      %v1396 = vadd.f32 0.0, %v1395
      %1397 = vmatmul.bf16.gmra.mxu0 %v1328
      %v1398 = vpop.f32.mrf.mxu0
      %v1399 = vadd.f32 0.0, %v1398
      %v1400 = vpop.f32.mrf.mxu0
      %v1401 = vadd.f32 0.0, %v1400
      %1402 = vmatmul.bf16.gmra.mxu0 %v1331
      %v1403 = vpop.f32.mrf.mxu0
      %v1404 = vadd.f32 0.0, %v1403
      %v1405 = vpop.f32.mrf.mxu0
      %v1406 = vadd.f32 0.0, %v1405
      %1407 = vmatmul.bf16.gmra.mxu0 %v1334
      %v1408 = vpop.f32.mrf.mxu0
      %v1409 = vadd.f32 0.0, %v1408
      %v1410 = vpop.f32.mrf.mxu0
      %v1411 = vadd.f32 0.0, %v1410
      %1412 = vmatmul.bf16.gmra.mxu0 %v1337
      %v1413 = vpop.f32.mrf.mxu0
      %v1414 = vadd.f32 0.0, %v1413
      %v1415 = vpop.f32.mrf.mxu0
      %v1416 = vadd.f32 0.0, %v1415
      %1417 = vmatmul.bf16.gmra.mxu0 %v1340
      %v1418 = vpop.f32.mrf.mxu0
      %v1419 = vadd.f32 0.0, %v1418
      %v1420 = vpop.f32.mrf.mxu0
      %v1421 = vadd.f32 0.0, %v1420
      %1422 = vmatmul.bf16.gmra.mxu0 %v1343
      %v1423 = vpop.f32.mrf.mxu0
      %v1424 = vadd.f32 0.0, %v1423
      %v1425 = vpop.f32.mrf.mxu0
      %v1426 = vadd.f32 0.0, %v1425
      %1427 = vmatmul.bf16.gmra.mxu0 %v1346
      %v1428 = vpop.f32.mrf.mxu0
      %v1429 = vadd.f32 0.0, %v1428
      %v1430 = vpop.f32.mrf.mxu0
      %v1431 = vadd.f32 0.0, %v1430
      %1432 = vmatmul.bf16.gmra.mxu0 %v1349
      %v1433 = vpop.f32.mrf.mxu0
      %v1434 = vadd.f32 0.0, %v1433
      %v1435 = vpop.f32.mrf.mxu0
      %v1436 = vadd.f32 0.0, %v1435
      %1437 = vmatmul.bf16.gmra.mxu0 %v1352
      %v1438 = vpop.f32.mrf.mxu0
      %v1439 = vadd.f32 0.0, %v1438
      %v1440 = vpop.f32.mrf.mxu0
      %v1441 = vadd.f32 0.0, %v1440
      %1442 = vdwg.mxu0
      %v1475 = vunpack.c.l.b16 %v811
      %v1476 = vunpack.c.l.b16 %v812
      %v1477 = vunpack.c.l.b16 %v813
      %v1478 = vunpack.c.l.b16 %v814
      %v1479 = vunpack.c.l.b16 %v815
      %v1480 = vunpack.c.l.b16 %v816
      %v1481 = vunpack.c.l.b16 %v817
      %v1482 = vunpack.c.l.b16 %v818
      %v1483 = vunpack.c.l.b16 %v819
      %v1484 = vunpack.c.l.b16 %v820
      %v1485 = vunpack.c.l.b16 %v821
      %v1486 = vunpack.c.l.b16 %v822
      %v1487 = vunpack.c.l.b16 %v823
      %v1488 = vunpack.c.l.b16 %v824
      %v1489 = vunpack.c.l.b16 %v825
      %v1490 = vunpack.c.l.b16 %v826
      %v1491 = vunpack.c.l.b16 %v827
      %v1492 = vunpack.c.l.b16 %v828
      %v1493 = vunpack.c.l.b16 %v829
      %v1494 = vunpack.c.l.b16 %v830
      %v1495 = vunpack.c.l.b16 %v831
      %v1496 = vunpack.c.l.b16 %v832
      %v1497 = vunpack.c.l.b16 %v833
      %v1498 = vunpack.c.l.b16 %v834
      %v1499 = vunpack.c.l.b16 %v835
      %v1500 = vunpack.c.l.b16 %v836
      %v1501 = vunpack.c.l.b16 %v837
      %v1502 = vunpack.c.l.b16 %v838
      %v1503 = vunpack.c.l.b16 %v839
      %v1504 = vunpack.c.l.b16 %v840
      %v1505 = vunpack.c.l.b16 %v841
      %v1506 = vunpack.c.l.b16 %v842
      %v1507 = vpack.c.b16 %v1476, %v1475
      %v1508 = vpack.c.b16 %v1478, %v1477
      %v1509 = vpack.c.b16 %v1480, %v1479
      %v1510 = vpack.c.b16 %v1482, %v1481
      %v1511 = vpack.c.b16 %v1484, %v1483
      %v1512 = vpack.c.b16 %v1486, %v1485
      %v1513 = vpack.c.b16 %v1488, %v1487
      %v1514 = vpack.c.b16 %v1490, %v1489
      %v1515 = vpack.c.b16 %v1492, %v1491
      %v1516 = vpack.c.b16 %v1494, %v1493
      %v1517 = vpack.c.b16 %v1496, %v1495
      %v1518 = vpack.c.b16 %v1498, %v1497
      %v1519 = vpack.c.b16 %v1500, %v1499
      %v1520 = vpack.c.b16 %v1502, %v1501
      %v1521 = vpack.c.b16 %v1504, %v1503
      %v1522 = vpack.c.b16 %v1506, %v1505
      %v1525 = vunpack.c.l.b16 %v843
      %v1526 = vunpack.c.l.b16 %v844
      %v1527 = vpack.c.b16 %v1526, %v1525
      %v1530 = vsel %vm1305, %v1507, 0
      %v1533 = vsel %vm1305, %v1508, 0
      %v1536 = vsel %vm1305, %v1509, 0
      %v1539 = vsel %vm1305, %v1510, 0
      %v1542 = vsel %vm1305, %v1511, 0
      %v1545 = vsel %vm1305, %v1512, 0
      %v1548 = vsel %vm1305, %v1513, 0
      %v1551 = vsel %vm1305, %v1514, 0
      %v1554 = vsel %vm1305, %v1515, 0
      %v1557 = vsel %vm1305, %v1516, 0
      %v1560 = vsel %vm1305, %v1517, 0
      %v1563 = vsel %vm1305, %v1518, 0
      %v1566 = vsel %vm1305, %v1519, 0
      %v1569 = vsel %vm1305, %v1520, 0
      %v1572 = vsel %vm1305, %v1521, 0
      %v1575 = vsel %vm1305, %v1522, 0
      %1577 = vmatpush.bf16.msra.mxu0 0
      %1578 = vmatpush.bf16.msra.mxu0 0
      %1579 = vmatpush.bf16.msra.mxu0 0
      %1580 = vmatpush.bf16.msra.mxu0 0
      %1581 = vmatpush.bf16.msra.mxu0 0
      %1582 = vmatpush.bf16.msra.mxu0 0
      %1583 = vmatpush.bf16.msra.mxu0 0
      %1584 = vmatpush.bf16.msra.mxu0 %v1527
      %1585 = vmatmul.bf16.gmra.mxu0 %v1530
      %v1586 = vpop.f32.mrf.mxu0
      %v1587 = vadd.f32 %v1364, %v1586
      %v1588 = vpop.f32.mrf.mxu0
      %v1589 = vadd.f32 %v1366, %v1588
      %1590 = vmatmul.bf16.gmra.mxu0 %v1533
      %v1591 = vpop.f32.mrf.mxu0
      %v1592 = vadd.f32 %v1369, %v1591
      %v1593 = vpop.f32.mrf.mxu0
      %v1594 = vadd.f32 %v1371, %v1593
      %1595 = vmatmul.bf16.gmra.mxu0 %v1536
      %v1596 = vpop.f32.mrf.mxu0
      %v1597 = vadd.f32 %v1374, %v1596
      %v1598 = vpop.f32.mrf.mxu0
      %v1599 = vadd.f32 %v1376, %v1598
      %1600 = vmatmul.bf16.gmra.mxu0 %v1539
      %v1601 = vpop.f32.mrf.mxu0
      %v1602 = vadd.f32 %v1379, %v1601
      %v1603 = vpop.f32.mrf.mxu0
      %v1604 = vadd.f32 %v1381, %v1603
      %1605 = vmatmul.bf16.gmra.mxu0 %v1542
      %v1606 = vpop.f32.mrf.mxu0
      %v1607 = vadd.f32 %v1384, %v1606
      %v1608 = vpop.f32.mrf.mxu0
      %v1609 = vadd.f32 %v1386, %v1608
      %1610 = vmatmul.bf16.gmra.mxu0 %v1545
      %v1611 = vpop.f32.mrf.mxu0
      %v1612 = vadd.f32 %v1389, %v1611
      %v1613 = vpop.f32.mrf.mxu0
      %v1614 = vadd.f32 %v1391, %v1613
      %1615 = vmatmul.bf16.gmra.mxu0 %v1548
      %v1616 = vpop.f32.mrf.mxu0
      %v1617 = vadd.f32 %v1394, %v1616
      %v1618 = vpop.f32.mrf.mxu0
      %v1619 = vadd.f32 %v1396, %v1618
      %1620 = vmatmul.bf16.gmra.mxu0 %v1551
      %v1621 = vpop.f32.mrf.mxu0
      %v1622 = vadd.f32 %v1399, %v1621
      %v1623 = vpop.f32.mrf.mxu0
      %v1624 = vadd.f32 %v1401, %v1623
      %1625 = vmatmul.bf16.gmra.mxu0 %v1554
      %v1626 = vpop.f32.mrf.mxu0
      %v1627 = vadd.f32 %v1404, %v1626
      %v1628 = vpop.f32.mrf.mxu0
      %v1629 = vadd.f32 %v1406, %v1628
      %1630 = vmatmul.bf16.gmra.mxu0 %v1557
      %v1631 = vpop.f32.mrf.mxu0
      %v1632 = vadd.f32 %v1409, %v1631
      %v1633 = vpop.f32.mrf.mxu0
      %v1634 = vadd.f32 %v1411, %v1633
      %1635 = vmatmul.bf16.gmra.mxu0 %v1560
      %v1636 = vpop.f32.mrf.mxu0
      %v1637 = vadd.f32 %v1414, %v1636
      %v1638 = vpop.f32.mrf.mxu0
      %v1639 = vadd.f32 %v1416, %v1638
      %1640 = vmatmul.bf16.gmra.mxu0 %v1563
      %v1641 = vpop.f32.mrf.mxu0
      %v1642 = vadd.f32 %v1419, %v1641
      %v1643 = vpop.f32.mrf.mxu0
      %v1644 = vadd.f32 %v1421, %v1643
      %1645 = vmatmul.bf16.gmra.mxu0 %v1566
      %v1646 = vpop.f32.mrf.mxu0
      %v1647 = vadd.f32 %v1424, %v1646
      %v1648 = vpop.f32.mrf.mxu0
      %v1649 = vadd.f32 %v1426, %v1648
      %1650 = vmatmul.bf16.gmra.mxu0 %v1569
      %v1651 = vpop.f32.mrf.mxu0
      %v1652 = vadd.f32 %v1429, %v1651
      %v1653 = vpop.f32.mrf.mxu0
      %v1654 = vadd.f32 %v1431, %v1653
      %1655 = vmatmul.bf16.gmra.mxu0 %v1572
      %v1656 = vpop.f32.mrf.mxu0
      %v1657 = vadd.f32 %v1434, %v1656
      %v1658 = vpop.f32.mrf.mxu0
      %v1659 = vadd.f32 %v1436, %v1658
      %1660 = vmatmul.bf16.gmra.mxu0 %v1575
      %v1661 = vpop.f32.mrf.mxu0
      %v1662 = vadd.f32 %v1439, %v1661
      %v1663 = vpop.f32.mrf.mxu0
      %v1664 = vadd.f32 %v1441, %v1663
      %1665 = vdwg.mxu0
      %v1666 = vld [vmem:[#allocation2] sm:$0xe]
      %v1667 = vld [vmem:[#allocation2 + $0xc] sm:$0xe]
      %v1668 = vld [vmem:[#allocation2 + $0x18] sm:$0xe]
      %v1669 = vld [vmem:[#allocation2 + $0x24] sm:$0xe]
      %v1670 = vld [vmem:[#allocation2 + $0x30] sm:$0xe]
      %v1671 = vld [vmem:[#allocation2 + $0x3c] sm:$0xe]
      %v1672 = vld [vmem:[#allocation2 + $0x48] sm:$0xe]
      %v1673 = vld [vmem:[#allocation2 + $0x54] sm:$0xe]
      %v1674 = vld [vmem:[#allocation2 + $0x60] sm:$0xe]
      %v1675 = vld [vmem:[#allocation2 + $0x6c] sm:$0xe]
      %v1676 = vld [vmem:[#allocation2 + $0x78] sm:$0xe]
      %v1677 = vld [vmem:[#allocation2 + $0x84] sm:$0xe]
      %v1678 = vld [vmem:[#allocation2 + $0x90] sm:$0xe]
      %v1679 = vld [vmem:[#allocation2 + $0x9c] sm:$0xe]
      %v1680 = vld [vmem:[#allocation2 + $0xa8] sm:$0xe]
      %v1681 = vld [vmem:[#allocation2 + $0xb4] sm:$0xe]
      %vm1714 = vcmask 1042432
      %vm1715 = vcmask 1046532
      %vm1716 = vmor %vm1714, %vm1715
      %v1717 = vrot.slane %v1666, 5
      %v1718 = vrot.slane %v1717, 4
      %v1719 = vrot.slane %v812, 5
      %v1720 = vsel %vm1716, %v1718, %v1719
      %v1721 = vrot.slane %v1719, 4
      %v1722 = vrot.slane %v845, 5
      %v1723 = vsel %vm1716, %v1721, %v1722
      %v1724 = vrot.slane %v1667, 5
      %v1725 = vrot.slane %v1724, 4
      %v1726 = vrot.slane %v814, 5
      %v1727 = vsel %vm1716, %v1725, %v1726
      %v1728 = vrot.slane %v1726, 4
      %v1729 = vrot.slane %v846, 5
      %v1730 = vsel %vm1716, %v1728, %v1729
      %v1731 = vrot.slane %v1668, 5
      %v1732 = vrot.slane %v1731, 4
      %v1733 = vrot.slane %v816, 5
      %v1734 = vsel %vm1716, %v1732, %v1733
      %v1735 = vrot.slane %v1733, 4
      %v1736 = vrot.slane %v847, 5
      %v1737 = vsel %vm1716, %v1735, %v1736
      %v1738 = vrot.slane %v1669, 5
      %v1739 = vrot.slane %v1738, 4
      %v1740 = vrot.slane %v818, 5
      %v1741 = vsel %vm1716, %v1739, %v1740
      %v1742 = vrot.slane %v1740, 4
      %v1743 = vrot.slane %v848, 5
      %v1744 = vsel %vm1716, %v1742, %v1743
      %v1745 = vrot.slane %v1670, 5
      %v1746 = vrot.slane %v1745, 4
      %v1747 = vrot.slane %v820, 5
      %v1748 = vsel %vm1716, %v1746, %v1747
      %v1749 = vrot.slane %v1747, 4
      %v1750 = vrot.slane %v849, 5
      %v1751 = vsel %vm1716, %v1749, %v1750
      %v1752 = vrot.slane %v1671, 5
      %v1753 = vrot.slane %v1752, 4
      %v1754 = vrot.slane %v822, 5
      %v1755 = vsel %vm1716, %v1753, %v1754
      %v1756 = vrot.slane %v1754, 4
      %v1757 = vrot.slane %v850, 5
      %v1758 = vsel %vm1716, %v1756, %v1757
      %v1759 = vrot.slane %v1672, 5
      %v1760 = vrot.slane %v1759, 4
      %v1761 = vrot.slane %v824, 5
      %v1762 = vsel %vm1716, %v1760, %v1761
      %v1763 = vrot.slane %v1761, 4
      %v1764 = vrot.slane %v851, 5
      %v1765 = vsel %vm1716, %v1763, %v1764
      %v1766 = vrot.slane %v1673, 5
      %v1767 = vrot.slane %v1766, 4
      %v1768 = vrot.slane %v826, 5
      %v1769 = vsel %vm1716, %v1767, %v1768
      %v1770 = vrot.slane %v1768, 4
      %v1771 = vrot.slane %v852, 5
      %v1772 = vsel %vm1716, %v1770, %v1771
      %v1773 = vrot.slane %v1674, 5
      %v1774 = vrot.slane %v1773, 4
      %v1775 = vrot.slane %v828, 5
      %v1776 = vsel %vm1716, %v1774, %v1775
      %v1777 = vrot.slane %v1775, 4
      %v1778 = vrot.slane %v853, 5
      %v1779 = vsel %vm1716, %v1777, %v1778
      %v1780 = vrot.slane %v1675, 5
      %v1781 = vrot.slane %v1780, 4
      %v1782 = vrot.slane %v830, 5
      %v1783 = vsel %vm1716, %v1781, %v1782
      %v1784 = vrot.slane %v1782, 4
      %v1785 = vrot.slane %v854, 5
      %v1786 = vsel %vm1716, %v1784, %v1785
      %v1787 = vrot.slane %v1676, 5
      %v1788 = vrot.slane %v1787, 4
      %v1789 = vrot.slane %v832, 5
      %v1790 = vsel %vm1716, %v1788, %v1789
      %v1791 = vrot.slane %v1789, 4
      %v1792 = vrot.slane %v855, 5
      %v1793 = vsel %vm1716, %v1791, %v1792
      %v1794 = vrot.slane %v1677, 5
      %v1795 = vrot.slane %v1794, 4
      %v1796 = vrot.slane %v834, 5
      %v1797 = vsel %vm1716, %v1795, %v1796
      %v1798 = vrot.slane %v1796, 4
      %v1799 = vrot.slane %v856, 5
      %v1800 = vsel %vm1716, %v1798, %v1799
      %v1801 = vrot.slane %v1678, 5
      %v1802 = vrot.slane %v1801, 4
      %v1803 = vrot.slane %v836, 5
      %v1804 = vsel %vm1716, %v1802, %v1803
      %v1805 = vrot.slane %v1803, 4
      %v1806 = vrot.slane %v857, 5
      %v1807 = vsel %vm1716, %v1805, %v1806
      %v1808 = vrot.slane %v1679, 5
      %v1809 = vrot.slane %v1808, 4
      %v1810 = vrot.slane %v838, 5
      %v1811 = vsel %vm1716, %v1809, %v1810
      %v1812 = vrot.slane %v1810, 4
      %v1813 = vrot.slane %v858, 5
      %v1814 = vsel %vm1716, %v1812, %v1813
      %v1815 = vrot.slane %v1680, 5
      %v1816 = vrot.slane %v1815, 4
      %v1817 = vrot.slane %v840, 5
      %v1818 = vsel %vm1716, %v1816, %v1817
      %v1819 = vrot.slane %v1817, 4
      %v1820 = vrot.slane %v859, 5
      %v1821 = vsel %vm1716, %v1819, %v1820
      %v1822 = vrot.slane %v1681, 5
      %v1823 = vrot.slane %v1822, 4
      %v1824 = vrot.slane %v842, 5
      %v1825 = vsel %vm1716, %v1823, %v1824
      %v1826 = vrot.slane %v1824, 4
      %v1827 = vrot.slane %v860, 5
      %v1828 = vsel %vm1716, %v1826, %v1827
      %s1829 = scalar_lea.vmem %s1, 16
      %v1830 = vld [vmem:[%s1829] sm:$0xf]
      %v1831 = vld [vmem:[%s1829 + $0x4] sm:$0xf]
      %v1832 = vunpack.c.l.b16 %v1720
      %v1833 = vunpack.c.l.b16 %v1723
      %v1834 = vunpack.c.l.b16 %v1727
      %v1835 = vunpack.c.l.b16 %v1730
      %v1836 = vunpack.c.l.b16 %v1734
      %v1837 = vunpack.c.l.b16 %v1737
      %v1838 = vunpack.c.l.b16 %v1741
      %v1839 = vunpack.c.l.b16 %v1744
      %v1840 = vunpack.c.l.b16 %v1748
      %v1841 = vunpack.c.l.b16 %v1751
      %v1842 = vunpack.c.l.b16 %v1755
      %v1843 = vunpack.c.l.b16 %v1758
      %v1844 = vunpack.c.l.b16 %v1762
      %v1845 = vunpack.c.l.b16 %v1765
      %v1846 = vunpack.c.l.b16 %v1769
      %v1847 = vunpack.c.l.b16 %v1772
      %v1848 = vunpack.c.l.b16 %v1776
      %v1849 = vunpack.c.l.b16 %v1779
      %v1850 = vunpack.c.l.b16 %v1783
      %v1851 = vunpack.c.l.b16 %v1786
      %v1852 = vunpack.c.l.b16 %v1790
      %v1853 = vunpack.c.l.b16 %v1793
      %v1854 = vunpack.c.l.b16 %v1797
      %v1855 = vunpack.c.l.b16 %v1800
      %v1856 = vunpack.c.l.b16 %v1804
      %v1857 = vunpack.c.l.b16 %v1807
      %v1858 = vunpack.c.l.b16 %v1811
      %v1859 = vunpack.c.l.b16 %v1814
      %v1860 = vunpack.c.l.b16 %v1818
      %v1861 = vunpack.c.l.b16 %v1821
      %v1862 = vunpack.c.l.b16 %v1825
      %v1863 = vunpack.c.l.b16 %v1828
      %v1864 = vpack.c.b16 %v1833, %v1832
      %v1865 = vpack.c.b16 %v1835, %v1834
      %v1866 = vpack.c.b16 %v1837, %v1836
      %v1867 = vpack.c.b16 %v1839, %v1838
      %v1868 = vpack.c.b16 %v1841, %v1840
      %v1869 = vpack.c.b16 %v1843, %v1842
      %v1870 = vpack.c.b16 %v1845, %v1844
      %v1871 = vpack.c.b16 %v1847, %v1846
      %v1872 = vpack.c.b16 %v1849, %v1848
      %v1873 = vpack.c.b16 %v1851, %v1850
      %v1874 = vpack.c.b16 %v1853, %v1852
      %v1875 = vpack.c.b16 %v1855, %v1854
      %v1876 = vpack.c.b16 %v1857, %v1856
      %v1877 = vpack.c.b16 %v1859, %v1858
      %v1878 = vpack.c.b16 %v1861, %v1860
      %v1879 = vpack.c.b16 %v1863, %v1862
      %v1882 = vunpack.c.l.b16 %v1830
      %v1883 = vunpack.c.l.b16 %v1831
      %v1884 = vpack.c.b16 %v1883, %v1882
      %v1887 = vsel %vm1305, %v1864, 0
      %v1890 = vsel %vm1305, %v1865, 0
      %v1893 = vsel %vm1305, %v1866, 0
      %v1896 = vsel %vm1305, %v1867, 0
      %v1899 = vsel %vm1305, %v1868, 0
      %v1902 = vsel %vm1305, %v1869, 0
      %v1905 = vsel %vm1305, %v1870, 0
      %v1908 = vsel %vm1305, %v1871, 0
      %v1911 = vsel %vm1305, %v1872, 0
      %v1914 = vsel %vm1305, %v1873, 0
      %v1917 = vsel %vm1305, %v1874, 0
      %v1920 = vsel %vm1305, %v1875, 0
      %v1923 = vsel %vm1305, %v1876, 0
      %v1926 = vsel %vm1305, %v1877, 0
      %v1929 = vsel %vm1305, %v1878, 0
      %v1932 = vsel %vm1305, %v1879, 0
      %1934 = vmatpush.bf16.msra.mxu0 0
      %1935 = vmatpush.bf16.msra.mxu0 0
      %1936 = vmatpush.bf16.msra.mxu0 0
      %1937 = vmatpush.bf16.msra.mxu0 0
      %1938 = vmatpush.bf16.msra.mxu0 0
      %1939 = vmatpush.bf16.msra.mxu0 0
      %1940 = vmatpush.bf16.msra.mxu0 0
      %1941 = vmatpush.bf16.msra.mxu0 %v1884
      %1942 = vmatmul.bf16.gmra.mxu0 %v1887
      %v1943 = vpop.f32.mrf.mxu0
      %v1944 = vadd.f32 0.0, %v1943
      %v1945 = vpop.f32.mrf.mxu0
      %v1946 = vadd.f32 0.0, %v1945
      %1947 = vmatmul.bf16.gmra.mxu0 %v1890
      %v1948 = vpop.f32.mrf.mxu0
      %v1949 = vadd.f32 0.0, %v1948
      %v1950 = vpop.f32.mrf.mxu0
      %v1951 = vadd.f32 0.0, %v1950
      %1952 = vmatmul.bf16.gmra.mxu0 %v1893
      %v1953 = vpop.f32.mrf.mxu0
      %v1954 = vadd.f32 0.0, %v1953
      %v1955 = vpop.f32.mrf.mxu0
      %v1956 = vadd.f32 0.0, %v1955
      %1957 = vmatmul.bf16.gmra.mxu0 %v1896
      %v1958 = vpop.f32.mrf.mxu0
      %v1959 = vadd.f32 0.0, %v1958
      %v1960 = vpop.f32.mrf.mxu0
      %v1961 = vadd.f32 0.0, %v1960
      %1962 = vmatmul.bf16.gmra.mxu0 %v1899
      %v1963 = vpop.f32.mrf.mxu0
      %v1964 = vadd.f32 0.0, %v1963
      %v1965 = vpop.f32.mrf.mxu0
      %v1966 = vadd.f32 0.0, %v1965
      %1967 = vmatmul.bf16.gmra.mxu0 %v1902
      %v1968 = vpop.f32.mrf.mxu0
      %v1969 = vadd.f32 0.0, %v1968
      %v1970 = vpop.f32.mrf.mxu0
      %v1971 = vadd.f32 0.0, %v1970
      %1972 = vmatmul.bf16.gmra.mxu0 %v1905
      %v1973 = vpop.f32.mrf.mxu0
      %v1974 = vadd.f32 0.0, %v1973
      %v1975 = vpop.f32.mrf.mxu0
      %v1976 = vadd.f32 0.0, %v1975
      %1977 = vmatmul.bf16.gmra.mxu0 %v1908
      %v1978 = vpop.f32.mrf.mxu0
      %v1979 = vadd.f32 0.0, %v1978
      %v1980 = vpop.f32.mrf.mxu0
      %v1981 = vadd.f32 0.0, %v1980
      %1982 = vmatmul.bf16.gmra.mxu0 %v1911
      %v1983 = vpop.f32.mrf.mxu0
      %v1984 = vadd.f32 0.0, %v1983
      %v1985 = vpop.f32.mrf.mxu0
      %v1986 = vadd.f32 0.0, %v1985
      %1987 = vmatmul.bf16.gmra.mxu0 %v1914
      %v1988 = vpop.f32.mrf.mxu0
      %v1989 = vadd.f32 0.0, %v1988
      %v1990 = vpop.f32.mrf.mxu0
      %v1991 = vadd.f32 0.0, %v1990
      %1992 = vmatmul.bf16.gmra.mxu0 %v1917
      %v1993 = vpop.f32.mrf.mxu0
      %v1994 = vadd.f32 0.0, %v1993
      %v1995 = vpop.f32.mrf.mxu0
      %v1996 = vadd.f32 0.0, %v1995
      %1997 = vmatmul.bf16.gmra.mxu0 %v1920
      %v1998 = vpop.f32.mrf.mxu0
      %v1999 = vadd.f32 0.0, %v1998
      %v2000 = vpop.f32.mrf.mxu0
      %v2001 = vadd.f32 0.0, %v2000
      %2002 = vmatmul.bf16.gmra.mxu0 %v1923
      %v2003 = vpop.f32.mrf.mxu0
      %v2004 = vadd.f32 0.0, %v2003
      %v2005 = vpop.f32.mrf.mxu0
      %v2006 = vadd.f32 0.0, %v2005
      %2007 = vmatmul.bf16.gmra.mxu0 %v1926
      %v2008 = vpop.f32.mrf.mxu0
      %v2009 = vadd.f32 0.0, %v2008
      %v2010 = vpop.f32.mrf.mxu0
      %v2011 = vadd.f32 0.0, %v2010
      %2012 = vmatmul.bf16.gmra.mxu0 %v1929
      %v2013 = vpop.f32.mrf.mxu0
      %v2014 = vadd.f32 0.0, %v2013
      %v2015 = vpop.f32.mrf.mxu0
      %v2016 = vadd.f32 0.0, %v2015
      %2017 = vmatmul.bf16.gmra.mxu0 %v1932
      %v2018 = vpop.f32.mrf.mxu0
      %v2019 = vadd.f32 0.0, %v2018
      %v2020 = vpop.f32.mrf.mxu0
      %v2021 = vadd.f32 0.0, %v2020
      %2022 = vdwg.mxu0
      %v2023 = vadd.f32 %v1587, %v1944
      %v2024 = vadd.f32 %v1589, %v1946
      %v2025 = vadd.f32 %v1592, %v1949
      %v2026 = vadd.f32 %v1594, %v1951
      %v2027 = vadd.f32 %v1597, %v1954
      %v2028 = vadd.f32 %v1599, %v1956
      %v2029 = vadd.f32 %v1602, %v1959
      %v2030 = vadd.f32 %v1604, %v1961
      %v2031 = vadd.f32 %v1607, %v1964
      %v2032 = vadd.f32 %v1609, %v1966
      %v2033 = vadd.f32 %v1612, %v1969
      %v2034 = vadd.f32 %v1614, %v1971
      %v2035 = vadd.f32 %v1617, %v1974
      %v2036 = vadd.f32 %v1619, %v1976
      %v2037 = vadd.f32 %v1622, %v1979
      %v2038 = vadd.f32 %v1624, %v1981
      %v2039 = vadd.f32 %v1627, %v1984
      %v2040 = vadd.f32 %v1629, %v1986
      %v2041 = vadd.f32 %v1632, %v1989
      %v2042 = vadd.f32 %v1634, %v1991
      %v2043 = vadd.f32 %v1637, %v1994
      %v2044 = vadd.f32 %v1639, %v1996
      %v2045 = vadd.f32 %v1642, %v1999
      %v2046 = vadd.f32 %v1644, %v2001
      %v2047 = vadd.f32 %v1647, %v2004
      %v2048 = vadd.f32 %v1649, %v2006
      %v2049 = vadd.f32 %v1652, %v2009
      %v2050 = vadd.f32 %v1654, %v2011
      %v2051 = vadd.f32 %v1657, %v2014
      %v2052 = vadd.f32 %v1659, %v2016
      %v2053 = vadd.f32 %v1662, %v2019
      %v2054 = vadd.f32 %v1664, %v2021
      %v2055 = vld [vmem:[%s693] sm:$0xf]
      %v2056 = vld [vmem:[%s693 + $0x4] sm:$0xf]
      %v2057 = vld [vmem:[%s693 + $0xc] sm:$0xf]
      %v2058 = vld [vmem:[%s693 + $0x10] sm:$0xf]
      %v2059 = vld [vmem:[%s693 + $0x18] sm:$0xf]
      %v2060 = vld [vmem:[%s693 + $0x1c] sm:$0xf]
      %v2061 = vld [vmem:[%s693 + $0x24] sm:$0xf]
      %v2062 = vld [vmem:[%s693 + $0x28] sm:$0xf]
      %v2063 = vld [vmem:[%s693 + $0x30] sm:$0xf]
      %v2064 = vld [vmem:[%s693 + $0x34] sm:$0xf]
      %v2065 = vld [vmem:[%s693 + $0x3c] sm:$0xf]
      %v2066 = vld [vmem:[%s693 + $0x40] sm:$0xf]
      %v2067 = vld [vmem:[%s693 + $0x48] sm:$0xf]
      %v2068 = vld [vmem:[%s693 + $0x4c] sm:$0xf]
      %v2069 = vld [vmem:[%s693 + $0x54] sm:$0xf]
      %v2070 = vld [vmem:[%s693 + $0x58] sm:$0xf]
      %v2071 = vld [vmem:[%s693 + $0x60] sm:$0xf]
      %v2072 = vld [vmem:[%s693 + $0x64] sm:$0xf]
      %v2073 = vld [vmem:[%s693 + $0x6c] sm:$0xf]
      %v2074 = vld [vmem:[%s693 + $0x70] sm:$0xf]
      %v2075 = vld [vmem:[%s693 + $0x78] sm:$0xf]
      %v2076 = vld [vmem:[%s693 + $0x7c] sm:$0xf]
      %v2077 = vld [vmem:[%s693 + $0x84] sm:$0xf]
      %v2078 = vld [vmem:[%s693 + $0x88] sm:$0xf]
      %v2079 = vld [vmem:[%s693 + $0x90] sm:$0xf]
      %v2080 = vld [vmem:[%s693 + $0x94] sm:$0xf]
      %v2081 = vld [vmem:[%s693 + $0x9c] sm:$0xf]
      %v2082 = vld [vmem:[%s693 + $0xa0] sm:$0xf]
      %v2083 = vld [vmem:[%s693 + $0xa8] sm:$0xf]
      %v2084 = vld [vmem:[%s693 + $0xac] sm:$0xf]
      %v2085 = vld [vmem:[%s693 + $0xb4] sm:$0xf]
      %v2086 = vld [vmem:[%s693 + $0xb8] sm:$0xf]
      %s2087 = scalar_lea.vmem %s1, 24
      %v2088 = vld [vmem:[%s2087] sm:$0xf]
      %v2089 = vld [vmem:[%s2087 + $0x4] sm:$0xf]
      %v2122 = vunpack.c.l.b16 %v2055
      %v2123 = vunpack.c.l.b16 %v2056
      %v2124 = vunpack.c.l.b16 %v2057
      %v2125 = vunpack.c.l.b16 %v2058
      %v2126 = vunpack.c.l.b16 %v2059
      %v2127 = vunpack.c.l.b16 %v2060
      %v2128 = vunpack.c.l.b16 %v2061
      %v2129 = vunpack.c.l.b16 %v2062
      %v2130 = vunpack.c.l.b16 %v2063
      %v2131 = vunpack.c.l.b16 %v2064
      %v2132 = vunpack.c.l.b16 %v2065
      %v2133 = vunpack.c.l.b16 %v2066
      %v2134 = vunpack.c.l.b16 %v2067
      %v2135 = vunpack.c.l.b16 %v2068
      %v2136 = vunpack.c.l.b16 %v2069
      %v2137 = vunpack.c.l.b16 %v2070
      %v2138 = vunpack.c.l.b16 %v2071
      %v2139 = vunpack.c.l.b16 %v2072
      %v2140 = vunpack.c.l.b16 %v2073
      %v2141 = vunpack.c.l.b16 %v2074
      %v2142 = vunpack.c.l.b16 %v2075
      %v2143 = vunpack.c.l.b16 %v2076
      %v2144 = vunpack.c.l.b16 %v2077
      %v2145 = vunpack.c.l.b16 %v2078
      %v2146 = vunpack.c.l.b16 %v2079
      %v2147 = vunpack.c.l.b16 %v2080
      %v2148 = vunpack.c.l.b16 %v2081
      %v2149 = vunpack.c.l.b16 %v2082
      %v2150 = vunpack.c.l.b16 %v2083
      %v2151 = vunpack.c.l.b16 %v2084
      %v2152 = vunpack.c.l.b16 %v2085
      %v2153 = vunpack.c.l.b16 %v2086
      %v2154 = vpack.c.b16 %v2123, %v2122
      %v2155 = vpack.c.b16 %v2125, %v2124
      %v2156 = vpack.c.b16 %v2127, %v2126
      %v2157 = vpack.c.b16 %v2129, %v2128
      %v2158 = vpack.c.b16 %v2131, %v2130
      %v2159 = vpack.c.b16 %v2133, %v2132
      %v2160 = vpack.c.b16 %v2135, %v2134
      %v2161 = vpack.c.b16 %v2137, %v2136
      %v2162 = vpack.c.b16 %v2139, %v2138
      %v2163 = vpack.c.b16 %v2141, %v2140
      %v2164 = vpack.c.b16 %v2143, %v2142
      %v2165 = vpack.c.b16 %v2145, %v2144
      %v2166 = vpack.c.b16 %v2147, %v2146
      %v2167 = vpack.c.b16 %v2149, %v2148
      %v2168 = vpack.c.b16 %v2151, %v2150
      %v2169 = vpack.c.b16 %v2153, %v2152
      %v2172 = vunpack.c.l.b16 %v2088
      %v2173 = vunpack.c.l.b16 %v2089
      %v2174 = vpack.c.b16 %v2173, %v2172
      %v2177 = vsel %vm1305, %v2154, 0
      %v2180 = vsel %vm1305, %v2155, 0
      %v2183 = vsel %vm1305, %v2156, 0
      %v2186 = vsel %vm1305, %v2157, 0
      %v2189 = vsel %vm1305, %v2158, 0
      %v2192 = vsel %vm1305, %v2159, 0
      %v2195 = vsel %vm1305, %v2160, 0
      %v2198 = vsel %vm1305, %v2161, 0
      %v2201 = vsel %vm1305, %v2162, 0
      %v2204 = vsel %vm1305, %v2163, 0
      %v2207 = vsel %vm1305, %v2164, 0
      %v2210 = vsel %vm1305, %v2165, 0
      %v2213 = vsel %vm1305, %v2166, 0
      %v2216 = vsel %vm1305, %v2167, 0
      %v2219 = vsel %vm1305, %v2168, 0
      %v2222 = vsel %vm1305, %v2169, 0
      %2224 = vmatpush.bf16.msra.mxu0 0
      %2225 = vmatpush.bf16.msra.mxu0 0
      %2226 = vmatpush.bf16.msra.mxu0 0
      %2227 = vmatpush.bf16.msra.mxu0 0
      %2228 = vmatpush.bf16.msra.mxu0 0
      %2229 = vmatpush.bf16.msra.mxu0 0
      %2230 = vmatpush.bf16.msra.mxu0 0
      %2231 = vmatpush.bf16.msra.mxu0 %v2174
      %2232 = vmatmul.bf16.gmra.mxu0 %v2177
      %v2233 = vpop.f32.mrf.mxu0
      %v2234 = vadd.f32 0.0, %v2233
      %v2235 = vpop.f32.mrf.mxu0
      %v2236 = vadd.f32 0.0, %v2235
      %2237 = vmatmul.bf16.gmra.mxu0 %v2180
      %v2238 = vpop.f32.mrf.mxu0
      %v2239 = vadd.f32 0.0, %v2238
      %v2240 = vpop.f32.mrf.mxu0
      %v2241 = vadd.f32 0.0, %v2240
      %2242 = vmatmul.bf16.gmra.mxu0 %v2183
      %v2243 = vpop.f32.mrf.mxu0
      %v2244 = vadd.f32 0.0, %v2243
      %v2245 = vpop.f32.mrf.mxu0
      %v2246 = vadd.f32 0.0, %v2245
      %2247 = vmatmul.bf16.gmra.mxu0 %v2186
      %v2248 = vpop.f32.mrf.mxu0
      %v2249 = vadd.f32 0.0, %v2248
      %v2250 = vpop.f32.mrf.mxu0
      %v2251 = vadd.f32 0.0, %v2250
      %2252 = vmatmul.bf16.gmra.mxu0 %v2189
      %v2253 = vpop.f32.mrf.mxu0
      %v2254 = vadd.f32 0.0, %v2253
      %v2255 = vpop.f32.mrf.mxu0
      %v2256 = vadd.f32 0.0, %v2255
      %2257 = vmatmul.bf16.gmra.mxu0 %v2192
      %v2258 = vpop.f32.mrf.mxu0
      %v2259 = vadd.f32 0.0, %v2258
      %v2260 = vpop.f32.mrf.mxu0
      %v2261 = vadd.f32 0.0, %v2260
      %2262 = vmatmul.bf16.gmra.mxu0 %v2195
      %v2263 = vpop.f32.mrf.mxu0
      %v2264 = vadd.f32 0.0, %v2263
      %v2265 = vpop.f32.mrf.mxu0
      %v2266 = vadd.f32 0.0, %v2265
      %2267 = vmatmul.bf16.gmra.mxu0 %v2198
      %v2268 = vpop.f32.mrf.mxu0
      %v2269 = vadd.f32 0.0, %v2268
      %v2270 = vpop.f32.mrf.mxu0
      %v2271 = vadd.f32 0.0, %v2270
      %2272 = vmatmul.bf16.gmra.mxu0 %v2201
      %v2273 = vpop.f32.mrf.mxu0
      %v2274 = vadd.f32 0.0, %v2273
      %v2275 = vpop.f32.mrf.mxu0
      %v2276 = vadd.f32 0.0, %v2275
      %2277 = vmatmul.bf16.gmra.mxu0 %v2204
      %v2278 = vpop.f32.mrf.mxu0
      %v2279 = vadd.f32 0.0, %v2278
      %v2280 = vpop.f32.mrf.mxu0
      %v2281 = vadd.f32 0.0, %v2280
      %2282 = vmatmul.bf16.gmra.mxu0 %v2207
      %v2283 = vpop.f32.mrf.mxu0
      %v2284 = vadd.f32 0.0, %v2283
      %v2285 = vpop.f32.mrf.mxu0
      %v2286 = vadd.f32 0.0, %v2285
      %2287 = vmatmul.bf16.gmra.mxu0 %v2210
      %v2288 = vpop.f32.mrf.mxu0
      %v2289 = vadd.f32 0.0, %v2288
      %v2290 = vpop.f32.mrf.mxu0
      %v2291 = vadd.f32 0.0, %v2290
      %2292 = vmatmul.bf16.gmra.mxu0 %v2213
      %v2293 = vpop.f32.mrf.mxu0
      %v2294 = vadd.f32 0.0, %v2293
      %v2295 = vpop.f32.mrf.mxu0
      %v2296 = vadd.f32 0.0, %v2295
      %2297 = vmatmul.bf16.gmra.mxu0 %v2216
      %v2298 = vpop.f32.mrf.mxu0
      %v2299 = vadd.f32 0.0, %v2298
      %v2300 = vpop.f32.mrf.mxu0
      %v2301 = vadd.f32 0.0, %v2300
      %2302 = vmatmul.bf16.gmra.mxu0 %v2219
      %v2303 = vpop.f32.mrf.mxu0
      %v2304 = vadd.f32 0.0, %v2303
      %v2305 = vpop.f32.mrf.mxu0
      %v2306 = vadd.f32 0.0, %v2305
      %2307 = vmatmul.bf16.gmra.mxu0 %v2222
      %v2308 = vpop.f32.mrf.mxu0
      %v2309 = vadd.f32 0.0, %v2308
      %v2310 = vpop.f32.mrf.mxu0
      %v2311 = vadd.f32 0.0, %v2310
      %2312 = vdwg.mxu0
      %v2313 = vadd.f32 %v2023, %v2234
      %v2314 = vadd.f32 %v2024, %v2236
      %v2315 = vadd.f32 %v2025, %v2239
      %v2316 = vadd.f32 %v2026, %v2241
      %v2317 = vadd.f32 %v2027, %v2244
      %v2318 = vadd.f32 %v2028, %v2246
      %v2319 = vadd.f32 %v2029, %v2249
      %v2320 = vadd.f32 %v2030, %v2251
      %v2321 = vadd.f32 %v2031, %v2254
      %v2322 = vadd.f32 %v2032, %v2256
      %v2323 = vadd.f32 %v2033, %v2259
      %v2324 = vadd.f32 %v2034, %v2261
      %v2325 = vadd.f32 %v2035, %v2264
      %v2326 = vadd.f32 %v2036, %v2266
      %v2327 = vadd.f32 %v2037, %v2269
      %v2328 = vadd.f32 %v2038, %v2271
      %v2329 = vadd.f32 %v2039, %v2274
      %v2330 = vadd.f32 %v2040, %v2276
      %v2331 = vadd.f32 %v2041, %v2279
      %v2332 = vadd.f32 %v2042, %v2281
      %v2333 = vadd.f32 %v2043, %v2284
      %v2334 = vadd.f32 %v2044, %v2286
      %v2335 = vadd.f32 %v2045, %v2289
      %v2336 = vadd.f32 %v2046, %v2291
      %v2337 = vadd.f32 %v2047, %v2294
      %v2338 = vadd.f32 %v2048, %v2296
      %v2339 = vadd.f32 %v2049, %v2299
      %v2340 = vadd.f32 %v2050, %v2301
      %v2341 = vadd.f32 %v2051, %v2304
      %v2342 = vadd.f32 %v2052, %v2306
      %v2343 = vadd.f32 %v2053, %v2309
      %v2344 = vadd.f32 %v2054, %v2311
      %v2345 = vld [vmem:[%s693] sm:$0xf]
      %v2346 = vld [vmem:[%s693 + $0x4] sm:$0xf]
      %v2347 = vld [vmem:[%s693 + $0x8] sm:$0x1]
      %v2348 = vld [vmem:[%s693 + $0xc] sm:$0xf]
      %v2349 = vld [vmem:[%s693 + $0x10] sm:$0xf]
      %v2350 = vld [vmem:[%s693 + $0x14] sm:$0x1]
      %v2351 = vld [vmem:[%s693 + $0x18] sm:$0xf]
      %v2352 = vld [vmem:[%s693 + $0x1c] sm:$0xf]
      %v2353 = vld [vmem:[%s693 + $0x20] sm:$0x1]
      %v2354 = vld [vmem:[%s693 + $0x24] sm:$0xf]
      %v2355 = vld [vmem:[%s693 + $0x28] sm:$0xf]
      %v2356 = vld [vmem:[%s693 + $0x2c] sm:$0x1]
      %v2357 = vld [vmem:[%s693 + $0x30] sm:$0xf]
      %v2358 = vld [vmem:[%s693 + $0x34] sm:$0xf]
      %v2359 = vld [vmem:[%s693 + $0x38] sm:$0x1]
      %v2360 = vld [vmem:[%s693 + $0x3c] sm:$0xf]
      %v2361 = vld [vmem:[%s693 + $0x40] sm:$0xf]
      %v2362 = vld [vmem:[%s693 + $0x44] sm:$0x1]
      %v2363 = vld [vmem:[%s693 + $0x48] sm:$0xf]
      %v2364 = vld [vmem:[%s693 + $0x4c] sm:$0xf]
      %v2365 = vld [vmem:[%s693 + $0x50] sm:$0x1]
      %v2366 = vld [vmem:[%s693 + $0x54] sm:$0xf]
      %v2367 = vld [vmem:[%s693 + $0x58] sm:$0xf]
      %v2368 = vld [vmem:[%s693 + $0x5c] sm:$0x1]
      %v2369 = vld [vmem:[%s693 + $0x60] sm:$0xf]
      %v2370 = vld [vmem:[%s693 + $0x64] sm:$0xf]
      %v2371 = vld [vmem:[%s693 + $0x68] sm:$0x1]
      %v2372 = vld [vmem:[%s693 + $0x6c] sm:$0xf]
      %v2373 = vld [vmem:[%s693 + $0x70] sm:$0xf]
      %v2374 = vld [vmem:[%s693 + $0x74] sm:$0x1]
      %v2375 = vld [vmem:[%s693 + $0x78] sm:$0xf]
      %v2376 = vld [vmem:[%s693 + $0x7c] sm:$0xf]
      %v2377 = vld [vmem:[%s693 + $0x80] sm:$0x1]
      %v2378 = vld [vmem:[%s693 + $0x84] sm:$0xf]
      %v2379 = vld [vmem:[%s693 + $0x88] sm:$0xf]
      %v2380 = vld [vmem:[%s693 + $0x8c] sm:$0x1]
      %v2381 = vld [vmem:[%s693 + $0x90] sm:$0xf]
      %v2382 = vld [vmem:[%s693 + $0x94] sm:$0xf]
      %v2383 = vld [vmem:[%s693 + $0x98] sm:$0x1]
      %v2384 = vld [vmem:[%s693 + $0x9c] sm:$0xf]
      %v2385 = vld [vmem:[%s693 + $0xa0] sm:$0xf]
      %v2386 = vld [vmem:[%s693 + $0xa4] sm:$0x1]
      %v2387 = vld [vmem:[%s693 + $0xa8] sm:$0xf]
      %v2388 = vld [vmem:[%s693 + $0xac] sm:$0xf]
      %v2389 = vld [vmem:[%s693 + $0xb0] sm:$0x1]
      %v2390 = vld [vmem:[%s693 + $0xb4] sm:$0xf]
      %v2391 = vld [vmem:[%s693 + $0xb8] sm:$0xf]
      %v2392 = vld [vmem:[%s693 + $0xbc] sm:$0x1]
      %v2394 = vshrl.u32 %v2345, 16
      %v2396 = vrot.slane %v2394, 4
      %v2397 = vshll.u32 %v2345, 16
      %v2399 = vrot.slane %v2397, 5
      %v2400 = vor.u32 %v2396, %v2399
      %v2401 = vrot.slane %v2400, 4
      %v2403 = vshll.u32 %v2346, 16
      %v2405 = vrot.slane %v2403, 5
      %v2406 = vsel %vm863, %v2401, %v2405
      %v2407 = vshrl.u32 %v2346, 16
      %v2409 = vrot.slane %v2407, 4
      %v2410 = vor.u32 %v2409, %v2405
      %v2411 = vrot.slane %v2410, 4
      %v2413 = vshll.u32 %v2347, 16
      %v2415 = vrot.slane %v2413, 5
      %v2416 = vsel %vm863, %v2411, %v2415
      %v2418 = vshrl.u32 %v2348, 16
      %v2420 = vrot.slane %v2418, 4
      %v2421 = vshll.u32 %v2348, 16
      %v2423 = vrot.slane %v2421, 5
      %v2424 = vor.u32 %v2420, %v2423
      %v2425 = vrot.slane %v2424, 4
      %v2427 = vshll.u32 %v2349, 16
      %v2429 = vrot.slane %v2427, 5
      %v2430 = vsel %vm863, %v2425, %v2429
      %v2431 = vshrl.u32 %v2349, 16
      %v2433 = vrot.slane %v2431, 4
      %v2434 = vor.u32 %v2433, %v2429
      %v2435 = vrot.slane %v2434, 4
      %v2437 = vshll.u32 %v2350, 16
      %v2439 = vrot.slane %v2437, 5
      %v2440 = vsel %vm863, %v2435, %v2439
      %v2442 = vshrl.u32 %v2351, 16
      %v2444 = vrot.slane %v2442, 4
      %v2445 = vshll.u32 %v2351, 16
      %v2447 = vrot.slane %v2445, 5
      %v2448 = vor.u32 %v2444, %v2447
      %v2449 = vrot.slane %v2448, 4
      %v2451 = vshll.u32 %v2352, 16
      %v2453 = vrot.slane %v2451, 5
      %v2454 = vsel %vm863, %v2449, %v2453
      %v2455 = vshrl.u32 %v2352, 16
      %v2457 = vrot.slane %v2455, 4
      %v2458 = vor.u32 %v2457, %v2453
      %v2459 = vrot.slane %v2458, 4
      %v2461 = vshll.u32 %v2353, 16
      %v2463 = vrot.slane %v2461, 5
      %v2464 = vsel %vm863, %v2459, %v2463
      %v2466 = vshrl.u32 %v2354, 16
      %v2468 = vrot.slane %v2466, 4
      %v2469 = vshll.u32 %v2354, 16
      %v2471 = vrot.slane %v2469, 5
      %v2472 = vor.u32 %v2468, %v2471
      %v2473 = vrot.slane %v2472, 4
      %v2475 = vshll.u32 %v2355, 16
      %v2477 = vrot.slane %v2475, 5
      %v2478 = vsel %vm863, %v2473, %v2477
      %v2479 = vshrl.u32 %v2355, 16
      %v2481 = vrot.slane %v2479, 4
      %v2482 = vor.u32 %v2481, %v2477
      %v2483 = vrot.slane %v2482, 4
      %v2485 = vshll.u32 %v2356, 16
      %v2487 = vrot.slane %v2485, 5
      %v2488 = vsel %vm863, %v2483, %v2487
      %v2490 = vshrl.u32 %v2357, 16
      %v2492 = vrot.slane %v2490, 4
      %v2493 = vshll.u32 %v2357, 16
      %v2495 = vrot.slane %v2493, 5
      %v2496 = vor.u32 %v2492, %v2495
      %v2497 = vrot.slane %v2496, 4
      %v2499 = vshll.u32 %v2358, 16
      %v2501 = vrot.slane %v2499, 5
      %v2502 = vsel %vm863, %v2497, %v2501
      %v2503 = vshrl.u32 %v2358, 16
      %v2505 = vrot.slane %v2503, 4
      %v2506 = vor.u32 %v2505, %v2501
      %v2507 = vrot.slane %v2506, 4
      %v2509 = vshll.u32 %v2359, 16
      %v2511 = vrot.slane %v2509, 5
      %v2512 = vsel %vm863, %v2507, %v2511
      %v2514 = vshrl.u32 %v2360, 16
      %v2516 = vrot.slane %v2514, 4
      %v2517 = vshll.u32 %v2360, 16
      %v2519 = vrot.slane %v2517, 5
      %v2520 = vor.u32 %v2516, %v2519
      %v2521 = vrot.slane %v2520, 4
      %v2523 = vshll.u32 %v2361, 16
      %v2525 = vrot.slane %v2523, 5
      %v2526 = vsel %vm863, %v2521, %v2525
      %v2527 = vshrl.u32 %v2361, 16
      %v2529 = vrot.slane %v2527, 4
      %v2530 = vor.u32 %v2529, %v2525
      %v2531 = vrot.slane %v2530, 4
      %v2533 = vshll.u32 %v2362, 16
      %v2535 = vrot.slane %v2533, 5
      %v2536 = vsel %vm863, %v2531, %v2535
      %v2538 = vshrl.u32 %v2363, 16
      %v2540 = vrot.slane %v2538, 4
      %v2541 = vshll.u32 %v2363, 16
      %v2543 = vrot.slane %v2541, 5
      %v2544 = vor.u32 %v2540, %v2543
      %v2545 = vrot.slane %v2544, 4
      %v2547 = vshll.u32 %v2364, 16
      %v2549 = vrot.slane %v2547, 5
      %v2550 = vsel %vm863, %v2545, %v2549
      %v2551 = vshrl.u32 %v2364, 16
      %v2553 = vrot.slane %v2551, 4
      %v2554 = vor.u32 %v2553, %v2549
      %v2555 = vrot.slane %v2554, 4
      %v2557 = vshll.u32 %v2365, 16
      %v2559 = vrot.slane %v2557, 5
      %v2560 = vsel %vm863, %v2555, %v2559
      %v2562 = vshrl.u32 %v2366, 16
      %v2564 = vrot.slane %v2562, 4
      %v2565 = vshll.u32 %v2366, 16
      %v2567 = vrot.slane %v2565, 5
      %v2568 = vor.u32 %v2564, %v2567
      %v2569 = vrot.slane %v2568, 4
      %v2571 = vshll.u32 %v2367, 16
      %v2573 = vrot.slane %v2571, 5
      %v2574 = vsel %vm863, %v2569, %v2573
      %v2575 = vshrl.u32 %v2367, 16
      %v2577 = vrot.slane %v2575, 4
      %v2578 = vor.u32 %v2577, %v2573
      %v2579 = vrot.slane %v2578, 4
      %v2581 = vshll.u32 %v2368, 16
      %v2583 = vrot.slane %v2581, 5
      %v2584 = vsel %vm863, %v2579, %v2583
      %v2586 = vshrl.u32 %v2369, 16
      %v2588 = vrot.slane %v2586, 4
      %v2589 = vshll.u32 %v2369, 16
      %v2591 = vrot.slane %v2589, 5
      %v2592 = vor.u32 %v2588, %v2591
      %v2593 = vrot.slane %v2592, 4
      %v2595 = vshll.u32 %v2370, 16
      %v2597 = vrot.slane %v2595, 5
      %v2598 = vsel %vm863, %v2593, %v2597
      %v2599 = vshrl.u32 %v2370, 16
      %v2601 = vrot.slane %v2599, 4
      %v2602 = vor.u32 %v2601, %v2597
      %v2603 = vrot.slane %v2602, 4
      %v2605 = vshll.u32 %v2371, 16
      %v2607 = vrot.slane %v2605, 5
      %v2608 = vsel %vm863, %v2603, %v2607
      %v2610 = vshrl.u32 %v2372, 16
      %v2612 = vrot.slane %v2610, 4
      %v2613 = vshll.u32 %v2372, 16
      %v2615 = vrot.slane %v2613, 5
      %v2616 = vor.u32 %v2612, %v2615
      %v2617 = vrot.slane %v2616, 4
      %v2619 = vshll.u32 %v2373, 16
      %v2621 = vrot.slane %v2619, 5
      %v2622 = vsel %vm863, %v2617, %v2621
      %v2623 = vshrl.u32 %v2373, 16
      %v2625 = vrot.slane %v2623, 4
      %v2626 = vor.u32 %v2625, %v2621
      %v2627 = vrot.slane %v2626, 4
      %v2629 = vshll.u32 %v2374, 16
      %v2631 = vrot.slane %v2629, 5
      %v2632 = vsel %vm863, %v2627, %v2631
      %v2634 = vshrl.u32 %v2375, 16
      %v2636 = vrot.slane %v2634, 4
      %v2637 = vshll.u32 %v2375, 16
      %v2639 = vrot.slane %v2637, 5
      %v2640 = vor.u32 %v2636, %v2639
      %v2641 = vrot.slane %v2640, 4
      %v2643 = vshll.u32 %v2376, 16
      %v2645 = vrot.slane %v2643, 5
      %v2646 = vsel %vm863, %v2641, %v2645
      %v2647 = vshrl.u32 %v2376, 16
      %v2649 = vrot.slane %v2647, 4
      %v2650 = vor.u32 %v2649, %v2645
      %v2651 = vrot.slane %v2650, 4
      %v2653 = vshll.u32 %v2377, 16
      %v2655 = vrot.slane %v2653, 5
      %v2656 = vsel %vm863, %v2651, %v2655
      %v2658 = vshrl.u32 %v2378, 16
      %v2660 = vrot.slane %v2658, 4
      %v2661 = vshll.u32 %v2378, 16
      %v2663 = vrot.slane %v2661, 5
      %v2664 = vor.u32 %v2660, %v2663
      %v2665 = vrot.slane %v2664, 4
      %v2667 = vshll.u32 %v2379, 16
      %v2669 = vrot.slane %v2667, 5
      %v2670 = vsel %vm863, %v2665, %v2669
      %v2671 = vshrl.u32 %v2379, 16
      %v2673 = vrot.slane %v2671, 4
      %v2674 = vor.u32 %v2673, %v2669
      %v2675 = vrot.slane %v2674, 4
      %v2677 = vshll.u32 %v2380, 16
      %v2679 = vrot.slane %v2677, 5
      %v2680 = vsel %vm863, %v2675, %v2679
      %v2682 = vshrl.u32 %v2381, 16
      %v2684 = vrot.slane %v2682, 4
      %v2685 = vshll.u32 %v2381, 16
      %v2687 = vrot.slane %v2685, 5
      %v2688 = vor.u32 %v2684, %v2687
      %v2689 = vrot.slane %v2688, 4
      %v2691 = vshll.u32 %v2382, 16
      %v2693 = vrot.slane %v2691, 5
      %v2694 = vsel %vm863, %v2689, %v2693
      %v2695 = vshrl.u32 %v2382, 16
      %v2697 = vrot.slane %v2695, 4
      %v2698 = vor.u32 %v2697, %v2693
      %v2699 = vrot.slane %v2698, 4
      %v2701 = vshll.u32 %v2383, 16
      %v2703 = vrot.slane %v2701, 5
      %v2704 = vsel %vm863, %v2699, %v2703
      %v2706 = vshrl.u32 %v2384, 16
      %v2708 = vrot.slane %v2706, 4
      %v2709 = vshll.u32 %v2384, 16
      %v2711 = vrot.slane %v2709, 5
      %v2712 = vor.u32 %v2708, %v2711
      %v2713 = vrot.slane %v2712, 4
      %v2715 = vshll.u32 %v2385, 16
      %v2717 = vrot.slane %v2715, 5
      %v2718 = vsel %vm863, %v2713, %v2717
      %v2719 = vshrl.u32 %v2385, 16
      %v2721 = vrot.slane %v2719, 4
      %v2722 = vor.u32 %v2721, %v2717
      %v2723 = vrot.slane %v2722, 4
      %v2725 = vshll.u32 %v2386, 16
      %v2727 = vrot.slane %v2725, 5
      %v2728 = vsel %vm863, %v2723, %v2727
      %v2730 = vshrl.u32 %v2387, 16
      %v2732 = vrot.slane %v2730, 4
      %v2733 = vshll.u32 %v2387, 16
      %v2735 = vrot.slane %v2733, 5
      %v2736 = vor.u32 %v2732, %v2735
      %v2737 = vrot.slane %v2736, 4
      %v2739 = vshll.u32 %v2388, 16
      %v2741 = vrot.slane %v2739, 5
      %v2742 = vsel %vm863, %v2737, %v2741
      %v2743 = vshrl.u32 %v2388, 16
      %v2745 = vrot.slane %v2743, 4
      %v2746 = vor.u32 %v2745, %v2741
      %v2747 = vrot.slane %v2746, 4
      %v2749 = vshll.u32 %v2389, 16
      %v2751 = vrot.slane %v2749, 5
      %v2752 = vsel %vm863, %v2747, %v2751
      %v2754 = vshrl.u32 %v2390, 16
      %v2756 = vrot.slane %v2754, 4
      %v2757 = vshll.u32 %v2390, 16
      %v2759 = vrot.slane %v2757, 5
      %v2760 = vor.u32 %v2756, %v2759
      %v2761 = vrot.slane %v2760, 4
      %v2763 = vshll.u32 %v2391, 16
      %v2765 = vrot.slane %v2763, 5
      %v2766 = vsel %vm863, %v2761, %v2765
      %v2767 = vshrl.u32 %v2391, 16
      %v2769 = vrot.slane %v2767, 4
      %v2770 = vor.u32 %v2769, %v2765
      %v2771 = vrot.slane %v2770, 4
      %v2773 = vshll.u32 %v2392, 16
      %v2775 = vrot.slane %v2773, 5
      %v2776 = vsel %vm863, %v2771, %v2775
      %s2777 = scalar_lea.vmem %s1, 32
      %v2778 = vld [vmem:[%s2777] sm:$0xf]
      %v2779 = vld [vmem:[%s2777 + $0x4] sm:$0xf]
      %v2780 = vunpack.c.l.b16 %v2406
      %v2781 = vunpack.c.l.b16 %v2416
      %v2782 = vunpack.c.l.b16 %v2430
      %v2783 = vunpack.c.l.b16 %v2440
      %v2784 = vunpack.c.l.b16 %v2454
      %v2785 = vunpack.c.l.b16 %v2464
      %v2786 = vunpack.c.l.b16 %v2478
      %v2787 = vunpack.c.l.b16 %v2488
      %v2788 = vunpack.c.l.b16 %v2502
      %v2789 = vunpack.c.l.b16 %v2512
      %v2790 = vunpack.c.l.b16 %v2526
      %v2791 = vunpack.c.l.b16 %v2536
      %v2792 = vunpack.c.l.b16 %v2550
      %v2793 = vunpack.c.l.b16 %v2560
      %v2794 = vunpack.c.l.b16 %v2574
      %v2795 = vunpack.c.l.b16 %v2584
      %v2796 = vunpack.c.l.b16 %v2598
      %v2797 = vunpack.c.l.b16 %v2608
      %v2798 = vunpack.c.l.b16 %v2622
      %v2799 = vunpack.c.l.b16 %v2632
      %v2800 = vunpack.c.l.b16 %v2646
      %v2801 = vunpack.c.l.b16 %v2656
      %v2802 = vunpack.c.l.b16 %v2670
      %v2803 = vunpack.c.l.b16 %v2680
      %v2804 = vunpack.c.l.b16 %v2694
      %v2805 = vunpack.c.l.b16 %v2704
      %v2806 = vunpack.c.l.b16 %v2718
      %v2807 = vunpack.c.l.b16 %v2728
      %v2808 = vunpack.c.l.b16 %v2742
      %v2809 = vunpack.c.l.b16 %v2752
      %v2810 = vunpack.c.l.b16 %v2766
      %v2811 = vunpack.c.l.b16 %v2776
      %v2812 = vpack.c.b16 %v2781, %v2780
      %v2813 = vpack.c.b16 %v2783, %v2782
      %v2814 = vpack.c.b16 %v2785, %v2784
      %v2815 = vpack.c.b16 %v2787, %v2786
      %v2816 = vpack.c.b16 %v2789, %v2788
      %v2817 = vpack.c.b16 %v2791, %v2790
      %v2818 = vpack.c.b16 %v2793, %v2792
      %v2819 = vpack.c.b16 %v2795, %v2794
      %v2820 = vpack.c.b16 %v2797, %v2796
      %v2821 = vpack.c.b16 %v2799, %v2798
      %v2822 = vpack.c.b16 %v2801, %v2800
      %v2823 = vpack.c.b16 %v2803, %v2802
      %v2824 = vpack.c.b16 %v2805, %v2804
      %v2825 = vpack.c.b16 %v2807, %v2806
      %v2826 = vpack.c.b16 %v2809, %v2808
      %v2827 = vpack.c.b16 %v2811, %v2810
      %v2830 = vunpack.c.l.b16 %v2778
      %v2831 = vunpack.c.l.b16 %v2779
      %v2832 = vpack.c.b16 %v2831, %v2830
      %v2835 = vsel %vm1305, %v2812, 0
      %v2838 = vsel %vm1305, %v2813, 0
      %v2841 = vsel %vm1305, %v2814, 0
      %v2844 = vsel %vm1305, %v2815, 0
      %v2847 = vsel %vm1305, %v2816, 0
      %v2850 = vsel %vm1305, %v2817, 0
      %v2853 = vsel %vm1305, %v2818, 0
      %v2856 = vsel %vm1305, %v2819, 0
      %v2859 = vsel %vm1305, %v2820, 0
      %v2862 = vsel %vm1305, %v2821, 0
      %v2865 = vsel %vm1305, %v2822, 0
      %v2868 = vsel %vm1305, %v2823, 0
      %v2871 = vsel %vm1305, %v2824, 0
      %v2874 = vsel %vm1305, %v2825, 0
      %v2877 = vsel %vm1305, %v2826, 0
      %v2880 = vsel %vm1305, %v2827, 0
      %2882 = vmatpush.bf16.msra.mxu0 0
      %2883 = vmatpush.bf16.msra.mxu0 0
      %2884 = vmatpush.bf16.msra.mxu0 0
      %2885 = vmatpush.bf16.msra.mxu0 0
      %2886 = vmatpush.bf16.msra.mxu0 0
      %2887 = vmatpush.bf16.msra.mxu0 0
      %2888 = vmatpush.bf16.msra.mxu0 0
      %2889 = vmatpush.bf16.msra.mxu0 %v2832
      %2890 = vmatmul.bf16.gmra.mxu0 %v2835
      %v2891 = vpop.f32.mrf.mxu0
      %v2892 = vadd.f32 0.0, %v2891
      %v2893 = vpop.f32.mrf.mxu0
      %v2894 = vadd.f32 0.0, %v2893
      %2895 = vmatmul.bf16.gmra.mxu0 %v2838
      %v2896 = vpop.f32.mrf.mxu0
      %v2897 = vadd.f32 0.0, %v2896
      %v2898 = vpop.f32.mrf.mxu0
      %v2899 = vadd.f32 0.0, %v2898
      %2900 = vmatmul.bf16.gmra.mxu0 %v2841
      %v2901 = vpop.f32.mrf.mxu0
      %v2902 = vadd.f32 0.0, %v2901
      %v2903 = vpop.f32.mrf.mxu0
      %v2904 = vadd.f32 0.0, %v2903
      %2905 = vmatmul.bf16.gmra.mxu0 %v2844
      %v2906 = vpop.f32.mrf.mxu0
      %v2907 = vadd.f32 0.0, %v2906
      %v2908 = vpop.f32.mrf.mxu0
      %v2909 = vadd.f32 0.0, %v2908
      %2910 = vmatmul.bf16.gmra.mxu0 %v2847
      %v2911 = vpop.f32.mrf.mxu0
      %v2912 = vadd.f32 0.0, %v2911
      %v2913 = vpop.f32.mrf.mxu0
      %v2914 = vadd.f32 0.0, %v2913
      %2915 = vmatmul.bf16.gmra.mxu0 %v2850
      %v2916 = vpop.f32.mrf.mxu0
      %v2917 = vadd.f32 0.0, %v2916
      %v2918 = vpop.f32.mrf.mxu0
      %v2919 = vadd.f32 0.0, %v2918
      %2920 = vmatmul.bf16.gmra.mxu0 %v2853
      %v2921 = vpop.f32.mrf.mxu0
      %v2922 = vadd.f32 0.0, %v2921
      %v2923 = vpop.f32.mrf.mxu0
      %v2924 = vadd.f32 0.0, %v2923
      %2925 = vmatmul.bf16.gmra.mxu0 %v2856
      %v2926 = vpop.f32.mrf.mxu0
      %v2927 = vadd.f32 0.0, %v2926
      %v2928 = vpop.f32.mrf.mxu0
      %v2929 = vadd.f32 0.0, %v2928
      %2930 = vmatmul.bf16.gmra.mxu0 %v2859
      %v2931 = vpop.f32.mrf.mxu0
      %v2932 = vadd.f32 0.0, %v2931
      %v2933 = vpop.f32.mrf.mxu0
      %v2934 = vadd.f32 0.0, %v2933
      %2935 = vmatmul.bf16.gmra.mxu0 %v2862
      %v2936 = vpop.f32.mrf.mxu0
      %v2937 = vadd.f32 0.0, %v2936
      %v2938 = vpop.f32.mrf.mxu0
      %v2939 = vadd.f32 0.0, %v2938
      %2940 = vmatmul.bf16.gmra.mxu0 %v2865
      %v2941 = vpop.f32.mrf.mxu0
      %v2942 = vadd.f32 0.0, %v2941
      %v2943 = vpop.f32.mrf.mxu0
      %v2944 = vadd.f32 0.0, %v2943
      %2945 = vmatmul.bf16.gmra.mxu0 %v2868
      %v2946 = vpop.f32.mrf.mxu0
      %v2947 = vadd.f32 0.0, %v2946
      %v2948 = vpop.f32.mrf.mxu0
      %v2949 = vadd.f32 0.0, %v2948
      %2950 = vmatmul.bf16.gmra.mxu0 %v2871
      %v2951 = vpop.f32.mrf.mxu0
      %v2952 = vadd.f32 0.0, %v2951
      %v2953 = vpop.f32.mrf.mxu0
      %v2954 = vadd.f32 0.0, %v2953
      %2955 = vmatmul.bf16.gmra.mxu0 %v2874
      %v2956 = vpop.f32.mrf.mxu0
      %v2957 = vadd.f32 0.0, %v2956
      %v2958 = vpop.f32.mrf.mxu0
      %v2959 = vadd.f32 0.0, %v2958
      %2960 = vmatmul.bf16.gmra.mxu0 %v2877
      %v2961 = vpop.f32.mrf.mxu0
      %v2962 = vadd.f32 0.0, %v2961
      %v2963 = vpop.f32.mrf.mxu0
      %v2964 = vadd.f32 0.0, %v2963
      %2965 = vmatmul.bf16.gmra.mxu0 %v2880
      %v2966 = vpop.f32.mrf.mxu0
      %v2967 = vadd.f32 0.0, %v2966
      %v2968 = vpop.f32.mrf.mxu0
      %v2969 = vadd.f32 0.0, %v2968
      %2970 = vdwg.mxu0
      %v2971 = vadd.f32 %v2313, %v2892
      %v2972 = vadd.f32 %v2314, %v2894
      %v2973 = vadd.f32 %v2315, %v2897
      %v2974 = vadd.f32 %v2316, %v2899
      %v2975 = vadd.f32 %v2317, %v2902
      %v2976 = vadd.f32 %v2318, %v2904
      %v2977 = vadd.f32 %v2319, %v2907
      %v2978 = vadd.f32 %v2320, %v2909
      %v2979 = vadd.f32 %v2321, %v2912
      %v2980 = vadd.f32 %v2322, %v2914
      %v2981 = vadd.f32 %v2323, %v2917
      %v2982 = vadd.f32 %v2324, %v2919
      %v2983 = vadd.f32 %v2325, %v2922
      %v2984 = vadd.f32 %v2326, %v2924
      %v2985 = vadd.f32 %v2327, %v2927
      %v2986 = vadd.f32 %v2328, %v2929
      %v2987 = vadd.f32 %v2329, %v2932
      %v2988 = vadd.f32 %v2330, %v2934
      %v2989 = vadd.f32 %v2331, %v2937
      %v2990 = vadd.f32 %v2332, %v2939
      %v2991 = vadd.f32 %v2333, %v2942
      %v2992 = vadd.f32 %v2334, %v2944
      %v2993 = vadd.f32 %v2335, %v2947
      %v2994 = vadd.f32 %v2336, %v2949
      %v2995 = vadd.f32 %v2337, %v2952
      %v2996 = vadd.f32 %v2338, %v2954
      %v2997 = vadd.f32 %v2339, %v2957
      %v2998 = vadd.f32 %v2340, %v2959
      %v2999 = vadd.f32 %v2341, %v2962
      %v3000 = vadd.f32 %v2342, %v2964
      %v3001 = vadd.f32 %v2343, %v2967
      %v3002 = vadd.f32 %v2344, %v2969
      %v3003 = vld [vmem:[%s693] sm:$0xe]
      %v3004 = vld [vmem:[%s693 + $0xc] sm:$0xe]
      %v3005 = vld [vmem:[%s693 + $0x18] sm:$0xe]
      %v3006 = vld [vmem:[%s693 + $0x24] sm:$0xe]
      %v3007 = vld [vmem:[%s693 + $0x30] sm:$0xe]
      %v3008 = vld [vmem:[%s693 + $0x3c] sm:$0xe]
      %v3009 = vld [vmem:[%s693 + $0x48] sm:$0xe]
      %v3010 = vld [vmem:[%s693 + $0x54] sm:$0xe]
      %v3011 = vld [vmem:[%s693 + $0x60] sm:$0xe]
      %v3012 = vld [vmem:[%s693 + $0x6c] sm:$0xe]
      %v3013 = vld [vmem:[%s693 + $0x78] sm:$0xe]
      %v3014 = vld [vmem:[%s693 + $0x84] sm:$0xe]
      %v3015 = vld [vmem:[%s693 + $0x90] sm:$0xe]
      %v3016 = vld [vmem:[%s693 + $0x9c] sm:$0xe]
      %v3017 = vld [vmem:[%s693 + $0xa8] sm:$0xe]
      %v3018 = vld [vmem:[%s693 + $0xb4] sm:$0xe]
      %v3067 = vrot.slane %v3003, 5
      %v3068 = vrot.slane %v3067, 4
      %v3069 = vrot.slane %v2346, 5
      %v3070 = vsel %vm1716, %v3068, %v3069
      %v3071 = vrot.slane %v3069, 4
      %v3072 = vrot.slane %v2347, 5
      %v3073 = vsel %vm1716, %v3071, %v3072
      %v3074 = vrot.slane %v3004, 5
      %v3075 = vrot.slane %v3074, 4
      %v3076 = vrot.slane %v2349, 5
      %v3077 = vsel %vm1716, %v3075, %v3076
      %v3078 = vrot.slane %v3076, 4
      %v3079 = vrot.slane %v2350, 5
      %v3080 = vsel %vm1716, %v3078, %v3079
      %v3081 = vrot.slane %v3005, 5
      %v3082 = vrot.slane %v3081, 4
      %v3083 = vrot.slane %v2352, 5
      %v3084 = vsel %vm1716, %v3082, %v3083
      %v3085 = vrot.slane %v3083, 4
      %v3086 = vrot.slane %v2353, 5
      %v3087 = vsel %vm1716, %v3085, %v3086
      %v3088 = vrot.slane %v3006, 5
      %v3089 = vrot.slane %v3088, 4
      %v3090 = vrot.slane %v2355, 5
      %v3091 = vsel %vm1716, %v3089, %v3090
      %v3092 = vrot.slane %v3090, 4
      %v3093 = vrot.slane %v2356, 5
      %v3094 = vsel %vm1716, %v3092, %v3093
      %v3095 = vrot.slane %v3007, 5
      %v3096 = vrot.slane %v3095, 4
      %v3097 = vrot.slane %v2358, 5
      %v3098 = vsel %vm1716, %v3096, %v3097
      %v3099 = vrot.slane %v3097, 4
      %v3100 = vrot.slane %v2359, 5
      %v3101 = vsel %vm1716, %v3099, %v3100
      %v3102 = vrot.slane %v3008, 5
      %v3103 = vrot.slane %v3102, 4
      %v3104 = vrot.slane %v2361, 5
      %v3105 = vsel %vm1716, %v3103, %v3104
      %v3106 = vrot.slane %v3104, 4
      %v3107 = vrot.slane %v2362, 5
      %v3108 = vsel %vm1716, %v3106, %v3107
      %v3109 = vrot.slane %v3009, 5
      %v3110 = vrot.slane %v3109, 4
      %v3111 = vrot.slane %v2364, 5
      %v3112 = vsel %vm1716, %v3110, %v3111
      %v3113 = vrot.slane %v3111, 4
      %v3114 = vrot.slane %v2365, 5
      %v3115 = vsel %vm1716, %v3113, %v3114
      %v3116 = vrot.slane %v3010, 5
      %v3117 = vrot.slane %v3116, 4
      %v3118 = vrot.slane %v2367, 5
      %v3119 = vsel %vm1716, %v3117, %v3118
      %v3120 = vrot.slane %v3118, 4
      %v3121 = vrot.slane %v2368, 5
      %v3122 = vsel %vm1716, %v3120, %v3121
      %v3123 = vrot.slane %v3011, 5
      %v3124 = vrot.slane %v3123, 4
      %v3125 = vrot.slane %v2370, 5
      %v3126 = vsel %vm1716, %v3124, %v3125
      %v3127 = vrot.slane %v3125, 4
      %v3128 = vrot.slane %v2371, 5
      %v3129 = vsel %vm1716, %v3127, %v3128
      %v3130 = vrot.slane %v3012, 5
      %v3131 = vrot.slane %v3130, 4
      %v3132 = vrot.slane %v2373, 5
      %v3133 = vsel %vm1716, %v3131, %v3132
      %v3134 = vrot.slane %v3132, 4
      %v3135 = vrot.slane %v2374, 5
      %v3136 = vsel %vm1716, %v3134, %v3135
      %v3137 = vrot.slane %v3013, 5
      %v3138 = vrot.slane %v3137, 4
      %v3139 = vrot.slane %v2376, 5
      %v3140 = vsel %vm1716, %v3138, %v3139
      %v3141 = vrot.slane %v3139, 4
      %v3142 = vrot.slane %v2377, 5
      %v3143 = vsel %vm1716, %v3141, %v3142
      %v3144 = vrot.slane %v3014, 5
      %v3145 = vrot.slane %v3144, 4
      %v3146 = vrot.slane %v2379, 5
      %v3147 = vsel %vm1716, %v3145, %v3146
      %v3148 = vrot.slane %v3146, 4
      %v3149 = vrot.slane %v2380, 5
      %v3150 = vsel %vm1716, %v3148, %v3149
      %v3151 = vrot.slane %v3015, 5
      %v3152 = vrot.slane %v3151, 4
      %v3153 = vrot.slane %v2382, 5
      %v3154 = vsel %vm1716, %v3152, %v3153
      %v3155 = vrot.slane %v3153, 4
      %v3156 = vrot.slane %v2383, 5
      %v3157 = vsel %vm1716, %v3155, %v3156
      %v3158 = vrot.slane %v3016, 5
      %v3159 = vrot.slane %v3158, 4
      %v3160 = vrot.slane %v2385, 5
      %v3161 = vsel %vm1716, %v3159, %v3160
      %v3162 = vrot.slane %v3160, 4
      %v3163 = vrot.slane %v2386, 5
      %v3164 = vsel %vm1716, %v3162, %v3163
      %v3165 = vrot.slane %v3017, 5
      %v3166 = vrot.slane %v3165, 4
      %v3167 = vrot.slane %v2388, 5
      %v3168 = vsel %vm1716, %v3166, %v3167
      %v3169 = vrot.slane %v3167, 4
      %v3170 = vrot.slane %v2389, 5
      %v3171 = vsel %vm1716, %v3169, %v3170
      %v3172 = vrot.slane %v3018, 5
      %v3173 = vrot.slane %v3172, 4
      %v3174 = vrot.slane %v2391, 5
      %v3175 = vsel %vm1716, %v3173, %v3174
      %v3176 = vrot.slane %v3174, 4
      %v3177 = vrot.slane %v2392, 5
      %v3178 = vsel %vm1716, %v3176, %v3177
      %s3179 = scalar_lea.vmem %s1, 40
      %v3180 = vld [vmem:[%s3179] sm:$0xf]
      %v3181 = vld [vmem:[%s3179 + $0x4] sm:$0xf]
      %v3182 = vunpack.c.l.b16 %v3070
      %v3183 = vunpack.c.l.b16 %v3073
      %v3184 = vunpack.c.l.b16 %v3077
      %v3185 = vunpack.c.l.b16 %v3080
      %v3186 = vunpack.c.l.b16 %v3084
      %v3187 = vunpack.c.l.b16 %v3087
      %v3188 = vunpack.c.l.b16 %v3091
      %v3189 = vunpack.c.l.b16 %v3094
      %v3190 = vunpack.c.l.b16 %v3098
      %v3191 = vunpack.c.l.b16 %v3101
      %v3192 = vunpack.c.l.b16 %v3105
      %v3193 = vunpack.c.l.b16 %v3108
      %v3194 = vunpack.c.l.b16 %v3112
      %v3195 = vunpack.c.l.b16 %v3115
      %v3196 = vunpack.c.l.b16 %v3119
      %v3197 = vunpack.c.l.b16 %v3122
      %v3198 = vunpack.c.l.b16 %v3126
      %v3199 = vunpack.c.l.b16 %v3129
      %v3200 = vunpack.c.l.b16 %v3133
      %v3201 = vunpack.c.l.b16 %v3136
      %v3202 = vunpack.c.l.b16 %v3140
      %v3203 = vunpack.c.l.b16 %v3143
      %v3204 = vunpack.c.l.b16 %v3147
      %v3205 = vunpack.c.l.b16 %v3150
      %v3206 = vunpack.c.l.b16 %v3154
      %v3207 = vunpack.c.l.b16 %v3157
      %v3208 = vunpack.c.l.b16 %v3161
      %v3209 = vunpack.c.l.b16 %v3164
      %v3210 = vunpack.c.l.b16 %v3168
      %v3211 = vunpack.c.l.b16 %v3171
      %v3212 = vunpack.c.l.b16 %v3175
      %v3213 = vunpack.c.l.b16 %v3178
      %v3214 = vpack.c.b16 %v3183, %v3182
      %v3215 = vpack.c.b16 %v3185, %v3184
      %v3216 = vpack.c.b16 %v3187, %v3186
      %v3217 = vpack.c.b16 %v3189, %v3188
      %v3218 = vpack.c.b16 %v3191, %v3190
      %v3219 = vpack.c.b16 %v3193, %v3192
      %v3220 = vpack.c.b16 %v3195, %v3194
      %v3221 = vpack.c.b16 %v3197, %v3196
      %v3222 = vpack.c.b16 %v3199, %v3198
      %v3223 = vpack.c.b16 %v3201, %v3200
      %v3224 = vpack.c.b16 %v3203, %v3202
      %v3225 = vpack.c.b16 %v3205, %v3204
      %v3226 = vpack.c.b16 %v3207, %v3206
      %v3227 = vpack.c.b16 %v3209, %v3208
      %v3228 = vpack.c.b16 %v3211, %v3210
      %v3229 = vpack.c.b16 %v3213, %v3212
      %v3232 = vunpack.c.l.b16 %v3180
      %v3233 = vunpack.c.l.b16 %v3181
      %v3234 = vpack.c.b16 %v3233, %v3232
      %v3237 = vsel %vm1305, %v3214, 0
      %v3240 = vsel %vm1305, %v3215, 0
      %v3243 = vsel %vm1305, %v3216, 0
      %v3246 = vsel %vm1305, %v3217, 0
      %v3249 = vsel %vm1305, %v3218, 0
      %v3252 = vsel %vm1305, %v3219, 0
      %v3255 = vsel %vm1305, %v3220, 0
      %v3258 = vsel %vm1305, %v3221, 0
      %v3261 = vsel %vm1305, %v3222, 0
      %v3264 = vsel %vm1305, %v3223, 0
      %v3267 = vsel %vm1305, %v3224, 0
      %v3270 = vsel %vm1305, %v3225, 0
      %v3273 = vsel %vm1305, %v3226, 0
      %v3276 = vsel %vm1305, %v3227, 0
      %v3279 = vsel %vm1305, %v3228, 0
      %v3282 = vsel %vm1305, %v3229, 0
      %3284 = vmatpush.bf16.msra.mxu0 0
      %3285 = vmatpush.bf16.msra.mxu0 0
      %3286 = vmatpush.bf16.msra.mxu0 0
      %3287 = vmatpush.bf16.msra.mxu0 0
      %3288 = vmatpush.bf16.msra.mxu0 0
      %3289 = vmatpush.bf16.msra.mxu0 0
      %3290 = vmatpush.bf16.msra.mxu0 0
      %3291 = vmatpush.bf16.msra.mxu0 %v3234
      %3292 = vmatmul.bf16.gmra.mxu0 %v3237
      %v3293 = vpop.f32.mrf.mxu0
      %v3294 = vadd.f32 0.0, %v3293
      %v3295 = vpop.f32.mrf.mxu0
      %v3296 = vadd.f32 0.0, %v3295
      %3297 = vmatmul.bf16.gmra.mxu0 %v3240
      %v3298 = vpop.f32.mrf.mxu0
      %v3299 = vadd.f32 0.0, %v3298
      %v3300 = vpop.f32.mrf.mxu0
      %v3301 = vadd.f32 0.0, %v3300
      %3302 = vmatmul.bf16.gmra.mxu0 %v3243
      %v3303 = vpop.f32.mrf.mxu0
      %v3304 = vadd.f32 0.0, %v3303
      %v3305 = vpop.f32.mrf.mxu0
      %v3306 = vadd.f32 0.0, %v3305
      %3307 = vmatmul.bf16.gmra.mxu0 %v3246
      %v3308 = vpop.f32.mrf.mxu0
      %v3309 = vadd.f32 0.0, %v3308
      %v3310 = vpop.f32.mrf.mxu0
      %v3311 = vadd.f32 0.0, %v3310
      %3312 = vmatmul.bf16.gmra.mxu0 %v3249
      %v3313 = vpop.f32.mrf.mxu0
      %v3314 = vadd.f32 0.0, %v3313
      %v3315 = vpop.f32.mrf.mxu0
      %v3316 = vadd.f32 0.0, %v3315
      %3317 = vmatmul.bf16.gmra.mxu0 %v3252
      %v3318 = vpop.f32.mrf.mxu0
      %v3319 = vadd.f32 0.0, %v3318
      %v3320 = vpop.f32.mrf.mxu0
      %v3321 = vadd.f32 0.0, %v3320
      %3322 = vmatmul.bf16.gmra.mxu0 %v3255
      %v3323 = vpop.f32.mrf.mxu0
      %v3324 = vadd.f32 0.0, %v3323
      %v3325 = vpop.f32.mrf.mxu0
      %v3326 = vadd.f32 0.0, %v3325
      %3327 = vmatmul.bf16.gmra.mxu0 %v3258
      %v3328 = vpop.f32.mrf.mxu0
      %v3329 = vadd.f32 0.0, %v3328
      %v3330 = vpop.f32.mrf.mxu0
      %v3331 = vadd.f32 0.0, %v3330
      %3332 = vmatmul.bf16.gmra.mxu0 %v3261
      %v3333 = vpop.f32.mrf.mxu0
      %v3334 = vadd.f32 0.0, %v3333
      %v3335 = vpop.f32.mrf.mxu0
      %v3336 = vadd.f32 0.0, %v3335
      %3337 = vmatmul.bf16.gmra.mxu0 %v3264
      %v3338 = vpop.f32.mrf.mxu0
      %v3339 = vadd.f32 0.0, %v3338
      %v3340 = vpop.f32.mrf.mxu0
      %v3341 = vadd.f32 0.0, %v3340
      %3342 = vmatmul.bf16.gmra.mxu0 %v3267
      %v3343 = vpop.f32.mrf.mxu0
      %v3344 = vadd.f32 0.0, %v3343
      %v3345 = vpop.f32.mrf.mxu0
      %v3346 = vadd.f32 0.0, %v3345
      %3347 = vmatmul.bf16.gmra.mxu0 %v3270
      %v3348 = vpop.f32.mrf.mxu0
      %v3349 = vadd.f32 0.0, %v3348
      %v3350 = vpop.f32.mrf.mxu0
      %v3351 = vadd.f32 0.0, %v3350
      %3352 = vmatmul.bf16.gmra.mxu0 %v3273
      %v3353 = vpop.f32.mrf.mxu0
      %v3354 = vadd.f32 0.0, %v3353
      %v3355 = vpop.f32.mrf.mxu0
      %v3356 = vadd.f32 0.0, %v3355
      %3357 = vmatmul.bf16.gmra.mxu0 %v3276
      %v3358 = vpop.f32.mrf.mxu0
      %v3359 = vadd.f32 0.0, %v3358
      %v3360 = vpop.f32.mrf.mxu0
      %v3361 = vadd.f32 0.0, %v3360
      %3362 = vmatmul.bf16.gmra.mxu0 %v3279
      %v3363 = vpop.f32.mrf.mxu0
      %v3364 = vadd.f32 0.0, %v3363
      %v3365 = vpop.f32.mrf.mxu0
      %v3366 = vadd.f32 0.0, %v3365
      %3367 = vmatmul.bf16.gmra.mxu0 %v3282
      %v3368 = vpop.f32.mrf.mxu0
      %v3369 = vadd.f32 0.0, %v3368
      %v3370 = vpop.f32.mrf.mxu0
      %v3371 = vadd.f32 0.0, %v3370
      %3372 = vdwg.mxu0
      %v3373 = vadd.f32 %v2971, %v3294
      %v3374 = vadd.f32 %v2972, %v3296
      %v3375 = vadd.f32 %v2973, %v3299
      %v3376 = vadd.f32 %v2974, %v3301
      %v3377 = vadd.f32 %v2975, %v3304
      %v3378 = vadd.f32 %v2976, %v3306
      %v3379 = vadd.f32 %v2977, %v3309
      %v3380 = vadd.f32 %v2978, %v3311
      %v3381 = vadd.f32 %v2979, %v3314
      %v3382 = vadd.f32 %v2980, %v3316
      %v3383 = vadd.f32 %v2981, %v3319
      %v3384 = vadd.f32 %v2982, %v3321
      %v3385 = vadd.f32 %v2983, %v3324
      %v3386 = vadd.f32 %v2984, %v3326
      %v3387 = vadd.f32 %v2985, %v3329
      %v3388 = vadd.f32 %v2986, %v3331
      %v3389 = vadd.f32 %v2987, %v3334
      %v3390 = vadd.f32 %v2988, %v3336
      %v3391 = vadd.f32 %v2989, %v3339
      %v3392 = vadd.f32 %v2990, %v3341
      %v3393 = vadd.f32 %v2991, %v3344
      %v3394 = vadd.f32 %v2992, %v3346
      %v3395 = vadd.f32 %v2993, %v3349
      %v3396 = vadd.f32 %v2994, %v3351
      %v3397 = vadd.f32 %v2995, %v3354
      %v3398 = vadd.f32 %v2996, %v3356
      %v3399 = vadd.f32 %v2997, %v3359
      %v3400 = vadd.f32 %v2998, %v3361
      %v3401 = vadd.f32 %v2999, %v3364
      %v3402 = vadd.f32 %v3000, %v3366
      %v3403 = vadd.f32 %v3001, %v3369
      %v3404 = vadd.f32 %v3002, %v3371
      %s3405 = scalar_lea.vmem [#allocation2], 24
      %v3406 = vld [vmem:[%s3405] sm:$0xf]
      %v3407 = vld [vmem:[%s3405 + $0x4] sm:$0xf]
      %v3408 = vld [vmem:[%s3405 + $0xc] sm:$0xf]
      %v3409 = vld [vmem:[%s3405 + $0x10] sm:$0xf]
      %v3410 = vld [vmem:[%s3405 + $0x18] sm:$0xf]
      %v3411 = vld [vmem:[%s3405 + $0x1c] sm:$0xf]
      %v3412 = vld [vmem:[%s3405 + $0x24] sm:$0xf]
      %v3413 = vld [vmem:[%s3405 + $0x28] sm:$0xf]
      %v3414 = vld [vmem:[%s3405 + $0x30] sm:$0xf]
      %v3415 = vld [vmem:[%s3405 + $0x34] sm:$0xf]
      %v3416 = vld [vmem:[%s3405 + $0x3c] sm:$0xf]
      %v3417 = vld [vmem:[%s3405 + $0x40] sm:$0xf]
      %v3418 = vld [vmem:[%s3405 + $0x48] sm:$0xf]
      %v3419 = vld [vmem:[%s3405 + $0x4c] sm:$0xf]
      %v3420 = vld [vmem:[%s3405 + $0x54] sm:$0xf]
      %v3421 = vld [vmem:[%s3405 + $0x58] sm:$0xf]
      %v3422 = vld [vmem:[%s3405 + $0x60] sm:$0xf]
      %v3423 = vld [vmem:[%s3405 + $0x64] sm:$0xf]
      %v3424 = vld [vmem:[%s3405 + $0x6c] sm:$0xf]
      %v3425 = vld [vmem:[%s3405 + $0x70] sm:$0xf]
      %v3426 = vld [vmem:[%s3405 + $0x78] sm:$0xf]
      %v3427 = vld [vmem:[%s3405 + $0x7c] sm:$0xf]
      %v3428 = vld [vmem:[%s3405 + $0x84] sm:$0xf]
      %v3429 = vld [vmem:[%s3405 + $0x88] sm:$0xf]
      %v3430 = vld [vmem:[%s3405 + $0x90] sm:$0xf]
      %v3431 = vld [vmem:[%s3405 + $0x94] sm:$0xf]
      %v3432 = vld [vmem:[%s3405 + $0x9c] sm:$0xf]
      %v3433 = vld [vmem:[%s3405 + $0xa0] sm:$0xf]
      %v3434 = vld [vmem:[%s3405 + $0xa8] sm:$0xf]
      %v3435 = vld [vmem:[%s3405 + $0xac] sm:$0xf]
      %v3436 = vld [vmem:[%s3405 + $0xb4] sm:$0xf]
      %v3437 = vld [vmem:[%s3405 + $0xb8] sm:$0xf]
      %s3438 = scalar_lea.vmem %s1, 48
      %v3439 = vld [vmem:[%s3438] sm:$0xf]
      %v3440 = vld [vmem:[%s3438 + $0x4] sm:$0xf]
      %v3473 = vunpack.c.l.b16 %v3406
      %v3474 = vunpack.c.l.b16 %v3407
      %v3475 = vunpack.c.l.b16 %v3408
      %v3476 = vunpack.c.l.b16 %v3409
      %v3477 = vunpack.c.l.b16 %v3410
      %v3478 = vunpack.c.l.b16 %v3411
      %v3479 = vunpack.c.l.b16 %v3412
      %v3480 = vunpack.c.l.b16 %v3413
      %v3481 = vunpack.c.l.b16 %v3414
      %v3482 = vunpack.c.l.b16 %v3415
      %v3483 = vunpack.c.l.b16 %v3416
      %v3484 = vunpack.c.l.b16 %v3417
      %v3485 = vunpack.c.l.b16 %v3418
      %v3486 = vunpack.c.l.b16 %v3419
      %v3487 = vunpack.c.l.b16 %v3420
      %v3488 = vunpack.c.l.b16 %v3421
      %v3489 = vunpack.c.l.b16 %v3422
      %v3490 = vunpack.c.l.b16 %v3423
      %v3491 = vunpack.c.l.b16 %v3424
      %v3492 = vunpack.c.l.b16 %v3425
      %v3493 = vunpack.c.l.b16 %v3426
      %v3494 = vunpack.c.l.b16 %v3427
      %v3495 = vunpack.c.l.b16 %v3428
      %v3496 = vunpack.c.l.b16 %v3429
      %v3497 = vunpack.c.l.b16 %v3430
      %v3498 = vunpack.c.l.b16 %v3431
      %v3499 = vunpack.c.l.b16 %v3432
      %v3500 = vunpack.c.l.b16 %v3433
      %v3501 = vunpack.c.l.b16 %v3434
      %v3502 = vunpack.c.l.b16 %v3435
      %v3503 = vunpack.c.l.b16 %v3436
      %v3504 = vunpack.c.l.b16 %v3437
      %v3505 = vpack.c.b16 %v3474, %v3473
      %v3506 = vpack.c.b16 %v3476, %v3475
      %v3507 = vpack.c.b16 %v3478, %v3477
      %v3508 = vpack.c.b16 %v3480, %v3479
      %v3509 = vpack.c.b16 %v3482, %v3481
      %v3510 = vpack.c.b16 %v3484, %v3483
      %v3511 = vpack.c.b16 %v3486, %v3485
      %v3512 = vpack.c.b16 %v3488, %v3487
      %v3513 = vpack.c.b16 %v3490, %v3489
      %v3514 = vpack.c.b16 %v3492, %v3491
      %v3515 = vpack.c.b16 %v3494, %v3493
      %v3516 = vpack.c.b16 %v3496, %v3495
      %v3517 = vpack.c.b16 %v3498, %v3497
      %v3518 = vpack.c.b16 %v3500, %v3499
      %v3519 = vpack.c.b16 %v3502, %v3501
      %v3520 = vpack.c.b16 %v3504, %v3503
      %v3523 = vunpack.c.l.b16 %v3439
      %v3524 = vunpack.c.l.b16 %v3440
      %v3525 = vpack.c.b16 %v3524, %v3523
      %v3528 = vsel %vm1305, %v3505, 0
      %v3531 = vsel %vm1305, %v3506, 0
      %v3534 = vsel %vm1305, %v3507, 0
      %v3537 = vsel %vm1305, %v3508, 0
      %v3540 = vsel %vm1305, %v3509, 0
      %v3543 = vsel %vm1305, %v3510, 0
      %v3546 = vsel %vm1305, %v3511, 0
      %v3549 = vsel %vm1305, %v3512, 0
      %v3552 = vsel %vm1305, %v3513, 0
      %v3555 = vsel %vm1305, %v3514, 0
      %v3558 = vsel %vm1305, %v3515, 0
      %v3561 = vsel %vm1305, %v3516, 0
      %v3564 = vsel %vm1305, %v3517, 0
      %v3567 = vsel %vm1305, %v3518, 0
      %v3570 = vsel %vm1305, %v3519, 0
      %v3573 = vsel %vm1305, %v3520, 0
      %3575 = vmatpush.bf16.msra.mxu0 0
      %3576 = vmatpush.bf16.msra.mxu0 0
      %3577 = vmatpush.bf16.msra.mxu0 0
      %3578 = vmatpush.bf16.msra.mxu0 0
      %3579 = vmatpush.bf16.msra.mxu0 0
      %3580 = vmatpush.bf16.msra.mxu0 0
      %3581 = vmatpush.bf16.msra.mxu0 0
      %3582 = vmatpush.bf16.msra.mxu0 %v3525
      %3583 = vmatmul.bf16.gmra.mxu0 %v3528
      %v3584 = vpop.f32.mrf.mxu0
      %v3585 = vadd.f32 0.0, %v3584
      %v3586 = vpop.f32.mrf.mxu0
      %v3587 = vadd.f32 0.0, %v3586
      %3588 = vmatmul.bf16.gmra.mxu0 %v3531
      %v3589 = vpop.f32.mrf.mxu0
      %v3590 = vadd.f32 0.0, %v3589
      %v3591 = vpop.f32.mrf.mxu0
      %v3592 = vadd.f32 0.0, %v3591
      %3593 = vmatmul.bf16.gmra.mxu0 %v3534
      %v3594 = vpop.f32.mrf.mxu0
      %v3595 = vadd.f32 0.0, %v3594
      %v3596 = vpop.f32.mrf.mxu0
      %v3597 = vadd.f32 0.0, %v3596
      %3598 = vmatmul.bf16.gmra.mxu0 %v3537
      %v3599 = vpop.f32.mrf.mxu0
      %v3600 = vadd.f32 0.0, %v3599
      %v3601 = vpop.f32.mrf.mxu0
      %v3602 = vadd.f32 0.0, %v3601
      %3603 = vmatmul.bf16.gmra.mxu0 %v3540
      %v3604 = vpop.f32.mrf.mxu0
      %v3605 = vadd.f32 0.0, %v3604
      %v3606 = vpop.f32.mrf.mxu0
      %v3607 = vadd.f32 0.0, %v3606
      %3608 = vmatmul.bf16.gmra.mxu0 %v3543
      %v3609 = vpop.f32.mrf.mxu0
      %v3610 = vadd.f32 0.0, %v3609
      %v3611 = vpop.f32.mrf.mxu0
      %v3612 = vadd.f32 0.0, %v3611
      %3613 = vmatmul.bf16.gmra.mxu0 %v3546
      %v3614 = vpop.f32.mrf.mxu0
      %v3615 = vadd.f32 0.0, %v3614
      %v3616 = vpop.f32.mrf.mxu0
      %v3617 = vadd.f32 0.0, %v3616
      %3618 = vmatmul.bf16.gmra.mxu0 %v3549
      %v3619 = vpop.f32.mrf.mxu0
      %v3620 = vadd.f32 0.0, %v3619
      %v3621 = vpop.f32.mrf.mxu0
      %v3622 = vadd.f32 0.0, %v3621
      %3623 = vmatmul.bf16.gmra.mxu0 %v3552
      %v3624 = vpop.f32.mrf.mxu0
      %v3625 = vadd.f32 0.0, %v3624
      %v3626 = vpop.f32.mrf.mxu0
      %v3627 = vadd.f32 0.0, %v3626
      %3628 = vmatmul.bf16.gmra.mxu0 %v3555
      %v3629 = vpop.f32.mrf.mxu0
      %v3630 = vadd.f32 0.0, %v3629
      %v3631 = vpop.f32.mrf.mxu0
      %v3632 = vadd.f32 0.0, %v3631
      %3633 = vmatmul.bf16.gmra.mxu0 %v3558
      %v3634 = vpop.f32.mrf.mxu0
      %v3635 = vadd.f32 0.0, %v3634
      %v3636 = vpop.f32.mrf.mxu0
      %v3637 = vadd.f32 0.0, %v3636
      %3638 = vmatmul.bf16.gmra.mxu0 %v3561
      %v3639 = vpop.f32.mrf.mxu0
      %v3640 = vadd.f32 0.0, %v3639
      %v3641 = vpop.f32.mrf.mxu0
      %v3642 = vadd.f32 0.0, %v3641
      %3643 = vmatmul.bf16.gmra.mxu0 %v3564
      %v3644 = vpop.f32.mrf.mxu0
      %v3645 = vadd.f32 0.0, %v3644
      %v3646 = vpop.f32.mrf.mxu0
      %v3647 = vadd.f32 0.0, %v3646
      %3648 = vmatmul.bf16.gmra.mxu0 %v3567
      %v3649 = vpop.f32.mrf.mxu0
      %v3650 = vadd.f32 0.0, %v3649
      %v3651 = vpop.f32.mrf.mxu0
      %v3652 = vadd.f32 0.0, %v3651
      %3653 = vmatmul.bf16.gmra.mxu0 %v3570
      %v3654 = vpop.f32.mrf.mxu0
      %v3655 = vadd.f32 0.0, %v3654
      %v3656 = vpop.f32.mrf.mxu0
      %v3657 = vadd.f32 0.0, %v3656
      %3658 = vmatmul.bf16.gmra.mxu0 %v3573
      %v3659 = vpop.f32.mrf.mxu0
      %v3660 = vadd.f32 0.0, %v3659
      %v3661 = vpop.f32.mrf.mxu0
      %v3662 = vadd.f32 0.0, %v3661
      %3663 = vdwg.mxu0
      %v3664 = vadd.f32 %v3373, %v3585
      %v3665 = vadd.f32 %v3374, %v3587
      %v3666 = vadd.f32 %v3375, %v3590
      %v3667 = vadd.f32 %v3376, %v3592
      %v3668 = vadd.f32 %v3377, %v3595
      %v3669 = vadd.f32 %v3378, %v3597
      %v3670 = vadd.f32 %v3379, %v3600
      %v3671 = vadd.f32 %v3380, %v3602
      %v3672 = vadd.f32 %v3381, %v3605
      %v3673 = vadd.f32 %v3382, %v3607
      %v3674 = vadd.f32 %v3383, %v3610
      %v3675 = vadd.f32 %v3384, %v3612
      %v3676 = vadd.f32 %v3385, %v3615
      %v3677 = vadd.f32 %v3386, %v3617
      %v3678 = vadd.f32 %v3387, %v3620
      %v3679 = vadd.f32 %v3388, %v3622
      %v3680 = vadd.f32 %v3389, %v3625
      %v3681 = vadd.f32 %v3390, %v3627
      %v3682 = vadd.f32 %v3391, %v3630
      %v3683 = vadd.f32 %v3392, %v3632
      %v3684 = vadd.f32 %v3393, %v3635
      %v3685 = vadd.f32 %v3394, %v3637
      %v3686 = vadd.f32 %v3395, %v3640
      %v3687 = vadd.f32 %v3396, %v3642
      %v3688 = vadd.f32 %v3397, %v3645
      %v3689 = vadd.f32 %v3398, %v3647
      %v3690 = vadd.f32 %v3399, %v3650
      %v3691 = vadd.f32 %v3400, %v3652
      %v3692 = vadd.f32 %v3401, %v3655
      %v3693 = vadd.f32 %v3402, %v3657
      %v3694 = vadd.f32 %v3403, %v3660
      %v3695 = vadd.f32 %v3404, %v3662
      %v3696 = vld [vmem:[%s3405] sm:$0xf]
      %v3697 = vld [vmem:[%s3405 + $0x4] sm:$0xf]
      %v3698 = vld [vmem:[%s3405 + $0x8] sm:$0x1]
      %v3699 = vld [vmem:[%s3405 + $0xc] sm:$0xf]
      %v3700 = vld [vmem:[%s3405 + $0x10] sm:$0xf]
      %v3701 = vld [vmem:[%s3405 + $0x14] sm:$0x1]
      %v3702 = vld [vmem:[%s3405 + $0x18] sm:$0xf]
      %v3703 = vld [vmem:[%s3405 + $0x1c] sm:$0xf]
      %v3704 = vld [vmem:[%s3405 + $0x20] sm:$0x1]
      %v3705 = vld [vmem:[%s3405 + $0x24] sm:$0xf]
      %v3706 = vld [vmem:[%s3405 + $0x28] sm:$0xf]
      %v3707 = vld [vmem:[%s3405 + $0x2c] sm:$0x1]
      %v3708 = vld [vmem:[%s3405 + $0x30] sm:$0xf]
      %v3709 = vld [vmem:[%s3405 + $0x34] sm:$0xf]
      %v3710 = vld [vmem:[%s3405 + $0x38] sm:$0x1]
      %v3711 = vld [vmem:[%s3405 + $0x3c] sm:$0xf]
      %v3712 = vld [vmem:[%s3405 + $0x40] sm:$0xf]
      %v3713 = vld [vmem:[%s3405 + $0x44] sm:$0x1]
      %v3714 = vld [vmem:[%s3405 + $0x48] sm:$0xf]
      %v3715 = vld [vmem:[%s3405 + $0x4c] sm:$0xf]
      %v3716 = vld [vmem:[%s3405 + $0x50] sm:$0x1]
      %v3717 = vld [vmem:[%s3405 + $0x54] sm:$0xf]
      %v3718 = vld [vmem:[%s3405 + $0x58] sm:$0xf]
      %v3719 = vld [vmem:[%s3405 + $0x5c] sm:$0x1]
      %v3720 = vld [vmem:[%s3405 + $0x60] sm:$0xf]
      %v3721 = vld [vmem:[%s3405 + $0x64] sm:$0xf]
      %v3722 = vld [vmem:[%s3405 + $0x68] sm:$0x1]
      %v3723 = vld [vmem:[%s3405 + $0x6c] sm:$0xf]
      %v3724 = vld [vmem:[%s3405 + $0x70] sm:$0xf]
      %v3725 = vld [vmem:[%s3405 + $0x74] sm:$0x1]
      %v3726 = vld [vmem:[%s3405 + $0x78] sm:$0xf]
      %v3727 = vld [vmem:[%s3405 + $0x7c] sm:$0xf]
      %v3728 = vld [vmem:[%s3405 + $0x80] sm:$0x1]
      %v3729 = vld [vmem:[%s3405 + $0x84] sm:$0xf]
      %v3730 = vld [vmem:[%s3405 + $0x88] sm:$0xf]
      %v3731 = vld [vmem:[%s3405 + $0x8c] sm:$0x1]
      %v3732 = vld [vmem:[%s3405 + $0x90] sm:$0xf]
      %v3733 = vld [vmem:[%s3405 + $0x94] sm:$0xf]
      %v3734 = vld [vmem:[%s3405 + $0x98] sm:$0x1]
      %v3735 = vld [vmem:[%s3405 + $0x9c] sm:$0xf]
      %v3736 = vld [vmem:[%s3405 + $0xa0] sm:$0xf]
      %v3737 = vld [vmem:[%s3405 + $0xa4] sm:$0x1]
      %v3738 = vld [vmem:[%s3405 + $0xa8] sm:$0xf]
      %v3739 = vld [vmem:[%s3405 + $0xac] sm:$0xf]
      %v3740 = vld [vmem:[%s3405 + $0xb0] sm:$0x1]
      %v3741 = vld [vmem:[%s3405 + $0xb4] sm:$0xf]
      %v3742 = vld [vmem:[%s3405 + $0xb8] sm:$0xf]
      %v3743 = vld [vmem:[%s3405 + $0xbc] sm:$0x1]
      %v3745 = vshrl.u32 %v3696, 16
      %v3747 = vrot.slane %v3745, 4
      %v3748 = vshll.u32 %v3696, 16
      %v3750 = vrot.slane %v3748, 5
      %v3751 = vor.u32 %v3747, %v3750
      %v3752 = vrot.slane %v3751, 4
      %v3754 = vshll.u32 %v3697, 16
      %v3756 = vrot.slane %v3754, 5
      %v3757 = vsel %vm863, %v3752, %v3756
      %v3758 = vshrl.u32 %v3697, 16
      %v3760 = vrot.slane %v3758, 4
      %v3761 = vor.u32 %v3760, %v3756
      %v3762 = vrot.slane %v3761, 4
      %v3764 = vshll.u32 %v3698, 16
      %v3766 = vrot.slane %v3764, 5
      %v3767 = vsel %vm863, %v3762, %v3766
      %v3769 = vshrl.u32 %v3699, 16
      %v3771 = vrot.slane %v3769, 4
      %v3772 = vshll.u32 %v3699, 16
      %v3774 = vrot.slane %v3772, 5
      %v3775 = vor.u32 %v3771, %v3774
      %v3776 = vrot.slane %v3775, 4
      %v3778 = vshll.u32 %v3700, 16
      %v3780 = vrot.slane %v3778, 5
      %v3781 = vsel %vm863, %v3776, %v3780
      %v3782 = vshrl.u32 %v3700, 16
      %v3784 = vrot.slane %v3782, 4
      %v3785 = vor.u32 %v3784, %v3780
      %v3786 = vrot.slane %v3785, 4
      %v3788 = vshll.u32 %v3701, 16
      %v3790 = vrot.slane %v3788, 5
      %v3791 = vsel %vm863, %v3786, %v3790
      %v3793 = vshrl.u32 %v3702, 16
      %v3795 = vrot.slane %v3793, 4
      %v3796 = vshll.u32 %v3702, 16
      %v3798 = vrot.slane %v3796, 5
      %v3799 = vor.u32 %v3795, %v3798
      %v3800 = vrot.slane %v3799, 4
      %v3802 = vshll.u32 %v3703, 16
      %v3804 = vrot.slane %v3802, 5
      %v3805 = vsel %vm863, %v3800, %v3804
      %v3806 = vshrl.u32 %v3703, 16
      %v3808 = vrot.slane %v3806, 4
      %v3809 = vor.u32 %v3808, %v3804
      %v3810 = vrot.slane %v3809, 4
      %v3812 = vshll.u32 %v3704, 16
      %v3814 = vrot.slane %v3812, 5
      %v3815 = vsel %vm863, %v3810, %v3814
      %v3817 = vshrl.u32 %v3705, 16
      %v3819 = vrot.slane %v3817, 4
      %v3820 = vshll.u32 %v3705, 16
      %v3822 = vrot.slane %v3820, 5
      %v3823 = vor.u32 %v3819, %v3822
      %v3824 = vrot.slane %v3823, 4
      %v3826 = vshll.u32 %v3706, 16
      %v3828 = vrot.slane %v3826, 5
      %v3829 = vsel %vm863, %v3824, %v3828
      %v3830 = vshrl.u32 %v3706, 16
      %v3832 = vrot.slane %v3830, 4
      %v3833 = vor.u32 %v3832, %v3828
      %v3834 = vrot.slane %v3833, 4
      %v3836 = vshll.u32 %v3707, 16
      %v3838 = vrot.slane %v3836, 5
      %v3839 = vsel %vm863, %v3834, %v3838
      %v3841 = vshrl.u32 %v3708, 16
      %v3843 = vrot.slane %v3841, 4
      %v3844 = vshll.u32 %v3708, 16
      %v3846 = vrot.slane %v3844, 5
      %v3847 = vor.u32 %v3843, %v3846
      %v3848 = vrot.slane %v3847, 4
      %v3850 = vshll.u32 %v3709, 16
      %v3852 = vrot.slane %v3850, 5
      %v3853 = vsel %vm863, %v3848, %v3852
      %v3854 = vshrl.u32 %v3709, 16
      %v3856 = vrot.slane %v3854, 4
      %v3857 = vor.u32 %v3856, %v3852
      %v3858 = vrot.slane %v3857, 4
      %v3860 = vshll.u32 %v3710, 16
      %v3862 = vrot.slane %v3860, 5
      %v3863 = vsel %vm863, %v3858, %v3862
      %v3865 = vshrl.u32 %v3711, 16
      %v3867 = vrot.slane %v3865, 4
      %v3868 = vshll.u32 %v3711, 16
      %v3870 = vrot.slane %v3868, 5
      %v3871 = vor.u32 %v3867, %v3870
      %v3872 = vrot.slane %v3871, 4
      %v3874 = vshll.u32 %v3712, 16
      %v3876 = vrot.slane %v3874, 5
      %v3877 = vsel %vm863, %v3872, %v3876
      %v3878 = vshrl.u32 %v3712, 16
      %v3880 = vrot.slane %v3878, 4
      %v3881 = vor.u32 %v3880, %v3876
      %v3882 = vrot.slane %v3881, 4
      %v3884 = vshll.u32 %v3713, 16
      %v3886 = vrot.slane %v3884, 5
      %v3887 = vsel %vm863, %v3882, %v3886
      %v3889 = vshrl.u32 %v3714, 16
      %v3891 = vrot.slane %v3889, 4
      %v3892 = vshll.u32 %v3714, 16
      %v3894 = vrot.slane %v3892, 5
      %v3895 = vor.u32 %v3891, %v3894
      %v3896 = vrot.slane %v3895, 4
      %v3898 = vshll.u32 %v3715, 16
      %v3900 = vrot.slane %v3898, 5
      %v3901 = vsel %vm863, %v3896, %v3900
      %v3902 = vshrl.u32 %v3715, 16
      %v3904 = vrot.slane %v3902, 4
      %v3905 = vor.u32 %v3904, %v3900
      %v3906 = vrot.slane %v3905, 4
      %v3908 = vshll.u32 %v3716, 16
      %v3910 = vrot.slane %v3908, 5
      %v3911 = vsel %vm863, %v3906, %v3910
      %v3913 = vshrl.u32 %v3717, 16
      %v3915 = vrot.slane %v3913, 4
      %v3916 = vshll.u32 %v3717, 16
      %v3918 = vrot.slane %v3916, 5
      %v3919 = vor.u32 %v3915, %v3918
      %v3920 = vrot.slane %v3919, 4
      %v3922 = vshll.u32 %v3718, 16
      %v3924 = vrot.slane %v3922, 5
      %v3925 = vsel %vm863, %v3920, %v3924
      %v3926 = vshrl.u32 %v3718, 16
      %v3928 = vrot.slane %v3926, 4
      %v3929 = vor.u32 %v3928, %v3924
      %v3930 = vrot.slane %v3929, 4
      %v3932 = vshll.u32 %v3719, 16
      %v3934 = vrot.slane %v3932, 5
      %v3935 = vsel %vm863, %v3930, %v3934
      %v3937 = vshrl.u32 %v3720, 16
      %v3939 = vrot.slane %v3937, 4
      %v3940 = vshll.u32 %v3720, 16
      %v3942 = vrot.slane %v3940, 5
      %v3943 = vor.u32 %v3939, %v3942
      %v3944 = vrot.slane %v3943, 4
      %v3946 = vshll.u32 %v3721, 16
      %v3948 = vrot.slane %v3946, 5
      %v3949 = vsel %vm863, %v3944, %v3948
      %v3950 = vshrl.u32 %v3721, 16
      %v3952 = vrot.slane %v3950, 4
      %v3953 = vor.u32 %v3952, %v3948
      %v3954 = vrot.slane %v3953, 4
      %v3956 = vshll.u32 %v3722, 16
      %v3958 = vrot.slane %v3956, 5
      %v3959 = vsel %vm863, %v3954, %v3958
      %v3961 = vshrl.u32 %v3723, 16
      %v3963 = vrot.slane %v3961, 4
      %v3964 = vshll.u32 %v3723, 16
      %v3966 = vrot.slane %v3964, 5
      %v3967 = vor.u32 %v3963, %v3966
      %v3968 = vrot.slane %v3967, 4
      %v3970 = vshll.u32 %v3724, 16
      %v3972 = vrot.slane %v3970, 5
      %v3973 = vsel %vm863, %v3968, %v3972
      %v3974 = vshrl.u32 %v3724, 16
      %v3976 = vrot.slane %v3974, 4
      %v3977 = vor.u32 %v3976, %v3972
      %v3978 = vrot.slane %v3977, 4
      %v3980 = vshll.u32 %v3725, 16
      %v3982 = vrot.slane %v3980, 5
      %v3983 = vsel %vm863, %v3978, %v3982
      %v3985 = vshrl.u32 %v3726, 16
      %v3987 = vrot.slane %v3985, 4
      %v3988 = vshll.u32 %v3726, 16
      %v3990 = vrot.slane %v3988, 5
      %v3991 = vor.u32 %v3987, %v3990
      %v3992 = vrot.slane %v3991, 4
      %v3994 = vshll.u32 %v3727, 16
      %v3996 = vrot.slane %v3994, 5
      %v3997 = vsel %vm863, %v3992, %v3996
      %v3998 = vshrl.u32 %v3727, 16
      %v4000 = vrot.slane %v3998, 4
      %v4001 = vor.u32 %v4000, %v3996
      %v4002 = vrot.slane %v4001, 4
      %v4004 = vshll.u32 %v3728, 16
      %v4006 = vrot.slane %v4004, 5
      %v4007 = vsel %vm863, %v4002, %v4006
      %v4009 = vshrl.u32 %v3729, 16
      %v4011 = vrot.slane %v4009, 4
      %v4012 = vshll.u32 %v3729, 16
      %v4014 = vrot.slane %v4012, 5
      %v4015 = vor.u32 %v4011, %v4014
      %v4016 = vrot.slane %v4015, 4
      %v4018 = vshll.u32 %v3730, 16
      %v4020 = vrot.slane %v4018, 5
      %v4021 = vsel %vm863, %v4016, %v4020
      %v4022 = vshrl.u32 %v3730, 16
      %v4024 = vrot.slane %v4022, 4
      %v4025 = vor.u32 %v4024, %v4020
      %v4026 = vrot.slane %v4025, 4
      %v4028 = vshll.u32 %v3731, 16
      %v4030 = vrot.slane %v4028, 5
      %v4031 = vsel %vm863, %v4026, %v4030
      %v4033 = vshrl.u32 %v3732, 16
      %v4035 = vrot.slane %v4033, 4
      %v4036 = vshll.u32 %v3732, 16
      %v4038 = vrot.slane %v4036, 5
      %v4039 = vor.u32 %v4035, %v4038
      %v4040 = vrot.slane %v4039, 4
      %v4042 = vshll.u32 %v3733, 16
      %v4044 = vrot.slane %v4042, 5
      %v4045 = vsel %vm863, %v4040, %v4044
      %v4046 = vshrl.u32 %v3733, 16
      %v4048 = vrot.slane %v4046, 4
      %v4049 = vor.u32 %v4048, %v4044
      %v4050 = vrot.slane %v4049, 4
      %v4052 = vshll.u32 %v3734, 16
      %v4054 = vrot.slane %v4052, 5
      %v4055 = vsel %vm863, %v4050, %v4054
      %v4057 = vshrl.u32 %v3735, 16
      %v4059 = vrot.slane %v4057, 4
      %v4060 = vshll.u32 %v3735, 16
      %v4062 = vrot.slane %v4060, 5
      %v4063 = vor.u32 %v4059, %v4062
      %v4064 = vrot.slane %v4063, 4
      %v4066 = vshll.u32 %v3736, 16
      %v4068 = vrot.slane %v4066, 5
      %v4069 = vsel %vm863, %v4064, %v4068
      %v4070 = vshrl.u32 %v3736, 16
      %v4072 = vrot.slane %v4070, 4
      %v4073 = vor.u32 %v4072, %v4068
      %v4074 = vrot.slane %v4073, 4
      %v4076 = vshll.u32 %v3737, 16
      %v4078 = vrot.slane %v4076, 5
      %v4079 = vsel %vm863, %v4074, %v4078
      %v4081 = vshrl.u32 %v3738, 16
      %v4083 = vrot.slane %v4081, 4
      %v4084 = vshll.u32 %v3738, 16
      %v4086 = vrot.slane %v4084, 5
      %v4087 = vor.u32 %v4083, %v4086
      %v4088 = vrot.slane %v4087, 4
      %v4090 = vshll.u32 %v3739, 16
      %v4092 = vrot.slane %v4090, 5
      %v4093 = vsel %vm863, %v4088, %v4092
      %v4094 = vshrl.u32 %v3739, 16
      %v4096 = vrot.slane %v4094, 4
      %v4097 = vor.u32 %v4096, %v4092
      %v4098 = vrot.slane %v4097, 4
      %v4100 = vshll.u32 %v3740, 16
      %v4102 = vrot.slane %v4100, 5
      %v4103 = vsel %vm863, %v4098, %v4102
      %v4105 = vshrl.u32 %v3741, 16
      %v4107 = vrot.slane %v4105, 4
      %v4108 = vshll.u32 %v3741, 16
      %v4110 = vrot.slane %v4108, 5
      %v4111 = vor.u32 %v4107, %v4110
      %v4112 = vrot.slane %v4111, 4
      %v4114 = vshll.u32 %v3742, 16
      %v4116 = vrot.slane %v4114, 5
      %v4117 = vsel %vm863, %v4112, %v4116
      %v4118 = vshrl.u32 %v3742, 16
      %v4120 = vrot.slane %v4118, 4
      %v4121 = vor.u32 %v4120, %v4116
      %v4122 = vrot.slane %v4121, 4
      %v4124 = vshll.u32 %v3743, 16
      %v4126 = vrot.slane %v4124, 5
      %v4127 = vsel %vm863, %v4122, %v4126
      %s4128 = scalar_lea.vmem %s1, 56
      %v4129 = vld [vmem:[%s4128] sm:$0xf]
      %v4130 = vld [vmem:[%s4128 + $0x4] sm:$0xf]
      %v4131 = vunpack.c.l.b16 %v3757
      %v4132 = vunpack.c.l.b16 %v3767
      %v4133 = vunpack.c.l.b16 %v3781
      %v4134 = vunpack.c.l.b16 %v3791
      %v4135 = vunpack.c.l.b16 %v3805
      %v4136 = vunpack.c.l.b16 %v3815
      %v4137 = vunpack.c.l.b16 %v3829
      %v4138 = vunpack.c.l.b16 %v3839
      %v4139 = vunpack.c.l.b16 %v3853
      %v4140 = vunpack.c.l.b16 %v3863
      %v4141 = vunpack.c.l.b16 %v3877
      %v4142 = vunpack.c.l.b16 %v3887
      %v4143 = vunpack.c.l.b16 %v3901
      %v4144 = vunpack.c.l.b16 %v3911
      %v4145 = vunpack.c.l.b16 %v3925
      %v4146 = vunpack.c.l.b16 %v3935
      %v4147 = vunpack.c.l.b16 %v3949
      %v4148 = vunpack.c.l.b16 %v3959
      %v4149 = vunpack.c.l.b16 %v3973
      %v4150 = vunpack.c.l.b16 %v3983
      %v4151 = vunpack.c.l.b16 %v3997
      %v4152 = vunpack.c.l.b16 %v4007
      %v4153 = vunpack.c.l.b16 %v4021
      %v4154 = vunpack.c.l.b16 %v4031
      %v4155 = vunpack.c.l.b16 %v4045
      %v4156 = vunpack.c.l.b16 %v4055
      %v4157 = vunpack.c.l.b16 %v4069
      %v4158 = vunpack.c.l.b16 %v4079
      %v4159 = vunpack.c.l.b16 %v4093
      %v4160 = vunpack.c.l.b16 %v4103
      %v4161 = vunpack.c.l.b16 %v4117
      %v4162 = vunpack.c.l.b16 %v4127
      %v4163 = vpack.c.b16 %v4132, %v4131
      %v4164 = vpack.c.b16 %v4134, %v4133
      %v4165 = vpack.c.b16 %v4136, %v4135
      %v4166 = vpack.c.b16 %v4138, %v4137
      %v4167 = vpack.c.b16 %v4140, %v4139
      %v4168 = vpack.c.b16 %v4142, %v4141
      %v4169 = vpack.c.b16 %v4144, %v4143
      %v4170 = vpack.c.b16 %v4146, %v4145
      %v4171 = vpack.c.b16 %v4148, %v4147
      %v4172 = vpack.c.b16 %v4150, %v4149
      %v4173 = vpack.c.b16 %v4152, %v4151
      %v4174 = vpack.c.b16 %v4154, %v4153
      %v4175 = vpack.c.b16 %v4156, %v4155
      %v4176 = vpack.c.b16 %v4158, %v4157
      %v4177 = vpack.c.b16 %v4160, %v4159
      %v4178 = vpack.c.b16 %v4162, %v4161
      %v4181 = vunpack.c.l.b16 %v4129
      %v4182 = vunpack.c.l.b16 %v4130
      %v4183 = vpack.c.b16 %v4182, %v4181
      %v4186 = vsel %vm1305, %v4163, 0
      %v4189 = vsel %vm1305, %v4164, 0
      %v4192 = vsel %vm1305, %v4165, 0
      %v4195 = vsel %vm1305, %v4166, 0
      %v4198 = vsel %vm1305, %v4167, 0
      %v4201 = vsel %vm1305, %v4168, 0
      %v4204 = vsel %vm1305, %v4169, 0
      %v4207 = vsel %vm1305, %v4170, 0
      %v4210 = vsel %vm1305, %v4171, 0
      %v4213 = vsel %vm1305, %v4172, 0
      %v4216 = vsel %vm1305, %v4173, 0
      %v4219 = vsel %vm1305, %v4174, 0
      %v4222 = vsel %vm1305, %v4175, 0
      %v4225 = vsel %vm1305, %v4176, 0
      %v4228 = vsel %vm1305, %v4177, 0
      %v4231 = vsel %vm1305, %v4178, 0
      %4233 = vmatpush.bf16.msra.mxu0 0
      %4234 = vmatpush.bf16.msra.mxu0 0
      %4235 = vmatpush.bf16.msra.mxu0 0
      %4236 = vmatpush.bf16.msra.mxu0 0
      %4237 = vmatpush.bf16.msra.mxu0 0
      %4238 = vmatpush.bf16.msra.mxu0 0
      %4239 = vmatpush.bf16.msra.mxu0 0
      %4240 = vmatpush.bf16.msra.mxu0 %v4183
      %4241 = vmatmul.bf16.gmra.mxu0 %v4186
      %v4242 = vpop.f32.mrf.mxu0
      %v4243 = vadd.f32 0.0, %v4242
      %v4244 = vpop.f32.mrf.mxu0
      %v4245 = vadd.f32 0.0, %v4244
      %4246 = vmatmul.bf16.gmra.mxu0 %v4189
      %v4247 = vpop.f32.mrf.mxu0
      %v4248 = vadd.f32 0.0, %v4247
      %v4249 = vpop.f32.mrf.mxu0
      %v4250 = vadd.f32 0.0, %v4249
      %4251 = vmatmul.bf16.gmra.mxu0 %v4192
      %v4252 = vpop.f32.mrf.mxu0
      %v4253 = vadd.f32 0.0, %v4252
      %v4254 = vpop.f32.mrf.mxu0
      %v4255 = vadd.f32 0.0, %v4254
      %4256 = vmatmul.bf16.gmra.mxu0 %v4195
      %v4257 = vpop.f32.mrf.mxu0
      %v4258 = vadd.f32 0.0, %v4257
      %v4259 = vpop.f32.mrf.mxu0
      %v4260 = vadd.f32 0.0, %v4259
      %4261 = vmatmul.bf16.gmra.mxu0 %v4198
      %v4262 = vpop.f32.mrf.mxu0
      %v4263 = vadd.f32 0.0, %v4262
      %v4264 = vpop.f32.mrf.mxu0
      %v4265 = vadd.f32 0.0, %v4264
      %4266 = vmatmul.bf16.gmra.mxu0 %v4201
      %v4267 = vpop.f32.mrf.mxu0
      %v4268 = vadd.f32 0.0, %v4267
      %v4269 = vpop.f32.mrf.mxu0
      %v4270 = vadd.f32 0.0, %v4269
      %4271 = vmatmul.bf16.gmra.mxu0 %v4204
      %v4272 = vpop.f32.mrf.mxu0
      %v4273 = vadd.f32 0.0, %v4272
      %v4274 = vpop.f32.mrf.mxu0
      %v4275 = vadd.f32 0.0, %v4274
      %4276 = vmatmul.bf16.gmra.mxu0 %v4207
      %v4277 = vpop.f32.mrf.mxu0
      %v4278 = vadd.f32 0.0, %v4277
      %v4279 = vpop.f32.mrf.mxu0
      %v4280 = vadd.f32 0.0, %v4279
      %4281 = vmatmul.bf16.gmra.mxu0 %v4210
      %v4282 = vpop.f32.mrf.mxu0
      %v4283 = vadd.f32 0.0, %v4282
      %v4284 = vpop.f32.mrf.mxu0
      %v4285 = vadd.f32 0.0, %v4284
      %4286 = vmatmul.bf16.gmra.mxu0 %v4213
      %v4287 = vpop.f32.mrf.mxu0
      %v4288 = vadd.f32 0.0, %v4287
      %v4289 = vpop.f32.mrf.mxu0
      %v4290 = vadd.f32 0.0, %v4289
      %4291 = vmatmul.bf16.gmra.mxu0 %v4216
      %v4292 = vpop.f32.mrf.mxu0
      %v4293 = vadd.f32 0.0, %v4292
      %v4294 = vpop.f32.mrf.mxu0
      %v4295 = vadd.f32 0.0, %v4294
      %4296 = vmatmul.bf16.gmra.mxu0 %v4219
      %v4297 = vpop.f32.mrf.mxu0
      %v4298 = vadd.f32 0.0, %v4297
      %v4299 = vpop.f32.mrf.mxu0
      %v4300 = vadd.f32 0.0, %v4299
      %4301 = vmatmul.bf16.gmra.mxu0 %v4222
      %v4302 = vpop.f32.mrf.mxu0
      %v4303 = vadd.f32 0.0, %v4302
      %v4304 = vpop.f32.mrf.mxu0
      %v4305 = vadd.f32 0.0, %v4304
      %4306 = vmatmul.bf16.gmra.mxu0 %v4225
      %v4307 = vpop.f32.mrf.mxu0
      %v4308 = vadd.f32 0.0, %v4307
      %v4309 = vpop.f32.mrf.mxu0
      %v4310 = vadd.f32 0.0, %v4309
      %4311 = vmatmul.bf16.gmra.mxu0 %v4228
      %v4312 = vpop.f32.mrf.mxu0
      %v4313 = vadd.f32 0.0, %v4312
      %v4314 = vpop.f32.mrf.mxu0
      %v4315 = vadd.f32 0.0, %v4314
      %4316 = vmatmul.bf16.gmra.mxu0 %v4231
      %v4317 = vpop.f32.mrf.mxu0
      %v4318 = vadd.f32 0.0, %v4317
      %v4319 = vpop.f32.mrf.mxu0
      %v4320 = vadd.f32 0.0, %v4319
      %4321 = vdwg.mxu0
      %v4322 = vadd.f32 %v3664, %v4243
      %v4323 = vadd.f32 %v3665, %v4245
      %v4324 = vadd.f32 %v3666, %v4248
      %v4325 = vadd.f32 %v3667, %v4250
      %v4326 = vadd.f32 %v3668, %v4253
      %v4327 = vadd.f32 %v3669, %v4255
      %v4328 = vadd.f32 %v3670, %v4258
      %v4329 = vadd.f32 %v3671, %v4260
      %v4330 = vadd.f32 %v3672, %v4263
      %v4331 = vadd.f32 %v3673, %v4265
      %v4332 = vadd.f32 %v3674, %v4268
      %v4333 = vadd.f32 %v3675, %v4270
      %v4334 = vadd.f32 %v3676, %v4273
      %v4335 = vadd.f32 %v3677, %v4275
      %v4336 = vadd.f32 %v3678, %v4278
      %v4337 = vadd.f32 %v3679, %v4280
      %v4338 = vadd.f32 %v3680, %v4283
      %v4339 = vadd.f32 %v3681, %v4285
      %v4340 = vadd.f32 %v3682, %v4288
      %v4341 = vadd.f32 %v3683, %v4290
      %v4342 = vadd.f32 %v3684, %v4293
      %v4343 = vadd.f32 %v3685, %v4295
      %v4344 = vadd.f32 %v3686, %v4298
      %v4345 = vadd.f32 %v3687, %v4300
      %v4346 = vadd.f32 %v3688, %v4303
      %v4347 = vadd.f32 %v3689, %v4305
      %v4348 = vadd.f32 %v3690, %v4308
      %v4349 = vadd.f32 %v3691, %v4310
      %v4350 = vadd.f32 %v3692, %v4313
      %v4351 = vadd.f32 %v3693, %v4315
      %v4352 = vadd.f32 %v3694, %v4318
      %v4353 = vadd.f32 %v3695, %v4320
      %v4354 = vld [vmem:[%s3405] sm:$0xe]
      %v4355 = vld [vmem:[%s3405 + $0xc] sm:$0xe]
      %v4356 = vld [vmem:[%s3405 + $0x18] sm:$0xe]
      %v4357 = vld [vmem:[%s3405 + $0x24] sm:$0xe]
      %v4358 = vld [vmem:[%s3405 + $0x30] sm:$0xe]
      %v4359 = vld [vmem:[%s3405 + $0x3c] sm:$0xe]
      %v4360 = vld [vmem:[%s3405 + $0x48] sm:$0xe]
      %v4361 = vld [vmem:[%s3405 + $0x54] sm:$0xe]
      %v4362 = vld [vmem:[%s3405 + $0x60] sm:$0xe]
      %v4363 = vld [vmem:[%s3405 + $0x6c] sm:$0xe]
      %v4364 = vld [vmem:[%s3405 + $0x78] sm:$0xe]
      %v4365 = vld [vmem:[%s3405 + $0x84] sm:$0xe]
      %v4366 = vld [vmem:[%s3405 + $0x90] sm:$0xe]
      %v4367 = vld [vmem:[%s3405 + $0x9c] sm:$0xe]
      %v4368 = vld [vmem:[%s3405 + $0xa8] sm:$0xe]
      %v4369 = vld [vmem:[%s3405 + $0xb4] sm:$0xe]
      %v4418 = vrot.slane %v4354, 5
      %v4419 = vrot.slane %v4418, 4
      %v4420 = vrot.slane %v3697, 5
      %v4421 = vsel %vm1716, %v4419, %v4420
      %v4422 = vrot.slane %v4420, 4
      %v4423 = vrot.slane %v3698, 5
      %v4424 = vsel %vm1716, %v4422, %v4423
      %v4425 = vrot.slane %v4355, 5
      %v4426 = vrot.slane %v4425, 4
      %v4427 = vrot.slane %v3700, 5
      %v4428 = vsel %vm1716, %v4426, %v4427
      %v4429 = vrot.slane %v4427, 4
      %v4430 = vrot.slane %v3701, 5
      %v4431 = vsel %vm1716, %v4429, %v4430
      %v4432 = vrot.slane %v4356, 5
      %v4433 = vrot.slane %v4432, 4
      %v4434 = vrot.slane %v3703, 5
      %v4435 = vsel %vm1716, %v4433, %v4434
      %v4436 = vrot.slane %v4434, 4
      %v4437 = vrot.slane %v3704, 5
      %v4438 = vsel %vm1716, %v4436, %v4437
      %v4439 = vrot.slane %v4357, 5
      %v4440 = vrot.slane %v4439, 4
      %v4441 = vrot.slane %v3706, 5
      %v4442 = vsel %vm1716, %v4440, %v4441
      %v4443 = vrot.slane %v4441, 4
      %v4444 = vrot.slane %v3707, 5
      %v4445 = vsel %vm1716, %v4443, %v4444
      %v4446 = vrot.slane %v4358, 5
      %v4447 = vrot.slane %v4446, 4
      %v4448 = vrot.slane %v3709, 5
      %v4449 = vsel %vm1716, %v4447, %v4448
      %v4450 = vrot.slane %v4448, 4
      %v4451 = vrot.slane %v3710, 5
      %v4452 = vsel %vm1716, %v4450, %v4451
      %v4453 = vrot.slane %v4359, 5
      %v4454 = vrot.slane %v4453, 4
      %v4455 = vrot.slane %v3712, 5
      %v4456 = vsel %vm1716, %v4454, %v4455
      %v4457 = vrot.slane %v4455, 4
      %v4458 = vrot.slane %v3713, 5
      %v4459 = vsel %vm1716, %v4457, %v4458
      %v4460 = vrot.slane %v4360, 5
      %v4461 = vrot.slane %v4460, 4
      %v4462 = vrot.slane %v3715, 5
      %v4463 = vsel %vm1716, %v4461, %v4462
      %v4464 = vrot.slane %v4462, 4
      %v4465 = vrot.slane %v3716, 5
      %v4466 = vsel %vm1716, %v4464, %v4465
      %v4467 = vrot.slane %v4361, 5
      %v4468 = vrot.slane %v4467, 4
      %v4469 = vrot.slane %v3718, 5
      %v4470 = vsel %vm1716, %v4468, %v4469
      %v4471 = vrot.slane %v4469, 4
      %v4472 = vrot.slane %v3719, 5
      %v4473 = vsel %vm1716, %v4471, %v4472
      %v4474 = vrot.slane %v4362, 5
      %v4475 = vrot.slane %v4474, 4
      %v4476 = vrot.slane %v3721, 5
      %v4477 = vsel %vm1716, %v4475, %v4476
      %v4478 = vrot.slane %v4476, 4
      %v4479 = vrot.slane %v3722, 5
      %v4480 = vsel %vm1716, %v4478, %v4479
      %v4481 = vrot.slane %v4363, 5
      %v4482 = vrot.slane %v4481, 4
      %v4483 = vrot.slane %v3724, 5
      %v4484 = vsel %vm1716, %v4482, %v4483
      %v4485 = vrot.slane %v4483, 4
      %v4486 = vrot.slane %v3725, 5
      %v4487 = vsel %vm1716, %v4485, %v4486
      %v4488 = vrot.slane %v4364, 5
      %v4489 = vrot.slane %v4488, 4
      %v4490 = vrot.slane %v3727, 5
      %v4491 = vsel %vm1716, %v4489, %v4490
      %v4492 = vrot.slane %v4490, 4
      %v4493 = vrot.slane %v3728, 5
      %v4494 = vsel %vm1716, %v4492, %v4493
      %v4495 = vrot.slane %v4365, 5
      %v4496 = vrot.slane %v4495, 4
      %v4497 = vrot.slane %v3730, 5
      %v4498 = vsel %vm1716, %v4496, %v4497
      %v4499 = vrot.slane %v4497, 4
      %v4500 = vrot.slane %v3731, 5
      %v4501 = vsel %vm1716, %v4499, %v4500
      %v4502 = vrot.slane %v4366, 5
      %v4503 = vrot.slane %v4502, 4
      %v4504 = vrot.slane %v3733, 5
      %v4505 = vsel %vm1716, %v4503, %v4504
      %v4506 = vrot.slane %v4504, 4
      %v4507 = vrot.slane %v3734, 5
      %v4508 = vsel %vm1716, %v4506, %v4507
      %v4509 = vrot.slane %v4367, 5
      %v4510 = vrot.slane %v4509, 4
      %v4511 = vrot.slane %v3736, 5
      %v4512 = vsel %vm1716, %v4510, %v4511
      %v4513 = vrot.slane %v4511, 4
      %v4514 = vrot.slane %v3737, 5
      %v4515 = vsel %vm1716, %v4513, %v4514
      %v4516 = vrot.slane %v4368, 5
      %v4517 = vrot.slane %v4516, 4
      %v4518 = vrot.slane %v3739, 5
      %v4519 = vsel %vm1716, %v4517, %v4518
      %v4520 = vrot.slane %v4518, 4
      %v4521 = vrot.slane %v3740, 5
      %v4522 = vsel %vm1716, %v4520, %v4521
      %v4523 = vrot.slane %v4369, 5
      %v4524 = vrot.slane %v4523, 4
      %v4525 = vrot.slane %v3742, 5
      %v4526 = vsel %vm1716, %v4524, %v4525
      %v4527 = vrot.slane %v4525, 4
      %v4528 = vrot.slane %v3743, 5
      %v4529 = vsel %vm1716, %v4527, %v4528
      %s4530 = scalar_lea.vmem %s1, 64
      %v4531 = vld [vmem:[%s4530] sm:$0xf]
      %v4532 = vld [vmem:[%s4530 + $0x4] sm:$0xf]
      %v4533 = vunpack.c.l.b16 %v4421
      %v4534 = vunpack.c.l.b16 %v4424
      %v4535 = vunpack.c.l.b16 %v4428
      %v4536 = vunpack.c.l.b16 %v4431
      %v4537 = vunpack.c.l.b16 %v4435
      %v4538 = vunpack.c.l.b16 %v4438
      %v4539 = vunpack.c.l.b16 %v4442
      %v4540 = vunpack.c.l.b16 %v4445
      %v4541 = vunpack.c.l.b16 %v4449
      %v4542 = vunpack.c.l.b16 %v4452
      %v4543 = vunpack.c.l.b16 %v4456
      %v4544 = vunpack.c.l.b16 %v4459
      %v4545 = vunpack.c.l.b16 %v4463
      %v4546 = vunpack.c.l.b16 %v4466
      %v4547 = vunpack.c.l.b16 %v4470
      %v4548 = vunpack.c.l.b16 %v4473
      %v4549 = vunpack.c.l.b16 %v4477
      %v4550 = vunpack.c.l.b16 %v4480
      %v4551 = vunpack.c.l.b16 %v4484
      %v4552 = vunpack.c.l.b16 %v4487
      %v4553 = vunpack.c.l.b16 %v4491
      %v4554 = vunpack.c.l.b16 %v4494
      %v4555 = vunpack.c.l.b16 %v4498
      %v4556 = vunpack.c.l.b16 %v4501
      %v4557 = vunpack.c.l.b16 %v4505
      %v4558 = vunpack.c.l.b16 %v4508
      %v4559 = vunpack.c.l.b16 %v4512
      %v4560 = vunpack.c.l.b16 %v4515
      %v4561 = vunpack.c.l.b16 %v4519
      %v4562 = vunpack.c.l.b16 %v4522
      %v4563 = vunpack.c.l.b16 %v4526
      %v4564 = vunpack.c.l.b16 %v4529
      %v4565 = vpack.c.b16 %v4534, %v4533
      %v4566 = vpack.c.b16 %v4536, %v4535
      %v4567 = vpack.c.b16 %v4538, %v4537
      %v4568 = vpack.c.b16 %v4540, %v4539
      %v4569 = vpack.c.b16 %v4542, %v4541
      %v4570 = vpack.c.b16 %v4544, %v4543
      %v4571 = vpack.c.b16 %v4546, %v4545
      %v4572 = vpack.c.b16 %v4548, %v4547
      %v4573 = vpack.c.b16 %v4550, %v4549
      %v4574 = vpack.c.b16 %v4552, %v4551
      %v4575 = vpack.c.b16 %v4554, %v4553
      %v4576 = vpack.c.b16 %v4556, %v4555
      %v4577 = vpack.c.b16 %v4558, %v4557
      %v4578 = vpack.c.b16 %v4560, %v4559
      %v4579 = vpack.c.b16 %v4562, %v4561
      %v4580 = vpack.c.b16 %v4564, %v4563
      %v4583 = vunpack.c.l.b16 %v4531
      %v4584 = vunpack.c.l.b16 %v4532
      %v4585 = vpack.c.b16 %v4584, %v4583
      %v4588 = vsel %vm1305, %v4565, 0
      %v4591 = vsel %vm1305, %v4566, 0
      %v4594 = vsel %vm1305, %v4567, 0
      %v4597 = vsel %vm1305, %v4568, 0
      %v4600 = vsel %vm1305, %v4569, 0
      %v4603 = vsel %vm1305, %v4570, 0
      %v4606 = vsel %vm1305, %v4571, 0
      %v4609 = vsel %vm1305, %v4572, 0
      %v4612 = vsel %vm1305, %v4573, 0
      %v4615 = vsel %vm1305, %v4574, 0
      %v4618 = vsel %vm1305, %v4575, 0
      %v4621 = vsel %vm1305, %v4576, 0
      %v4624 = vsel %vm1305, %v4577, 0
      %v4627 = vsel %vm1305, %v4578, 0
      %v4630 = vsel %vm1305, %v4579, 0
      %v4633 = vsel %vm1305, %v4580, 0
      %4635 = vmatpush.bf16.msra.mxu0 0
      %4636 = vmatpush.bf16.msra.mxu0 0
      %4637 = vmatpush.bf16.msra.mxu0 0
      %4638 = vmatpush.bf16.msra.mxu0 0
      %4639 = vmatpush.bf16.msra.mxu0 0
      %4640 = vmatpush.bf16.msra.mxu0 0
      %4641 = vmatpush.bf16.msra.mxu0 0
      %4642 = vmatpush.bf16.msra.mxu0 %v4585
      %4643 = vmatmul.bf16.gmra.mxu0 %v4588
      %v4644 = vpop.f32.mrf.mxu0
      %v4645 = vadd.f32 0.0, %v4644
      %v4646 = vpop.f32.mrf.mxu0
      %v4647 = vadd.f32 0.0, %v4646
      %4648 = vmatmul.bf16.gmra.mxu0 %v4591
      %v4649 = vpop.f32.mrf.mxu0
      %v4650 = vadd.f32 0.0, %v4649
      %v4651 = vpop.f32.mrf.mxu0
      %v4652 = vadd.f32 0.0, %v4651
      %4653 = vmatmul.bf16.gmra.mxu0 %v4594
      %v4654 = vpop.f32.mrf.mxu0
      %v4655 = vadd.f32 0.0, %v4654
      %v4656 = vpop.f32.mrf.mxu0
      %v4657 = vadd.f32 0.0, %v4656
      %4658 = vmatmul.bf16.gmra.mxu0 %v4597
      %v4659 = vpop.f32.mrf.mxu0
      %v4660 = vadd.f32 0.0, %v4659
      %v4661 = vpop.f32.mrf.mxu0
      %v4662 = vadd.f32 0.0, %v4661
      %4663 = vmatmul.bf16.gmra.mxu0 %v4600
      %v4664 = vpop.f32.mrf.mxu0
      %v4665 = vadd.f32 0.0, %v4664
      %v4666 = vpop.f32.mrf.mxu0
      %v4667 = vadd.f32 0.0, %v4666
      %4668 = vmatmul.bf16.gmra.mxu0 %v4603
      %v4669 = vpop.f32.mrf.mxu0
      %v4670 = vadd.f32 0.0, %v4669
      %v4671 = vpop.f32.mrf.mxu0
      %v4672 = vadd.f32 0.0, %v4671
      %4673 = vmatmul.bf16.gmra.mxu0 %v4606
      %v4674 = vpop.f32.mrf.mxu0
      %v4675 = vadd.f32 0.0, %v4674
      %v4676 = vpop.f32.mrf.mxu0
      %v4677 = vadd.f32 0.0, %v4676
      %4678 = vmatmul.bf16.gmra.mxu0 %v4609
      %v4679 = vpop.f32.mrf.mxu0
      %v4680 = vadd.f32 0.0, %v4679
      %v4681 = vpop.f32.mrf.mxu0
      %v4682 = vadd.f32 0.0, %v4681
      %4683 = vmatmul.bf16.gmra.mxu0 %v4612
      %v4684 = vpop.f32.mrf.mxu0
      %v4685 = vadd.f32 0.0, %v4684
      %v4686 = vpop.f32.mrf.mxu0
      %v4687 = vadd.f32 0.0, %v4686
      %4688 = vmatmul.bf16.gmra.mxu0 %v4615
      %v4689 = vpop.f32.mrf.mxu0
      %v4690 = vadd.f32 0.0, %v4689
      %v4691 = vpop.f32.mrf.mxu0
      %v4692 = vadd.f32 0.0, %v4691
      %4693 = vmatmul.bf16.gmra.mxu0 %v4618
      %v4694 = vpop.f32.mrf.mxu0
      %v4695 = vadd.f32 0.0, %v4694
      %v4696 = vpop.f32.mrf.mxu0
      %v4697 = vadd.f32 0.0, %v4696
      %4698 = vmatmul.bf16.gmra.mxu0 %v4621
      %v4699 = vpop.f32.mrf.mxu0
      %v4700 = vadd.f32 0.0, %v4699
      %v4701 = vpop.f32.mrf.mxu0
      %v4702 = vadd.f32 0.0, %v4701
      %4703 = vmatmul.bf16.gmra.mxu0 %v4624
      %v4704 = vpop.f32.mrf.mxu0
      %v4705 = vadd.f32 0.0, %v4704
      %v4706 = vpop.f32.mrf.mxu0
      %v4707 = vadd.f32 0.0, %v4706
      %4708 = vmatmul.bf16.gmra.mxu0 %v4627
      %v4709 = vpop.f32.mrf.mxu0
      %v4710 = vadd.f32 0.0, %v4709
      %v4711 = vpop.f32.mrf.mxu0
      %v4712 = vadd.f32 0.0, %v4711
      %4713 = vmatmul.bf16.gmra.mxu0 %v4630
      %v4714 = vpop.f32.mrf.mxu0
      %v4715 = vadd.f32 0.0, %v4714
      %v4716 = vpop.f32.mrf.mxu0
      %v4717 = vadd.f32 0.0, %v4716
      %4718 = vmatmul.bf16.gmra.mxu0 %v4633
      %v4719 = vpop.f32.mrf.mxu0
      %v4720 = vadd.f32 0.0, %v4719
      %v4721 = vpop.f32.mrf.mxu0
      %v4722 = vadd.f32 0.0, %v4721
      %4723 = vdwg.mxu0
      %v4724 = vadd.f32 %v4322, %v4645
      %v4725 = vadd.f32 %v4323, %v4647
      %v4726 = vadd.f32 %v4324, %v4650
      %v4727 = vadd.f32 %v4325, %v4652
      %v4728 = vadd.f32 %v4326, %v4655
      %v4729 = vadd.f32 %v4327, %v4657
      %v4730 = vadd.f32 %v4328, %v4660
      %v4731 = vadd.f32 %v4329, %v4662
      %v4732 = vadd.f32 %v4330, %v4665
      %v4733 = vadd.f32 %v4331, %v4667
      %v4734 = vadd.f32 %v4332, %v4670
      %v4735 = vadd.f32 %v4333, %v4672
      %v4736 = vadd.f32 %v4334, %v4675
      %v4737 = vadd.f32 %v4335, %v4677
      %v4738 = vadd.f32 %v4336, %v4680
      %v4739 = vadd.f32 %v4337, %v4682
      %v4740 = vadd.f32 %v4338, %v4685
      %v4741 = vadd.f32 %v4339, %v4687
      %v4742 = vadd.f32 %v4340, %v4690
      %v4743 = vadd.f32 %v4341, %v4692
      %v4744 = vadd.f32 %v4342, %v4695
      %v4745 = vadd.f32 %v4343, %v4697
      %v4746 = vadd.f32 %v4344, %v4700
      %v4747 = vadd.f32 %v4345, %v4702
      %v4748 = vadd.f32 %v4346, %v4705
      %v4749 = vadd.f32 %v4347, %v4707
      %v4750 = vadd.f32 %v4348, %v4710
      %v4751 = vadd.f32 %v4349, %v4712
      %v4752 = vadd.f32 %v4350, %v4715
      %v4753 = vadd.f32 %v4351, %v4717
      %v4754 = vadd.f32 %v4352, %v4720
      %v4755 = vadd.f32 %v4353, %v4722
      %v4756 = vld [vmem:[%s2] sm:$0x1]
      %v4758 = vperm.slane %v4756, 0
      %v4760 = vadd.f32 %v4724, %v4758
      %v4761 = vadd.f32 %v4725, %v4758
      %v4762 = vadd.f32 %v4726, %v4758
      %v4763 = vadd.f32 %v4727, %v4758
      %v4764 = vadd.f32 %v4728, %v4758
      %v4765 = vadd.f32 %v4729, %v4758
      %v4766 = vadd.f32 %v4730, %v4758
      %v4767 = vadd.f32 %v4731, %v4758
      %v4768 = vadd.f32 %v4732, %v4758
      %v4769 = vadd.f32 %v4733, %v4758
      %v4770 = vadd.f32 %v4734, %v4758
      %v4771 = vadd.f32 %v4735, %v4758
      %v4772 = vadd.f32 %v4736, %v4758
      %v4773 = vadd.f32 %v4737, %v4758
      %v4774 = vadd.f32 %v4738, %v4758
      %v4775 = vadd.f32 %v4739, %v4758
      %v4776 = vadd.f32 %v4740, %v4758
      %v4777 = vadd.f32 %v4741, %v4758
      %v4778 = vadd.f32 %v4742, %v4758
      %v4779 = vadd.f32 %v4743, %v4758
      %v4780 = vadd.f32 %v4744, %v4758
      %v4781 = vadd.f32 %v4745, %v4758
      %v4782 = vadd.f32 %v4746, %v4758
      %v4783 = vadd.f32 %v4747, %v4758
      %v4784 = vadd.f32 %v4748, %v4758
      %v4785 = vadd.f32 %v4749, %v4758
      %v4786 = vadd.f32 %v4750, %v4758
      %v4787 = vadd.f32 %v4751, %v4758
      %v4788 = vadd.f32 %v4752, %v4758
      %v4789 = vadd.f32 %v4753, %v4758
      %v4790 = vadd.f32 %v4754, %v4758
      %v4791 = vadd.f32 %v4755, %v4758
      %v4792 = vxor.u32 %v4760, 2147483648
      %v4793 = vxor.u32 %v4761, 2147483648
      %v4794 = vxor.u32 %v4762, 2147483648
      %v4795 = vxor.u32 %v4763, 2147483648
      %v4796 = vxor.u32 %v4764, 2147483648
      %v4797 = vxor.u32 %v4765, 2147483648
      %v4798 = vxor.u32 %v4766, 2147483648
      %v4799 = vxor.u32 %v4767, 2147483648
      %v4800 = vxor.u32 %v4768, 2147483648
      %v4801 = vxor.u32 %v4769, 2147483648
      %v4802 = vxor.u32 %v4770, 2147483648
      %v4803 = vxor.u32 %v4771, 2147483648
      %v4804 = vxor.u32 %v4772, 2147483648
      %v4805 = vxor.u32 %v4773, 2147483648
      %v4806 = vxor.u32 %v4774, 2147483648
      %v4807 = vxor.u32 %v4775, 2147483648
      %v4808 = vxor.u32 %v4776, 2147483648
      %v4809 = vxor.u32 %v4777, 2147483648
      %v4810 = vxor.u32 %v4778, 2147483648
      %v4811 = vxor.u32 %v4779, 2147483648
      %v4812 = vxor.u32 %v4780, 2147483648
      %v4813 = vxor.u32 %v4781, 2147483648
      %v4814 = vxor.u32 %v4782, 2147483648
      %v4815 = vxor.u32 %v4783, 2147483648
      %v4816 = vxor.u32 %v4784, 2147483648
      %v4817 = vxor.u32 %v4785, 2147483648
      %v4818 = vxor.u32 %v4786, 2147483648
      %v4819 = vxor.u32 %v4787, 2147483648
      %v4820 = vxor.u32 %v4788, 2147483648
      %v4821 = vxor.u32 %v4789, 2147483648
      %v4822 = vxor.u32 %v4790, 2147483648
      %v4823 = vxor.u32 %v4791, 2147483648
      %v4824 = vmul.f32 %v4792, 1.442695
      %v4825 = vpow.pop %v4824
      %v4826 = vmul.f32 %v4793, 1.442695
      %v4827 = vpow.pop %v4826
      %v4828 = vmul.f32 %v4794, 1.442695
      %v4829 = vpow.pop %v4828
      %v4830 = vmul.f32 %v4795, 1.442695
      %v4831 = vpow.pop %v4830
      %v4832 = vmul.f32 %v4796, 1.442695
      %v4833 = vpow.pop %v4832
      %v4834 = vmul.f32 %v4797, 1.442695
      %v4835 = vpow.pop %v4834
      %v4836 = vmul.f32 %v4798, 1.442695
      %v4837 = vpow.pop %v4836
      %v4838 = vmul.f32 %v4799, 1.442695
      %v4839 = vpow.pop %v4838
      %v4840 = vmul.f32 %v4800, 1.442695
      %v4841 = vpow.pop %v4840
      %v4842 = vmul.f32 %v4801, 1.442695
      %v4843 = vpow.pop %v4842
      %v4844 = vmul.f32 %v4802, 1.442695
      %v4845 = vpow.pop %v4844
      %v4846 = vmul.f32 %v4803, 1.442695
      %v4847 = vpow.pop %v4846
      %v4848 = vmul.f32 %v4804, 1.442695
      %v4849 = vpow.pop %v4848
      %v4850 = vmul.f32 %v4805, 1.442695
      %v4851 = vpow.pop %v4850
      %v4852 = vmul.f32 %v4806, 1.442695
      %v4853 = vpow.pop %v4852
      %v4854 = vmul.f32 %v4807, 1.442695
      %v4855 = vpow.pop %v4854
      %v4856 = vmul.f32 %v4808, 1.442695
      %v4857 = vpow.pop %v4856
      %v4858 = vmul.f32 %v4809, 1.442695
      %v4859 = vpow.pop %v4858
      %v4860 = vmul.f32 %v4810, 1.442695
      %v4861 = vpow.pop %v4860
      %v4862 = vmul.f32 %v4811, 1.442695
      %v4863 = vpow.pop %v4862
      %v4864 = vmul.f32 %v4812, 1.442695
      %v4865 = vpow.pop %v4864
      %v4866 = vmul.f32 %v4813, 1.442695
      %v4867 = vpow.pop %v4866
      %v4868 = vmul.f32 %v4814, 1.442695
      %v4869 = vpow.pop %v4868
      %v4870 = vmul.f32 %v4815, 1.442695
      %v4871 = vpow.pop %v4870
      %v4872 = vmul.f32 %v4816, 1.442695
      %v4873 = vpow.pop %v4872
      %v4874 = vmul.f32 %v4817, 1.442695
      %v4875 = vpow.pop %v4874
      %v4876 = vmul.f32 %v4818, 1.442695
      %v4877 = vpow.pop %v4876
      %v4878 = vmul.f32 %v4819, 1.442695
      %v4879 = vpow.pop %v4878
      %v4880 = vmul.f32 %v4820, 1.442695
      %v4881 = vpow.pop %v4880
      %v4882 = vmul.f32 %v4821, 1.442695
      %v4883 = vpow.pop %v4882
      %v4884 = vmul.f32 %v4822, 1.442695
      %v4885 = vpow.pop %v4884
      %v4886 = vmul.f32 %v4823, 1.442695
      %v4887 = vpow.pop %v4886
      %v4888 = vadd.f32 %v4825, 1.0
      %v4889 = vadd.f32 %v4827, 1.0
      %v4890 = vadd.f32 %v4829, 1.0
      %v4891 = vadd.f32 %v4831, 1.0
      %v4892 = vadd.f32 %v4833, 1.0
      %v4893 = vadd.f32 %v4835, 1.0
      %v4894 = vadd.f32 %v4837, 1.0
      %v4895 = vadd.f32 %v4839, 1.0
      %v4896 = vadd.f32 %v4841, 1.0
      %v4897 = vadd.f32 %v4843, 1.0
      %v4898 = vadd.f32 %v4845, 1.0
      %v4899 = vadd.f32 %v4847, 1.0
      %v4900 = vadd.f32 %v4849, 1.0
      %v4901 = vadd.f32 %v4851, 1.0
      %v4902 = vadd.f32 %v4853, 1.0
      %v4903 = vadd.f32 %v4855, 1.0
      %v4904 = vadd.f32 %v4857, 1.0
      %v4905 = vadd.f32 %v4859, 1.0
      %v4906 = vadd.f32 %v4861, 1.0
      %v4907 = vadd.f32 %v4863, 1.0
      %v4908 = vadd.f32 %v4865, 1.0
      %v4909 = vadd.f32 %v4867, 1.0
      %v4910 = vadd.f32 %v4869, 1.0
      %v4911 = vadd.f32 %v4871, 1.0
      %v4912 = vadd.f32 %v4873, 1.0
      %v4913 = vadd.f32 %v4875, 1.0
      %v4914 = vadd.f32 %v4877, 1.0
      %v4915 = vadd.f32 %v4879, 1.0
      %v4916 = vadd.f32 %v4881, 1.0
      %v4917 = vadd.f32 %v4883, 1.0
      %v4918 = vadd.f32 %v4885, 1.0
      %v4919 = vadd.f32 %v4887, 1.0
      %v4920 = vrcp.pop %v4888
      %v4921 = vmul.f32 %v4888, %v4920
      %v4922 = vsub.f32 1.0, %v4921
      %v4923 = vmul.f32 %v4920, %v4922
      %v4924 = vadd.f32 %v4920, %v4923
      %vm4925 = vweird.f32 %v4888
      %vm4926 = vweird.f32 %v4920
      %vm4927 = vmor %vm4925, %vm4926
      %v4928 = vsel %vm4927, %v4920, %v4924
      %v4929 = vand.u32 2147483647, %v4888
      %vm4930 = vcmp.eq.f32.partialorder %v4929, 8.507059e+37
      %v4931 = vand.u32 %v4888, 2147483648
      %v4932 = vor.u32 1.1754944e-38, %v4931
      %v4933 = vsel %vm4930, %v4932, %v4928
      %v4934 = vmul.f32 1.0, %v4933
      %v4935 = vrcp.pop %v4889
      %v4936 = vmul.f32 %v4889, %v4935
      %v4937 = vsub.f32 1.0, %v4936
      %v4938 = vmul.f32 %v4935, %v4937
      %v4939 = vadd.f32 %v4935, %v4938
      %vm4940 = vweird.f32 %v4889
      %vm4941 = vweird.f32 %v4935
      %vm4942 = vmor %vm4940, %vm4941
      %v4943 = vsel %vm4942, %v4935, %v4939
      %v4944 = vand.u32 2147483647, %v4889
      %vm4945 = vcmp.eq.f32.partialorder %v4944, 8.507059e+37
      %v4946 = vand.u32 %v4889, 2147483648
      %v4947 = vor.u32 1.1754944e-38, %v4946
      %v4948 = vsel %vm4945, %v4947, %v4943
      %v4949 = vmul.f32 1.0, %v4948
      %v4950 = vrcp.pop %v4890
      %v4951 = vmul.f32 %v4890, %v4950
      %v4952 = vsub.f32 1.0, %v4951
      %v4953 = vmul.f32 %v4950, %v4952
      %v4954 = vadd.f32 %v4950, %v4953
      %vm4955 = vweird.f32 %v4890
      %vm4956 = vweird.f32 %v4950
      %vm4957 = vmor %vm4955, %vm4956
      %v4958 = vsel %vm4957, %v4950, %v4954
      %v4959 = vand.u32 2147483647, %v4890
      %vm4960 = vcmp.eq.f32.partialorder %v4959, 8.507059e+37
      %v4961 = vand.u32 %v4890, 2147483648
      %v4962 = vor.u32 1.1754944e-38, %v4961
      %v4963 = vsel %vm4960, %v4962, %v4958
      %v4964 = vmul.f32 1.0, %v4963
      %v4965 = vrcp.pop %v4891
      %v4966 = vmul.f32 %v4891, %v4965
      %v4967 = vsub.f32 1.0, %v4966
      %v4968 = vmul.f32 %v4965, %v4967
      %v4969 = vadd.f32 %v4965, %v4968
      %vm4970 = vweird.f32 %v4891
      %vm4971 = vweird.f32 %v4965
      %vm4972 = vmor %vm4970, %vm4971
      %v4973 = vsel %vm4972, %v4965, %v4969
      %v4974 = vand.u32 2147483647, %v4891
      %vm4975 = vcmp.eq.f32.partialorder %v4974, 8.507059e+37
      %v4976 = vand.u32 %v4891, 2147483648
      %v4977 = vor.u32 1.1754944e-38, %v4976
      %v4978 = vsel %vm4975, %v4977, %v4973
      %v4979 = vmul.f32 1.0, %v4978
      %v4980 = vrcp.pop %v4892
      %v4981 = vmul.f32 %v4892, %v4980
      %v4982 = vsub.f32 1.0, %v4981
      %v4983 = vmul.f32 %v4980, %v4982
      %v4984 = vadd.f32 %v4980, %v4983
      %vm4985 = vweird.f32 %v4892
      %vm4986 = vweird.f32 %v4980
      %vm4987 = vmor %vm4985, %vm4986
      %v4988 = vsel %vm4987, %v4980, %v4984
      %v4989 = vand.u32 2147483647, %v4892
      %vm4990 = vcmp.eq.f32.partialorder %v4989, 8.507059e+37
      %v4991 = vand.u32 %v4892, 2147483648
      %v4992 = vor.u32 1.1754944e-38, %v4991
      %v4993 = vsel %vm4990, %v4992, %v4988
      %v4994 = vmul.f32 1.0, %v4993
      %v4995 = vrcp.pop %v4893
      %v4996 = vmul.f32 %v4893, %v4995
      %v4997 = vsub.f32 1.0, %v4996
      %v4998 = vmul.f32 %v4995, %v4997
      %v4999 = vadd.f32 %v4995, %v4998
      %vm5000 = vweird.f32 %v4893
      %vm5001 = vweird.f32 %v4995
      %vm5002 = vmor %vm5000, %vm5001
      %v5003 = vsel %vm5002, %v4995, %v4999
      %v5004 = vand.u32 2147483647, %v4893
      %vm5005 = vcmp.eq.f32.partialorder %v5004, 8.507059e+37
      %v5006 = vand.u32 %v4893, 2147483648
      %v5007 = vor.u32 1.1754944e-38, %v5006
      %v5008 = vsel %vm5005, %v5007, %v5003
      %v5009 = vmul.f32 1.0, %v5008
      %v5010 = vrcp.pop %v4894
      %v5011 = vmul.f32 %v4894, %v5010
      %v5012 = vsub.f32 1.0, %v5011
      %v5013 = vmul.f32 %v5010, %v5012
      %v5014 = vadd.f32 %v5010, %v5013
      %vm5015 = vweird.f32 %v4894
      %vm5016 = vweird.f32 %v5010
      %vm5017 = vmor %vm5015, %vm5016
      %v5018 = vsel %vm5017, %v5010, %v5014
      %v5019 = vand.u32 2147483647, %v4894
      %vm5020 = vcmp.eq.f32.partialorder %v5019, 8.507059e+37
      %v5021 = vand.u32 %v4894, 2147483648
      %v5022 = vor.u32 1.1754944e-38, %v5021
      %v5023 = vsel %vm5020, %v5022, %v5018
      %v5024 = vmul.f32 1.0, %v5023
      %v5025 = vrcp.pop %v4895
      %v5026 = vmul.f32 %v4895, %v5025
      %v5027 = vsub.f32 1.0, %v5026
      %v5028 = vmul.f32 %v5025, %v5027
      %v5029 = vadd.f32 %v5025, %v5028
      %vm5030 = vweird.f32 %v4895
      %vm5031 = vweird.f32 %v5025
      %vm5032 = vmor %vm5030, %vm5031
      %v5033 = vsel %vm5032, %v5025, %v5029
      %v5034 = vand.u32 2147483647, %v4895
      %vm5035 = vcmp.eq.f32.partialorder %v5034, 8.507059e+37
      %v5036 = vand.u32 %v4895, 2147483648
      %v5037 = vor.u32 1.1754944e-38, %v5036
      %v5038 = vsel %vm5035, %v5037, %v5033
      %v5039 = vmul.f32 1.0, %v5038
      %v5040 = vrcp.pop %v4896
      %v5041 = vmul.f32 %v4896, %v5040
      %v5042 = vsub.f32 1.0, %v5041
      %v5043 = vmul.f32 %v5040, %v5042
      %v5044 = vadd.f32 %v5040, %v5043
      %vm5045 = vweird.f32 %v4896
      %vm5046 = vweird.f32 %v5040
      %vm5047 = vmor %vm5045, %vm5046
      %v5048 = vsel %vm5047, %v5040, %v5044
      %v5049 = vand.u32 2147483647, %v4896
      %vm5050 = vcmp.eq.f32.partialorder %v5049, 8.507059e+37
      %v5051 = vand.u32 %v4896, 2147483648
      %v5052 = vor.u32 1.1754944e-38, %v5051
      %v5053 = vsel %vm5050, %v5052, %v5048
      %v5054 = vmul.f32 1.0, %v5053
      %v5055 = vrcp.pop %v4897
      %v5056 = vmul.f32 %v4897, %v5055
      %v5057 = vsub.f32 1.0, %v5056
      %v5058 = vmul.f32 %v5055, %v5057
      %v5059 = vadd.f32 %v5055, %v5058
      %vm5060 = vweird.f32 %v4897
      %vm5061 = vweird.f32 %v5055
      %vm5062 = vmor %vm5060, %vm5061
      %v5063 = vsel %vm5062, %v5055, %v5059
      %v5064 = vand.u32 2147483647, %v4897
      %vm5065 = vcmp.eq.f32.partialorder %v5064, 8.507059e+37
      %v5066 = vand.u32 %v4897, 2147483648
      %v5067 = vor.u32 1.1754944e-38, %v5066
      %v5068 = vsel %vm5065, %v5067, %v5063
      %v5069 = vmul.f32 1.0, %v5068
      %v5070 = vrcp.pop %v4898
      %v5071 = vmul.f32 %v4898, %v5070
      %v5072 = vsub.f32 1.0, %v5071
      %v5073 = vmul.f32 %v5070, %v5072
      %v5074 = vadd.f32 %v5070, %v5073
      %vm5075 = vweird.f32 %v4898
      %vm5076 = vweird.f32 %v5070
      %vm5077 = vmor %vm5075, %vm5076
      %v5078 = vsel %vm5077, %v5070, %v5074
      %v5079 = vand.u32 2147483647, %v4898
      %vm5080 = vcmp.eq.f32.partialorder %v5079, 8.507059e+37
      %v5081 = vand.u32 %v4898, 2147483648
      %v5082 = vor.u32 1.1754944e-38, %v5081
      %v5083 = vsel %vm5080, %v5082, %v5078
      %v5084 = vmul.f32 1.0, %v5083
      %v5085 = vrcp.pop %v4899
      %v5086 = vmul.f32 %v4899, %v5085
      %v5087 = vsub.f32 1.0, %v5086
      %v5088 = vmul.f32 %v5085, %v5087
      %v5089 = vadd.f32 %v5085, %v5088
      %vm5090 = vweird.f32 %v4899
      %vm5091 = vweird.f32 %v5085
      %vm5092 = vmor %vm5090, %vm5091
      %v5093 = vsel %vm5092, %v5085, %v5089
      %v5094 = vand.u32 2147483647, %v4899
      %vm5095 = vcmp.eq.f32.partialorder %v5094, 8.507059e+37
      %v5096 = vand.u32 %v4899, 2147483648
      %v5097 = vor.u32 1.1754944e-38, %v5096
      %v5098 = vsel %vm5095, %v5097, %v5093
      %v5099 = vmul.f32 1.0, %v5098
      %v5100 = vrcp.pop %v4900
      %v5101 = vmul.f32 %v4900, %v5100
      %v5102 = vsub.f32 1.0, %v5101
      %v5103 = vmul.f32 %v5100, %v5102
      %v5104 = vadd.f32 %v5100, %v5103
      %vm5105 = vweird.f32 %v4900
      %vm5106 = vweird.f32 %v5100
      %vm5107 = vmor %vm5105, %vm5106
      %v5108 = vsel %vm5107, %v5100, %v5104
      %v5109 = vand.u32 2147483647, %v4900
      %vm5110 = vcmp.eq.f32.partialorder %v5109, 8.507059e+37
      %v5111 = vand.u32 %v4900, 2147483648
      %v5112 = vor.u32 1.1754944e-38, %v5111
      %v5113 = vsel %vm5110, %v5112, %v5108
      %v5114 = vmul.f32 1.0, %v5113
      %v5115 = vrcp.pop %v4901
      %v5116 = vmul.f32 %v4901, %v5115
      %v5117 = vsub.f32 1.0, %v5116
      %v5118 = vmul.f32 %v5115, %v5117
      %v5119 = vadd.f32 %v5115, %v5118
      %vm5120 = vweird.f32 %v4901
      %vm5121 = vweird.f32 %v5115
      %vm5122 = vmor %vm5120, %vm5121
      %v5123 = vsel %vm5122, %v5115, %v5119
      %v5124 = vand.u32 2147483647, %v4901
      %vm5125 = vcmp.eq.f32.partialorder %v5124, 8.507059e+37
      %v5126 = vand.u32 %v4901, 2147483648
      %v5127 = vor.u32 1.1754944e-38, %v5126
      %v5128 = vsel %vm5125, %v5127, %v5123
      %v5129 = vmul.f32 1.0, %v5128
      %v5130 = vrcp.pop %v4902
      %v5131 = vmul.f32 %v4902, %v5130
      %v5132 = vsub.f32 1.0, %v5131
      %v5133 = vmul.f32 %v5130, %v5132
      %v5134 = vadd.f32 %v5130, %v5133
      %vm5135 = vweird.f32 %v4902
      %vm5136 = vweird.f32 %v5130
      %vm5137 = vmor %vm5135, %vm5136
      %v5138 = vsel %vm5137, %v5130, %v5134
      %v5139 = vand.u32 2147483647, %v4902
      %vm5140 = vcmp.eq.f32.partialorder %v5139, 8.507059e+37
      %v5141 = vand.u32 %v4902, 2147483648
      %v5142 = vor.u32 1.1754944e-38, %v5141
      %v5143 = vsel %vm5140, %v5142, %v5138
      %v5144 = vmul.f32 1.0, %v5143
      %v5145 = vrcp.pop %v4903
      %v5146 = vmul.f32 %v4903, %v5145
      %v5147 = vsub.f32 1.0, %v5146
      %v5148 = vmul.f32 %v5145, %v5147
      %v5149 = vadd.f32 %v5145, %v5148
      %vm5150 = vweird.f32 %v4903
      %vm5151 = vweird.f32 %v5145
      %vm5152 = vmor %vm5150, %vm5151
      %v5153 = vsel %vm5152, %v5145, %v5149
      %v5154 = vand.u32 2147483647, %v4903
      %vm5155 = vcmp.eq.f32.partialorder %v5154, 8.507059e+37
      %v5156 = vand.u32 %v4903, 2147483648
      %v5157 = vor.u32 1.1754944e-38, %v5156
      %v5158 = vsel %vm5155, %v5157, %v5153
      %v5159 = vmul.f32 1.0, %v5158
      %v5160 = vrcp.pop %v4904
      %v5161 = vmul.f32 %v4904, %v5160
      %v5162 = vsub.f32 1.0, %v5161
      %v5163 = vmul.f32 %v5160, %v5162
      %v5164 = vadd.f32 %v5160, %v5163
      %vm5165 = vweird.f32 %v4904
      %vm5166 = vweird.f32 %v5160
      %vm5167 = vmor %vm5165, %vm5166
      %v5168 = vsel %vm5167, %v5160, %v5164
      %v5169 = vand.u32 2147483647, %v4904
      %vm5170 = vcmp.eq.f32.partialorder %v5169, 8.507059e+37
      %v5171 = vand.u32 %v4904, 2147483648
      %v5172 = vor.u32 1.1754944e-38, %v5171
      %v5173 = vsel %vm5170, %v5172, %v5168
      %v5174 = vmul.f32 1.0, %v5173
      %v5175 = vrcp.pop %v4905
      %v5176 = vmul.f32 %v4905, %v5175
      %v5177 = vsub.f32 1.0, %v5176
      %v5178 = vmul.f32 %v5175, %v5177
      %v5179 = vadd.f32 %v5175, %v5178
      %vm5180 = vweird.f32 %v4905
      %vm5181 = vweird.f32 %v5175
      %vm5182 = vmor %vm5180, %vm5181
      %v5183 = vsel %vm5182, %v5175, %v5179
      %v5184 = vand.u32 2147483647, %v4905
      %vm5185 = vcmp.eq.f32.partialorder %v5184, 8.507059e+37
      %v5186 = vand.u32 %v4905, 2147483648
      %v5187 = vor.u32 1.1754944e-38, %v5186
      %v5188 = vsel %vm5185, %v5187, %v5183
      %v5189 = vmul.f32 1.0, %v5188
      %v5190 = vrcp.pop %v4906
      %v5191 = vmul.f32 %v4906, %v5190
      %v5192 = vsub.f32 1.0, %v5191
      %v5193 = vmul.f32 %v5190, %v5192
      %v5194 = vadd.f32 %v5190, %v5193
      %vm5195 = vweird.f32 %v4906
      %vm5196 = vweird.f32 %v5190
      %vm5197 = vmor %vm5195, %vm5196
      %v5198 = vsel %vm5197, %v5190, %v5194
      %v5199 = vand.u32 2147483647, %v4906
      %vm5200 = vcmp.eq.f32.partialorder %v5199, 8.507059e+37
      %v5201 = vand.u32 %v4906, 2147483648
      %v5202 = vor.u32 1.1754944e-38, %v5201
      %v5203 = vsel %vm5200, %v5202, %v5198
      %v5204 = vmul.f32 1.0, %v5203
      %v5205 = vrcp.pop %v4907
      %v5206 = vmul.f32 %v4907, %v5205
      %v5207 = vsub.f32 1.0, %v5206
      %v5208 = vmul.f32 %v5205, %v5207
      %v5209 = vadd.f32 %v5205, %v5208
      %vm5210 = vweird.f32 %v4907
      %vm5211 = vweird.f32 %v5205
      %vm5212 = vmor %vm5210, %vm5211
      %v5213 = vsel %vm5212, %v5205, %v5209
      %v5214 = vand.u32 2147483647, %v4907
      %vm5215 = vcmp.eq.f32.partialorder %v5214, 8.507059e+37
      %v5216 = vand.u32 %v4907, 2147483648
      %v5217 = vor.u32 1.1754944e-38, %v5216
      %v5218 = vsel %vm5215, %v5217, %v5213
      %v5219 = vmul.f32 1.0, %v5218
      %v5220 = vrcp.pop %v4908
      %v5221 = vmul.f32 %v4908, %v5220
      %v5222 = vsub.f32 1.0, %v5221
      %v5223 = vmul.f32 %v5220, %v5222
      %v5224 = vadd.f32 %v5220, %v5223
      %vm5225 = vweird.f32 %v4908
      %vm5226 = vweird.f32 %v5220
      %vm5227 = vmor %vm5225, %vm5226
      %v5228 = vsel %vm5227, %v5220, %v5224
      %v5229 = vand.u32 2147483647, %v4908
      %vm5230 = vcmp.eq.f32.partialorder %v5229, 8.507059e+37
      %v5231 = vand.u32 %v4908, 2147483648
      %v5232 = vor.u32 1.1754944e-38, %v5231
      %v5233 = vsel %vm5230, %v5232, %v5228
      %v5234 = vmul.f32 1.0, %v5233
      %v5235 = vrcp.pop %v4909
      %v5236 = vmul.f32 %v4909, %v5235
      %v5237 = vsub.f32 1.0, %v5236
      %v5238 = vmul.f32 %v5235, %v5237
      %v5239 = vadd.f32 %v5235, %v5238
      %vm5240 = vweird.f32 %v4909
      %vm5241 = vweird.f32 %v5235
      %vm5242 = vmor %vm5240, %vm5241
      %v5243 = vsel %vm5242, %v5235, %v5239
      %v5244 = vand.u32 2147483647, %v4909
      %vm5245 = vcmp.eq.f32.partialorder %v5244, 8.507059e+37
      %v5246 = vand.u32 %v4909, 2147483648
      %v5247 = vor.u32 1.1754944e-38, %v5246
      %v5248 = vsel %vm5245, %v5247, %v5243
      %v5249 = vmul.f32 1.0, %v5248
      %v5250 = vrcp.pop %v4910
      %v5251 = vmul.f32 %v4910, %v5250
      %v5252 = vsub.f32 1.0, %v5251
      %v5253 = vmul.f32 %v5250, %v5252
      %v5254 = vadd.f32 %v5250, %v5253
      %vm5255 = vweird.f32 %v4910
      %vm5256 = vweird.f32 %v5250
      %vm5257 = vmor %vm5255, %vm5256
      %v5258 = vsel %vm5257, %v5250, %v5254
      %v5259 = vand.u32 2147483647, %v4910
      %vm5260 = vcmp.eq.f32.partialorder %v5259, 8.507059e+37
      %v5261 = vand.u32 %v4910, 2147483648
      %v5262 = vor.u32 1.1754944e-38, %v5261
      %v5263 = vsel %vm5260, %v5262, %v5258
      %v5264 = vmul.f32 1.0, %v5263
      %v5265 = vrcp.pop %v4911
      %v5266 = vmul.f32 %v4911, %v5265
      %v5267 = vsub.f32 1.0, %v5266
      %v5268 = vmul.f32 %v5265, %v5267
      %v5269 = vadd.f32 %v5265, %v5268
      %vm5270 = vweird.f32 %v4911
      %vm5271 = vweird.f32 %v5265
      %vm5272 = vmor %vm5270, %vm5271
      %v5273 = vsel %vm5272, %v5265, %v5269
      %v5274 = vand.u32 2147483647, %v4911
      %vm5275 = vcmp.eq.f32.partialorder %v5274, 8.507059e+37
      %v5276 = vand.u32 %v4911, 2147483648
      %v5277 = vor.u32 1.1754944e-38, %v5276
      %v5278 = vsel %vm5275, %v5277, %v5273
      %v5279 = vmul.f32 1.0, %v5278
      %v5280 = vrcp.pop %v4912
      %v5281 = vmul.f32 %v4912, %v5280
      %v5282 = vsub.f32 1.0, %v5281
      %v5283 = vmul.f32 %v5280, %v5282
      %v5284 = vadd.f32 %v5280, %v5283
      %vm5285 = vweird.f32 %v4912
      %vm5286 = vweird.f32 %v5280
      %vm5287 = vmor %vm5285, %vm5286
      %v5288 = vsel %vm5287, %v5280, %v5284
      %v5289 = vand.u32 2147483647, %v4912
      %vm5290 = vcmp.eq.f32.partialorder %v5289, 8.507059e+37
      %v5291 = vand.u32 %v4912, 2147483648
      %v5292 = vor.u32 1.1754944e-38, %v5291
      %v5293 = vsel %vm5290, %v5292, %v5288
      %v5294 = vmul.f32 1.0, %v5293
      %v5295 = vrcp.pop %v4913
      %v5296 = vmul.f32 %v4913, %v5295
      %v5297 = vsub.f32 1.0, %v5296
      %v5298 = vmul.f32 %v5295, %v5297
      %v5299 = vadd.f32 %v5295, %v5298
      %vm5300 = vweird.f32 %v4913
      %vm5301 = vweird.f32 %v5295
      %vm5302 = vmor %vm5300, %vm5301
      %v5303 = vsel %vm5302, %v5295, %v5299
      %v5304 = vand.u32 2147483647, %v4913
      %vm5305 = vcmp.eq.f32.partialorder %v5304, 8.507059e+37
      %v5306 = vand.u32 %v4913, 2147483648
      %v5307 = vor.u32 1.1754944e-38, %v5306
      %v5308 = vsel %vm5305, %v5307, %v5303
      %v5309 = vmul.f32 1.0, %v5308
      %v5310 = vrcp.pop %v4914
      %v5311 = vmul.f32 %v4914, %v5310
      %v5312 = vsub.f32 1.0, %v5311
      %v5313 = vmul.f32 %v5310, %v5312
      %v5314 = vadd.f32 %v5310, %v5313
      %vm5315 = vweird.f32 %v4914
      %vm5316 = vweird.f32 %v5310
      %vm5317 = vmor %vm5315, %vm5316
      %v5318 = vsel %vm5317, %v5310, %v5314
      %v5319 = vand.u32 2147483647, %v4914
      %vm5320 = vcmp.eq.f32.partialorder %v5319, 8.507059e+37
      %v5321 = vand.u32 %v4914, 2147483648
      %v5322 = vor.u32 1.1754944e-38, %v5321
      %v5323 = vsel %vm5320, %v5322, %v5318
      %v5324 = vmul.f32 1.0, %v5323
      %v5325 = vrcp.pop %v4915
      %v5326 = vmul.f32 %v4915, %v5325
      %v5327 = vsub.f32 1.0, %v5326
      %v5328 = vmul.f32 %v5325, %v5327
      %v5329 = vadd.f32 %v5325, %v5328
      %vm5330 = vweird.f32 %v4915
      %vm5331 = vweird.f32 %v5325
      %vm5332 = vmor %vm5330, %vm5331
      %v5333 = vsel %vm5332, %v5325, %v5329
      %v5334 = vand.u32 2147483647, %v4915
      %vm5335 = vcmp.eq.f32.partialorder %v5334, 8.507059e+37
      %v5336 = vand.u32 %v4915, 2147483648
      %v5337 = vor.u32 1.1754944e-38, %v5336
      %v5338 = vsel %vm5335, %v5337, %v5333
      %v5339 = vmul.f32 1.0, %v5338
      %v5340 = vrcp.pop %v4916
      %v5341 = vmul.f32 %v4916, %v5340
      %v5342 = vsub.f32 1.0, %v5341
      %v5343 = vmul.f32 %v5340, %v5342
      %v5344 = vadd.f32 %v5340, %v5343
      %vm5345 = vweird.f32 %v4916
      %vm5346 = vweird.f32 %v5340
      %vm5347 = vmor %vm5345, %vm5346
      %v5348 = vsel %vm5347, %v5340, %v5344
      %v5349 = vand.u32 2147483647, %v4916
      %vm5350 = vcmp.eq.f32.partialorder %v5349, 8.507059e+37
      %v5351 = vand.u32 %v4916, 2147483648
      %v5352 = vor.u32 1.1754944e-38, %v5351
      %v5353 = vsel %vm5350, %v5352, %v5348
      %v5354 = vmul.f32 1.0, %v5353
      %v5355 = vrcp.pop %v4917
      %v5356 = vmul.f32 %v4917, %v5355
      %v5357 = vsub.f32 1.0, %v5356
      %v5358 = vmul.f32 %v5355, %v5357
      %v5359 = vadd.f32 %v5355, %v5358
      %vm5360 = vweird.f32 %v4917
      %vm5361 = vweird.f32 %v5355
      %vm5362 = vmor %vm5360, %vm5361
      %v5363 = vsel %vm5362, %v5355, %v5359
      %v5364 = vand.u32 2147483647, %v4917
      %vm5365 = vcmp.eq.f32.partialorder %v5364, 8.507059e+37
      %v5366 = vand.u32 %v4917, 2147483648
      %v5367 = vor.u32 1.1754944e-38, %v5366
      %v5368 = vsel %vm5365, %v5367, %v5363
      %v5369 = vmul.f32 1.0, %v5368
      %v5370 = vrcp.pop %v4918
      %v5371 = vmul.f32 %v4918, %v5370
      %v5372 = vsub.f32 1.0, %v5371
      %v5373 = vmul.f32 %v5370, %v5372
      %v5374 = vadd.f32 %v5370, %v5373
      %vm5375 = vweird.f32 %v4918
      %vm5376 = vweird.f32 %v5370
      %vm5377 = vmor %vm5375, %vm5376
      %v5378 = vsel %vm5377, %v5370, %v5374
      %v5379 = vand.u32 2147483647, %v4918
      %vm5380 = vcmp.eq.f32.partialorder %v5379, 8.507059e+37
      %v5381 = vand.u32 %v4918, 2147483648
      %v5382 = vor.u32 1.1754944e-38, %v5381
      %v5383 = vsel %vm5380, %v5382, %v5378
      %v5384 = vmul.f32 1.0, %v5383
      %v5385 = vrcp.pop %v4919
      %v5386 = vmul.f32 %v4919, %v5385
      %v5387 = vsub.f32 1.0, %v5386
      %v5388 = vmul.f32 %v5385, %v5387
      %v5389 = vadd.f32 %v5385, %v5388
      %vm5390 = vweird.f32 %v4919
      %vm5391 = vweird.f32 %v5385
      %vm5392 = vmor %vm5390, %vm5391
      %v5393 = vsel %vm5392, %v5385, %v5389
      %v5394 = vand.u32 2147483647, %v4919
      %vm5395 = vcmp.eq.f32.partialorder %v5394, 8.507059e+37
      %v5396 = vand.u32 %v4919, 2147483648
      %v5397 = vor.u32 1.1754944e-38, %v5396
      %v5398 = vsel %vm5395, %v5397, %v5393
      %v5399 = vmul.f32 1.0, %v5398
      %v5400 = vmul.f32 %v4760, %v4934
      %v5401 = vmul.f32 %v4761, %v4949
      %v5402 = vmul.f32 %v4762, %v4964
      %v5403 = vmul.f32 %v4763, %v4979
      %v5404 = vmul.f32 %v4764, %v4994
      %v5405 = vmul.f32 %v4765, %v5009
      %v5406 = vmul.f32 %v4766, %v5024
      %v5407 = vmul.f32 %v4767, %v5039
      %v5408 = vmul.f32 %v4768, %v5054
      %v5409 = vmul.f32 %v4769, %v5069
      %v5410 = vmul.f32 %v4770, %v5084
      %v5411 = vmul.f32 %v4771, %v5099
      %v5412 = vmul.f32 %v4772, %v5114
      %v5413 = vmul.f32 %v4773, %v5129
      %v5414 = vmul.f32 %v4774, %v5144
      %v5415 = vmul.f32 %v4775, %v5159
      %v5416 = vmul.f32 %v4776, %v5174
      %v5417 = vmul.f32 %v4777, %v5189
      %v5418 = vmul.f32 %v4778, %v5204
      %v5419 = vmul.f32 %v4779, %v5219
      %v5420 = vmul.f32 %v4780, %v5234
      %v5421 = vmul.f32 %v4781, %v5249
      %v5422 = vmul.f32 %v4782, %v5264
      %v5423 = vmul.f32 %v4783, %v5279
      %v5424 = vmul.f32 %v4784, %v5294
      %v5425 = vmul.f32 %v4785, %v5309
      %v5426 = vmul.f32 %v4786, %v5324
      %v5427 = vmul.f32 %v4787, %v5339
      %v5428 = vmul.f32 %v4788, %v5354
      %v5429 = vmul.f32 %v4789, %v5369
      %v5430 = vmul.f32 %v4790, %v5384
      %v5431 = vmul.f32 %v4791, %v5399
      %v5432 = vpack.c.bf16 %v5400, %v5400
      %v5433 = vpack.c.bf16 %v5401, %v5401
      %v5434 = vpack.c.bf16 %v5402, %v5402
      %v5435 = vpack.c.bf16 %v5403, %v5403
      %v5436 = vpack.c.bf16 %v5404, %v5404
      %v5437 = vpack.c.bf16 %v5405, %v5405
      %v5438 = vpack.c.bf16 %v5406, %v5406
      %v5439 = vpack.c.bf16 %v5407, %v5407
      %v5440 = vpack.c.bf16 %v5408, %v5408
      %v5441 = vpack.c.bf16 %v5409, %v5409
      %v5442 = vpack.c.bf16 %v5410, %v5410
      %v5443 = vpack.c.bf16 %v5411, %v5411
      %v5444 = vpack.c.bf16 %v5412, %v5412
      %v5445 = vpack.c.bf16 %v5413, %v5413
      %v5446 = vpack.c.bf16 %v5414, %v5414
      %v5447 = vpack.c.bf16 %v5415, %v5415
      %v5448 = vpack.c.bf16 %v5416, %v5416
      %v5449 = vpack.c.bf16 %v5417, %v5417
      %v5450 = vpack.c.bf16 %v5418, %v5418
      %v5451 = vpack.c.bf16 %v5419, %v5419
      %v5452 = vpack.c.bf16 %v5420, %v5420
      %v5453 = vpack.c.bf16 %v5421, %v5421
      %v5454 = vpack.c.bf16 %v5422, %v5422
      %v5455 = vpack.c.bf16 %v5423, %v5423
      %v5456 = vpack.c.bf16 %v5424, %v5424
      %v5457 = vpack.c.bf16 %v5425, %v5425
      %v5458 = vpack.c.bf16 %v5426, %v5426
      %v5459 = vpack.c.bf16 %v5427, %v5427
      %v5460 = vpack.c.bf16 %v5428, %v5428
      %v5461 = vpack.c.bf16 %v5429, %v5429
      %v5462 = vpack.c.bf16 %v5430, %v5430
      %v5463 = vpack.c.bf16 %v5431, %v5431
      %v5465 = vshrl.u32 %v5432, 16
      %v5467 = vrot.slane %v5465, 7
      %v5468 = vshll.u32 %v5432, 16
      %v5470 = vor.u32 %v5467, %v5468
      %v5471 = vrot.slane %v5467, 4
      %v5473 = vshrl.u32 %v5433, 16
      %v5475 = vrot.slane %v5473, 7
      %v5476 = vshll.u32 %v5433, 16
      %v5478 = vor.u32 %v5475, %v5476
      %v5479 = vsel %vm372, %v5471, %v5478
      %v5480 = vrot.slane %v5475, 4
      %v5482 = vshrl.u32 %v5434, 16
      %v5484 = vrot.slane %v5482, 7
      %v5485 = vshll.u32 %v5434, 16
      %v5487 = vor.u32 %v5484, %v5485
      %v5488 = vrot.slane %v5484, 4
      %v5490 = vshrl.u32 %v5435, 16
      %v5492 = vrot.slane %v5490, 7
      %v5493 = vshll.u32 %v5435, 16
      %v5495 = vor.u32 %v5492, %v5493
      %v5496 = vsel %vm372, %v5488, %v5495
      %v5497 = vrot.slane %v5492, 4
      %v5499 = vshrl.u32 %v5436, 16
      %v5501 = vrot.slane %v5499, 7
      %v5502 = vshll.u32 %v5436, 16
      %v5504 = vor.u32 %v5501, %v5502
      %v5505 = vrot.slane %v5501, 4
      %v5507 = vshrl.u32 %v5437, 16
      %v5509 = vrot.slane %v5507, 7
      %v5510 = vshll.u32 %v5437, 16
      %v5512 = vor.u32 %v5509, %v5510
      %v5513 = vsel %vm372, %v5505, %v5512
      %v5514 = vrot.slane %v5509, 4
      %v5516 = vshrl.u32 %v5438, 16
      %v5518 = vrot.slane %v5516, 7
      %v5519 = vshll.u32 %v5438, 16
      %v5521 = vor.u32 %v5518, %v5519
      %v5522 = vrot.slane %v5518, 4
      %v5524 = vshrl.u32 %v5439, 16
      %v5526 = vrot.slane %v5524, 7
      %v5527 = vshll.u32 %v5439, 16
      %v5529 = vor.u32 %v5526, %v5527
      %v5530 = vsel %vm372, %v5522, %v5529
      %v5531 = vrot.slane %v5526, 4
      %v5533 = vshrl.u32 %v5440, 16
      %v5535 = vrot.slane %v5533, 7
      %v5536 = vshll.u32 %v5440, 16
      %v5538 = vor.u32 %v5535, %v5536
      %v5539 = vrot.slane %v5535, 4
      %v5541 = vshrl.u32 %v5441, 16
      %v5543 = vrot.slane %v5541, 7
      %v5544 = vshll.u32 %v5441, 16
      %v5546 = vor.u32 %v5543, %v5544
      %v5547 = vsel %vm372, %v5539, %v5546
      %v5548 = vrot.slane %v5543, 4
      %v5550 = vshrl.u32 %v5442, 16
      %v5552 = vrot.slane %v5550, 7
      %v5553 = vshll.u32 %v5442, 16
      %v5555 = vor.u32 %v5552, %v5553
      %v5556 = vrot.slane %v5552, 4
      %v5558 = vshrl.u32 %v5443, 16
      %v5560 = vrot.slane %v5558, 7
      %v5561 = vshll.u32 %v5443, 16
      %v5563 = vor.u32 %v5560, %v5561
      %v5564 = vsel %vm372, %v5556, %v5563
      %v5565 = vrot.slane %v5560, 4
      %v5567 = vshrl.u32 %v5444, 16
      %v5569 = vrot.slane %v5567, 7
      %v5570 = vshll.u32 %v5444, 16
      %v5572 = vor.u32 %v5569, %v5570
      %v5573 = vrot.slane %v5569, 4
      %v5575 = vshrl.u32 %v5445, 16
      %v5577 = vrot.slane %v5575, 7
      %v5578 = vshll.u32 %v5445, 16
      %v5580 = vor.u32 %v5577, %v5578
      %v5581 = vsel %vm372, %v5573, %v5580
      %v5582 = vrot.slane %v5577, 4
      %v5584 = vshrl.u32 %v5446, 16
      %v5586 = vrot.slane %v5584, 7
      %v5587 = vshll.u32 %v5446, 16
      %v5589 = vor.u32 %v5586, %v5587
      %v5590 = vrot.slane %v5586, 4
      %v5592 = vshrl.u32 %v5447, 16
      %v5594 = vrot.slane %v5592, 7
      %v5595 = vshll.u32 %v5447, 16
      %v5597 = vor.u32 %v5594, %v5595
      %v5598 = vsel %vm372, %v5590, %v5597
      %v5599 = vrot.slane %v5594, 4
      %v5601 = vshrl.u32 %v5448, 16
      %v5603 = vrot.slane %v5601, 7
      %v5604 = vshll.u32 %v5448, 16
      %v5606 = vor.u32 %v5603, %v5604
      %v5607 = vrot.slane %v5603, 4
      %v5609 = vshrl.u32 %v5449, 16
      %v5611 = vrot.slane %v5609, 7
      %v5612 = vshll.u32 %v5449, 16
      %v5614 = vor.u32 %v5611, %v5612
      %v5615 = vsel %vm372, %v5607, %v5614
      %v5616 = vrot.slane %v5611, 4
      %v5618 = vshrl.u32 %v5450, 16
      %v5620 = vrot.slane %v5618, 7
      %v5621 = vshll.u32 %v5450, 16
      %v5623 = vor.u32 %v5620, %v5621
      %v5624 = vrot.slane %v5620, 4
      %v5626 = vshrl.u32 %v5451, 16
      %v5628 = vrot.slane %v5626, 7
      %v5629 = vshll.u32 %v5451, 16
      %v5631 = vor.u32 %v5628, %v5629
      %v5632 = vsel %vm372, %v5624, %v5631
      %v5633 = vrot.slane %v5628, 4
      %v5635 = vshrl.u32 %v5452, 16
      %v5637 = vrot.slane %v5635, 7
      %v5638 = vshll.u32 %v5452, 16
      %v5640 = vor.u32 %v5637, %v5638
      %v5641 = vrot.slane %v5637, 4
      %v5643 = vshrl.u32 %v5453, 16
      %v5645 = vrot.slane %v5643, 7
      %v5646 = vshll.u32 %v5453, 16
      %v5648 = vor.u32 %v5645, %v5646
      %v5649 = vsel %vm372, %v5641, %v5648
      %v5650 = vrot.slane %v5645, 4
      %v5652 = vshrl.u32 %v5454, 16
      %v5654 = vrot.slane %v5652, 7
      %v5655 = vshll.u32 %v5454, 16
      %v5657 = vor.u32 %v5654, %v5655
      %v5658 = vrot.slane %v5654, 4
      %v5660 = vshrl.u32 %v5455, 16
      %v5662 = vrot.slane %v5660, 7
      %v5663 = vshll.u32 %v5455, 16
      %v5665 = vor.u32 %v5662, %v5663
      %v5666 = vsel %vm372, %v5658, %v5665
      %v5667 = vrot.slane %v5662, 4
      %v5669 = vshrl.u32 %v5456, 16
      %v5671 = vrot.slane %v5669, 7
      %v5672 = vshll.u32 %v5456, 16
      %v5674 = vor.u32 %v5671, %v5672
      %v5675 = vrot.slane %v5671, 4
      %v5677 = vshrl.u32 %v5457, 16
      %v5679 = vrot.slane %v5677, 7
      %v5680 = vshll.u32 %v5457, 16
      %v5682 = vor.u32 %v5679, %v5680
      %v5683 = vsel %vm372, %v5675, %v5682
      %v5684 = vrot.slane %v5679, 4
      %v5686 = vshrl.u32 %v5458, 16
      %v5688 = vrot.slane %v5686, 7
      %v5689 = vshll.u32 %v5458, 16
      %v5691 = vor.u32 %v5688, %v5689
      %v5692 = vrot.slane %v5688, 4
      %v5694 = vshrl.u32 %v5459, 16
      %v5696 = vrot.slane %v5694, 7
      %v5697 = vshll.u32 %v5459, 16
      %v5699 = vor.u32 %v5696, %v5697
      %v5700 = vsel %vm372, %v5692, %v5699
      %v5701 = vrot.slane %v5696, 4
      %v5703 = vshrl.u32 %v5460, 16
      %v5705 = vrot.slane %v5703, 7
      %v5706 = vshll.u32 %v5460, 16
      %v5708 = vor.u32 %v5705, %v5706
      %v5709 = vrot.slane %v5705, 4
      %v5711 = vshrl.u32 %v5461, 16
      %v5713 = vrot.slane %v5711, 7
      %v5714 = vshll.u32 %v5461, 16
      %v5716 = vor.u32 %v5713, %v5714
      %v5717 = vsel %vm372, %v5709, %v5716
      %v5718 = vrot.slane %v5713, 4
      %v5720 = vshrl.u32 %v5462, 16
      %v5722 = vrot.slane %v5720, 7
      %v5723 = vshll.u32 %v5462, 16
      %v5725 = vor.u32 %v5722, %v5723
      %v5726 = vrot.slane %v5722, 4
      %v5728 = vshrl.u32 %v5463, 16
      %v5730 = vrot.slane %v5728, 7
      %v5731 = vshll.u32 %v5463, 16
      %v5733 = vor.u32 %v5730, %v5731
      %v5734 = vsel %vm372, %v5726, %v5733
      %v5735 = vrot.slane %v5730, 4
      %s5784 = scalar_lea.vmem [#allocation3], 12
      %vm5785 = vcmask 60416
      %vm5786 = vmand %vm5785, %vm695
      %v5787 = vld [vmem:[%s5784] sm:$0xf]
      %v5788 = vsel %vm5786, %v5470, %v5787
      %5789 = vst [vmem:[%s5784] sm:$0xf] %v5788
      %5790 = vst.msk [vmem:[%s5784 + $0x4] sm:$0xf] %vm282, %v5479
      %vm5791 = vcmask 57344
      %vm5792 = vmand %vm5791, %vm370
      %v5793 = vld [vmem:[%s5784 + $0x8] sm:$0x1]
      %v5794 = vsel %vm5792, %v5480, %v5793
      %5795 = vst [vmem:[%s5784 + $0x8] sm:$0x1] %v5794
      %v5796 = vld [vmem:[%s5784 + $0xc] sm:$0xf]
      %v5797 = vsel %vm5786, %v5487, %v5796
      %5798 = vst [vmem:[%s5784 + $0xc] sm:$0xf] %v5797
      %5799 = vst.msk [vmem:[%s5784 + $0x10] sm:$0xf] %vm282, %v5496
      %v5800 = vld [vmem:[%s5784 + $0x14] sm:$0x1]
      %v5801 = vsel %vm5792, %v5497, %v5800
      %5802 = vst [vmem:[%s5784 + $0x14] sm:$0x1] %v5801
      %v5803 = vld [vmem:[%s5784 + $0x18] sm:$0xf]
      %v5804 = vsel %vm5786, %v5504, %v5803
      %5805 = vst [vmem:[%s5784 + $0x18] sm:$0xf] %v5804
      %5806 = vst.msk [vmem:[%s5784 + $0x1c] sm:$0xf] %vm282, %v5513
      %v5807 = vld [vmem:[%s5784 + $0x20] sm:$0x1]
      %v5808 = vsel %vm5792, %v5514, %v5807
      %5809 = vst [vmem:[%s5784 + $0x20] sm:$0x1] %v5808
      %v5810 = vld [vmem:[%s5784 + $0x24] sm:$0xf]
      %v5811 = vsel %vm5786, %v5521, %v5810
      %5812 = vst [vmem:[%s5784 + $0x24] sm:$0xf] %v5811
      %5813 = vst.msk [vmem:[%s5784 + $0x28] sm:$0xf] %vm282, %v5530
      %v5814 = vld [vmem:[%s5784 + $0x2c] sm:$0x1]
      %v5815 = vsel %vm5792, %v5531, %v5814
      %5816 = vst [vmem:[%s5784 + $0x2c] sm:$0x1] %v5815
      %v5817 = vld [vmem:[%s5784 + $0x30] sm:$0xf]
      %v5818 = vsel %vm5786, %v5538, %v5817
      %5819 = vst [vmem:[%s5784 + $0x30] sm:$0xf] %v5818
      %5820 = vst.msk [vmem:[%s5784 + $0x34] sm:$0xf] %vm282, %v5547
      %v5821 = vld [vmem:[%s5784 + $0x38] sm:$0x1]
      %v5822 = vsel %vm5792, %v5548, %v5821
      %5823 = vst [vmem:[%s5784 + $0x38] sm:$0x1] %v5822
      %v5824 = vld [vmem:[%s5784 + $0x3c] sm:$0xf]
      %v5825 = vsel %vm5786, %v5555, %v5824
      %5826 = vst [vmem:[%s5784 + $0x3c] sm:$0xf] %v5825
      %5827 = vst.msk [vmem:[%s5784 + $0x40] sm:$0xf] %vm282, %v5564
      %v5828 = vld [vmem:[%s5784 + $0x44] sm:$0x1]
      %v5829 = vsel %vm5792, %v5565, %v5828
      %5830 = vst [vmem:[%s5784 + $0x44] sm:$0x1] %v5829
      %v5831 = vld [vmem:[%s5784 + $0x48] sm:$0xf]
      %v5832 = vsel %vm5786, %v5572, %v5831
      %5833 = vst [vmem:[%s5784 + $0x48] sm:$0xf] %v5832
      %5834 = vst.msk [vmem:[%s5784 + $0x4c] sm:$0xf] %vm282, %v5581
      %v5835 = vld [vmem:[%s5784 + $0x50] sm:$0x1]
      %v5836 = vsel %vm5792, %v5582, %v5835
      %5837 = vst [vmem:[%s5784 + $0x50] sm:$0x1] %v5836
      %v5838 = vld [vmem:[%s5784 + $0x54] sm:$0xf]
      %v5839 = vsel %vm5786, %v5589, %v5838
      %5840 = vst [vmem:[%s5784 + $0x54] sm:$0xf] %v5839
      %5841 = vst.msk [vmem:[%s5784 + $0x58] sm:$0xf] %vm282, %v5598
      %v5842 = vld [vmem:[%s5784 + $0x5c] sm:$0x1]
      %v5843 = vsel %vm5792, %v5599, %v5842
      %5844 = vst [vmem:[%s5784 + $0x5c] sm:$0x1] %v5843
      %v5845 = vld [vmem:[%s5784 + $0x60] sm:$0xf]
      %v5846 = vsel %vm5786, %v5606, %v5845
      %5847 = vst [vmem:[%s5784 + $0x60] sm:$0xf] %v5846
      %5848 = vst.msk [vmem:[%s5784 + $0x64] sm:$0xf] %vm282, %v5615
      %v5849 = vld [vmem:[%s5784 + $0x68] sm:$0x1]
      %v5850 = vsel %vm5792, %v5616, %v5849
      %5851 = vst [vmem:[%s5784 + $0x68] sm:$0x1] %v5850
      %v5852 = vld [vmem:[%s5784 + $0x6c] sm:$0xf]
      %v5853 = vsel %vm5786, %v5623, %v5852
      %5854 = vst [vmem:[%s5784 + $0x6c] sm:$0xf] %v5853
      %5855 = vst.msk [vmem:[%s5784 + $0x70] sm:$0xf] %vm282, %v5632
      %v5856 = vld [vmem:[%s5784 + $0x74] sm:$0x1]
      %v5857 = vsel %vm5792, %v5633, %v5856
      %5858 = vst [vmem:[%s5784 + $0x74] sm:$0x1] %v5857
      %v5859 = vld [vmem:[%s5784 + $0x78] sm:$0xf]
      %v5860 = vsel %vm5786, %v5640, %v5859
      %5861 = vst [vmem:[%s5784 + $0x78] sm:$0xf] %v5860
      %5862 = vst.msk [vmem:[%s5784 + $0x7c] sm:$0xf] %vm282, %v5649
      %v5863 = vld [vmem:[%s5784 + $0x80] sm:$0x1]
      %v5864 = vsel %vm5792, %v5650, %v5863
      %5865 = vst [vmem:[%s5784 + $0x80] sm:$0x1] %v5864
      %v5866 = vld [vmem:[%s5784 + $0x84] sm:$0xf]
      %v5867 = vsel %vm5786, %v5657, %v5866
      %5868 = vst [vmem:[%s5784 + $0x84] sm:$0xf] %v5867
      %5869 = vst.msk [vmem:[%s5784 + $0x88] sm:$0xf] %vm282, %v5666
      %v5870 = vld [vmem:[%s5784 + $0x8c] sm:$0x1]
      %v5871 = vsel %vm5792, %v5667, %v5870
      %5872 = vst [vmem:[%s5784 + $0x8c] sm:$0x1] %v5871
      %v5873 = vld [vmem:[%s5784 + $0x90] sm:$0xf]
      %v5874 = vsel %vm5786, %v5674, %v5873
      %5875 = vst [vmem:[%s5784 + $0x90] sm:$0xf] %v5874
      %5876 = vst.msk [vmem:[%s5784 + $0x94] sm:$0xf] %vm282, %v5683
      %v5877 = vld [vmem:[%s5784 + $0x98] sm:$0x1]
      %v5878 = vsel %vm5792, %v5684, %v5877
      %5879 = vst [vmem:[%s5784 + $0x98] sm:$0x1] %v5878
      %v5880 = vld [vmem:[%s5784 + $0x9c] sm:$0xf]
      %v5881 = vsel %vm5786, %v5691, %v5880
      %5882 = vst [vmem:[%s5784 + $0x9c] sm:$0xf] %v5881
      %5883 = vst.msk [vmem:[%s5784 + $0xa0] sm:$0xf] %vm282, %v5700
      %v5884 = vld [vmem:[%s5784 + $0xa4] sm:$0x1]
      %v5885 = vsel %vm5792, %v5701, %v5884
      %5886 = vst [vmem:[%s5784 + $0xa4] sm:$0x1] %v5885
      %v5887 = vld [vmem:[%s5784 + $0xa8] sm:$0xf]
      %v5888 = vsel %vm5786, %v5708, %v5887
      %5889 = vst [vmem:[%s5784 + $0xa8] sm:$0xf] %v5888
      %5890 = vst.msk [vmem:[%s5784 + $0xac] sm:$0xf] %vm282, %v5717
      %v5891 = vld [vmem:[%s5784 + $0xb0] sm:$0x1]
      %v5892 = vsel %vm5792, %v5718, %v5891
      %5893 = vst [vmem:[%s5784 + $0xb0] sm:$0x1] %v5892
      %v5894 = vld [vmem:[%s5784 + $0xb4] sm:$0xf]
      %v5895 = vsel %vm5786, %v5725, %v5894
      %5896 = vst [vmem:[%s5784 + $0xb4] sm:$0xf] %v5895
      %5897 = vst.msk [vmem:[%s5784 + $0xb8] sm:$0xf] %vm282, %v5734
      %v5898 = vld [vmem:[%s5784 + $0xbc] sm:$0x1]
      %v5899 = vsel %vm5792, %v5735, %v5898
      %5900 = vst [vmem:[%s5784 + $0xbc] sm:$0x1] %v5899
      %v5901 = vld [vmem:[#allocation3] sm:$0xf]
      %v5902 = vld [vmem:[#allocation3 + $0x4] sm:$0xf]
      %v5903 = vld [vmem:[#allocation3 + $0xc] sm:$0xf]
      %v5904 = vld [vmem:[#allocation3 + $0x10] sm:$0xf]
      %v5905 = vld [vmem:[#allocation3 + $0x18] sm:$0xf]
      %v5906 = vld [vmem:[#allocation3 + $0x1c] sm:$0xf]
      %v5907 = vld [vmem:[#allocation3 + $0x24] sm:$0xf]
      %v5908 = vld [vmem:[#allocation3 + $0x28] sm:$0xf]
      %v5909 = vld [vmem:[#allocation3 + $0x30] sm:$0xf]
      %v5910 = vld [vmem:[#allocation3 + $0x34] sm:$0xf]
      %v5911 = vld [vmem:[#allocation3 + $0x3c] sm:$0xf]
      %v5912 = vld [vmem:[#allocation3 + $0x40] sm:$0xf]
      %v5913 = vld [vmem:[#allocation3 + $0x48] sm:$0xf]
      %v5914 = vld [vmem:[#allocation3 + $0x4c] sm:$0xf]
      %v5915 = vld [vmem:[#allocation3 + $0x54] sm:$0xf]
      %v5916 = vld [vmem:[#allocation3 + $0x58] sm:$0xf]
      %v5917 = vld [vmem:[#allocation3 + $0x60] sm:$0xf]
      %v5918 = vld [vmem:[#allocation3 + $0x64] sm:$0xf]
      %v5919 = vld [vmem:[#allocation3 + $0x6c] sm:$0xf]
      %v5920 = vld [vmem:[#allocation3 + $0x70] sm:$0xf]
      %v5921 = vld [vmem:[#allocation3 + $0x78] sm:$0xf]
      %v5922 = vld [vmem:[#allocation3 + $0x7c] sm:$0xf]
      %v5923 = vld [vmem:[#allocation3 + $0x84] sm:$0xf]
      %v5924 = vld [vmem:[#allocation3 + $0x88] sm:$0xf]
      %v5925 = vld [vmem:[#allocation3 + $0x90] sm:$0xf]
      %v5926 = vld [vmem:[#allocation3 + $0x94] sm:$0xf]
      %v5927 = vld [vmem:[#allocation3 + $0x9c] sm:$0xf]
      %v5928 = vld [vmem:[#allocation3 + $0xa0] sm:$0xf]
      %v5929 = vld [vmem:[#allocation3 + $0xa8] sm:$0xf]
      %v5930 = vld [vmem:[#allocation3 + $0xac] sm:$0xf]
      %v5931 = vld [vmem:[#allocation3 + $0xb4] sm:$0xf]
      %v5932 = vld [vmem:[#allocation3 + $0xb8] sm:$0xf]
      %v5933 = vld [vmem:[%s3] sm:$0xf]
      %v5934 = vld [vmem:[#allocation3 + $0x8] sm:$0x1]
      %v5935 = vld [vmem:[#allocation3 + $0x14] sm:$0x1]
      %v5936 = vld [vmem:[#allocation3 + $0x20] sm:$0x1]
      %v5937 = vld [vmem:[#allocation3 + $0x2c] sm:$0x1]
      %v5938 = vld [vmem:[#allocation3 + $0x38] sm:$0x1]
      %v5939 = vld [vmem:[#allocation3 + $0x44] sm:$0x1]
      %v5940 = vld [vmem:[#allocation3 + $0x50] sm:$0x1]
      %v5941 = vld [vmem:[#allocation3 + $0x5c] sm:$0x1]
      %v5942 = vld [vmem:[#allocation3 + $0x68] sm:$0x1]
      %v5943 = vld [vmem:[#allocation3 + $0x74] sm:$0x1]
      %v5944 = vld [vmem:[#allocation3 + $0x80] sm:$0x1]
      %v5945 = vld [vmem:[#allocation3 + $0x8c] sm:$0x1]
      %v5946 = vld [vmem:[#allocation3 + $0x98] sm:$0x1]
      %v5947 = vld [vmem:[#allocation3 + $0xa4] sm:$0x1]
      %v5948 = vld [vmem:[#allocation3 + $0xb0] sm:$0x1]
      %v5949 = vld [vmem:[#allocation3 + $0xbc] sm:$0x1]
      %v5951 = vshrl.u32 %v5901, 16
      %v5953 = vrot.slane %v5951, 4
      %v5954 = vshll.u32 %v5901, 16
      %v5956 = vrot.slane %v5954, 5
      %v5957 = vor.u32 %v5953, %v5956
      %v5958 = vrot.slane %v5957, 4
      %v5960 = vshll.u32 %v5902, 16
      %v5962 = vrot.slane %v5960, 5
      %v5963 = vsel %vm863, %v5958, %v5962
      %v5964 = vshrl.u32 %v5902, 16
      %v5966 = vrot.slane %v5964, 4
      %v5967 = vor.u32 %v5966, %v5962
      %v5968 = vrot.slane %v5967, 4
      %v5970 = vshll.u32 %v5934, 16
      %v5972 = vrot.slane %v5970, 5
      %v5973 = vsel %vm863, %v5968, %v5972
      %v5975 = vshrl.u32 %v5903, 16
      %v5977 = vrot.slane %v5975, 4
      %v5978 = vshll.u32 %v5903, 16
      %v5980 = vrot.slane %v5978, 5
      %v5981 = vor.u32 %v5977, %v5980
      %v5982 = vrot.slane %v5981, 4
      %v5984 = vshll.u32 %v5904, 16
      %v5986 = vrot.slane %v5984, 5
      %v5987 = vsel %vm863, %v5982, %v5986
      %v5988 = vshrl.u32 %v5904, 16
      %v5990 = vrot.slane %v5988, 4
      %v5991 = vor.u32 %v5990, %v5986
      %v5992 = vrot.slane %v5991, 4
      %v5994 = vshll.u32 %v5935, 16
      %v5996 = vrot.slane %v5994, 5
      %v5997 = vsel %vm863, %v5992, %v5996
      %v5999 = vshrl.u32 %v5905, 16
      %v6001 = vrot.slane %v5999, 4
      %v6002 = vshll.u32 %v5905, 16
      %v6004 = vrot.slane %v6002, 5
      %v6005 = vor.u32 %v6001, %v6004
      %v6006 = vrot.slane %v6005, 4
      %v6008 = vshll.u32 %v5906, 16
      %v6010 = vrot.slane %v6008, 5
      %v6011 = vsel %vm863, %v6006, %v6010
      %v6012 = vshrl.u32 %v5906, 16
      %v6014 = vrot.slane %v6012, 4
      %v6015 = vor.u32 %v6014, %v6010
      %v6016 = vrot.slane %v6015, 4
      %v6018 = vshll.u32 %v5936, 16
      %v6020 = vrot.slane %v6018, 5
      %v6021 = vsel %vm863, %v6016, %v6020
      %v6023 = vshrl.u32 %v5907, 16
      %v6025 = vrot.slane %v6023, 4
      %v6026 = vshll.u32 %v5907, 16
      %v6028 = vrot.slane %v6026, 5
      %v6029 = vor.u32 %v6025, %v6028
      %v6030 = vrot.slane %v6029, 4
      %v6032 = vshll.u32 %v5908, 16
      %v6034 = vrot.slane %v6032, 5
      %v6035 = vsel %vm863, %v6030, %v6034
      %v6036 = vshrl.u32 %v5908, 16
      %v6038 = vrot.slane %v6036, 4
      %v6039 = vor.u32 %v6038, %v6034
      %v6040 = vrot.slane %v6039, 4
      %v6042 = vshll.u32 %v5937, 16
      %v6044 = vrot.slane %v6042, 5
      %v6045 = vsel %vm863, %v6040, %v6044
      %v6047 = vshrl.u32 %v5909, 16
      %v6049 = vrot.slane %v6047, 4
      %v6050 = vshll.u32 %v5909, 16
      %v6052 = vrot.slane %v6050, 5
      %v6053 = vor.u32 %v6049, %v6052
      %v6054 = vrot.slane %v6053, 4
      %v6056 = vshll.u32 %v5910, 16
      %v6058 = vrot.slane %v6056, 5
      %v6059 = vsel %vm863, %v6054, %v6058
      %v6060 = vshrl.u32 %v5910, 16
      %v6062 = vrot.slane %v6060, 4
      %v6063 = vor.u32 %v6062, %v6058
      %v6064 = vrot.slane %v6063, 4
      %v6066 = vshll.u32 %v5938, 16
      %v6068 = vrot.slane %v6066, 5
      %v6069 = vsel %vm863, %v6064, %v6068
      %v6071 = vshrl.u32 %v5911, 16
      %v6073 = vrot.slane %v6071, 4
      %v6074 = vshll.u32 %v5911, 16
      %v6076 = vrot.slane %v6074, 5
      %v6077 = vor.u32 %v6073, %v6076
      %v6078 = vrot.slane %v6077, 4
      %v6080 = vshll.u32 %v5912, 16
      %v6082 = vrot.slane %v6080, 5
      %v6083 = vsel %vm863, %v6078, %v6082
      %v6084 = vshrl.u32 %v5912, 16
      %v6086 = vrot.slane %v6084, 4
      %v6087 = vor.u32 %v6086, %v6082
      %v6088 = vrot.slane %v6087, 4
      %v6090 = vshll.u32 %v5939, 16
      %v6092 = vrot.slane %v6090, 5
      %v6093 = vsel %vm863, %v6088, %v6092
      %v6095 = vshrl.u32 %v5913, 16
      %v6097 = vrot.slane %v6095, 4
      %v6098 = vshll.u32 %v5913, 16
      %v6100 = vrot.slane %v6098, 5
      %v6101 = vor.u32 %v6097, %v6100
      %v6102 = vrot.slane %v6101, 4
      %v6104 = vshll.u32 %v5914, 16
      %v6106 = vrot.slane %v6104, 5
      %v6107 = vsel %vm863, %v6102, %v6106
      %v6108 = vshrl.u32 %v5914, 16
      %v6110 = vrot.slane %v6108, 4
      %v6111 = vor.u32 %v6110, %v6106
      %v6112 = vrot.slane %v6111, 4
      %v6114 = vshll.u32 %v5940, 16
      %v6116 = vrot.slane %v6114, 5
      %v6117 = vsel %vm863, %v6112, %v6116
      %v6119 = vshrl.u32 %v5915, 16
      %v6121 = vrot.slane %v6119, 4
      %v6122 = vshll.u32 %v5915, 16
      %v6124 = vrot.slane %v6122, 5
      %v6125 = vor.u32 %v6121, %v6124
      %v6126 = vrot.slane %v6125, 4
      %v6128 = vshll.u32 %v5916, 16
      %v6130 = vrot.slane %v6128, 5
      %v6131 = vsel %vm863, %v6126, %v6130
      %v6132 = vshrl.u32 %v5916, 16
      %v6134 = vrot.slane %v6132, 4
      %v6135 = vor.u32 %v6134, %v6130
      %v6136 = vrot.slane %v6135, 4
      %v6138 = vshll.u32 %v5941, 16
      %v6140 = vrot.slane %v6138, 5
      %v6141 = vsel %vm863, %v6136, %v6140
      %v6143 = vshrl.u32 %v5917, 16
      %v6145 = vrot.slane %v6143, 4
      %v6146 = vshll.u32 %v5917, 16
      %v6148 = vrot.slane %v6146, 5
      %v6149 = vor.u32 %v6145, %v6148
      %v6150 = vrot.slane %v6149, 4
      %v6152 = vshll.u32 %v5918, 16
      %v6154 = vrot.slane %v6152, 5
      %v6155 = vsel %vm863, %v6150, %v6154
      %v6156 = vshrl.u32 %v5918, 16
      %v6158 = vrot.slane %v6156, 4
      %v6159 = vor.u32 %v6158, %v6154
      %v6160 = vrot.slane %v6159, 4
      %v6162 = vshll.u32 %v5942, 16
      %v6164 = vrot.slane %v6162, 5
      %v6165 = vsel %vm863, %v6160, %v6164
      %v6167 = vshrl.u32 %v5919, 16
      %v6169 = vrot.slane %v6167, 4
      %v6170 = vshll.u32 %v5919, 16
      %v6172 = vrot.slane %v6170, 5
      %v6173 = vor.u32 %v6169, %v6172
      %v6174 = vrot.slane %v6173, 4
      %v6176 = vshll.u32 %v5920, 16
      %v6178 = vrot.slane %v6176, 5
      %v6179 = vsel %vm863, %v6174, %v6178
      %v6180 = vshrl.u32 %v5920, 16
      %v6182 = vrot.slane %v6180, 4
      %v6183 = vor.u32 %v6182, %v6178
      %v6184 = vrot.slane %v6183, 4
      %v6186 = vshll.u32 %v5943, 16
      %v6188 = vrot.slane %v6186, 5
      %v6189 = vsel %vm863, %v6184, %v6188
      %v6191 = vshrl.u32 %v5921, 16
      %v6193 = vrot.slane %v6191, 4
      %v6194 = vshll.u32 %v5921, 16
      %v6196 = vrot.slane %v6194, 5
      %v6197 = vor.u32 %v6193, %v6196
      %v6198 = vrot.slane %v6197, 4
      %v6200 = vshll.u32 %v5922, 16
      %v6202 = vrot.slane %v6200, 5
      %v6203 = vsel %vm863, %v6198, %v6202
      %v6204 = vshrl.u32 %v5922, 16
      %v6206 = vrot.slane %v6204, 4
      %v6207 = vor.u32 %v6206, %v6202
      %v6208 = vrot.slane %v6207, 4
      %v6210 = vshll.u32 %v5944, 16
      %v6212 = vrot.slane %v6210, 5
      %v6213 = vsel %vm863, %v6208, %v6212
      %v6215 = vshrl.u32 %v5923, 16
      %v6217 = vrot.slane %v6215, 4
      %v6218 = vshll.u32 %v5923, 16
      %v6220 = vrot.slane %v6218, 5
      %v6221 = vor.u32 %v6217, %v6220
      %v6222 = vrot.slane %v6221, 4
      %v6224 = vshll.u32 %v5924, 16
      %v6226 = vrot.slane %v6224, 5
      %v6227 = vsel %vm863, %v6222, %v6226
      %v6228 = vshrl.u32 %v5924, 16
      %v6230 = vrot.slane %v6228, 4
      %v6231 = vor.u32 %v6230, %v6226
      %v6232 = vrot.slane %v6231, 4
      %v6234 = vshll.u32 %v5945, 16
      %v6236 = vrot.slane %v6234, 5
      %v6237 = vsel %vm863, %v6232, %v6236
      %v6239 = vshrl.u32 %v5925, 16
      %v6241 = vrot.slane %v6239, 4
      %v6242 = vshll.u32 %v5925, 16
      %v6244 = vrot.slane %v6242, 5
      %v6245 = vor.u32 %v6241, %v6244
      %v6246 = vrot.slane %v6245, 4
      %v6248 = vshll.u32 %v5926, 16
      %v6250 = vrot.slane %v6248, 5
      %v6251 = vsel %vm863, %v6246, %v6250
      %v6252 = vshrl.u32 %v5926, 16
      %v6254 = vrot.slane %v6252, 4
      %v6255 = vor.u32 %v6254, %v6250
      %v6256 = vrot.slane %v6255, 4
      %v6258 = vshll.u32 %v5946, 16
      %v6260 = vrot.slane %v6258, 5
      %v6261 = vsel %vm863, %v6256, %v6260
      %v6263 = vshrl.u32 %v5927, 16
      %v6265 = vrot.slane %v6263, 4
      %v6266 = vshll.u32 %v5927, 16
      %v6268 = vrot.slane %v6266, 5
      %v6269 = vor.u32 %v6265, %v6268
      %v6270 = vrot.slane %v6269, 4
      %v6272 = vshll.u32 %v5928, 16
      %v6274 = vrot.slane %v6272, 5
      %v6275 = vsel %vm863, %v6270, %v6274
      %v6276 = vshrl.u32 %v5928, 16
      %v6278 = vrot.slane %v6276, 4
      %v6279 = vor.u32 %v6278, %v6274
      %v6280 = vrot.slane %v6279, 4
      %v6282 = vshll.u32 %v5947, 16
      %v6284 = vrot.slane %v6282, 5
      %v6285 = vsel %vm863, %v6280, %v6284
      %v6287 = vshrl.u32 %v5929, 16
      %v6289 = vrot.slane %v6287, 4
      %v6290 = vshll.u32 %v5929, 16
      %v6292 = vrot.slane %v6290, 5
      %v6293 = vor.u32 %v6289, %v6292
      %v6294 = vrot.slane %v6293, 4
      %v6296 = vshll.u32 %v5930, 16
      %v6298 = vrot.slane %v6296, 5
      %v6299 = vsel %vm863, %v6294, %v6298
      %v6300 = vshrl.u32 %v5930, 16
      %v6302 = vrot.slane %v6300, 4
      %v6303 = vor.u32 %v6302, %v6298
      %v6304 = vrot.slane %v6303, 4
      %v6306 = vshll.u32 %v5948, 16
      %v6308 = vrot.slane %v6306, 5
      %v6309 = vsel %vm863, %v6304, %v6308
      %v6311 = vshrl.u32 %v5931, 16
      %v6313 = vrot.slane %v6311, 4
      %v6314 = vshll.u32 %v5931, 16
      %v6316 = vrot.slane %v6314, 5
      %v6317 = vor.u32 %v6313, %v6316
      %v6318 = vrot.slane %v6317, 4
      %v6320 = vshll.u32 %v5932, 16
      %v6322 = vrot.slane %v6320, 5
      %v6323 = vsel %vm863, %v6318, %v6322
      %v6324 = vshrl.u32 %v5932, 16
      %v6326 = vrot.slane %v6324, 4
      %v6327 = vor.u32 %v6326, %v6322
      %v6328 = vrot.slane %v6327, 4
      %v6330 = vshll.u32 %v5949, 16
      %v6332 = vrot.slane %v6330, 5
      %v6333 = vsel %vm863, %v6328, %v6332
      %s6334 = scalar_lea.vmem %s3, 4
      %v6335 = vld [vmem:[%s6334] sm:$0xf]
      %v6336 = vunpack.c.l.b16 %v5963
      %v6337 = vunpack.c.l.b16 %v5973
      %v6338 = vunpack.c.l.b16 %v5987
      %v6339 = vunpack.c.l.b16 %v5997
      %v6340 = vunpack.c.l.b16 %v6011
      %v6341 = vunpack.c.l.b16 %v6021
      %v6342 = vunpack.c.l.b16 %v6035
      %v6343 = vunpack.c.l.b16 %v6045
      %v6344 = vunpack.c.l.b16 %v6059
      %v6345 = vunpack.c.l.b16 %v6069
      %v6346 = vunpack.c.l.b16 %v6083
      %v6347 = vunpack.c.l.b16 %v6093
      %v6348 = vunpack.c.l.b16 %v6107
      %v6349 = vunpack.c.l.b16 %v6117
      %v6350 = vunpack.c.l.b16 %v6131
      %v6351 = vunpack.c.l.b16 %v6141
      %v6352 = vunpack.c.l.b16 %v6155
      %v6353 = vunpack.c.l.b16 %v6165
      %v6354 = vunpack.c.l.b16 %v6179
      %v6355 = vunpack.c.l.b16 %v6189
      %v6356 = vunpack.c.l.b16 %v6203
      %v6357 = vunpack.c.l.b16 %v6213
      %v6358 = vunpack.c.l.b16 %v6227
      %v6359 = vunpack.c.l.b16 %v6237
      %v6360 = vunpack.c.l.b16 %v6251
      %v6361 = vunpack.c.l.b16 %v6261
      %v6362 = vunpack.c.l.b16 %v6275
      %v6363 = vunpack.c.l.b16 %v6285
      %v6364 = vunpack.c.l.b16 %v6299
      %v6365 = vunpack.c.l.b16 %v6309
      %v6366 = vunpack.c.l.b16 %v6323
      %v6367 = vunpack.c.l.b16 %v6333
      %v6368 = vpack.c.b16 %v6337, %v6336
      %v6369 = vpack.c.b16 %v6339, %v6338
      %v6370 = vpack.c.b16 %v6341, %v6340
      %v6371 = vpack.c.b16 %v6343, %v6342
      %v6372 = vpack.c.b16 %v6345, %v6344
      %v6373 = vpack.c.b16 %v6347, %v6346
      %v6374 = vpack.c.b16 %v6349, %v6348
      %v6375 = vpack.c.b16 %v6351, %v6350
      %v6376 = vpack.c.b16 %v6353, %v6352
      %v6377 = vpack.c.b16 %v6355, %v6354
      %v6378 = vpack.c.b16 %v6357, %v6356
      %v6379 = vpack.c.b16 %v6359, %v6358
      %v6380 = vpack.c.b16 %v6361, %v6360
      %v6381 = vpack.c.b16 %v6363, %v6362
      %v6382 = vpack.c.b16 %v6365, %v6364
      %v6383 = vpack.c.b16 %v6367, %v6366
      %vm6384 = vcmask 64512
      %v6386 = vsel %vm6384, %v6368, 0
      %v6389 = vsel %vm6384, %v6369, 0
      %v6392 = vsel %vm6384, %v6370, 0
      %v6395 = vsel %vm6384, %v6371, 0
      %v6398 = vsel %vm6384, %v6372, 0
      %v6401 = vsel %vm6384, %v6373, 0
      %v6404 = vsel %vm6384, %v6374, 0
      %v6407 = vsel %vm6384, %v6375, 0
      %v6410 = vsel %vm6384, %v6376, 0
      %v6413 = vsel %vm6384, %v6377, 0
      %v6416 = vsel %vm6384, %v6378, 0
      %v6419 = vsel %vm6384, %v6379, 0
      %v6422 = vsel %vm6384, %v6380, 0
      %v6425 = vsel %vm6384, %v6381, 0
      %v6428 = vsel %vm6384, %v6382, 0
      %v6431 = vsel %vm6384, %v6383, 0
      %vm6433 = vcmask 1043456
      %v6435 = vsel %vm6433, %v6335, 0
      %6437 = vmatpush.bf16.msra.mxu0 0
      %6438 = vmatpush.bf16.msra.mxu0 0
      %6439 = vmatpush.bf16.msra.mxu0 0
      %6440 = vmatpush.bf16.msra.mxu0 0
      %6441 = vmatpush.bf16.msra.mxu0 0
      %6442 = vmatpush.bf16.msra.mxu0 0
      %6443 = vmatpush.bf16.msra.mxu0 0
      %6444 = vmatpush.bf16.msra.mxu0 %v6435
      %6445 = vmatmul.bf16.gmra.mxu0 %v6386
      %v6446 = vpop.f32.mrf.mxu0
      %v6447 = vadd.f32 0.0, %v6446
      %v6448 = vpop.f32.mrf.mxu0
      %v6449 = vadd.f32 0.0, %v6448
      %6450 = vmatmul.bf16.gmra.mxu0 %v6389
      %v6451 = vpop.f32.mrf.mxu0
      %v6452 = vadd.f32 0.0, %v6451
      %v6453 = vpop.f32.mrf.mxu0
      %v6454 = vadd.f32 0.0, %v6453
      %6455 = vmatmul.bf16.gmra.mxu0 %v6392
      %v6456 = vpop.f32.mrf.mxu0
      %v6457 = vadd.f32 0.0, %v6456
      %v6458 = vpop.f32.mrf.mxu0
      %v6459 = vadd.f32 0.0, %v6458
      %6460 = vmatmul.bf16.gmra.mxu0 %v6395
      %v6461 = vpop.f32.mrf.mxu0
      %v6462 = vadd.f32 0.0, %v6461
      %v6463 = vpop.f32.mrf.mxu0
      %v6464 = vadd.f32 0.0, %v6463
      %6465 = vmatmul.bf16.gmra.mxu0 %v6398
      %v6466 = vpop.f32.mrf.mxu0
      %v6467 = vadd.f32 0.0, %v6466
      %v6468 = vpop.f32.mrf.mxu0
      %v6469 = vadd.f32 0.0, %v6468
      %6470 = vmatmul.bf16.gmra.mxu0 %v6401
      %v6471 = vpop.f32.mrf.mxu0
      %v6472 = vadd.f32 0.0, %v6471
      %v6473 = vpop.f32.mrf.mxu0
      %v6474 = vadd.f32 0.0, %v6473
      %6475 = vmatmul.bf16.gmra.mxu0 %v6404
      %v6476 = vpop.f32.mrf.mxu0
      %v6477 = vadd.f32 0.0, %v6476
      %v6478 = vpop.f32.mrf.mxu0
      %v6479 = vadd.f32 0.0, %v6478
      %6480 = vmatmul.bf16.gmra.mxu0 %v6407
      %v6481 = vpop.f32.mrf.mxu0
      %v6482 = vadd.f32 0.0, %v6481
      %v6483 = vpop.f32.mrf.mxu0
      %v6484 = vadd.f32 0.0, %v6483
      %6485 = vmatmul.bf16.gmra.mxu0 %v6410
      %v6486 = vpop.f32.mrf.mxu0
      %v6487 = vadd.f32 0.0, %v6486
      %v6488 = vpop.f32.mrf.mxu0
      %v6489 = vadd.f32 0.0, %v6488
      %6490 = vmatmul.bf16.gmra.mxu0 %v6413
      %v6491 = vpop.f32.mrf.mxu0
      %v6492 = vadd.f32 0.0, %v6491
      %v6493 = vpop.f32.mrf.mxu0
      %v6494 = vadd.f32 0.0, %v6493
      %6495 = vmatmul.bf16.gmra.mxu0 %v6416
      %v6496 = vpop.f32.mrf.mxu0
      %v6497 = vadd.f32 0.0, %v6496
      %v6498 = vpop.f32.mrf.mxu0
      %v6499 = vadd.f32 0.0, %v6498
      %6500 = vmatmul.bf16.gmra.mxu0 %v6419
      %v6501 = vpop.f32.mrf.mxu0
      %v6502 = vadd.f32 0.0, %v6501
      %v6503 = vpop.f32.mrf.mxu0
      %v6504 = vadd.f32 0.0, %v6503
      %6505 = vmatmul.bf16.gmra.mxu0 %v6422
      %v6506 = vpop.f32.mrf.mxu0
      %v6507 = vadd.f32 0.0, %v6506
      %v6508 = vpop.f32.mrf.mxu0
      %v6509 = vadd.f32 0.0, %v6508
      %6510 = vmatmul.bf16.gmra.mxu0 %v6425
      %v6511 = vpop.f32.mrf.mxu0
      %v6512 = vadd.f32 0.0, %v6511
      %v6513 = vpop.f32.mrf.mxu0
      %v6514 = vadd.f32 0.0, %v6513
      %6515 = vmatmul.bf16.gmra.mxu0 %v6428
      %v6516 = vpop.f32.mrf.mxu0
      %v6517 = vadd.f32 0.0, %v6516
      %v6518 = vpop.f32.mrf.mxu0
      %v6519 = vadd.f32 0.0, %v6518
      %6520 = vmatmul.bf16.gmra.mxu0 %v6431
      %v6521 = vpop.f32.mrf.mxu0
      %v6522 = vadd.f32 0.0, %v6521
      %v6523 = vpop.f32.mrf.mxu0
      %v6524 = vadd.f32 0.0, %v6523
      %6525 = vdwg.mxu0
      %v6558 = vunpack.c.l.b16 %v5901
      %v6559 = vunpack.c.l.b16 %v5902
      %v6560 = vunpack.c.l.b16 %v5903
      %v6561 = vunpack.c.l.b16 %v5904
      %v6562 = vunpack.c.l.b16 %v5905
      %v6563 = vunpack.c.l.b16 %v5906
      %v6564 = vunpack.c.l.b16 %v5907
      %v6565 = vunpack.c.l.b16 %v5908
      %v6566 = vunpack.c.l.b16 %v5909
      %v6567 = vunpack.c.l.b16 %v5910
      %v6568 = vunpack.c.l.b16 %v5911
      %v6569 = vunpack.c.l.b16 %v5912
      %v6570 = vunpack.c.l.b16 %v5913
      %v6571 = vunpack.c.l.b16 %v5914
      %v6572 = vunpack.c.l.b16 %v5915
      %v6573 = vunpack.c.l.b16 %v5916
      %v6574 = vunpack.c.l.b16 %v5917
      %v6575 = vunpack.c.l.b16 %v5918
      %v6576 = vunpack.c.l.b16 %v5919
      %v6577 = vunpack.c.l.b16 %v5920
      %v6578 = vunpack.c.l.b16 %v5921
      %v6579 = vunpack.c.l.b16 %v5922
      %v6580 = vunpack.c.l.b16 %v5923
      %v6581 = vunpack.c.l.b16 %v5924
      %v6582 = vunpack.c.l.b16 %v5925
      %v6583 = vunpack.c.l.b16 %v5926
      %v6584 = vunpack.c.l.b16 %v5927
      %v6585 = vunpack.c.l.b16 %v5928
      %v6586 = vunpack.c.l.b16 %v5929
      %v6587 = vunpack.c.l.b16 %v5930
      %v6588 = vunpack.c.l.b16 %v5931
      %v6589 = vunpack.c.l.b16 %v5932
      %v6590 = vpack.c.b16 %v6559, %v6558
      %v6591 = vpack.c.b16 %v6561, %v6560
      %v6592 = vpack.c.b16 %v6563, %v6562
      %v6593 = vpack.c.b16 %v6565, %v6564
      %v6594 = vpack.c.b16 %v6567, %v6566
      %v6595 = vpack.c.b16 %v6569, %v6568
      %v6596 = vpack.c.b16 %v6571, %v6570
      %v6597 = vpack.c.b16 %v6573, %v6572
      %v6598 = vpack.c.b16 %v6575, %v6574
      %v6599 = vpack.c.b16 %v6577, %v6576
      %v6600 = vpack.c.b16 %v6579, %v6578
      %v6601 = vpack.c.b16 %v6581, %v6580
      %v6602 = vpack.c.b16 %v6583, %v6582
      %v6603 = vpack.c.b16 %v6585, %v6584
      %v6604 = vpack.c.b16 %v6587, %v6586
      %v6605 = vpack.c.b16 %v6589, %v6588
      %v6607 = vsel %vm6384, %v6590, 0
      %v6610 = vsel %vm6384, %v6591, 0
      %v6613 = vsel %vm6384, %v6592, 0
      %v6616 = vsel %vm6384, %v6593, 0
      %v6619 = vsel %vm6384, %v6594, 0
      %v6622 = vsel %vm6384, %v6595, 0
      %v6625 = vsel %vm6384, %v6596, 0
      %v6628 = vsel %vm6384, %v6597, 0
      %v6631 = vsel %vm6384, %v6598, 0
      %v6634 = vsel %vm6384, %v6599, 0
      %v6637 = vsel %vm6384, %v6600, 0
      %v6640 = vsel %vm6384, %v6601, 0
      %v6643 = vsel %vm6384, %v6602, 0
      %v6646 = vsel %vm6384, %v6603, 0
      %v6649 = vsel %vm6384, %v6604, 0
      %v6652 = vsel %vm6384, %v6605, 0
      %v6655 = vsel %vm6433, %v5933, 0
      %6657 = vmatpush.bf16.msra.mxu0 0
      %6658 = vmatpush.bf16.msra.mxu0 0
      %6659 = vmatpush.bf16.msra.mxu0 0
      %6660 = vmatpush.bf16.msra.mxu0 0
      %6661 = vmatpush.bf16.msra.mxu0 0
      %6662 = vmatpush.bf16.msra.mxu0 0
      %6663 = vmatpush.bf16.msra.mxu0 0
      %6664 = vmatpush.bf16.msra.mxu0 %v6655
      %6665 = vmatmul.bf16.gmra.mxu0 %v6607
      %v6666 = vpop.f32.mrf.mxu0
      %v6667 = vadd.f32 %v6447, %v6666
      %v6668 = vpop.f32.mrf.mxu0
      %v6669 = vadd.f32 %v6449, %v6668
      %6670 = vmatmul.bf16.gmra.mxu0 %v6610
      %v6671 = vpop.f32.mrf.mxu0
      %v6672 = vadd.f32 %v6452, %v6671
      %v6673 = vpop.f32.mrf.mxu0
      %v6674 = vadd.f32 %v6454, %v6673
      %6675 = vmatmul.bf16.gmra.mxu0 %v6613
      %v6676 = vpop.f32.mrf.mxu0
      %v6677 = vadd.f32 %v6457, %v6676
      %v6678 = vpop.f32.mrf.mxu0
      %v6679 = vadd.f32 %v6459, %v6678
      %6680 = vmatmul.bf16.gmra.mxu0 %v6616
      %v6681 = vpop.f32.mrf.mxu0
      %v6682 = vadd.f32 %v6462, %v6681
      %v6683 = vpop.f32.mrf.mxu0
      %v6684 = vadd.f32 %v6464, %v6683
      %6685 = vmatmul.bf16.gmra.mxu0 %v6619
      %v6686 = vpop.f32.mrf.mxu0
      %v6687 = vadd.f32 %v6467, %v6686
      %v6688 = vpop.f32.mrf.mxu0
      %v6689 = vadd.f32 %v6469, %v6688
      %6690 = vmatmul.bf16.gmra.mxu0 %v6622
      %v6691 = vpop.f32.mrf.mxu0
      %v6692 = vadd.f32 %v6472, %v6691
      %v6693 = vpop.f32.mrf.mxu0
      %v6694 = vadd.f32 %v6474, %v6693
      %6695 = vmatmul.bf16.gmra.mxu0 %v6625
      %v6696 = vpop.f32.mrf.mxu0
      %v6697 = vadd.f32 %v6477, %v6696
      %v6698 = vpop.f32.mrf.mxu0
      %v6699 = vadd.f32 %v6479, %v6698
      %6700 = vmatmul.bf16.gmra.mxu0 %v6628
      %v6701 = vpop.f32.mrf.mxu0
      %v6702 = vadd.f32 %v6482, %v6701
      %v6703 = vpop.f32.mrf.mxu0
      %v6704 = vadd.f32 %v6484, %v6703
      %6705 = vmatmul.bf16.gmra.mxu0 %v6631
      %v6706 = vpop.f32.mrf.mxu0
      %v6707 = vadd.f32 %v6487, %v6706
      %v6708 = vpop.f32.mrf.mxu0
      %v6709 = vadd.f32 %v6489, %v6708
      %6710 = vmatmul.bf16.gmra.mxu0 %v6634
      %v6711 = vpop.f32.mrf.mxu0
      %v6712 = vadd.f32 %v6492, %v6711
      %v6713 = vpop.f32.mrf.mxu0
      %v6714 = vadd.f32 %v6494, %v6713
      %6715 = vmatmul.bf16.gmra.mxu0 %v6637
      %v6716 = vpop.f32.mrf.mxu0
      %v6717 = vadd.f32 %v6497, %v6716
      %v6718 = vpop.f32.mrf.mxu0
      %v6719 = vadd.f32 %v6499, %v6718
      %6720 = vmatmul.bf16.gmra.mxu0 %v6640
      %v6721 = vpop.f32.mrf.mxu0
      %v6722 = vadd.f32 %v6502, %v6721
      %v6723 = vpop.f32.mrf.mxu0
      %v6724 = vadd.f32 %v6504, %v6723
      %6725 = vmatmul.bf16.gmra.mxu0 %v6643
      %v6726 = vpop.f32.mrf.mxu0
      %v6727 = vadd.f32 %v6507, %v6726
      %v6728 = vpop.f32.mrf.mxu0
      %v6729 = vadd.f32 %v6509, %v6728
      %6730 = vmatmul.bf16.gmra.mxu0 %v6646
      %v6731 = vpop.f32.mrf.mxu0
      %v6732 = vadd.f32 %v6512, %v6731
      %v6733 = vpop.f32.mrf.mxu0
      %v6734 = vadd.f32 %v6514, %v6733
      %6735 = vmatmul.bf16.gmra.mxu0 %v6649
      %v6736 = vpop.f32.mrf.mxu0
      %v6737 = vadd.f32 %v6517, %v6736
      %v6738 = vpop.f32.mrf.mxu0
      %v6739 = vadd.f32 %v6519, %v6738
      %6740 = vmatmul.bf16.gmra.mxu0 %v6652
      %v6741 = vpop.f32.mrf.mxu0
      %v6742 = vadd.f32 %v6522, %v6741
      %v6743 = vpop.f32.mrf.mxu0
      %v6744 = vadd.f32 %v6524, %v6743
      %6745 = vdwg.mxu0
      %v6746 = vld [vmem:[#allocation3] sm:$0xe]
      %v6747 = vld [vmem:[#allocation3 + $0xc] sm:$0xe]
      %v6748 = vld [vmem:[#allocation3 + $0x18] sm:$0xe]
      %v6749 = vld [vmem:[#allocation3 + $0x24] sm:$0xe]
      %v6750 = vld [vmem:[#allocation3 + $0x30] sm:$0xe]
      %v6751 = vld [vmem:[#allocation3 + $0x3c] sm:$0xe]
      %v6752 = vld [vmem:[#allocation3 + $0x48] sm:$0xe]
      %v6753 = vld [vmem:[#allocation3 + $0x54] sm:$0xe]
      %v6754 = vld [vmem:[#allocation3 + $0x60] sm:$0xe]
      %v6755 = vld [vmem:[#allocation3 + $0x6c] sm:$0xe]
      %v6756 = vld [vmem:[#allocation3 + $0x78] sm:$0xe]
      %v6757 = vld [vmem:[#allocation3 + $0x84] sm:$0xe]
      %v6758 = vld [vmem:[#allocation3 + $0x90] sm:$0xe]
      %v6759 = vld [vmem:[#allocation3 + $0x9c] sm:$0xe]
      %v6760 = vld [vmem:[#allocation3 + $0xa8] sm:$0xe]
      %v6761 = vld [vmem:[#allocation3 + $0xb4] sm:$0xe]
      %v6794 = vrot.slane %v6746, 5
      %v6795 = vrot.slane %v6794, 4
      %v6796 = vrot.slane %v5902, 5
      %v6797 = vsel %vm1716, %v6795, %v6796
      %v6798 = vrot.slane %v6796, 4
      %v6799 = vrot.slane %v5934, 5
      %v6800 = vsel %vm1716, %v6798, %v6799
      %v6801 = vrot.slane %v6747, 5
      %v6802 = vrot.slane %v6801, 4
      %v6803 = vrot.slane %v5904, 5
      %v6804 = vsel %vm1716, %v6802, %v6803
      %v6805 = vrot.slane %v6803, 4
      %v6806 = vrot.slane %v5935, 5
      %v6807 = vsel %vm1716, %v6805, %v6806
      %v6808 = vrot.slane %v6748, 5
      %v6809 = vrot.slane %v6808, 4
      %v6810 = vrot.slane %v5906, 5
      %v6811 = vsel %vm1716, %v6809, %v6810
      %v6812 = vrot.slane %v6810, 4
      %v6813 = vrot.slane %v5936, 5
      %v6814 = vsel %vm1716, %v6812, %v6813
      %v6815 = vrot.slane %v6749, 5
      %v6816 = vrot.slane %v6815, 4
      %v6817 = vrot.slane %v5908, 5
      %v6818 = vsel %vm1716, %v6816, %v6817
      %v6819 = vrot.slane %v6817, 4
      %v6820 = vrot.slane %v5937, 5
      %v6821 = vsel %vm1716, %v6819, %v6820
      %v6822 = vrot.slane %v6750, 5
      %v6823 = vrot.slane %v6822, 4
      %v6824 = vrot.slane %v5910, 5
      %v6825 = vsel %vm1716, %v6823, %v6824
      %v6826 = vrot.slane %v6824, 4
      %v6827 = vrot.slane %v5938, 5
      %v6828 = vsel %vm1716, %v6826, %v6827
      %v6829 = vrot.slane %v6751, 5
      %v6830 = vrot.slane %v6829, 4
      %v6831 = vrot.slane %v5912, 5
      %v6832 = vsel %vm1716, %v6830, %v6831
      %v6833 = vrot.slane %v6831, 4
      %v6834 = vrot.slane %v5939, 5
      %v6835 = vsel %vm1716, %v6833, %v6834
      %v6836 = vrot.slane %v6752, 5
      %v6837 = vrot.slane %v6836, 4
      %v6838 = vrot.slane %v5914, 5
      %v6839 = vsel %vm1716, %v6837, %v6838
      %v6840 = vrot.slane %v6838, 4
      %v6841 = vrot.slane %v5940, 5
      %v6842 = vsel %vm1716, %v6840, %v6841
      %v6843 = vrot.slane %v6753, 5
      %v6844 = vrot.slane %v6843, 4
      %v6845 = vrot.slane %v5916, 5
      %v6846 = vsel %vm1716, %v6844, %v6845
      %v6847 = vrot.slane %v6845, 4
      %v6848 = vrot.slane %v5941, 5
      %v6849 = vsel %vm1716, %v6847, %v6848
      %v6850 = vrot.slane %v6754, 5
      %v6851 = vrot.slane %v6850, 4
      %v6852 = vrot.slane %v5918, 5
      %v6853 = vsel %vm1716, %v6851, %v6852
      %v6854 = vrot.slane %v6852, 4
      %v6855 = vrot.slane %v5942, 5
      %v6856 = vsel %vm1716, %v6854, %v6855
      %v6857 = vrot.slane %v6755, 5
      %v6858 = vrot.slane %v6857, 4
      %v6859 = vrot.slane %v5920, 5
      %v6860 = vsel %vm1716, %v6858, %v6859
      %v6861 = vrot.slane %v6859, 4
      %v6862 = vrot.slane %v5943, 5
      %v6863 = vsel %vm1716, %v6861, %v6862
      %v6864 = vrot.slane %v6756, 5
      %v6865 = vrot.slane %v6864, 4
      %v6866 = vrot.slane %v5922, 5
      %v6867 = vsel %vm1716, %v6865, %v6866
      %v6868 = vrot.slane %v6866, 4
      %v6869 = vrot.slane %v5944, 5
      %v6870 = vsel %vm1716, %v6868, %v6869
      %v6871 = vrot.slane %v6757, 5
      %v6872 = vrot.slane %v6871, 4
      %v6873 = vrot.slane %v5924, 5
      %v6874 = vsel %vm1716, %v6872, %v6873
      %v6875 = vrot.slane %v6873, 4
      %v6876 = vrot.slane %v5945, 5
      %v6877 = vsel %vm1716, %v6875, %v6876
      %v6878 = vrot.slane %v6758, 5
      %v6879 = vrot.slane %v6878, 4
      %v6880 = vrot.slane %v5926, 5
      %v6881 = vsel %vm1716, %v6879, %v6880
      %v6882 = vrot.slane %v6880, 4
      %v6883 = vrot.slane %v5946, 5
      %v6884 = vsel %vm1716, %v6882, %v6883
      %v6885 = vrot.slane %v6759, 5
      %v6886 = vrot.slane %v6885, 4
      %v6887 = vrot.slane %v5928, 5
      %v6888 = vsel %vm1716, %v6886, %v6887
      %v6889 = vrot.slane %v6887, 4
      %v6890 = vrot.slane %v5947, 5
      %v6891 = vsel %vm1716, %v6889, %v6890
      %v6892 = vrot.slane %v6760, 5
      %v6893 = vrot.slane %v6892, 4
      %v6894 = vrot.slane %v5930, 5
      %v6895 = vsel %vm1716, %v6893, %v6894
      %v6896 = vrot.slane %v6894, 4
      %v6897 = vrot.slane %v5948, 5
      %v6898 = vsel %vm1716, %v6896, %v6897
      %v6899 = vrot.slane %v6761, 5
      %v6900 = vrot.slane %v6899, 4
      %v6901 = vrot.slane %v5932, 5
      %v6902 = vsel %vm1716, %v6900, %v6901
      %v6903 = vrot.slane %v6901, 4
      %v6904 = vrot.slane %v5949, 5
      %v6905 = vsel %vm1716, %v6903, %v6904
      %s6906 = scalar_lea.vmem %s3, 8
      %v6907 = vld [vmem:[%s6906] sm:$0xf]
      %v6908 = vunpack.c.l.b16 %v6797
      %v6909 = vunpack.c.l.b16 %v6800
      %v6910 = vunpack.c.l.b16 %v6804
      %v6911 = vunpack.c.l.b16 %v6807
      %v6912 = vunpack.c.l.b16 %v6811
      %v6913 = vunpack.c.l.b16 %v6814
      %v6914 = vunpack.c.l.b16 %v6818
      %v6915 = vunpack.c.l.b16 %v6821
      %v6916 = vunpack.c.l.b16 %v6825
      %v6917 = vunpack.c.l.b16 %v6828
      %v6918 = vunpack.c.l.b16 %v6832
      %v6919 = vunpack.c.l.b16 %v6835
      %v6920 = vunpack.c.l.b16 %v6839
      %v6921 = vunpack.c.l.b16 %v6842
      %v6922 = vunpack.c.l.b16 %v6846
      %v6923 = vunpack.c.l.b16 %v6849
      %v6924 = vunpack.c.l.b16 %v6853
      %v6925 = vunpack.c.l.b16 %v6856
      %v6926 = vunpack.c.l.b16 %v6860
      %v6927 = vunpack.c.l.b16 %v6863
      %v6928 = vunpack.c.l.b16 %v6867
      %v6929 = vunpack.c.l.b16 %v6870
      %v6930 = vunpack.c.l.b16 %v6874
      %v6931 = vunpack.c.l.b16 %v6877
      %v6932 = vunpack.c.l.b16 %v6881
      %v6933 = vunpack.c.l.b16 %v6884
      %v6934 = vunpack.c.l.b16 %v6888
      %v6935 = vunpack.c.l.b16 %v6891
      %v6936 = vunpack.c.l.b16 %v6895
      %v6937 = vunpack.c.l.b16 %v6898
      %v6938 = vunpack.c.l.b16 %v6902
      %v6939 = vunpack.c.l.b16 %v6905
      %v6940 = vpack.c.b16 %v6909, %v6908
      %v6941 = vpack.c.b16 %v6911, %v6910
      %v6942 = vpack.c.b16 %v6913, %v6912
      %v6943 = vpack.c.b16 %v6915, %v6914
      %v6944 = vpack.c.b16 %v6917, %v6916
      %v6945 = vpack.c.b16 %v6919, %v6918
      %v6946 = vpack.c.b16 %v6921, %v6920
      %v6947 = vpack.c.b16 %v6923, %v6922
      %v6948 = vpack.c.b16 %v6925, %v6924
      %v6949 = vpack.c.b16 %v6927, %v6926
      %v6950 = vpack.c.b16 %v6929, %v6928
      %v6951 = vpack.c.b16 %v6931, %v6930
      %v6952 = vpack.c.b16 %v6933, %v6932
      %v6953 = vpack.c.b16 %v6935, %v6934
      %v6954 = vpack.c.b16 %v6937, %v6936
      %v6955 = vpack.c.b16 %v6939, %v6938
      %v6957 = vsel %vm6384, %v6940, 0
      %v6960 = vsel %vm6384, %v6941, 0
      %v6963 = vsel %vm6384, %v6942, 0
      %v6966 = vsel %vm6384, %v6943, 0
      %v6969 = vsel %vm6384, %v6944, 0
      %v6972 = vsel %vm6384, %v6945, 0
      %v6975 = vsel %vm6384, %v6946, 0
      %v6978 = vsel %vm6384, %v6947, 0
      %v6981 = vsel %vm6384, %v6948, 0
      %v6984 = vsel %vm6384, %v6949, 0
      %v6987 = vsel %vm6384, %v6950, 0
      %v6990 = vsel %vm6384, %v6951, 0
      %v6993 = vsel %vm6384, %v6952, 0
      %v6996 = vsel %vm6384, %v6953, 0
      %v6999 = vsel %vm6384, %v6954, 0
      %v7002 = vsel %vm6384, %v6955, 0
      %v7005 = vsel %vm6433, %v6907, 0
      %7007 = vmatpush.bf16.msra.mxu0 0
      %7008 = vmatpush.bf16.msra.mxu0 0
      %7009 = vmatpush.bf16.msra.mxu0 0
      %7010 = vmatpush.bf16.msra.mxu0 0
      %7011 = vmatpush.bf16.msra.mxu0 0
      %7012 = vmatpush.bf16.msra.mxu0 0
      %7013 = vmatpush.bf16.msra.mxu0 0
      %7014 = vmatpush.bf16.msra.mxu0 %v7005
      %7015 = vmatmul.bf16.gmra.mxu0 %v6957
      %v7016 = vpop.f32.mrf.mxu0
      %v7017 = vadd.f32 0.0, %v7016
      %v7018 = vpop.f32.mrf.mxu0
      %v7019 = vadd.f32 0.0, %v7018
      %7020 = vmatmul.bf16.gmra.mxu0 %v6960
      %v7021 = vpop.f32.mrf.mxu0
      %v7022 = vadd.f32 0.0, %v7021
      %v7023 = vpop.f32.mrf.mxu0
      %v7024 = vadd.f32 0.0, %v7023
      %7025 = vmatmul.bf16.gmra.mxu0 %v6963
      %v7026 = vpop.f32.mrf.mxu0
      %v7027 = vadd.f32 0.0, %v7026
      %v7028 = vpop.f32.mrf.mxu0
      %v7029 = vadd.f32 0.0, %v7028
      %7030 = vmatmul.bf16.gmra.mxu0 %v6966
      %v7031 = vpop.f32.mrf.mxu0
      %v7032 = vadd.f32 0.0, %v7031
      %v7033 = vpop.f32.mrf.mxu0
      %v7034 = vadd.f32 0.0, %v7033
      %7035 = vmatmul.bf16.gmra.mxu0 %v6969
      %v7036 = vpop.f32.mrf.mxu0
      %v7037 = vadd.f32 0.0, %v7036
      %v7038 = vpop.f32.mrf.mxu0
      %v7039 = vadd.f32 0.0, %v7038
      %7040 = vmatmul.bf16.gmra.mxu0 %v6972
      %v7041 = vpop.f32.mrf.mxu0
      %v7042 = vadd.f32 0.0, %v7041
      %v7043 = vpop.f32.mrf.mxu0
      %v7044 = vadd.f32 0.0, %v7043
      %7045 = vmatmul.bf16.gmra.mxu0 %v6975
      %v7046 = vpop.f32.mrf.mxu0
      %v7047 = vadd.f32 0.0, %v7046
      %v7048 = vpop.f32.mrf.mxu0
      %v7049 = vadd.f32 0.0, %v7048
      %7050 = vmatmul.bf16.gmra.mxu0 %v6978
      %v7051 = vpop.f32.mrf.mxu0
      %v7052 = vadd.f32 0.0, %v7051
      %v7053 = vpop.f32.mrf.mxu0
      %v7054 = vadd.f32 0.0, %v7053
      %7055 = vmatmul.bf16.gmra.mxu0 %v6981
      %v7056 = vpop.f32.mrf.mxu0
      %v7057 = vadd.f32 0.0, %v7056
      %v7058 = vpop.f32.mrf.mxu0
      %v7059 = vadd.f32 0.0, %v7058
      %7060 = vmatmul.bf16.gmra.mxu0 %v6984
      %v7061 = vpop.f32.mrf.mxu0
      %v7062 = vadd.f32 0.0, %v7061
      %v7063 = vpop.f32.mrf.mxu0
      %v7064 = vadd.f32 0.0, %v7063
      %7065 = vmatmul.bf16.gmra.mxu0 %v6987
      %v7066 = vpop.f32.mrf.mxu0
      %v7067 = vadd.f32 0.0, %v7066
      %v7068 = vpop.f32.mrf.mxu0
      %v7069 = vadd.f32 0.0, %v7068
      %7070 = vmatmul.bf16.gmra.mxu0 %v6990
      %v7071 = vpop.f32.mrf.mxu0
      %v7072 = vadd.f32 0.0, %v7071
      %v7073 = vpop.f32.mrf.mxu0
      %v7074 = vadd.f32 0.0, %v7073
      %7075 = vmatmul.bf16.gmra.mxu0 %v6993
      %v7076 = vpop.f32.mrf.mxu0
      %v7077 = vadd.f32 0.0, %v7076
      %v7078 = vpop.f32.mrf.mxu0
      %v7079 = vadd.f32 0.0, %v7078
      %7080 = vmatmul.bf16.gmra.mxu0 %v6996
      %v7081 = vpop.f32.mrf.mxu0
      %v7082 = vadd.f32 0.0, %v7081
      %v7083 = vpop.f32.mrf.mxu0
      %v7084 = vadd.f32 0.0, %v7083
      %7085 = vmatmul.bf16.gmra.mxu0 %v6999
      %v7086 = vpop.f32.mrf.mxu0
      %v7087 = vadd.f32 0.0, %v7086
      %v7088 = vpop.f32.mrf.mxu0
      %v7089 = vadd.f32 0.0, %v7088
      %7090 = vmatmul.bf16.gmra.mxu0 %v7002
      %v7091 = vpop.f32.mrf.mxu0
      %v7092 = vadd.f32 0.0, %v7091
      %v7093 = vpop.f32.mrf.mxu0
      %v7094 = vadd.f32 0.0, %v7093
      %7095 = vdwg.mxu0
      %v7096 = vadd.f32 %v6667, %v7017
      %v7097 = vadd.f32 %v6669, %v7019
      %v7098 = vadd.f32 %v6672, %v7022
      %v7099 = vadd.f32 %v6674, %v7024
      %v7100 = vadd.f32 %v6677, %v7027
      %v7101 = vadd.f32 %v6679, %v7029
      %v7102 = vadd.f32 %v6682, %v7032
      %v7103 = vadd.f32 %v6684, %v7034
      %v7104 = vadd.f32 %v6687, %v7037
      %v7105 = vadd.f32 %v6689, %v7039
      %v7106 = vadd.f32 %v6692, %v7042
      %v7107 = vadd.f32 %v6694, %v7044
      %v7108 = vadd.f32 %v6697, %v7047
      %v7109 = vadd.f32 %v6699, %v7049
      %v7110 = vadd.f32 %v6702, %v7052
      %v7111 = vadd.f32 %v6704, %v7054
      %v7112 = vadd.f32 %v6707, %v7057
      %v7113 = vadd.f32 %v6709, %v7059
      %v7114 = vadd.f32 %v6712, %v7062
      %v7115 = vadd.f32 %v6714, %v7064
      %v7116 = vadd.f32 %v6717, %v7067
      %v7117 = vadd.f32 %v6719, %v7069
      %v7118 = vadd.f32 %v6722, %v7072
      %v7119 = vadd.f32 %v6724, %v7074
      %v7120 = vadd.f32 %v6727, %v7077
      %v7121 = vadd.f32 %v6729, %v7079
      %v7122 = vadd.f32 %v6732, %v7082
      %v7123 = vadd.f32 %v6734, %v7084
      %v7124 = vadd.f32 %v6737, %v7087
      %v7125 = vadd.f32 %v6739, %v7089
      %v7126 = vadd.f32 %v6742, %v7092
      %v7127 = vadd.f32 %v6744, %v7094
      %v7128 = vld [vmem:[%s5784] sm:$0xf]
      %v7129 = vld [vmem:[%s5784 + $0x4] sm:$0xf]
      %v7130 = vld [vmem:[%s5784 + $0xc] sm:$0xf]
      %v7131 = vld [vmem:[%s5784 + $0x10] sm:$0xf]
      %v7132 = vld [vmem:[%s5784 + $0x18] sm:$0xf]
      %v7133 = vld [vmem:[%s5784 + $0x1c] sm:$0xf]
      %v7134 = vld [vmem:[%s5784 + $0x24] sm:$0xf]
      %v7135 = vld [vmem:[%s5784 + $0x28] sm:$0xf]
      %v7136 = vld [vmem:[%s5784 + $0x30] sm:$0xf]
      %v7137 = vld [vmem:[%s5784 + $0x34] sm:$0xf]
      %v7138 = vld [vmem:[%s5784 + $0x3c] sm:$0xf]
      %v7139 = vld [vmem:[%s5784 + $0x40] sm:$0xf]
      %v7140 = vld [vmem:[%s5784 + $0x48] sm:$0xf]
      %v7141 = vld [vmem:[%s5784 + $0x4c] sm:$0xf]
      %v7142 = vld [vmem:[%s5784 + $0x54] sm:$0xf]
      %v7143 = vld [vmem:[%s5784 + $0x58] sm:$0xf]
      %v7144 = vld [vmem:[%s5784 + $0x60] sm:$0xf]
      %v7145 = vld [vmem:[%s5784 + $0x64] sm:$0xf]
      %v7146 = vld [vmem:[%s5784 + $0x6c] sm:$0xf]
      %v7147 = vld [vmem:[%s5784 + $0x70] sm:$0xf]
      %v7148 = vld [vmem:[%s5784 + $0x78] sm:$0xf]
      %v7149 = vld [vmem:[%s5784 + $0x7c] sm:$0xf]
      %v7150 = vld [vmem:[%s5784 + $0x84] sm:$0xf]
      %v7151 = vld [vmem:[%s5784 + $0x88] sm:$0xf]
      %v7152 = vld [vmem:[%s5784 + $0x90] sm:$0xf]
      %v7153 = vld [vmem:[%s5784 + $0x94] sm:$0xf]
      %v7154 = vld [vmem:[%s5784 + $0x9c] sm:$0xf]
      %v7155 = vld [vmem:[%s5784 + $0xa0] sm:$0xf]
      %v7156 = vld [vmem:[%s5784 + $0xa8] sm:$0xf]
      %v7157 = vld [vmem:[%s5784 + $0xac] sm:$0xf]
      %v7158 = vld [vmem:[%s5784 + $0xb4] sm:$0xf]
      %v7159 = vld [vmem:[%s5784 + $0xb8] sm:$0xf]
      %s7160 = scalar_lea.vmem %s3, 12
      %v7161 = vld [vmem:[%s7160] sm:$0xf]
      %v7194 = vunpack.c.l.b16 %v7128
      %v7195 = vunpack.c.l.b16 %v7129
      %v7196 = vunpack.c.l.b16 %v7130
      %v7197 = vunpack.c.l.b16 %v7131
      %v7198 = vunpack.c.l.b16 %v7132
      %v7199 = vunpack.c.l.b16 %v7133
      %v7200 = vunpack.c.l.b16 %v7134
      %v7201 = vunpack.c.l.b16 %v7135
      %v7202 = vunpack.c.l.b16 %v7136
      %v7203 = vunpack.c.l.b16 %v7137
      %v7204 = vunpack.c.l.b16 %v7138
      %v7205 = vunpack.c.l.b16 %v7139
      %v7206 = vunpack.c.l.b16 %v7140
      %v7207 = vunpack.c.l.b16 %v7141
      %v7208 = vunpack.c.l.b16 %v7142
      %v7209 = vunpack.c.l.b16 %v7143
      %v7210 = vunpack.c.l.b16 %v7144
      %v7211 = vunpack.c.l.b16 %v7145
      %v7212 = vunpack.c.l.b16 %v7146
      %v7213 = vunpack.c.l.b16 %v7147
      %v7214 = vunpack.c.l.b16 %v7148
      %v7215 = vunpack.c.l.b16 %v7149
      %v7216 = vunpack.c.l.b16 %v7150
      %v7217 = vunpack.c.l.b16 %v7151
      %v7218 = vunpack.c.l.b16 %v7152
      %v7219 = vunpack.c.l.b16 %v7153
      %v7220 = vunpack.c.l.b16 %v7154
      %v7221 = vunpack.c.l.b16 %v7155
      %v7222 = vunpack.c.l.b16 %v7156
      %v7223 = vunpack.c.l.b16 %v7157
      %v7224 = vunpack.c.l.b16 %v7158
      %v7225 = vunpack.c.l.b16 %v7159
      %v7226 = vpack.c.b16 %v7195, %v7194
      %v7227 = vpack.c.b16 %v7197, %v7196
      %v7228 = vpack.c.b16 %v7199, %v7198
      %v7229 = vpack.c.b16 %v7201, %v7200
      %v7230 = vpack.c.b16 %v7203, %v7202
      %v7231 = vpack.c.b16 %v7205, %v7204
      %v7232 = vpack.c.b16 %v7207, %v7206
      %v7233 = vpack.c.b16 %v7209, %v7208
      %v7234 = vpack.c.b16 %v7211, %v7210
      %v7235 = vpack.c.b16 %v7213, %v7212
      %v7236 = vpack.c.b16 %v7215, %v7214
      %v7237 = vpack.c.b16 %v7217, %v7216
      %v7238 = vpack.c.b16 %v7219, %v7218
      %v7239 = vpack.c.b16 %v7221, %v7220
      %v7240 = vpack.c.b16 %v7223, %v7222
      %v7241 = vpack.c.b16 %v7225, %v7224
      %v7243 = vsel %vm6384, %v7226, 0
      %v7246 = vsel %vm6384, %v7227, 0
      %v7249 = vsel %vm6384, %v7228, 0
      %v7252 = vsel %vm6384, %v7229, 0
      %v7255 = vsel %vm6384, %v7230, 0
      %v7258 = vsel %vm6384, %v7231, 0
      %v7261 = vsel %vm6384, %v7232, 0
      %v7264 = vsel %vm6384, %v7233, 0
      %v7267 = vsel %vm6384, %v7234, 0
      %v7270 = vsel %vm6384, %v7235, 0
      %v7273 = vsel %vm6384, %v7236, 0
      %v7276 = vsel %vm6384, %v7237, 0
      %v7279 = vsel %vm6384, %v7238, 0
      %v7282 = vsel %vm6384, %v7239, 0
      %v7285 = vsel %vm6384, %v7240, 0
      %v7288 = vsel %vm6384, %v7241, 0
      %v7291 = vsel %vm6433, %v7161, 0
      %7293 = vmatpush.bf16.msra.mxu0 0
      %7294 = vmatpush.bf16.msra.mxu0 0
      %7295 = vmatpush.bf16.msra.mxu0 0
      %7296 = vmatpush.bf16.msra.mxu0 0
      %7297 = vmatpush.bf16.msra.mxu0 0
      %7298 = vmatpush.bf16.msra.mxu0 0
      %7299 = vmatpush.bf16.msra.mxu0 0
      %7300 = vmatpush.bf16.msra.mxu0 %v7291
      %7301 = vmatmul.bf16.gmra.mxu0 %v7243
      %v7302 = vpop.f32.mrf.mxu0
      %v7303 = vadd.f32 0.0, %v7302
      %v7304 = vpop.f32.mrf.mxu0
      %v7305 = vadd.f32 0.0, %v7304
      %7306 = vmatmul.bf16.gmra.mxu0 %v7246
      %v7307 = vpop.f32.mrf.mxu0
      %v7308 = vadd.f32 0.0, %v7307
      %v7309 = vpop.f32.mrf.mxu0
      %v7310 = vadd.f32 0.0, %v7309
      %7311 = vmatmul.bf16.gmra.mxu0 %v7249
      %v7312 = vpop.f32.mrf.mxu0
      %v7313 = vadd.f32 0.0, %v7312
      %v7314 = vpop.f32.mrf.mxu0
      %v7315 = vadd.f32 0.0, %v7314
      %7316 = vmatmul.bf16.gmra.mxu0 %v7252
      %v7317 = vpop.f32.mrf.mxu0
      %v7318 = vadd.f32 0.0, %v7317
      %v7319 = vpop.f32.mrf.mxu0
      %v7320 = vadd.f32 0.0, %v7319
      %7321 = vmatmul.bf16.gmra.mxu0 %v7255
      %v7322 = vpop.f32.mrf.mxu0
      %v7323 = vadd.f32 0.0, %v7322
      %v7324 = vpop.f32.mrf.mxu0
      %v7325 = vadd.f32 0.0, %v7324
      %7326 = vmatmul.bf16.gmra.mxu0 %v7258
      %v7327 = vpop.f32.mrf.mxu0
      %v7328 = vadd.f32 0.0, %v7327
      %v7329 = vpop.f32.mrf.mxu0
      %v7330 = vadd.f32 0.0, %v7329
      %7331 = vmatmul.bf16.gmra.mxu0 %v7261
      %v7332 = vpop.f32.mrf.mxu0
      %v7333 = vadd.f32 0.0, %v7332
      %v7334 = vpop.f32.mrf.mxu0
      %v7335 = vadd.f32 0.0, %v7334
      %7336 = vmatmul.bf16.gmra.mxu0 %v7264
      %v7337 = vpop.f32.mrf.mxu0
      %v7338 = vadd.f32 0.0, %v7337
      %v7339 = vpop.f32.mrf.mxu0
      %v7340 = vadd.f32 0.0, %v7339
      %7341 = vmatmul.bf16.gmra.mxu0 %v7267
      %v7342 = vpop.f32.mrf.mxu0
      %v7343 = vadd.f32 0.0, %v7342
      %v7344 = vpop.f32.mrf.mxu0
      %v7345 = vadd.f32 0.0, %v7344
      %7346 = vmatmul.bf16.gmra.mxu0 %v7270
      %v7347 = vpop.f32.mrf.mxu0
      %v7348 = vadd.f32 0.0, %v7347
      %v7349 = vpop.f32.mrf.mxu0
      %v7350 = vadd.f32 0.0, %v7349
      %7351 = vmatmul.bf16.gmra.mxu0 %v7273
      %v7352 = vpop.f32.mrf.mxu0
      %v7353 = vadd.f32 0.0, %v7352
      %v7354 = vpop.f32.mrf.mxu0
      %v7355 = vadd.f32 0.0, %v7354
      %7356 = vmatmul.bf16.gmra.mxu0 %v7276
      %v7357 = vpop.f32.mrf.mxu0
      %v7358 = vadd.f32 0.0, %v7357
      %v7359 = vpop.f32.mrf.mxu0
      %v7360 = vadd.f32 0.0, %v7359
      %7361 = vmatmul.bf16.gmra.mxu0 %v7279
      %v7362 = vpop.f32.mrf.mxu0
      %v7363 = vadd.f32 0.0, %v7362
      %v7364 = vpop.f32.mrf.mxu0
      %v7365 = vadd.f32 0.0, %v7364
      %7366 = vmatmul.bf16.gmra.mxu0 %v7282
      %v7367 = vpop.f32.mrf.mxu0
      %v7368 = vadd.f32 0.0, %v7367
      %v7369 = vpop.f32.mrf.mxu0
      %v7370 = vadd.f32 0.0, %v7369
      %7371 = vmatmul.bf16.gmra.mxu0 %v7285
      %v7372 = vpop.f32.mrf.mxu0
      %v7373 = vadd.f32 0.0, %v7372
      %v7374 = vpop.f32.mrf.mxu0
      %v7375 = vadd.f32 0.0, %v7374
      %7376 = vmatmul.bf16.gmra.mxu0 %v7288
      %v7377 = vpop.f32.mrf.mxu0
      %v7378 = vadd.f32 0.0, %v7377
      %v7379 = vpop.f32.mrf.mxu0
      %v7380 = vadd.f32 0.0, %v7379
      %7381 = vdwg.mxu0
      %v7382 = vadd.f32 %v7096, %v7303
      %v7383 = vadd.f32 %v7097, %v7305
      %v7384 = vadd.f32 %v7098, %v7308
      %v7385 = vadd.f32 %v7099, %v7310
      %v7386 = vadd.f32 %v7100, %v7313
      %v7387 = vadd.f32 %v7101, %v7315
      %v7388 = vadd.f32 %v7102, %v7318
      %v7389 = vadd.f32 %v7103, %v7320
      %v7390 = vadd.f32 %v7104, %v7323
      %v7391 = vadd.f32 %v7105, %v7325
      %v7392 = vadd.f32 %v7106, %v7328
      %v7393 = vadd.f32 %v7107, %v7330
      %v7394 = vadd.f32 %v7108, %v7333
      %v7395 = vadd.f32 %v7109, %v7335
      %v7396 = vadd.f32 %v7110, %v7338
      %v7397 = vadd.f32 %v7111, %v7340
      %v7398 = vadd.f32 %v7112, %v7343
      %v7399 = vadd.f32 %v7113, %v7345
      %v7400 = vadd.f32 %v7114, %v7348
      %v7401 = vadd.f32 %v7115, %v7350
      %v7402 = vadd.f32 %v7116, %v7353
      %v7403 = vadd.f32 %v7117, %v7355
      %v7404 = vadd.f32 %v7118, %v7358
      %v7405 = vadd.f32 %v7119, %v7360
      %v7406 = vadd.f32 %v7120, %v7363
      %v7407 = vadd.f32 %v7121, %v7365
      %v7408 = vadd.f32 %v7122, %v7368
      %v7409 = vadd.f32 %v7123, %v7370
      %v7410 = vadd.f32 %v7124, %v7373
      %v7411 = vadd.f32 %v7125, %v7375
      %v7412 = vadd.f32 %v7126, %v7378
      %v7413 = vadd.f32 %v7127, %v7380
      %v7414 = vld [vmem:[%s5784] sm:$0xf]
      %v7415 = vld [vmem:[%s5784 + $0x4] sm:$0xf]
      %v7416 = vld [vmem:[%s5784 + $0x8] sm:$0x1]
      %v7417 = vld [vmem:[%s5784 + $0xc] sm:$0xf]
      %v7418 = vld [vmem:[%s5784 + $0x10] sm:$0xf]
      %v7419 = vld [vmem:[%s5784 + $0x14] sm:$0x1]
      %v7420 = vld [vmem:[%s5784 + $0x18] sm:$0xf]
      %v7421 = vld [vmem:[%s5784 + $0x1c] sm:$0xf]
      %v7422 = vld [vmem:[%s5784 + $0x20] sm:$0x1]
      %v7423 = vld [vmem:[%s5784 + $0x24] sm:$0xf]
      %v7424 = vld [vmem:[%s5784 + $0x28] sm:$0xf]
      %v7425 = vld [vmem:[%s5784 + $0x2c] sm:$0x1]
      %v7426 = vld [vmem:[%s5784 + $0x30] sm:$0xf]
      %v7427 = vld [vmem:[%s5784 + $0x34] sm:$0xf]
      %v7428 = vld [vmem:[%s5784 + $0x38] sm:$0x1]
      %v7429 = vld [vmem:[%s5784 + $0x3c] sm:$0xf]
      %v7430 = vld [vmem:[%s5784 + $0x40] sm:$0xf]
      %v7431 = vld [vmem:[%s5784 + $0x44] sm:$0x1]
      %v7432 = vld [vmem:[%s5784 + $0x48] sm:$0xf]
      %v7433 = vld [vmem:[%s5784 + $0x4c] sm:$0xf]
      %v7434 = vld [vmem:[%s5784 + $0x50] sm:$0x1]
      %v7435 = vld [vmem:[%s5784 + $0x54] sm:$0xf]
      %v7436 = vld [vmem:[%s5784 + $0x58] sm:$0xf]
      %v7437 = vld [vmem:[%s5784 + $0x5c] sm:$0x1]
      %v7438 = vld [vmem:[%s5784 + $0x60] sm:$0xf]
      %v7439 = vld [vmem:[%s5784 + $0x64] sm:$0xf]
      %v7440 = vld [vmem:[%s5784 + $0x68] sm:$0x1]
      %v7441 = vld [vmem:[%s5784 + $0x6c] sm:$0xf]
      %v7442 = vld [vmem:[%s5784 + $0x70] sm:$0xf]
      %v7443 = vld [vmem:[%s5784 + $0x74] sm:$0x1]
      %v7444 = vld [vmem:[%s5784 + $0x78] sm:$0xf]
      %v7445 = vld [vmem:[%s5784 + $0x7c] sm:$0xf]
      %v7446 = vld [vmem:[%s5784 + $0x80] sm:$0x1]
      %v7447 = vld [vmem:[%s5784 + $0x84] sm:$0xf]
      %v7448 = vld [vmem:[%s5784 + $0x88] sm:$0xf]
      %v7449 = vld [vmem:[%s5784 + $0x8c] sm:$0x1]
      %v7450 = vld [vmem:[%s5784 + $0x90] sm:$0xf]
      %v7451 = vld [vmem:[%s5784 + $0x94] sm:$0xf]
      %v7452 = vld [vmem:[%s5784 + $0x98] sm:$0x1]
      %v7453 = vld [vmem:[%s5784 + $0x9c] sm:$0xf]
      %v7454 = vld [vmem:[%s5784 + $0xa0] sm:$0xf]
      %v7455 = vld [vmem:[%s5784 + $0xa4] sm:$0x1]
      %v7456 = vld [vmem:[%s5784 + $0xa8] sm:$0xf]
      %v7457 = vld [vmem:[%s5784 + $0xac] sm:$0xf]
      %v7458 = vld [vmem:[%s5784 + $0xb0] sm:$0x1]
      %v7459 = vld [vmem:[%s5784 + $0xb4] sm:$0xf]
      %v7460 = vld [vmem:[%s5784 + $0xb8] sm:$0xf]
      %v7461 = vld [vmem:[%s5784 + $0xbc] sm:$0x1]
      %v7463 = vshrl.u32 %v7414, 16
      %v7465 = vrot.slane %v7463, 4
      %v7466 = vshll.u32 %v7414, 16
      %v7468 = vrot.slane %v7466, 5
      %v7469 = vor.u32 %v7465, %v7468
      %v7470 = vrot.slane %v7469, 4
      %v7472 = vshll.u32 %v7415, 16
      %v7474 = vrot.slane %v7472, 5
      %v7475 = vsel %vm863, %v7470, %v7474
      %v7476 = vshrl.u32 %v7415, 16
      %v7478 = vrot.slane %v7476, 4
      %v7479 = vor.u32 %v7478, %v7474
      %v7480 = vrot.slane %v7479, 4
      %v7482 = vshll.u32 %v7416, 16
      %v7484 = vrot.slane %v7482, 5
      %v7485 = vsel %vm863, %v7480, %v7484
      %v7487 = vshrl.u32 %v7417, 16
      %v7489 = vrot.slane %v7487, 4
      %v7490 = vshll.u32 %v7417, 16
      %v7492 = vrot.slane %v7490, 5
      %v7493 = vor.u32 %v7489, %v7492
      %v7494 = vrot.slane %v7493, 4
      %v7496 = vshll.u32 %v7418, 16
      %v7498 = vrot.slane %v7496, 5
      %v7499 = vsel %vm863, %v7494, %v7498
      %v7500 = vshrl.u32 %v7418, 16
      %v7502 = vrot.slane %v7500, 4
      %v7503 = vor.u32 %v7502, %v7498
      %v7504 = vrot.slane %v7503, 4
      %v7506 = vshll.u32 %v7419, 16
      %v7508 = vrot.slane %v7506, 5
      %v7509 = vsel %vm863, %v7504, %v7508
      %v7511 = vshrl.u32 %v7420, 16
      %v7513 = vrot.slane %v7511, 4
      %v7514 = vshll.u32 %v7420, 16
      %v7516 = vrot.slane %v7514, 5
      %v7517 = vor.u32 %v7513, %v7516
      %v7518 = vrot.slane %v7517, 4
      %v7520 = vshll.u32 %v7421, 16
      %v7522 = vrot.slane %v7520, 5
      %v7523 = vsel %vm863, %v7518, %v7522
      %v7524 = vshrl.u32 %v7421, 16
      %v7526 = vrot.slane %v7524, 4
      %v7527 = vor.u32 %v7526, %v7522
      %v7528 = vrot.slane %v7527, 4
      %v7530 = vshll.u32 %v7422, 16
      %v7532 = vrot.slane %v7530, 5
      %v7533 = vsel %vm863, %v7528, %v7532
      %v7535 = vshrl.u32 %v7423, 16
      %v7537 = vrot.slane %v7535, 4
      %v7538 = vshll.u32 %v7423, 16
      %v7540 = vrot.slane %v7538, 5
      %v7541 = vor.u32 %v7537, %v7540
      %v7542 = vrot.slane %v7541, 4
      %v7544 = vshll.u32 %v7424, 16
      %v7546 = vrot.slane %v7544, 5
      %v7547 = vsel %vm863, %v7542, %v7546
      %v7548 = vshrl.u32 %v7424, 16
      %v7550 = vrot.slane %v7548, 4
      %v7551 = vor.u32 %v7550, %v7546
      %v7552 = vrot.slane %v7551, 4
      %v7554 = vshll.u32 %v7425, 16
      %v7556 = vrot.slane %v7554, 5
      %v7557 = vsel %vm863, %v7552, %v7556
      %v7559 = vshrl.u32 %v7426, 16
      %v7561 = vrot.slane %v7559, 4
      %v7562 = vshll.u32 %v7426, 16
      %v7564 = vrot.slane %v7562, 5
      %v7565 = vor.u32 %v7561, %v7564
      %v7566 = vrot.slane %v7565, 4
      %v7568 = vshll.u32 %v7427, 16
      %v7570 = vrot.slane %v7568, 5
      %v7571 = vsel %vm863, %v7566, %v7570
      %v7572 = vshrl.u32 %v7427, 16
      %v7574 = vrot.slane %v7572, 4
      %v7575 = vor.u32 %v7574, %v7570
      %v7576 = vrot.slane %v7575, 4
      %v7578 = vshll.u32 %v7428, 16
      %v7580 = vrot.slane %v7578, 5
      %v7581 = vsel %vm863, %v7576, %v7580
      %v7583 = vshrl.u32 %v7429, 16
      %v7585 = vrot.slane %v7583, 4
      %v7586 = vshll.u32 %v7429, 16
      %v7588 = vrot.slane %v7586, 5
      %v7589 = vor.u32 %v7585, %v7588
      %v7590 = vrot.slane %v7589, 4
      %v7592 = vshll.u32 %v7430, 16
      %v7594 = vrot.slane %v7592, 5
      %v7595 = vsel %vm863, %v7590, %v7594
      %v7596 = vshrl.u32 %v7430, 16
      %v7598 = vrot.slane %v7596, 4
      %v7599 = vor.u32 %v7598, %v7594
      %v7600 = vrot.slane %v7599, 4
      %v7602 = vshll.u32 %v7431, 16
      %v7604 = vrot.slane %v7602, 5
      %v7605 = vsel %vm863, %v7600, %v7604
      %v7607 = vshrl.u32 %v7432, 16
      %v7609 = vrot.slane %v7607, 4
      %v7610 = vshll.u32 %v7432, 16
      %v7612 = vrot.slane %v7610, 5
      %v7613 = vor.u32 %v7609, %v7612
      %v7614 = vrot.slane %v7613, 4
      %v7616 = vshll.u32 %v7433, 16
      %v7618 = vrot.slane %v7616, 5
      %v7619 = vsel %vm863, %v7614, %v7618
      %v7620 = vshrl.u32 %v7433, 16
      %v7622 = vrot.slane %v7620, 4
      %v7623 = vor.u32 %v7622, %v7618
      %v7624 = vrot.slane %v7623, 4
      %v7626 = vshll.u32 %v7434, 16
      %v7628 = vrot.slane %v7626, 5
      %v7629 = vsel %vm863, %v7624, %v7628
      %v7631 = vshrl.u32 %v7435, 16
      %v7633 = vrot.slane %v7631, 4
      %v7634 = vshll.u32 %v7435, 16
      %v7636 = vrot.slane %v7634, 5
      %v7637 = vor.u32 %v7633, %v7636
      %v7638 = vrot.slane %v7637, 4
      %v7640 = vshll.u32 %v7436, 16
      %v7642 = vrot.slane %v7640, 5
      %v7643 = vsel %vm863, %v7638, %v7642
      %v7644 = vshrl.u32 %v7436, 16
      %v7646 = vrot.slane %v7644, 4
      %v7647 = vor.u32 %v7646, %v7642
      %v7648 = vrot.slane %v7647, 4
      %v7650 = vshll.u32 %v7437, 16
      %v7652 = vrot.slane %v7650, 5
      %v7653 = vsel %vm863, %v7648, %v7652
      %v7655 = vshrl.u32 %v7438, 16
      %v7657 = vrot.slane %v7655, 4
      %v7658 = vshll.u32 %v7438, 16
      %v7660 = vrot.slane %v7658, 5
      %v7661 = vor.u32 %v7657, %v7660
      %v7662 = vrot.slane %v7661, 4
      %v7664 = vshll.u32 %v7439, 16
      %v7666 = vrot.slane %v7664, 5
      %v7667 = vsel %vm863, %v7662, %v7666
      %v7668 = vshrl.u32 %v7439, 16
      %v7670 = vrot.slane %v7668, 4
      %v7671 = vor.u32 %v7670, %v7666
      %v7672 = vrot.slane %v7671, 4
      %v7674 = vshll.u32 %v7440, 16
      %v7676 = vrot.slane %v7674, 5
      %v7677 = vsel %vm863, %v7672, %v7676
      %v7679 = vshrl.u32 %v7441, 16
      %v7681 = vrot.slane %v7679, 4
      %v7682 = vshll.u32 %v7441, 16
      %v7684 = vrot.slane %v7682, 5
      %v7685 = vor.u32 %v7681, %v7684
      %v7686 = vrot.slane %v7685, 4
      %v7688 = vshll.u32 %v7442, 16
      %v7690 = vrot.slane %v7688, 5
      %v7691 = vsel %vm863, %v7686, %v7690
      %v7692 = vshrl.u32 %v7442, 16
      %v7694 = vrot.slane %v7692, 4
      %v7695 = vor.u32 %v7694, %v7690
      %v7696 = vrot.slane %v7695, 4
      %v7698 = vshll.u32 %v7443, 16
      %v7700 = vrot.slane %v7698, 5
      %v7701 = vsel %vm863, %v7696, %v7700
      %v7703 = vshrl.u32 %v7444, 16
      %v7705 = vrot.slane %v7703, 4
      %v7706 = vshll.u32 %v7444, 16
      %v7708 = vrot.slane %v7706, 5
      %v7709 = vor.u32 %v7705, %v7708
      %v7710 = vrot.slane %v7709, 4
      %v7712 = vshll.u32 %v7445, 16
      %v7714 = vrot.slane %v7712, 5
      %v7715 = vsel %vm863, %v7710, %v7714
      %v7716 = vshrl.u32 %v7445, 16
      %v7718 = vrot.slane %v7716, 4
      %v7719 = vor.u32 %v7718, %v7714
      %v7720 = vrot.slane %v7719, 4
      %v7722 = vshll.u32 %v7446, 16
      %v7724 = vrot.slane %v7722, 5
      %v7725 = vsel %vm863, %v7720, %v7724
      %v7727 = vshrl.u32 %v7447, 16
      %v7729 = vrot.slane %v7727, 4
      %v7730 = vshll.u32 %v7447, 16
      %v7732 = vrot.slane %v7730, 5
      %v7733 = vor.u32 %v7729, %v7732
      %v7734 = vrot.slane %v7733, 4
      %v7736 = vshll.u32 %v7448, 16
      %v7738 = vrot.slane %v7736, 5
      %v7739 = vsel %vm863, %v7734, %v7738
      %v7740 = vshrl.u32 %v7448, 16
      %v7742 = vrot.slane %v7740, 4
      %v7743 = vor.u32 %v7742, %v7738
      %v7744 = vrot.slane %v7743, 4
      %v7746 = vshll.u32 %v7449, 16
      %v7748 = vrot.slane %v7746, 5
      %v7749 = vsel %vm863, %v7744, %v7748
      %v7751 = vshrl.u32 %v7450, 16
      %v7753 = vrot.slane %v7751, 4
      %v7754 = vshll.u32 %v7450, 16
      %v7756 = vrot.slane %v7754, 5
      %v7757 = vor.u32 %v7753, %v7756
      %v7758 = vrot.slane %v7757, 4
      %v7760 = vshll.u32 %v7451, 16
      %v7762 = vrot.slane %v7760, 5
      %v7763 = vsel %vm863, %v7758, %v7762
      %v7764 = vshrl.u32 %v7451, 16
      %v7766 = vrot.slane %v7764, 4
      %v7767 = vor.u32 %v7766, %v7762
      %v7768 = vrot.slane %v7767, 4
      %v7770 = vshll.u32 %v7452, 16
      %v7772 = vrot.slane %v7770, 5
      %v7773 = vsel %vm863, %v7768, %v7772
      %v7775 = vshrl.u32 %v7453, 16
      %v7777 = vrot.slane %v7775, 4
      %v7778 = vshll.u32 %v7453, 16
      %v7780 = vrot.slane %v7778, 5
      %v7781 = vor.u32 %v7777, %v7780
      %v7782 = vrot.slane %v7781, 4
      %v7784 = vshll.u32 %v7454, 16
      %v7786 = vrot.slane %v7784, 5
      %v7787 = vsel %vm863, %v7782, %v7786
      %v7788 = vshrl.u32 %v7454, 16
      %v7790 = vrot.slane %v7788, 4
      %v7791 = vor.u32 %v7790, %v7786
      %v7792 = vrot.slane %v7791, 4
      %v7794 = vshll.u32 %v7455, 16
      %v7796 = vrot.slane %v7794, 5
      %v7797 = vsel %vm863, %v7792, %v7796
      %v7799 = vshrl.u32 %v7456, 16
      %v7801 = vrot.slane %v7799, 4
      %v7802 = vshll.u32 %v7456, 16
      %v7804 = vrot.slane %v7802, 5
      %v7805 = vor.u32 %v7801, %v7804
      %v7806 = vrot.slane %v7805, 4
      %v7808 = vshll.u32 %v7457, 16
      %v7810 = vrot.slane %v7808, 5
      %v7811 = vsel %vm863, %v7806, %v7810
      %v7812 = vshrl.u32 %v7457, 16
      %v7814 = vrot.slane %v7812, 4
      %v7815 = vor.u32 %v7814, %v7810
      %v7816 = vrot.slane %v7815, 4
      %v7818 = vshll.u32 %v7458, 16
      %v7820 = vrot.slane %v7818, 5
      %v7821 = vsel %vm863, %v7816, %v7820
      %v7823 = vshrl.u32 %v7459, 16
      %v7825 = vrot.slane %v7823, 4
      %v7826 = vshll.u32 %v7459, 16
      %v7828 = vrot.slane %v7826, 5
      %v7829 = vor.u32 %v7825, %v7828
      %v7830 = vrot.slane %v7829, 4
      %v7832 = vshll.u32 %v7460, 16
      %v7834 = vrot.slane %v7832, 5
      %v7835 = vsel %vm863, %v7830, %v7834
      %v7836 = vshrl.u32 %v7460, 16
      %v7838 = vrot.slane %v7836, 4
      %v7839 = vor.u32 %v7838, %v7834
      %v7840 = vrot.slane %v7839, 4
      %v7842 = vshll.u32 %v7461, 16
      %v7844 = vrot.slane %v7842, 5
      %v7845 = vsel %vm863, %v7840, %v7844
      %s7846 = scalar_lea.vmem %s3, 16
      %v7847 = vld [vmem:[%s7846] sm:$0xf]
      %v7848 = vunpack.c.l.b16 %v7475
      %v7849 = vunpack.c.l.b16 %v7485
      %v7850 = vunpack.c.l.b16 %v7499
      %v7851 = vunpack.c.l.b16 %v7509
      %v7852 = vunpack.c.l.b16 %v7523
      %v7853 = vunpack.c.l.b16 %v7533
      %v7854 = vunpack.c.l.b16 %v7547
      %v7855 = vunpack.c.l.b16 %v7557
      %v7856 = vunpack.c.l.b16 %v7571
      %v7857 = vunpack.c.l.b16 %v7581
      %v7858 = vunpack.c.l.b16 %v7595
      %v7859 = vunpack.c.l.b16 %v7605
      %v7860 = vunpack.c.l.b16 %v7619
      %v7861 = vunpack.c.l.b16 %v7629
      %v7862 = vunpack.c.l.b16 %v7643
      %v7863 = vunpack.c.l.b16 %v7653
      %v7864 = vunpack.c.l.b16 %v7667
      %v7865 = vunpack.c.l.b16 %v7677
      %v7866 = vunpack.c.l.b16 %v7691
      %v7867 = vunpack.c.l.b16 %v7701
      %v7868 = vunpack.c.l.b16 %v7715
      %v7869 = vunpack.c.l.b16 %v7725
      %v7870 = vunpack.c.l.b16 %v7739
      %v7871 = vunpack.c.l.b16 %v7749
      %v7872 = vunpack.c.l.b16 %v7763
      %v7873 = vunpack.c.l.b16 %v7773
      %v7874 = vunpack.c.l.b16 %v7787
      %v7875 = vunpack.c.l.b16 %v7797
      %v7876 = vunpack.c.l.b16 %v7811
      %v7877 = vunpack.c.l.b16 %v7821
      %v7878 = vunpack.c.l.b16 %v7835
      %v7879 = vunpack.c.l.b16 %v7845
      %v7880 = vpack.c.b16 %v7849, %v7848
      %v7881 = vpack.c.b16 %v7851, %v7850
      %v7882 = vpack.c.b16 %v7853, %v7852
      %v7883 = vpack.c.b16 %v7855, %v7854
      %v7884 = vpack.c.b16 %v7857, %v7856
      %v7885 = vpack.c.b16 %v7859, %v7858
      %v7886 = vpack.c.b16 %v7861, %v7860
      %v7887 = vpack.c.b16 %v7863, %v7862
      %v7888 = vpack.c.b16 %v7865, %v7864
      %v7889 = vpack.c.b16 %v7867, %v7866
      %v7890 = vpack.c.b16 %v7869, %v7868
      %v7891 = vpack.c.b16 %v7871, %v7870
      %v7892 = vpack.c.b16 %v7873, %v7872
      %v7893 = vpack.c.b16 %v7875, %v7874
      %v7894 = vpack.c.b16 %v7877, %v7876
      %v7895 = vpack.c.b16 %v7879, %v7878
      %v7897 = vsel %vm6384, %v7880, 0
      %v7900 = vsel %vm6384, %v7881, 0
      %v7903 = vsel %vm6384, %v7882, 0
      %v7906 = vsel %vm6384, %v7883, 0
      %v7909 = vsel %vm6384, %v7884, 0
      %v7912 = vsel %vm6384, %v7885, 0
      %v7915 = vsel %vm6384, %v7886, 0
      %v7918 = vsel %vm6384, %v7887, 0
      %v7921 = vsel %vm6384, %v7888, 0
      %v7924 = vsel %vm6384, %v7889, 0
      %v7927 = vsel %vm6384, %v7890, 0
      %v7930 = vsel %vm6384, %v7891, 0
      %v7933 = vsel %vm6384, %v7892, 0
      %v7936 = vsel %vm6384, %v7893, 0
      %v7939 = vsel %vm6384, %v7894, 0
      %v7942 = vsel %vm6384, %v7895, 0
      %v7945 = vsel %vm6433, %v7847, 0
      %7947 = vmatpush.bf16.msra.mxu0 0
      %7948 = vmatpush.bf16.msra.mxu0 0
      %7949 = vmatpush.bf16.msra.mxu0 0
      %7950 = vmatpush.bf16.msra.mxu0 0
      %7951 = vmatpush.bf16.msra.mxu0 0
      %7952 = vmatpush.bf16.msra.mxu0 0
      %7953 = vmatpush.bf16.msra.mxu0 0
      %7954 = vmatpush.bf16.msra.mxu0 %v7945
      %7955 = vmatmul.bf16.gmra.mxu0 %v7897
      %v7956 = vpop.f32.mrf.mxu0
      %v7957 = vadd.f32 0.0, %v7956
      %v7958 = vpop.f32.mrf.mxu0
      %v7959 = vadd.f32 0.0, %v7958
      %7960 = vmatmul.bf16.gmra.mxu0 %v7900
      %v7961 = vpop.f32.mrf.mxu0
      %v7962 = vadd.f32 0.0, %v7961
      %v7963 = vpop.f32.mrf.mxu0
      %v7964 = vadd.f32 0.0, %v7963
      %7965 = vmatmul.bf16.gmra.mxu0 %v7903
      %v7966 = vpop.f32.mrf.mxu0
      %v7967 = vadd.f32 0.0, %v7966
      %v7968 = vpop.f32.mrf.mxu0
      %v7969 = vadd.f32 0.0, %v7968
      %7970 = vmatmul.bf16.gmra.mxu0 %v7906
      %v7971 = vpop.f32.mrf.mxu0
      %v7972 = vadd.f32 0.0, %v7971
      %v7973 = vpop.f32.mrf.mxu0
      %v7974 = vadd.f32 0.0, %v7973
      %7975 = vmatmul.bf16.gmra.mxu0 %v7909
      %v7976 = vpop.f32.mrf.mxu0
      %v7977 = vadd.f32 0.0, %v7976
      %v7978 = vpop.f32.mrf.mxu0
      %v7979 = vadd.f32 0.0, %v7978
      %7980 = vmatmul.bf16.gmra.mxu0 %v7912
      %v7981 = vpop.f32.mrf.mxu0
      %v7982 = vadd.f32 0.0, %v7981
      %v7983 = vpop.f32.mrf.mxu0
      %v7984 = vadd.f32 0.0, %v7983
      %7985 = vmatmul.bf16.gmra.mxu0 %v7915
      %v7986 = vpop.f32.mrf.mxu0
      %v7987 = vadd.f32 0.0, %v7986
      %v7988 = vpop.f32.mrf.mxu0
      %v7989 = vadd.f32 0.0, %v7988
      %7990 = vmatmul.bf16.gmra.mxu0 %v7918
      %v7991 = vpop.f32.mrf.mxu0
      %v7992 = vadd.f32 0.0, %v7991
      %v7993 = vpop.f32.mrf.mxu0
      %v7994 = vadd.f32 0.0, %v7993
      %7995 = vmatmul.bf16.gmra.mxu0 %v7921
      %v7996 = vpop.f32.mrf.mxu0
      %v7997 = vadd.f32 0.0, %v7996
      %v7998 = vpop.f32.mrf.mxu0
      %v7999 = vadd.f32 0.0, %v7998
      %8000 = vmatmul.bf16.gmra.mxu0 %v7924
      %v8001 = vpop.f32.mrf.mxu0
      %v8002 = vadd.f32 0.0, %v8001
      %v8003 = vpop.f32.mrf.mxu0
      %v8004 = vadd.f32 0.0, %v8003
      %8005 = vmatmul.bf16.gmra.mxu0 %v7927
      %v8006 = vpop.f32.mrf.mxu0
      %v8007 = vadd.f32 0.0, %v8006
      %v8008 = vpop.f32.mrf.mxu0
      %v8009 = vadd.f32 0.0, %v8008
      %8010 = vmatmul.bf16.gmra.mxu0 %v7930
      %v8011 = vpop.f32.mrf.mxu0
      %v8012 = vadd.f32 0.0, %v8011
      %v8013 = vpop.f32.mrf.mxu0
      %v8014 = vadd.f32 0.0, %v8013
      %8015 = vmatmul.bf16.gmra.mxu0 %v7933
      %v8016 = vpop.f32.mrf.mxu0
      %v8017 = vadd.f32 0.0, %v8016
      %v8018 = vpop.f32.mrf.mxu0
      %v8019 = vadd.f32 0.0, %v8018
      %8020 = vmatmul.bf16.gmra.mxu0 %v7936
      %v8021 = vpop.f32.mrf.mxu0
      %v8022 = vadd.f32 0.0, %v8021
      %v8023 = vpop.f32.mrf.mxu0
      %v8024 = vadd.f32 0.0, %v8023
      %8025 = vmatmul.bf16.gmra.mxu0 %v7939
      %v8026 = vpop.f32.mrf.mxu0
      %v8027 = vadd.f32 0.0, %v8026
      %v8028 = vpop.f32.mrf.mxu0
      %v8029 = vadd.f32 0.0, %v8028
      %8030 = vmatmul.bf16.gmra.mxu0 %v7942
      %v8031 = vpop.f32.mrf.mxu0
      %v8032 = vadd.f32 0.0, %v8031
      %v8033 = vpop.f32.mrf.mxu0
      %v8034 = vadd.f32 0.0, %v8033
      %8035 = vdwg.mxu0
      %v8036 = vadd.f32 %v7382, %v7957
      %v8037 = vadd.f32 %v7383, %v7959
      %v8038 = vadd.f32 %v7384, %v7962
      %v8039 = vadd.f32 %v7385, %v7964
      %v8040 = vadd.f32 %v7386, %v7967
      %v8041 = vadd.f32 %v7387, %v7969
      %v8042 = vadd.f32 %v7388, %v7972
      %v8043 = vadd.f32 %v7389, %v7974
      %v8044 = vadd.f32 %v7390, %v7977
      %v8045 = vadd.f32 %v7391, %v7979
      %v8046 = vadd.f32 %v7392, %v7982
      %v8047 = vadd.f32 %v7393, %v7984
      %v8048 = vadd.f32 %v7394, %v7987
      %v8049 = vadd.f32 %v7395, %v7989
      %v8050 = vadd.f32 %v7396, %v7992
      %v8051 = vadd.f32 %v7397, %v7994
      %v8052 = vadd.f32 %v7398, %v7997
      %v8053 = vadd.f32 %v7399, %v7999
      %v8054 = vadd.f32 %v7400, %v8002
      %v8055 = vadd.f32 %v7401, %v8004
      %v8056 = vadd.f32 %v7402, %v8007
      %v8057 = vadd.f32 %v7403, %v8009
      %v8058 = vadd.f32 %v7404, %v8012
      %v8059 = vadd.f32 %v7405, %v8014
      %v8060 = vadd.f32 %v7406, %v8017
      %v8061 = vadd.f32 %v7407, %v8019
      %v8062 = vadd.f32 %v7408, %v8022
      %v8063 = vadd.f32 %v7409, %v8024
      %v8064 = vadd.f32 %v7410, %v8027
      %v8065 = vadd.f32 %v7411, %v8029
      %v8066 = vadd.f32 %v7412, %v8032
      %v8067 = vadd.f32 %v7413, %v8034
      %v8068 = vld [vmem:[%s5784] sm:$0xe]
      %v8069 = vld [vmem:[%s5784 + $0xc] sm:$0xe]
      %v8070 = vld [vmem:[%s5784 + $0x18] sm:$0xe]
      %v8071 = vld [vmem:[%s5784 + $0x24] sm:$0xe]
      %v8072 = vld [vmem:[%s5784 + $0x30] sm:$0xe]
      %v8073 = vld [vmem:[%s5784 + $0x3c] sm:$0xe]
      %v8074 = vld [vmem:[%s5784 + $0x48] sm:$0xe]
      %v8075 = vld [vmem:[%s5784 + $0x54] sm:$0xe]
      %v8076 = vld [vmem:[%s5784 + $0x60] sm:$0xe]
      %v8077 = vld [vmem:[%s5784 + $0x6c] sm:$0xe]
      %v8078 = vld [vmem:[%s5784 + $0x78] sm:$0xe]
      %v8079 = vld [vmem:[%s5784 + $0x84] sm:$0xe]
      %v8080 = vld [vmem:[%s5784 + $0x90] sm:$0xe]
      %v8081 = vld [vmem:[%s5784 + $0x9c] sm:$0xe]
      %v8082 = vld [vmem:[%s5784 + $0xa8] sm:$0xe]
      %v8083 = vld [vmem:[%s5784 + $0xb4] sm:$0xe]
      %v8132 = vrot.slane %v8068, 5
      %v8133 = vrot.slane %v8132, 4
      %v8134 = vrot.slane %v7415, 5
      %v8135 = vsel %vm1716, %v8133, %v8134
      %v8136 = vrot.slane %v8134, 4
      %v8137 = vrot.slane %v7416, 5
      %v8138 = vsel %vm1716, %v8136, %v8137
      %v8139 = vrot.slane %v8069, 5
      %v8140 = vrot.slane %v8139, 4
      %v8141 = vrot.slane %v7418, 5
      %v8142 = vsel %vm1716, %v8140, %v8141
      %v8143 = vrot.slane %v8141, 4
      %v8144 = vrot.slane %v7419, 5
      %v8145 = vsel %vm1716, %v8143, %v8144
      %v8146 = vrot.slane %v8070, 5
      %v8147 = vrot.slane %v8146, 4
      %v8148 = vrot.slane %v7421, 5
      %v8149 = vsel %vm1716, %v8147, %v8148
      %v8150 = vrot.slane %v8148, 4
      %v8151 = vrot.slane %v7422, 5
      %v8152 = vsel %vm1716, %v8150, %v8151
      %v8153 = vrot.slane %v8071, 5
      %v8154 = vrot.slane %v8153, 4
      %v8155 = vrot.slane %v7424, 5
      %v8156 = vsel %vm1716, %v8154, %v8155
      %v8157 = vrot.slane %v8155, 4
      %v8158 = vrot.slane %v7425, 5
      %v8159 = vsel %vm1716, %v8157, %v8158
      %v8160 = vrot.slane %v8072, 5
      %v8161 = vrot.slane %v8160, 4
      %v8162 = vrot.slane %v7427, 5
      %v8163 = vsel %vm1716, %v8161, %v8162
      %v8164 = vrot.slane %v8162, 4
      %v8165 = vrot.slane %v7428, 5
      %v8166 = vsel %vm1716, %v8164, %v8165
      %v8167 = vrot.slane %v8073, 5
      %v8168 = vrot.slane %v8167, 4
      %v8169 = vrot.slane %v7430, 5
      %v8170 = vsel %vm1716, %v8168, %v8169
      %v8171 = vrot.slane %v8169, 4
      %v8172 = vrot.slane %v7431, 5
      %v8173 = vsel %vm1716, %v8171, %v8172
      %v8174 = vrot.slane %v8074, 5
      %v8175 = vrot.slane %v8174, 4
      %v8176 = vrot.slane %v7433, 5
      %v8177 = vsel %vm1716, %v8175, %v8176
      %v8178 = vrot.slane %v8176, 4
      %v8179 = vrot.slane %v7434, 5
      %v8180 = vsel %vm1716, %v8178, %v8179
      %v8181 = vrot.slane %v8075, 5
      %v8182 = vrot.slane %v8181, 4
      %v8183 = vrot.slane %v7436, 5
      %v8184 = vsel %vm1716, %v8182, %v8183
      %v8185 = vrot.slane %v8183, 4
      %v8186 = vrot.slane %v7437, 5
      %v8187 = vsel %vm1716, %v8185, %v8186
      %v8188 = vrot.slane %v8076, 5
      %v8189 = vrot.slane %v8188, 4
      %v8190 = vrot.slane %v7439, 5
      %v8191 = vsel %vm1716, %v8189, %v8190
      %v8192 = vrot.slane %v8190, 4
      %v8193 = vrot.slane %v7440, 5
      %v8194 = vsel %vm1716, %v8192, %v8193
      %v8195 = vrot.slane %v8077, 5
      %v8196 = vrot.slane %v8195, 4
      %v8197 = vrot.slane %v7442, 5
      %v8198 = vsel %vm1716, %v8196, %v8197
      %v8199 = vrot.slane %v8197, 4
      %v8200 = vrot.slane %v7443, 5
      %v8201 = vsel %vm1716, %v8199, %v8200
      %v8202 = vrot.slane %v8078, 5
      %v8203 = vrot.slane %v8202, 4
      %v8204 = vrot.slane %v7445, 5
      %v8205 = vsel %vm1716, %v8203, %v8204
      %v8206 = vrot.slane %v8204, 4
      %v8207 = vrot.slane %v7446, 5
      %v8208 = vsel %vm1716, %v8206, %v8207
      %v8209 = vrot.slane %v8079, 5
      %v8210 = vrot.slane %v8209, 4
      %v8211 = vrot.slane %v7448, 5
      %v8212 = vsel %vm1716, %v8210, %v8211
      %v8213 = vrot.slane %v8211, 4
      %v8214 = vrot.slane %v7449, 5
      %v8215 = vsel %vm1716, %v8213, %v8214
      %v8216 = vrot.slane %v8080, 5
      %v8217 = vrot.slane %v8216, 4
      %v8218 = vrot.slane %v7451, 5
      %v8219 = vsel %vm1716, %v8217, %v8218
      %v8220 = vrot.slane %v8218, 4
      %v8221 = vrot.slane %v7452, 5
      %v8222 = vsel %vm1716, %v8220, %v8221
      %v8223 = vrot.slane %v8081, 5
      %v8224 = vrot.slane %v8223, 4
      %v8225 = vrot.slane %v7454, 5
      %v8226 = vsel %vm1716, %v8224, %v8225
      %v8227 = vrot.slane %v8225, 4
      %v8228 = vrot.slane %v7455, 5
      %v8229 = vsel %vm1716, %v8227, %v8228
      %v8230 = vrot.slane %v8082, 5
      %v8231 = vrot.slane %v8230, 4
      %v8232 = vrot.slane %v7457, 5
      %v8233 = vsel %vm1716, %v8231, %v8232
      %v8234 = vrot.slane %v8232, 4
      %v8235 = vrot.slane %v7458, 5
      %v8236 = vsel %vm1716, %v8234, %v8235
      %v8237 = vrot.slane %v8083, 5
      %v8238 = vrot.slane %v8237, 4
      %v8239 = vrot.slane %v7460, 5
      %v8240 = vsel %vm1716, %v8238, %v8239
      %v8241 = vrot.slane %v8239, 4
      %v8242 = vrot.slane %v7461, 5
      %v8243 = vsel %vm1716, %v8241, %v8242
      %s8244 = scalar_lea.vmem %s3, 20
      %v8245 = vld [vmem:[%s8244] sm:$0xf]
      %v8246 = vunpack.c.l.b16 %v8135
      %v8247 = vunpack.c.l.b16 %v8138
      %v8248 = vunpack.c.l.b16 %v8142
      %v8249 = vunpack.c.l.b16 %v8145
      %v8250 = vunpack.c.l.b16 %v8149
      %v8251 = vunpack.c.l.b16 %v8152
      %v8252 = vunpack.c.l.b16 %v8156
      %v8253 = vunpack.c.l.b16 %v8159
      %v8254 = vunpack.c.l.b16 %v8163
      %v8255 = vunpack.c.l.b16 %v8166
      %v8256 = vunpack.c.l.b16 %v8170
      %v8257 = vunpack.c.l.b16 %v8173
      %v8258 = vunpack.c.l.b16 %v8177
      %v8259 = vunpack.c.l.b16 %v8180
      %v8260 = vunpack.c.l.b16 %v8184
      %v8261 = vunpack.c.l.b16 %v8187
      %v8262 = vunpack.c.l.b16 %v8191
      %v8263 = vunpack.c.l.b16 %v8194
      %v8264 = vunpack.c.l.b16 %v8198
      %v8265 = vunpack.c.l.b16 %v8201
      %v8266 = vunpack.c.l.b16 %v8205
      %v8267 = vunpack.c.l.b16 %v8208
      %v8268 = vunpack.c.l.b16 %v8212
      %v8269 = vunpack.c.l.b16 %v8215
      %v8270 = vunpack.c.l.b16 %v8219
      %v8271 = vunpack.c.l.b16 %v8222
      %v8272 = vunpack.c.l.b16 %v8226
      %v8273 = vunpack.c.l.b16 %v8229
      %v8274 = vunpack.c.l.b16 %v8233
      %v8275 = vunpack.c.l.b16 %v8236
      %v8276 = vunpack.c.l.b16 %v8240
      %v8277 = vunpack.c.l.b16 %v8243
      %v8278 = vpack.c.b16 %v8247, %v8246
      %v8279 = vpack.c.b16 %v8249, %v8248
      %v8280 = vpack.c.b16 %v8251, %v8250
      %v8281 = vpack.c.b16 %v8253, %v8252
      %v8282 = vpack.c.b16 %v8255, %v8254
      %v8283 = vpack.c.b16 %v8257, %v8256
      %v8284 = vpack.c.b16 %v8259, %v8258
      %v8285 = vpack.c.b16 %v8261, %v8260
      %v8286 = vpack.c.b16 %v8263, %v8262
      %v8287 = vpack.c.b16 %v8265, %v8264
      %v8288 = vpack.c.b16 %v8267, %v8266
      %v8289 = vpack.c.b16 %v8269, %v8268
      %v8290 = vpack.c.b16 %v8271, %v8270
      %v8291 = vpack.c.b16 %v8273, %v8272
      %v8292 = vpack.c.b16 %v8275, %v8274
      %v8293 = vpack.c.b16 %v8277, %v8276
      %v8295 = vsel %vm6384, %v8278, 0
      %v8298 = vsel %vm6384, %v8279, 0
      %v8301 = vsel %vm6384, %v8280, 0
      %v8304 = vsel %vm6384, %v8281, 0
      %v8307 = vsel %vm6384, %v8282, 0
      %v8310 = vsel %vm6384, %v8283, 0
      %v8313 = vsel %vm6384, %v8284, 0
      %v8316 = vsel %vm6384, %v8285, 0
      %v8319 = vsel %vm6384, %v8286, 0
      %v8322 = vsel %vm6384, %v8287, 0
      %v8325 = vsel %vm6384, %v8288, 0
      %v8328 = vsel %vm6384, %v8289, 0
      %v8331 = vsel %vm6384, %v8290, 0
      %v8334 = vsel %vm6384, %v8291, 0
      %v8337 = vsel %vm6384, %v8292, 0
      %v8340 = vsel %vm6384, %v8293, 0
      %v8343 = vsel %vm6433, %v8245, 0
      %8345 = vmatpush.bf16.msra.mxu0 0
      %8346 = vmatpush.bf16.msra.mxu0 0
      %8347 = vmatpush.bf16.msra.mxu0 0
      %8348 = vmatpush.bf16.msra.mxu0 0
      %8349 = vmatpush.bf16.msra.mxu0 0
      %8350 = vmatpush.bf16.msra.mxu0 0
      %8351 = vmatpush.bf16.msra.mxu0 0
      %8352 = vmatpush.bf16.msra.mxu0 %v8343
      %8353 = vmatmul.bf16.gmra.mxu0 %v8295
      %v8354 = vpop.f32.mrf.mxu0
      %v8355 = vadd.f32 0.0, %v8354
      %v8356 = vpop.f32.mrf.mxu0
      %v8357 = vadd.f32 0.0, %v8356
      %8358 = vmatmul.bf16.gmra.mxu0 %v8298
      %v8359 = vpop.f32.mrf.mxu0
      %v8360 = vadd.f32 0.0, %v8359
      %v8361 = vpop.f32.mrf.mxu0
      %v8362 = vadd.f32 0.0, %v8361
      %8363 = vmatmul.bf16.gmra.mxu0 %v8301
      %v8364 = vpop.f32.mrf.mxu0
      %v8365 = vadd.f32 0.0, %v8364
      %v8366 = vpop.f32.mrf.mxu0
      %v8367 = vadd.f32 0.0, %v8366
      %8368 = vmatmul.bf16.gmra.mxu0 %v8304
      %v8369 = vpop.f32.mrf.mxu0
      %v8370 = vadd.f32 0.0, %v8369
      %v8371 = vpop.f32.mrf.mxu0
      %v8372 = vadd.f32 0.0, %v8371
      %8373 = vmatmul.bf16.gmra.mxu0 %v8307
      %v8374 = vpop.f32.mrf.mxu0
      %v8375 = vadd.f32 0.0, %v8374
      %v8376 = vpop.f32.mrf.mxu0
      %v8377 = vadd.f32 0.0, %v8376
      %8378 = vmatmul.bf16.gmra.mxu0 %v8310
      %v8379 = vpop.f32.mrf.mxu0
      %v8380 = vadd.f32 0.0, %v8379
      %v8381 = vpop.f32.mrf.mxu0
      %v8382 = vadd.f32 0.0, %v8381
      %8383 = vmatmul.bf16.gmra.mxu0 %v8313
      %v8384 = vpop.f32.mrf.mxu0
      %v8385 = vadd.f32 0.0, %v8384
      %v8386 = vpop.f32.mrf.mxu0
      %v8387 = vadd.f32 0.0, %v8386
      %8388 = vmatmul.bf16.gmra.mxu0 %v8316
      %v8389 = vpop.f32.mrf.mxu0
      %v8390 = vadd.f32 0.0, %v8389
      %v8391 = vpop.f32.mrf.mxu0
      %v8392 = vadd.f32 0.0, %v8391
      %8393 = vmatmul.bf16.gmra.mxu0 %v8319
      %v8394 = vpop.f32.mrf.mxu0
      %v8395 = vadd.f32 0.0, %v8394
      %v8396 = vpop.f32.mrf.mxu0
      %v8397 = vadd.f32 0.0, %v8396
      %8398 = vmatmul.bf16.gmra.mxu0 %v8322
      %v8399 = vpop.f32.mrf.mxu0
      %v8400 = vadd.f32 0.0, %v8399
      %v8401 = vpop.f32.mrf.mxu0
      %v8402 = vadd.f32 0.0, %v8401
      %8403 = vmatmul.bf16.gmra.mxu0 %v8325
      %v8404 = vpop.f32.mrf.mxu0
      %v8405 = vadd.f32 0.0, %v8404
      %v8406 = vpop.f32.mrf.mxu0
      %v8407 = vadd.f32 0.0, %v8406
      %8408 = vmatmul.bf16.gmra.mxu0 %v8328
      %v8409 = vpop.f32.mrf.mxu0
      %v8410 = vadd.f32 0.0, %v8409
      %v8411 = vpop.f32.mrf.mxu0
      %v8412 = vadd.f32 0.0, %v8411
      %8413 = vmatmul.bf16.gmra.mxu0 %v8331
      %v8414 = vpop.f32.mrf.mxu0
      %v8415 = vadd.f32 0.0, %v8414
      %v8416 = vpop.f32.mrf.mxu0
      %v8417 = vadd.f32 0.0, %v8416
      %8418 = vmatmul.bf16.gmra.mxu0 %v8334
      %v8419 = vpop.f32.mrf.mxu0
      %v8420 = vadd.f32 0.0, %v8419
      %v8421 = vpop.f32.mrf.mxu0
      %v8422 = vadd.f32 0.0, %v8421
      %8423 = vmatmul.bf16.gmra.mxu0 %v8337
      %v8424 = vpop.f32.mrf.mxu0
      %v8425 = vadd.f32 0.0, %v8424
      %v8426 = vpop.f32.mrf.mxu0
      %v8427 = vadd.f32 0.0, %v8426
      %8428 = vmatmul.bf16.gmra.mxu0 %v8340
      %v8429 = vpop.f32.mrf.mxu0
      %v8430 = vadd.f32 0.0, %v8429
      %v8431 = vpop.f32.mrf.mxu0
      %v8432 = vadd.f32 0.0, %v8431
      %8433 = vdwg.mxu0
      %v8434 = vadd.f32 %v8036, %v8355
      %v8435 = vadd.f32 %v8037, %v8357
      %v8436 = vadd.f32 %v8038, %v8360
      %v8437 = vadd.f32 %v8039, %v8362
      %v8438 = vadd.f32 %v8040, %v8365
      %v8439 = vadd.f32 %v8041, %v8367
      %v8440 = vadd.f32 %v8042, %v8370
      %v8441 = vadd.f32 %v8043, %v8372
      %v8442 = vadd.f32 %v8044, %v8375
      %v8443 = vadd.f32 %v8045, %v8377
      %v8444 = vadd.f32 %v8046, %v8380
      %v8445 = vadd.f32 %v8047, %v8382
      %v8446 = vadd.f32 %v8048, %v8385
      %v8447 = vadd.f32 %v8049, %v8387
      %v8448 = vadd.f32 %v8050, %v8390
      %v8449 = vadd.f32 %v8051, %v8392
      %v8450 = vadd.f32 %v8052, %v8395
      %v8451 = vadd.f32 %v8053, %v8397
      %v8452 = vadd.f32 %v8054, %v8400
      %v8453 = vadd.f32 %v8055, %v8402
      %v8454 = vadd.f32 %v8056, %v8405
      %v8455 = vadd.f32 %v8057, %v8407
      %v8456 = vadd.f32 %v8058, %v8410
      %v8457 = vadd.f32 %v8059, %v8412
      %v8458 = vadd.f32 %v8060, %v8415
      %v8459 = vadd.f32 %v8061, %v8417
      %v8460 = vadd.f32 %v8062, %v8420
      %v8461 = vadd.f32 %v8063, %v8422
      %v8462 = vadd.f32 %v8064, %v8425
      %v8463 = vadd.f32 %v8065, %v8427
      %v8464 = vadd.f32 %v8066, %v8430
      %v8465 = vadd.f32 %v8067, %v8432
      %s8466 = scalar_lea.vmem [#allocation3], 24
      %v8467 = vld [vmem:[%s8466] sm:$0xf]
      %v8468 = vld [vmem:[%s8466 + $0x4] sm:$0xf]
      %v8469 = vld [vmem:[%s8466 + $0xc] sm:$0xf]
      %v8470 = vld [vmem:[%s8466 + $0x10] sm:$0xf]
      %v8471 = vld [vmem:[%s8466 + $0x18] sm:$0xf]
      %v8472 = vld [vmem:[%s8466 + $0x1c] sm:$0xf]
      %v8473 = vld [vmem:[%s8466 + $0x24] sm:$0xf]
      %v8474 = vld [vmem:[%s8466 + $0x28] sm:$0xf]
      %v8475 = vld [vmem:[%s8466 + $0x30] sm:$0xf]
      %v8476 = vld [vmem:[%s8466 + $0x34] sm:$0xf]
      %v8477 = vld [vmem:[%s8466 + $0x3c] sm:$0xf]
      %v8478 = vld [vmem:[%s8466 + $0x40] sm:$0xf]
      %v8479 = vld [vmem:[%s8466 + $0x48] sm:$0xf]
      %v8480 = vld [vmem:[%s8466 + $0x4c] sm:$0xf]
      %v8481 = vld [vmem:[%s8466 + $0x54] sm:$0xf]
      %v8482 = vld [vmem:[%s8466 + $0x58] sm:$0xf]
      %v8483 = vld [vmem:[%s8466 + $0x60] sm:$0xf]
      %v8484 = vld [vmem:[%s8466 + $0x64] sm:$0xf]
      %v8485 = vld [vmem:[%s8466 + $0x6c] sm:$0xf]
      %v8486 = vld [vmem:[%s8466 + $0x70] sm:$0xf]
      %v8487 = vld [vmem:[%s8466 + $0x78] sm:$0xf]
      %v8488 = vld [vmem:[%s8466 + $0x7c] sm:$0xf]
      %v8489 = vld [vmem:[%s8466 + $0x84] sm:$0xf]
      %v8490 = vld [vmem:[%s8466 + $0x88] sm:$0xf]
      %v8491 = vld [vmem:[%s8466 + $0x90] sm:$0xf]
      %v8492 = vld [vmem:[%s8466 + $0x94] sm:$0xf]
      %v8493 = vld [vmem:[%s8466 + $0x9c] sm:$0xf]
      %v8494 = vld [vmem:[%s8466 + $0xa0] sm:$0xf]
      %v8495 = vld [vmem:[%s8466 + $0xa8] sm:$0xf]
      %v8496 = vld [vmem:[%s8466 + $0xac] sm:$0xf]
      %v8497 = vld [vmem:[%s8466 + $0xb4] sm:$0xf]
      %v8498 = vld [vmem:[%s8466 + $0xb8] sm:$0xf]
      %s8499 = scalar_lea.vmem %s3, 24
      %v8500 = vld [vmem:[%s8499] sm:$0xf]
      %v8533 = vunpack.c.l.b16 %v8467
      %v8534 = vunpack.c.l.b16 %v8468
      %v8535 = vunpack.c.l.b16 %v8469
      %v8536 = vunpack.c.l.b16 %v8470
      %v8537 = vunpack.c.l.b16 %v8471
      %v8538 = vunpack.c.l.b16 %v8472
      %v8539 = vunpack.c.l.b16 %v8473
      %v8540 = vunpack.c.l.b16 %v8474
      %v8541 = vunpack.c.l.b16 %v8475
      %v8542 = vunpack.c.l.b16 %v8476
      %v8543 = vunpack.c.l.b16 %v8477
      %v8544 = vunpack.c.l.b16 %v8478
      %v8545 = vunpack.c.l.b16 %v8479
      %v8546 = vunpack.c.l.b16 %v8480
      %v8547 = vunpack.c.l.b16 %v8481
      %v8548 = vunpack.c.l.b16 %v8482
      %v8549 = vunpack.c.l.b16 %v8483
      %v8550 = vunpack.c.l.b16 %v8484
      %v8551 = vunpack.c.l.b16 %v8485
      %v8552 = vunpack.c.l.b16 %v8486
      %v8553 = vunpack.c.l.b16 %v8487
      %v8554 = vunpack.c.l.b16 %v8488
      %v8555 = vunpack.c.l.b16 %v8489
      %v8556 = vunpack.c.l.b16 %v8490
      %v8557 = vunpack.c.l.b16 %v8491
      %v8558 = vunpack.c.l.b16 %v8492
      %v8559 = vunpack.c.l.b16 %v8493
      %v8560 = vunpack.c.l.b16 %v8494
      %v8561 = vunpack.c.l.b16 %v8495
      %v8562 = vunpack.c.l.b16 %v8496
      %v8563 = vunpack.c.l.b16 %v8497
      %v8564 = vunpack.c.l.b16 %v8498
      %v8565 = vpack.c.b16 %v8534, %v8533
      %v8566 = vpack.c.b16 %v8536, %v8535
      %v8567 = vpack.c.b16 %v8538, %v8537
      %v8568 = vpack.c.b16 %v8540, %v8539
      %v8569 = vpack.c.b16 %v8542, %v8541
      %v8570 = vpack.c.b16 %v8544, %v8543
      %v8571 = vpack.c.b16 %v8546, %v8545
      %v8572 = vpack.c.b16 %v8548, %v8547
      %v8573 = vpack.c.b16 %v8550, %v8549
      %v8574 = vpack.c.b16 %v8552, %v8551
      %v8575 = vpack.c.b16 %v8554, %v8553
      %v8576 = vpack.c.b16 %v8556, %v8555
      %v8577 = vpack.c.b16 %v8558, %v8557
      %v8578 = vpack.c.b16 %v8560, %v8559
      %v8579 = vpack.c.b16 %v8562, %v8561
      %v8580 = vpack.c.b16 %v8564, %v8563
      %v8582 = vsel %vm6384, %v8565, 0
      %v8585 = vsel %vm6384, %v8566, 0
      %v8588 = vsel %vm6384, %v8567, 0
      %v8591 = vsel %vm6384, %v8568, 0
      %v8594 = vsel %vm6384, %v8569, 0
      %v8597 = vsel %vm6384, %v8570, 0
      %v8600 = vsel %vm6384, %v8571, 0
      %v8603 = vsel %vm6384, %v8572, 0
      %v8606 = vsel %vm6384, %v8573, 0
      %v8609 = vsel %vm6384, %v8574, 0
      %v8612 = vsel %vm6384, %v8575, 0
      %v8615 = vsel %vm6384, %v8576, 0
      %v8618 = vsel %vm6384, %v8577, 0
      %v8621 = vsel %vm6384, %v8578, 0
      %v8624 = vsel %vm6384, %v8579, 0
      %v8627 = vsel %vm6384, %v8580, 0
      %v8630 = vsel %vm6433, %v8500, 0
      %8632 = vmatpush.bf16.msra.mxu0 0
      %8633 = vmatpush.bf16.msra.mxu0 0
      %8634 = vmatpush.bf16.msra.mxu0 0
      %8635 = vmatpush.bf16.msra.mxu0 0
      %8636 = vmatpush.bf16.msra.mxu0 0
      %8637 = vmatpush.bf16.msra.mxu0 0
      %8638 = vmatpush.bf16.msra.mxu0 0
      %8639 = vmatpush.bf16.msra.mxu0 %v8630
      %8640 = vmatmul.bf16.gmra.mxu0 %v8582
      %v8641 = vpop.f32.mrf.mxu0
      %v8642 = vadd.f32 0.0, %v8641
      %v8643 = vpop.f32.mrf.mxu0
      %v8644 = vadd.f32 0.0, %v8643
      %8645 = vmatmul.bf16.gmra.mxu0 %v8585
      %v8646 = vpop.f32.mrf.mxu0
      %v8647 = vadd.f32 0.0, %v8646
      %v8648 = vpop.f32.mrf.mxu0
      %v8649 = vadd.f32 0.0, %v8648
      %8650 = vmatmul.bf16.gmra.mxu0 %v8588
      %v8651 = vpop.f32.mrf.mxu0
      %v8652 = vadd.f32 0.0, %v8651
      %v8653 = vpop.f32.mrf.mxu0
      %v8654 = vadd.f32 0.0, %v8653
      %8655 = vmatmul.bf16.gmra.mxu0 %v8591
      %v8656 = vpop.f32.mrf.mxu0
      %v8657 = vadd.f32 0.0, %v8656
      %v8658 = vpop.f32.mrf.mxu0
      %v8659 = vadd.f32 0.0, %v8658
      %8660 = vmatmul.bf16.gmra.mxu0 %v8594
      %v8661 = vpop.f32.mrf.mxu0
      %v8662 = vadd.f32 0.0, %v8661
      %v8663 = vpop.f32.mrf.mxu0
      %v8664 = vadd.f32 0.0, %v8663
      %8665 = vmatmul.bf16.gmra.mxu0 %v8597
      %v8666 = vpop.f32.mrf.mxu0
      %v8667 = vadd.f32 0.0, %v8666
      %v8668 = vpop.f32.mrf.mxu0
      %v8669 = vadd.f32 0.0, %v8668
      %8670 = vmatmul.bf16.gmra.mxu0 %v8600
      %v8671 = vpop.f32.mrf.mxu0
      %v8672 = vadd.f32 0.0, %v8671
      %v8673 = vpop.f32.mrf.mxu0
      %v8674 = vadd.f32 0.0, %v8673
      %8675 = vmatmul.bf16.gmra.mxu0 %v8603
      %v8676 = vpop.f32.mrf.mxu0
      %v8677 = vadd.f32 0.0, %v8676
      %v8678 = vpop.f32.mrf.mxu0
      %v8679 = vadd.f32 0.0, %v8678
      %8680 = vmatmul.bf16.gmra.mxu0 %v8606
      %v8681 = vpop.f32.mrf.mxu0
      %v8682 = vadd.f32 0.0, %v8681
      %v8683 = vpop.f32.mrf.mxu0
      %v8684 = vadd.f32 0.0, %v8683
      %8685 = vmatmul.bf16.gmra.mxu0 %v8609
      %v8686 = vpop.f32.mrf.mxu0
      %v8687 = vadd.f32 0.0, %v8686
      %v8688 = vpop.f32.mrf.mxu0
      %v8689 = vadd.f32 0.0, %v8688
      %8690 = vmatmul.bf16.gmra.mxu0 %v8612
      %v8691 = vpop.f32.mrf.mxu0
      %v8692 = vadd.f32 0.0, %v8691
      %v8693 = vpop.f32.mrf.mxu0
      %v8694 = vadd.f32 0.0, %v8693
      %8695 = vmatmul.bf16.gmra.mxu0 %v8615
      %v8696 = vpop.f32.mrf.mxu0
      %v8697 = vadd.f32 0.0, %v8696
      %v8698 = vpop.f32.mrf.mxu0
      %v8699 = vadd.f32 0.0, %v8698
      %8700 = vmatmul.bf16.gmra.mxu0 %v8618
      %v8701 = vpop.f32.mrf.mxu0
      %v8702 = vadd.f32 0.0, %v8701
      %v8703 = vpop.f32.mrf.mxu0
      %v8704 = vadd.f32 0.0, %v8703
      %8705 = vmatmul.bf16.gmra.mxu0 %v8621
      %v8706 = vpop.f32.mrf.mxu0
      %v8707 = vadd.f32 0.0, %v8706
      %v8708 = vpop.f32.mrf.mxu0
      %v8709 = vadd.f32 0.0, %v8708
      %8710 = vmatmul.bf16.gmra.mxu0 %v8624
      %v8711 = vpop.f32.mrf.mxu0
      %v8712 = vadd.f32 0.0, %v8711
      %v8713 = vpop.f32.mrf.mxu0
      %v8714 = vadd.f32 0.0, %v8713
      %8715 = vmatmul.bf16.gmra.mxu0 %v8627
      %v8716 = vpop.f32.mrf.mxu0
      %v8717 = vadd.f32 0.0, %v8716
      %v8718 = vpop.f32.mrf.mxu0
      %v8719 = vadd.f32 0.0, %v8718
      %8720 = vdwg.mxu0
      %v8721 = vadd.f32 %v8434, %v8642
      %v8722 = vadd.f32 %v8435, %v8644
      %v8723 = vadd.f32 %v8436, %v8647
      %v8724 = vadd.f32 %v8437, %v8649
      %v8725 = vadd.f32 %v8438, %v8652
      %v8726 = vadd.f32 %v8439, %v8654
      %v8727 = vadd.f32 %v8440, %v8657
      %v8728 = vadd.f32 %v8441, %v8659
      %v8729 = vadd.f32 %v8442, %v8662
      %v8730 = vadd.f32 %v8443, %v8664
      %v8731 = vadd.f32 %v8444, %v8667
      %v8732 = vadd.f32 %v8445, %v8669
      %v8733 = vadd.f32 %v8446, %v8672
      %v8734 = vadd.f32 %v8447, %v8674
      %v8735 = vadd.f32 %v8448, %v8677
      %v8736 = vadd.f32 %v8449, %v8679
      %v8737 = vadd.f32 %v8450, %v8682
      %v8738 = vadd.f32 %v8451, %v8684
      %v8739 = vadd.f32 %v8452, %v8687
      %v8740 = vadd.f32 %v8453, %v8689
      %v8741 = vadd.f32 %v8454, %v8692
      %v8742 = vadd.f32 %v8455, %v8694
      %v8743 = vadd.f32 %v8456, %v8697
      %v8744 = vadd.f32 %v8457, %v8699
      %v8745 = vadd.f32 %v8458, %v8702
      %v8746 = vadd.f32 %v8459, %v8704
      %v8747 = vadd.f32 %v8460, %v8707
      %v8748 = vadd.f32 %v8461, %v8709
      %v8749 = vadd.f32 %v8462, %v8712
      %v8750 = vadd.f32 %v8463, %v8714
      %v8751 = vadd.f32 %v8464, %v8717
      %v8752 = vadd.f32 %v8465, %v8719
      %v8753 = vld [vmem:[%s8466] sm:$0xf]
      %v8754 = vld [vmem:[%s8466 + $0x4] sm:$0xf]
      %v8755 = vld [vmem:[%s8466 + $0x8] sm:$0x1]
      %v8756 = vld [vmem:[%s8466 + $0xc] sm:$0xf]
      %v8757 = vld [vmem:[%s8466 + $0x10] sm:$0xf]
      %v8758 = vld [vmem:[%s8466 + $0x14] sm:$0x1]
      %v8759 = vld [vmem:[%s8466 + $0x18] sm:$0xf]
      %v8760 = vld [vmem:[%s8466 + $0x1c] sm:$0xf]
      %v8761 = vld [vmem:[%s8466 + $0x20] sm:$0x1]
      %v8762 = vld [vmem:[%s8466 + $0x24] sm:$0xf]
      %v8763 = vld [vmem:[%s8466 + $0x28] sm:$0xf]
      %v8764 = vld [vmem:[%s8466 + $0x2c] sm:$0x1]
      %v8765 = vld [vmem:[%s8466 + $0x30] sm:$0xf]
      %v8766 = vld [vmem:[%s8466 + $0x34] sm:$0xf]
      %v8767 = vld [vmem:[%s8466 + $0x38] sm:$0x1]
      %v8768 = vld [vmem:[%s8466 + $0x3c] sm:$0xf]
      %v8769 = vld [vmem:[%s8466 + $0x40] sm:$0xf]
      %v8770 = vld [vmem:[%s8466 + $0x44] sm:$0x1]
      %v8771 = vld [vmem:[%s8466 + $0x48] sm:$0xf]
      %v8772 = vld [vmem:[%s8466 + $0x4c] sm:$0xf]
      %v8773 = vld [vmem:[%s8466 + $0x50] sm:$0x1]
      %v8774 = vld [vmem:[%s8466 + $0x54] sm:$0xf]
      %v8775 = vld [vmem:[%s8466 + $0x58] sm:$0xf]
      %v8776 = vld [vmem:[%s8466 + $0x5c] sm:$0x1]
      %v8777 = vld [vmem:[%s8466 + $0x60] sm:$0xf]
      %v8778 = vld [vmem:[%s8466 + $0x64] sm:$0xf]
      %v8779 = vld [vmem:[%s8466 + $0x68] sm:$0x1]
      %v8780 = vld [vmem:[%s8466 + $0x6c] sm:$0xf]
      %v8781 = vld [vmem:[%s8466 + $0x70] sm:$0xf]
      %v8782 = vld [vmem:[%s8466 + $0x74] sm:$0x1]
      %v8783 = vld [vmem:[%s8466 + $0x78] sm:$0xf]
      %v8784 = vld [vmem:[%s8466 + $0x7c] sm:$0xf]
      %v8785 = vld [vmem:[%s8466 + $0x80] sm:$0x1]
      %v8786 = vld [vmem:[%s8466 + $0x84] sm:$0xf]
      %v8787 = vld [vmem:[%s8466 + $0x88] sm:$0xf]
      %v8788 = vld [vmem:[%s8466 + $0x8c] sm:$0x1]
      %v8789 = vld [vmem:[%s8466 + $0x90] sm:$0xf]
      %v8790 = vld [vmem:[%s8466 + $0x94] sm:$0xf]
      %v8791 = vld [vmem:[%s8466 + $0x98] sm:$0x1]
      %v8792 = vld [vmem:[%s8466 + $0x9c] sm:$0xf]
      %v8793 = vld [vmem:[%s8466 + $0xa0] sm:$0xf]
      %v8794 = vld [vmem:[%s8466 + $0xa4] sm:$0x1]
      %v8795 = vld [vmem:[%s8466 + $0xa8] sm:$0xf]
      %v8796 = vld [vmem:[%s8466 + $0xac] sm:$0xf]
      %v8797 = vld [vmem:[%s8466 + $0xb0] sm:$0x1]
      %v8798 = vld [vmem:[%s8466 + $0xb4] sm:$0xf]
      %v8799 = vld [vmem:[%s8466 + $0xb8] sm:$0xf]
      %v8800 = vld [vmem:[%s8466 + $0xbc] sm:$0x1]
      %v8802 = vshrl.u32 %v8753, 16
      %v8804 = vrot.slane %v8802, 4
      %v8805 = vshll.u32 %v8753, 16
      %v8807 = vrot.slane %v8805, 5
      %v8808 = vor.u32 %v8804, %v8807
      %v8809 = vrot.slane %v8808, 4
      %v8811 = vshll.u32 %v8754, 16
      %v8813 = vrot.slane %v8811, 5
      %v8814 = vsel %vm863, %v8809, %v8813
      %v8815 = vshrl.u32 %v8754, 16
      %v8817 = vrot.slane %v8815, 4
      %v8818 = vor.u32 %v8817, %v8813
      %v8819 = vrot.slane %v8818, 4
      %v8821 = vshll.u32 %v8755, 16
      %v8823 = vrot.slane %v8821, 5
      %v8824 = vsel %vm863, %v8819, %v8823
      %v8826 = vshrl.u32 %v8756, 16
      %v8828 = vrot.slane %v8826, 4
      %v8829 = vshll.u32 %v8756, 16
      %v8831 = vrot.slane %v8829, 5
      %v8832 = vor.u32 %v8828, %v8831
      %v8833 = vrot.slane %v8832, 4
      %v8835 = vshll.u32 %v8757, 16
      %v8837 = vrot.slane %v8835, 5
      %v8838 = vsel %vm863, %v8833, %v8837
      %v8839 = vshrl.u32 %v8757, 16
      %v8841 = vrot.slane %v8839, 4
      %v8842 = vor.u32 %v8841, %v8837
      %v8843 = vrot.slane %v8842, 4
      %v8845 = vshll.u32 %v8758, 16
      %v8847 = vrot.slane %v8845, 5
      %v8848 = vsel %vm863, %v8843, %v8847
      %v8850 = vshrl.u32 %v8759, 16
      %v8852 = vrot.slane %v8850, 4
      %v8853 = vshll.u32 %v8759, 16
      %v8855 = vrot.slane %v8853, 5
      %v8856 = vor.u32 %v8852, %v8855
      %v8857 = vrot.slane %v8856, 4
      %v8859 = vshll.u32 %v8760, 16
      %v8861 = vrot.slane %v8859, 5
      %v8862 = vsel %vm863, %v8857, %v8861
      %v8863 = vshrl.u32 %v8760, 16
      %v8865 = vrot.slane %v8863, 4
      %v8866 = vor.u32 %v8865, %v8861
      %v8867 = vrot.slane %v8866, 4
      %v8869 = vshll.u32 %v8761, 16
      %v8871 = vrot.slane %v8869, 5
      %v8872 = vsel %vm863, %v8867, %v8871
      %v8874 = vshrl.u32 %v8762, 16
      %v8876 = vrot.slane %v8874, 4
      %v8877 = vshll.u32 %v8762, 16
      %v8879 = vrot.slane %v8877, 5
      %v8880 = vor.u32 %v8876, %v8879
      %v8881 = vrot.slane %v8880, 4
      %v8883 = vshll.u32 %v8763, 16
      %v8885 = vrot.slane %v8883, 5
      %v8886 = vsel %vm863, %v8881, %v8885
      %v8887 = vshrl.u32 %v8763, 16
      %v8889 = vrot.slane %v8887, 4
      %v8890 = vor.u32 %v8889, %v8885
      %v8891 = vrot.slane %v8890, 4
      %v8893 = vshll.u32 %v8764, 16
      %v8895 = vrot.slane %v8893, 5
      %v8896 = vsel %vm863, %v8891, %v8895
      %v8898 = vshrl.u32 %v8765, 16
      %v8900 = vrot.slane %v8898, 4
      %v8901 = vshll.u32 %v8765, 16
      %v8903 = vrot.slane %v8901, 5
      %v8904 = vor.u32 %v8900, %v8903
      %v8905 = vrot.slane %v8904, 4
      %v8907 = vshll.u32 %v8766, 16
      %v8909 = vrot.slane %v8907, 5
      %v8910 = vsel %vm863, %v8905, %v8909
      %v8911 = vshrl.u32 %v8766, 16
      %v8913 = vrot.slane %v8911, 4
      %v8914 = vor.u32 %v8913, %v8909
      %v8915 = vrot.slane %v8914, 4
      %v8917 = vshll.u32 %v8767, 16
      %v8919 = vrot.slane %v8917, 5
      %v8920 = vsel %vm863, %v8915, %v8919
      %v8922 = vshrl.u32 %v8768, 16
      %v8924 = vrot.slane %v8922, 4
      %v8925 = vshll.u32 %v8768, 16
      %v8927 = vrot.slane %v8925, 5
      %v8928 = vor.u32 %v8924, %v8927
      %v8929 = vrot.slane %v8928, 4
      %v8931 = vshll.u32 %v8769, 16
      %v8933 = vrot.slane %v8931, 5
      %v8934 = vsel %vm863, %v8929, %v8933
      %v8935 = vshrl.u32 %v8769, 16
      %v8937 = vrot.slane %v8935, 4
      %v8938 = vor.u32 %v8937, %v8933
      %v8939 = vrot.slane %v8938, 4
      %v8941 = vshll.u32 %v8770, 16
      %v8943 = vrot.slane %v8941, 5
      %v8944 = vsel %vm863, %v8939, %v8943
      %v8946 = vshrl.u32 %v8771, 16
      %v8948 = vrot.slane %v8946, 4
      %v8949 = vshll.u32 %v8771, 16
      %v8951 = vrot.slane %v8949, 5
      %v8952 = vor.u32 %v8948, %v8951
      %v8953 = vrot.slane %v8952, 4
      %v8955 = vshll.u32 %v8772, 16
      %v8957 = vrot.slane %v8955, 5
      %v8958 = vsel %vm863, %v8953, %v8957
      %v8959 = vshrl.u32 %v8772, 16
      %v8961 = vrot.slane %v8959, 4
      %v8962 = vor.u32 %v8961, %v8957
      %v8963 = vrot.slane %v8962, 4
      %v8965 = vshll.u32 %v8773, 16
      %v8967 = vrot.slane %v8965, 5
      %v8968 = vsel %vm863, %v8963, %v8967
      %v8970 = vshrl.u32 %v8774, 16
      %v8972 = vrot.slane %v8970, 4
      %v8973 = vshll.u32 %v8774, 16
      %v8975 = vrot.slane %v8973, 5
      %v8976 = vor.u32 %v8972, %v8975
      %v8977 = vrot.slane %v8976, 4
      %v8979 = vshll.u32 %v8775, 16
      %v8981 = vrot.slane %v8979, 5
      %v8982 = vsel %vm863, %v8977, %v8981
      %v8983 = vshrl.u32 %v8775, 16
      %v8985 = vrot.slane %v8983, 4
      %v8986 = vor.u32 %v8985, %v8981
      %v8987 = vrot.slane %v8986, 4
      %v8989 = vshll.u32 %v8776, 16
      %v8991 = vrot.slane %v8989, 5
      %v8992 = vsel %vm863, %v8987, %v8991
      %v8994 = vshrl.u32 %v8777, 16
      %v8996 = vrot.slane %v8994, 4
      %v8997 = vshll.u32 %v8777, 16
      %v8999 = vrot.slane %v8997, 5
      %v9000 = vor.u32 %v8996, %v8999
      %v9001 = vrot.slane %v9000, 4
      %v9003 = vshll.u32 %v8778, 16
      %v9005 = vrot.slane %v9003, 5
      %v9006 = vsel %vm863, %v9001, %v9005
      %v9007 = vshrl.u32 %v8778, 16
      %v9009 = vrot.slane %v9007, 4
      %v9010 = vor.u32 %v9009, %v9005
      %v9011 = vrot.slane %v9010, 4
      %v9013 = vshll.u32 %v8779, 16
      %v9015 = vrot.slane %v9013, 5
      %v9016 = vsel %vm863, %v9011, %v9015
      %v9018 = vshrl.u32 %v8780, 16
      %v9020 = vrot.slane %v9018, 4
      %v9021 = vshll.u32 %v8780, 16
      %v9023 = vrot.slane %v9021, 5
      %v9024 = vor.u32 %v9020, %v9023
      %v9025 = vrot.slane %v9024, 4
      %v9027 = vshll.u32 %v8781, 16
      %v9029 = vrot.slane %v9027, 5
      %v9030 = vsel %vm863, %v9025, %v9029
      %v9031 = vshrl.u32 %v8781, 16
      %v9033 = vrot.slane %v9031, 4
      %v9034 = vor.u32 %v9033, %v9029
      %v9035 = vrot.slane %v9034, 4
      %v9037 = vshll.u32 %v8782, 16
      %v9039 = vrot.slane %v9037, 5
      %v9040 = vsel %vm863, %v9035, %v9039
      %v9042 = vshrl.u32 %v8783, 16
      %v9044 = vrot.slane %v9042, 4
      %v9045 = vshll.u32 %v8783, 16
      %v9047 = vrot.slane %v9045, 5
      %v9048 = vor.u32 %v9044, %v9047
      %v9049 = vrot.slane %v9048, 4
      %v9051 = vshll.u32 %v8784, 16
      %v9053 = vrot.slane %v9051, 5
      %v9054 = vsel %vm863, %v9049, %v9053
      %v9055 = vshrl.u32 %v8784, 16
      %v9057 = vrot.slane %v9055, 4
      %v9058 = vor.u32 %v9057, %v9053
      %v9059 = vrot.slane %v9058, 4
      %v9061 = vshll.u32 %v8785, 16
      %v9063 = vrot.slane %v9061, 5
      %v9064 = vsel %vm863, %v9059, %v9063
      %v9066 = vshrl.u32 %v8786, 16
      %v9068 = vrot.slane %v9066, 4
      %v9069 = vshll.u32 %v8786, 16
      %v9071 = vrot.slane %v9069, 5
      %v9072 = vor.u32 %v9068, %v9071
      %v9073 = vrot.slane %v9072, 4
      %v9075 = vshll.u32 %v8787, 16
      %v9077 = vrot.slane %v9075, 5
      %v9078 = vsel %vm863, %v9073, %v9077
      %v9079 = vshrl.u32 %v8787, 16
      %v9081 = vrot.slane %v9079, 4
      %v9082 = vor.u32 %v9081, %v9077
      %v9083 = vrot.slane %v9082, 4
      %v9085 = vshll.u32 %v8788, 16
      %v9087 = vrot.slane %v9085, 5
      %v9088 = vsel %vm863, %v9083, %v9087
      %v9090 = vshrl.u32 %v8789, 16
      %v9092 = vrot.slane %v9090, 4
      %v9093 = vshll.u32 %v8789, 16
      %v9095 = vrot.slane %v9093, 5
      %v9096 = vor.u32 %v9092, %v9095
      %v9097 = vrot.slane %v9096, 4
      %v9099 = vshll.u32 %v8790, 16
      %v9101 = vrot.slane %v9099, 5
      %v9102 = vsel %vm863, %v9097, %v9101
      %v9103 = vshrl.u32 %v8790, 16
      %v9105 = vrot.slane %v9103, 4
      %v9106 = vor.u32 %v9105, %v9101
      %v9107 = vrot.slane %v9106, 4
      %v9109 = vshll.u32 %v8791, 16
      %v9111 = vrot.slane %v9109, 5
      %v9112 = vsel %vm863, %v9107, %v9111
      %v9114 = vshrl.u32 %v8792, 16
      %v9116 = vrot.slane %v9114, 4
      %v9117 = vshll.u32 %v8792, 16
      %v9119 = vrot.slane %v9117, 5
      %v9120 = vor.u32 %v9116, %v9119
      %v9121 = vrot.slane %v9120, 4
      %v9123 = vshll.u32 %v8793, 16
      %v9125 = vrot.slane %v9123, 5
      %v9126 = vsel %vm863, %v9121, %v9125
      %v9127 = vshrl.u32 %v8793, 16
      %v9129 = vrot.slane %v9127, 4
      %v9130 = vor.u32 %v9129, %v9125
      %v9131 = vrot.slane %v9130, 4
      %v9133 = vshll.u32 %v8794, 16
      %v9135 = vrot.slane %v9133, 5
      %v9136 = vsel %vm863, %v9131, %v9135
      %v9138 = vshrl.u32 %v8795, 16
      %v9140 = vrot.slane %v9138, 4
      %v9141 = vshll.u32 %v8795, 16
      %v9143 = vrot.slane %v9141, 5
      %v9144 = vor.u32 %v9140, %v9143
      %v9145 = vrot.slane %v9144, 4
      %v9147 = vshll.u32 %v8796, 16
      %v9149 = vrot.slane %v9147, 5
      %v9150 = vsel %vm863, %v9145, %v9149
      %v9151 = vshrl.u32 %v8796, 16
      %v9153 = vrot.slane %v9151, 4
      %v9154 = vor.u32 %v9153, %v9149
      %v9155 = vrot.slane %v9154, 4
      %v9157 = vshll.u32 %v8797, 16
      %v9159 = vrot.slane %v9157, 5
      %v9160 = vsel %vm863, %v9155, %v9159
      %v9162 = vshrl.u32 %v8798, 16
      %v9164 = vrot.slane %v9162, 4
      %v9165 = vshll.u32 %v8798, 16
      %v9167 = vrot.slane %v9165, 5
      %v9168 = vor.u32 %v9164, %v9167
      %v9169 = vrot.slane %v9168, 4
      %v9171 = vshll.u32 %v8799, 16
      %v9173 = vrot.slane %v9171, 5
      %v9174 = vsel %vm863, %v9169, %v9173
      %v9175 = vshrl.u32 %v8799, 16
      %v9177 = vrot.slane %v9175, 4
      %v9178 = vor.u32 %v9177, %v9173
      %v9179 = vrot.slane %v9178, 4
      %v9181 = vshll.u32 %v8800, 16
      %v9183 = vrot.slane %v9181, 5
      %v9184 = vsel %vm863, %v9179, %v9183
      %s9185 = scalar_lea.vmem %s3, 28
      %v9186 = vld [vmem:[%s9185] sm:$0xf]
      %v9187 = vunpack.c.l.b16 %v8814
      %v9188 = vunpack.c.l.b16 %v8824
      %v9189 = vunpack.c.l.b16 %v8838
      %v9190 = vunpack.c.l.b16 %v8848
      %v9191 = vunpack.c.l.b16 %v8862
      %v9192 = vunpack.c.l.b16 %v8872
      %v9193 = vunpack.c.l.b16 %v8886
      %v9194 = vunpack.c.l.b16 %v8896
      %v9195 = vunpack.c.l.b16 %v8910
      %v9196 = vunpack.c.l.b16 %v8920
      %v9197 = vunpack.c.l.b16 %v8934
      %v9198 = vunpack.c.l.b16 %v8944
      %v9199 = vunpack.c.l.b16 %v8958
      %v9200 = vunpack.c.l.b16 %v8968
      %v9201 = vunpack.c.l.b16 %v8982
      %v9202 = vunpack.c.l.b16 %v8992
      %v9203 = vunpack.c.l.b16 %v9006
      %v9204 = vunpack.c.l.b16 %v9016
      %v9205 = vunpack.c.l.b16 %v9030
      %v9206 = vunpack.c.l.b16 %v9040
      %v9207 = vunpack.c.l.b16 %v9054
      %v9208 = vunpack.c.l.b16 %v9064
      %v9209 = vunpack.c.l.b16 %v9078
      %v9210 = vunpack.c.l.b16 %v9088
      %v9211 = vunpack.c.l.b16 %v9102
      %v9212 = vunpack.c.l.b16 %v9112
      %v9213 = vunpack.c.l.b16 %v9126
      %v9214 = vunpack.c.l.b16 %v9136
      %v9215 = vunpack.c.l.b16 %v9150
      %v9216 = vunpack.c.l.b16 %v9160
      %v9217 = vunpack.c.l.b16 %v9174
      %v9218 = vunpack.c.l.b16 %v9184
      %v9219 = vpack.c.b16 %v9188, %v9187
      %v9220 = vpack.c.b16 %v9190, %v9189
      %v9221 = vpack.c.b16 %v9192, %v9191
      %v9222 = vpack.c.b16 %v9194, %v9193
      %v9223 = vpack.c.b16 %v9196, %v9195
      %v9224 = vpack.c.b16 %v9198, %v9197
      %v9225 = vpack.c.b16 %v9200, %v9199
      %v9226 = vpack.c.b16 %v9202, %v9201
      %v9227 = vpack.c.b16 %v9204, %v9203
      %v9228 = vpack.c.b16 %v9206, %v9205
      %v9229 = vpack.c.b16 %v9208, %v9207
      %v9230 = vpack.c.b16 %v9210, %v9209
      %v9231 = vpack.c.b16 %v9212, %v9211
      %v9232 = vpack.c.b16 %v9214, %v9213
      %v9233 = vpack.c.b16 %v9216, %v9215
      %v9234 = vpack.c.b16 %v9218, %v9217
      %v9236 = vsel %vm6384, %v9219, 0
      %v9239 = vsel %vm6384, %v9220, 0
      %v9242 = vsel %vm6384, %v9221, 0
      %v9245 = vsel %vm6384, %v9222, 0
      %v9248 = vsel %vm6384, %v9223, 0
      %v9251 = vsel %vm6384, %v9224, 0
      %v9254 = vsel %vm6384, %v9225, 0
      %v9257 = vsel %vm6384, %v9226, 0
      %v9260 = vsel %vm6384, %v9227, 0
      %v9263 = vsel %vm6384, %v9228, 0
      %v9266 = vsel %vm6384, %v9229, 0
      %v9269 = vsel %vm6384, %v9230, 0
      %v9272 = vsel %vm6384, %v9231, 0
      %v9275 = vsel %vm6384, %v9232, 0
      %v9278 = vsel %vm6384, %v9233, 0
      %v9281 = vsel %vm6384, %v9234, 0
      %v9284 = vsel %vm6433, %v9186, 0
      %9286 = vmatpush.bf16.msra.mxu0 0
      %9287 = vmatpush.bf16.msra.mxu0 0
      %9288 = vmatpush.bf16.msra.mxu0 0
      %9289 = vmatpush.bf16.msra.mxu0 0
      %9290 = vmatpush.bf16.msra.mxu0 0
      %9291 = vmatpush.bf16.msra.mxu0 0
      %9292 = vmatpush.bf16.msra.mxu0 0
      %9293 = vmatpush.bf16.msra.mxu0 %v9284
      %9294 = vmatmul.bf16.gmra.mxu0 %v9236
      %v9295 = vpop.f32.mrf.mxu0
      %v9296 = vadd.f32 0.0, %v9295
      %v9297 = vpop.f32.mrf.mxu0
      %v9298 = vadd.f32 0.0, %v9297
      %9299 = vmatmul.bf16.gmra.mxu0 %v9239
      %v9300 = vpop.f32.mrf.mxu0
      %v9301 = vadd.f32 0.0, %v9300
      %v9302 = vpop.f32.mrf.mxu0
      %v9303 = vadd.f32 0.0, %v9302
      %9304 = vmatmul.bf16.gmra.mxu0 %v9242
      %v9305 = vpop.f32.mrf.mxu0
      %v9306 = vadd.f32 0.0, %v9305
      %v9307 = vpop.f32.mrf.mxu0
      %v9308 = vadd.f32 0.0, %v9307
      %9309 = vmatmul.bf16.gmra.mxu0 %v9245
      %v9310 = vpop.f32.mrf.mxu0
      %v9311 = vadd.f32 0.0, %v9310
      %v9312 = vpop.f32.mrf.mxu0
      %v9313 = vadd.f32 0.0, %v9312
      %9314 = vmatmul.bf16.gmra.mxu0 %v9248
      %v9315 = vpop.f32.mrf.mxu0
      %v9316 = vadd.f32 0.0, %v9315
      %v9317 = vpop.f32.mrf.mxu0
      %v9318 = vadd.f32 0.0, %v9317
      %9319 = vmatmul.bf16.gmra.mxu0 %v9251
      %v9320 = vpop.f32.mrf.mxu0
      %v9321 = vadd.f32 0.0, %v9320
      %v9322 = vpop.f32.mrf.mxu0
      %v9323 = vadd.f32 0.0, %v9322
      %9324 = vmatmul.bf16.gmra.mxu0 %v9254
      %v9325 = vpop.f32.mrf.mxu0
      %v9326 = vadd.f32 0.0, %v9325
      %v9327 = vpop.f32.mrf.mxu0
      %v9328 = vadd.f32 0.0, %v9327
      %9329 = vmatmul.bf16.gmra.mxu0 %v9257
      %v9330 = vpop.f32.mrf.mxu0
      %v9331 = vadd.f32 0.0, %v9330
      %v9332 = vpop.f32.mrf.mxu0
      %v9333 = vadd.f32 0.0, %v9332
      %9334 = vmatmul.bf16.gmra.mxu0 %v9260
      %v9335 = vpop.f32.mrf.mxu0
      %v9336 = vadd.f32 0.0, %v9335
      %v9337 = vpop.f32.mrf.mxu0
      %v9338 = vadd.f32 0.0, %v9337
      %9339 = vmatmul.bf16.gmra.mxu0 %v9263
      %v9340 = vpop.f32.mrf.mxu0
      %v9341 = vadd.f32 0.0, %v9340
      %v9342 = vpop.f32.mrf.mxu0
      %v9343 = vadd.f32 0.0, %v9342
      %9344 = vmatmul.bf16.gmra.mxu0 %v9266
      %v9345 = vpop.f32.mrf.mxu0
      %v9346 = vadd.f32 0.0, %v9345
      %v9347 = vpop.f32.mrf.mxu0
      %v9348 = vadd.f32 0.0, %v9347
      %9349 = vmatmul.bf16.gmra.mxu0 %v9269
      %v9350 = vpop.f32.mrf.mxu0
      %v9351 = vadd.f32 0.0, %v9350
      %v9352 = vpop.f32.mrf.mxu0
      %v9353 = vadd.f32 0.0, %v9352
      %9354 = vmatmul.bf16.gmra.mxu0 %v9272
      %v9355 = vpop.f32.mrf.mxu0
      %v9356 = vadd.f32 0.0, %v9355
      %v9357 = vpop.f32.mrf.mxu0
      %v9358 = vadd.f32 0.0, %v9357
      %9359 = vmatmul.bf16.gmra.mxu0 %v9275
      %v9360 = vpop.f32.mrf.mxu0
      %v9361 = vadd.f32 0.0, %v9360
      %v9362 = vpop.f32.mrf.mxu0
      %v9363 = vadd.f32 0.0, %v9362
      %9364 = vmatmul.bf16.gmra.mxu0 %v9278
      %v9365 = vpop.f32.mrf.mxu0
      %v9366 = vadd.f32 0.0, %v9365
      %v9367 = vpop.f32.mrf.mxu0
      %v9368 = vadd.f32 0.0, %v9367
      %9369 = vmatmul.bf16.gmra.mxu0 %v9281
      %v9370 = vpop.f32.mrf.mxu0
      %v9371 = vadd.f32 0.0, %v9370
      %v9372 = vpop.f32.mrf.mxu0
      %v9373 = vadd.f32 0.0, %v9372
      %9374 = vdwg.mxu0
      %v9375 = vadd.f32 %v8721, %v9296
      %v9376 = vadd.f32 %v8722, %v9298
      %v9377 = vadd.f32 %v8723, %v9301
      %v9378 = vadd.f32 %v8724, %v9303
      %v9379 = vadd.f32 %v8725, %v9306
      %v9380 = vadd.f32 %v8726, %v9308
      %v9381 = vadd.f32 %v8727, %v9311
      %v9382 = vadd.f32 %v8728, %v9313
      %v9383 = vadd.f32 %v8729, %v9316
      %v9384 = vadd.f32 %v8730, %v9318
      %v9385 = vadd.f32 %v8731, %v9321
      %v9386 = vadd.f32 %v8732, %v9323
      %v9387 = vadd.f32 %v8733, %v9326
      %v9388 = vadd.f32 %v8734, %v9328
      %v9389 = vadd.f32 %v8735, %v9331
      %v9390 = vadd.f32 %v8736, %v9333
      %v9391 = vadd.f32 %v8737, %v9336
      %v9392 = vadd.f32 %v8738, %v9338
      %v9393 = vadd.f32 %v8739, %v9341
      %v9394 = vadd.f32 %v8740, %v9343
      %v9395 = vadd.f32 %v8741, %v9346
      %v9396 = vadd.f32 %v8742, %v9348
      %v9397 = vadd.f32 %v8743, %v9351
      %v9398 = vadd.f32 %v8744, %v9353
      %v9399 = vadd.f32 %v8745, %v9356
      %v9400 = vadd.f32 %v8746, %v9358
      %v9401 = vadd.f32 %v8747, %v9361
      %v9402 = vadd.f32 %v8748, %v9363
      %v9403 = vadd.f32 %v8749, %v9366
      %v9404 = vadd.f32 %v8750, %v9368
      %v9405 = vadd.f32 %v8751, %v9371
      %v9406 = vadd.f32 %v8752, %v9373
      %v9407 = vld [vmem:[%s8466] sm:$0xe]
      %v9408 = vld [vmem:[%s8466 + $0xc] sm:$0xe]
      %v9409 = vld [vmem:[%s8466 + $0x18] sm:$0xe]
      %v9410 = vld [vmem:[%s8466 + $0x24] sm:$0xe]
      %v9411 = vld [vmem:[%s8466 + $0x30] sm:$0xe]
      %v9412 = vld [vmem:[%s8466 + $0x3c] sm:$0xe]
      %v9413 = vld [vmem:[%s8466 + $0x48] sm:$0xe]
      %v9414 = vld [vmem:[%s8466 + $0x54] sm:$0xe]
      %v9415 = vld [vmem:[%s8466 + $0x60] sm:$0xe]
      %v9416 = vld [vmem:[%s8466 + $0x6c] sm:$0xe]
      %v9417 = vld [vmem:[%s8466 + $0x78] sm:$0xe]
      %v9418 = vld [vmem:[%s8466 + $0x84] sm:$0xe]
      %v9419 = vld [vmem:[%s8466 + $0x90] sm:$0xe]
      %v9420 = vld [vmem:[%s8466 + $0x9c] sm:$0xe]
      %v9421 = vld [vmem:[%s8466 + $0xa8] sm:$0xe]
      %v9422 = vld [vmem:[%s8466 + $0xb4] sm:$0xe]
      %v9471 = vrot.slane %v9407, 5
      %v9472 = vrot.slane %v9471, 4
      %v9473 = vrot.slane %v8754, 5
      %v9474 = vsel %vm1716, %v9472, %v9473
      %v9475 = vrot.slane %v9473, 4
      %v9476 = vrot.slane %v8755, 5
      %v9477 = vsel %vm1716, %v9475, %v9476
      %v9478 = vrot.slane %v9408, 5
      %v9479 = vrot.slane %v9478, 4
      %v9480 = vrot.slane %v8757, 5
      %v9481 = vsel %vm1716, %v9479, %v9480
      %v9482 = vrot.slane %v9480, 4
      %v9483 = vrot.slane %v8758, 5
      %v9484 = vsel %vm1716, %v9482, %v9483
      %v9485 = vrot.slane %v9409, 5
      %v9486 = vrot.slane %v9485, 4
      %v9487 = vrot.slane %v8760, 5
      %v9488 = vsel %vm1716, %v9486, %v9487
      %v9489 = vrot.slane %v9487, 4
      %v9490 = vrot.slane %v8761, 5
      %v9491 = vsel %vm1716, %v9489, %v9490
      %v9492 = vrot.slane %v9410, 5
      %v9493 = vrot.slane %v9492, 4
      %v9494 = vrot.slane %v8763, 5
      %v9495 = vsel %vm1716, %v9493, %v9494
      %v9496 = vrot.slane %v9494, 4
      %v9497 = vrot.slane %v8764, 5
      %v9498 = vsel %vm1716, %v9496, %v9497
      %v9499 = vrot.slane %v9411, 5
      %v9500 = vrot.slane %v9499, 4
      %v9501 = vrot.slane %v8766, 5
      %v9502 = vsel %vm1716, %v9500, %v9501
      %v9503 = vrot.slane %v9501, 4
      %v9504 = vrot.slane %v8767, 5
      %v9505 = vsel %vm1716, %v9503, %v9504
      %v9506 = vrot.slane %v9412, 5
      %v9507 = vrot.slane %v9506, 4
      %v9508 = vrot.slane %v8769, 5
      %v9509 = vsel %vm1716, %v9507, %v9508
      %v9510 = vrot.slane %v9508, 4
      %v9511 = vrot.slane %v8770, 5
      %v9512 = vsel %vm1716, %v9510, %v9511
      %v9513 = vrot.slane %v9413, 5
      %v9514 = vrot.slane %v9513, 4
      %v9515 = vrot.slane %v8772, 5
      %v9516 = vsel %vm1716, %v9514, %v9515
      %v9517 = vrot.slane %v9515, 4
      %v9518 = vrot.slane %v8773, 5
      %v9519 = vsel %vm1716, %v9517, %v9518
      %v9520 = vrot.slane %v9414, 5
      %v9521 = vrot.slane %v9520, 4
      %v9522 = vrot.slane %v8775, 5
      %v9523 = vsel %vm1716, %v9521, %v9522
      %v9524 = vrot.slane %v9522, 4
      %v9525 = vrot.slane %v8776, 5
      %v9526 = vsel %vm1716, %v9524, %v9525
      %v9527 = vrot.slane %v9415, 5
      %v9528 = vrot.slane %v9527, 4
      %v9529 = vrot.slane %v8778, 5
      %v9530 = vsel %vm1716, %v9528, %v9529
      %v9531 = vrot.slane %v9529, 4
      %v9532 = vrot.slane %v8779, 5
      %v9533 = vsel %vm1716, %v9531, %v9532
      %v9534 = vrot.slane %v9416, 5
      %v9535 = vrot.slane %v9534, 4
      %v9536 = vrot.slane %v8781, 5
      %v9537 = vsel %vm1716, %v9535, %v9536
      %v9538 = vrot.slane %v9536, 4
      %v9539 = vrot.slane %v8782, 5
      %v9540 = vsel %vm1716, %v9538, %v9539
      %v9541 = vrot.slane %v9417, 5
      %v9542 = vrot.slane %v9541, 4
      %v9543 = vrot.slane %v8784, 5
      %v9544 = vsel %vm1716, %v9542, %v9543
      %v9545 = vrot.slane %v9543, 4
      %v9546 = vrot.slane %v8785, 5
      %v9547 = vsel %vm1716, %v9545, %v9546
      %v9548 = vrot.slane %v9418, 5
      %v9549 = vrot.slane %v9548, 4
      %v9550 = vrot.slane %v8787, 5
      %v9551 = vsel %vm1716, %v9549, %v9550
      %v9552 = vrot.slane %v9550, 4
      %v9553 = vrot.slane %v8788, 5
      %v9554 = vsel %vm1716, %v9552, %v9553
      %v9555 = vrot.slane %v9419, 5
      %v9556 = vrot.slane %v9555, 4
      %v9557 = vrot.slane %v8790, 5
      %v9558 = vsel %vm1716, %v9556, %v9557
      %v9559 = vrot.slane %v9557, 4
      %v9560 = vrot.slane %v8791, 5
      %v9561 = vsel %vm1716, %v9559, %v9560
      %v9562 = vrot.slane %v9420, 5
      %v9563 = vrot.slane %v9562, 4
      %v9564 = vrot.slane %v8793, 5
      %v9565 = vsel %vm1716, %v9563, %v9564
      %v9566 = vrot.slane %v9564, 4
      %v9567 = vrot.slane %v8794, 5
      %v9568 = vsel %vm1716, %v9566, %v9567
      %v9569 = vrot.slane %v9421, 5
      %v9570 = vrot.slane %v9569, 4
      %v9571 = vrot.slane %v8796, 5
      %v9572 = vsel %vm1716, %v9570, %v9571
      %v9573 = vrot.slane %v9571, 4
      %v9574 = vrot.slane %v8797, 5
      %v9575 = vsel %vm1716, %v9573, %v9574
      %v9576 = vrot.slane %v9422, 5
      %v9577 = vrot.slane %v9576, 4
      %v9578 = vrot.slane %v8799, 5
      %v9579 = vsel %vm1716, %v9577, %v9578
      %v9580 = vrot.slane %v9578, 4
      %v9581 = vrot.slane %v8800, 5
      %v9582 = vsel %vm1716, %v9580, %v9581
      %s9583 = scalar_lea.vmem %s3, 32
      %v9584 = vld [vmem:[%s9583] sm:$0xf]
      %v9585 = vunpack.c.l.b16 %v9474
      %v9586 = vunpack.c.l.b16 %v9477
      %v9587 = vunpack.c.l.b16 %v9481
      %v9588 = vunpack.c.l.b16 %v9484
      %v9589 = vunpack.c.l.b16 %v9488
      %v9590 = vunpack.c.l.b16 %v9491
      %v9591 = vunpack.c.l.b16 %v9495
      %v9592 = vunpack.c.l.b16 %v9498
      %v9593 = vunpack.c.l.b16 %v9502
      %v9594 = vunpack.c.l.b16 %v9505
      %v9595 = vunpack.c.l.b16 %v9509
      %v9596 = vunpack.c.l.b16 %v9512
      %v9597 = vunpack.c.l.b16 %v9516
      %v9598 = vunpack.c.l.b16 %v9519
      %v9599 = vunpack.c.l.b16 %v9523
      %v9600 = vunpack.c.l.b16 %v9526
      %v9601 = vunpack.c.l.b16 %v9530
      %v9602 = vunpack.c.l.b16 %v9533
      %v9603 = vunpack.c.l.b16 %v9537
      %v9604 = vunpack.c.l.b16 %v9540
      %v9605 = vunpack.c.l.b16 %v9544
      %v9606 = vunpack.c.l.b16 %v9547
      %v9607 = vunpack.c.l.b16 %v9551
      %v9608 = vunpack.c.l.b16 %v9554
      %v9609 = vunpack.c.l.b16 %v9558
      %v9610 = vunpack.c.l.b16 %v9561
      %v9611 = vunpack.c.l.b16 %v9565
      %v9612 = vunpack.c.l.b16 %v9568
      %v9613 = vunpack.c.l.b16 %v9572
      %v9614 = vunpack.c.l.b16 %v9575
      %v9615 = vunpack.c.l.b16 %v9579
      %v9616 = vunpack.c.l.b16 %v9582
      %v9617 = vpack.c.b16 %v9586, %v9585
      %v9618 = vpack.c.b16 %v9588, %v9587
      %v9619 = vpack.c.b16 %v9590, %v9589
      %v9620 = vpack.c.b16 %v9592, %v9591
      %v9621 = vpack.c.b16 %v9594, %v9593
      %v9622 = vpack.c.b16 %v9596, %v9595
      %v9623 = vpack.c.b16 %v9598, %v9597
      %v9624 = vpack.c.b16 %v9600, %v9599
      %v9625 = vpack.c.b16 %v9602, %v9601
      %v9626 = vpack.c.b16 %v9604, %v9603
      %v9627 = vpack.c.b16 %v9606, %v9605
      %v9628 = vpack.c.b16 %v9608, %v9607
      %v9629 = vpack.c.b16 %v9610, %v9609
      %v9630 = vpack.c.b16 %v9612, %v9611
      %v9631 = vpack.c.b16 %v9614, %v9613
      %v9632 = vpack.c.b16 %v9616, %v9615
      %v9634 = vsel %vm6384, %v9617, 0
      %v9637 = vsel %vm6384, %v9618, 0
      %v9640 = vsel %vm6384, %v9619, 0
      %v9643 = vsel %vm6384, %v9620, 0
      %v9646 = vsel %vm6384, %v9621, 0
      %v9649 = vsel %vm6384, %v9622, 0
      %v9652 = vsel %vm6384, %v9623, 0
      %v9655 = vsel %vm6384, %v9624, 0
      %v9658 = vsel %vm6384, %v9625, 0
      %v9661 = vsel %vm6384, %v9626, 0
      %v9664 = vsel %vm6384, %v9627, 0
      %v9667 = vsel %vm6384, %v9628, 0
      %v9670 = vsel %vm6384, %v9629, 0
      %v9673 = vsel %vm6384, %v9630, 0
      %v9676 = vsel %vm6384, %v9631, 0
      %v9679 = vsel %vm6384, %v9632, 0
      %v9682 = vsel %vm6433, %v9584, 0
      %9684 = vmatpush.bf16.msra.mxu0 0
      %9685 = vmatpush.bf16.msra.mxu0 0
      %9686 = vmatpush.bf16.msra.mxu0 0
      %9687 = vmatpush.bf16.msra.mxu0 0
      %9688 = vmatpush.bf16.msra.mxu0 0
      %9689 = vmatpush.bf16.msra.mxu0 0
      %9690 = vmatpush.bf16.msra.mxu0 0
      %9691 = vmatpush.bf16.msra.mxu0 %v9682
      %9692 = vmatmul.bf16.gmra.mxu0 %v9634
      %v9693 = vpop.f32.mrf.mxu0
      %v9694 = vadd.f32 0.0, %v9693
      %v9695 = vpop.f32.mrf.mxu0
      %v9696 = vadd.f32 0.0, %v9695
      %9697 = vmatmul.bf16.gmra.mxu0 %v9637
      %v9698 = vpop.f32.mrf.mxu0
      %v9699 = vadd.f32 0.0, %v9698
      %v9700 = vpop.f32.mrf.mxu0
      %v9701 = vadd.f32 0.0, %v9700
      %9702 = vmatmul.bf16.gmra.mxu0 %v9640
      %v9703 = vpop.f32.mrf.mxu0
      %v9704 = vadd.f32 0.0, %v9703
      %v9705 = vpop.f32.mrf.mxu0
      %v9706 = vadd.f32 0.0, %v9705
      %9707 = vmatmul.bf16.gmra.mxu0 %v9643
      %v9708 = vpop.f32.mrf.mxu0
      %v9709 = vadd.f32 0.0, %v9708
      %v9710 = vpop.f32.mrf.mxu0
      %v9711 = vadd.f32 0.0, %v9710
      %9712 = vmatmul.bf16.gmra.mxu0 %v9646
      %v9713 = vpop.f32.mrf.mxu0
      %v9714 = vadd.f32 0.0, %v9713
      %v9715 = vpop.f32.mrf.mxu0
      %v9716 = vadd.f32 0.0, %v9715
      %9717 = vmatmul.bf16.gmra.mxu0 %v9649
      %v9718 = vpop.f32.mrf.mxu0
      %v9719 = vadd.f32 0.0, %v9718
      %v9720 = vpop.f32.mrf.mxu0
      %v9721 = vadd.f32 0.0, %v9720
      %9722 = vmatmul.bf16.gmra.mxu0 %v9652
      %v9723 = vpop.f32.mrf.mxu0
      %v9724 = vadd.f32 0.0, %v9723
      %v9725 = vpop.f32.mrf.mxu0
      %v9726 = vadd.f32 0.0, %v9725
      %9727 = vmatmul.bf16.gmra.mxu0 %v9655
      %v9728 = vpop.f32.mrf.mxu0
      %v9729 = vadd.f32 0.0, %v9728
      %v9730 = vpop.f32.mrf.mxu0
      %v9731 = vadd.f32 0.0, %v9730
      %9732 = vmatmul.bf16.gmra.mxu0 %v9658
      %v9733 = vpop.f32.mrf.mxu0
      %v9734 = vadd.f32 0.0, %v9733
      %v9735 = vpop.f32.mrf.mxu0
      %v9736 = vadd.f32 0.0, %v9735
      %9737 = vmatmul.bf16.gmra.mxu0 %v9661
      %v9738 = vpop.f32.mrf.mxu0
      %v9739 = vadd.f32 0.0, %v9738
      %v9740 = vpop.f32.mrf.mxu0
      %v9741 = vadd.f32 0.0, %v9740
      %9742 = vmatmul.bf16.gmra.mxu0 %v9664
      %v9743 = vpop.f32.mrf.mxu0
      %v9744 = vadd.f32 0.0, %v9743
      %v9745 = vpop.f32.mrf.mxu0
      %v9746 = vadd.f32 0.0, %v9745
      %9747 = vmatmul.bf16.gmra.mxu0 %v9667
      %v9748 = vpop.f32.mrf.mxu0
      %v9749 = vadd.f32 0.0, %v9748
      %v9750 = vpop.f32.mrf.mxu0
      %v9751 = vadd.f32 0.0, %v9750
      %9752 = vmatmul.bf16.gmra.mxu0 %v9670
      %v9753 = vpop.f32.mrf.mxu0
      %v9754 = vadd.f32 0.0, %v9753
      %v9755 = vpop.f32.mrf.mxu0
      %v9756 = vadd.f32 0.0, %v9755
      %9757 = vmatmul.bf16.gmra.mxu0 %v9673
      %v9758 = vpop.f32.mrf.mxu0
      %v9759 = vadd.f32 0.0, %v9758
      %v9760 = vpop.f32.mrf.mxu0
      %v9761 = vadd.f32 0.0, %v9760
      %9762 = vmatmul.bf16.gmra.mxu0 %v9676
      %v9763 = vpop.f32.mrf.mxu0
      %v9764 = vadd.f32 0.0, %v9763
      %v9765 = vpop.f32.mrf.mxu0
      %v9766 = vadd.f32 0.0, %v9765
      %9767 = vmatmul.bf16.gmra.mxu0 %v9679
      %v9768 = vpop.f32.mrf.mxu0
      %v9769 = vadd.f32 0.0, %v9768
      %v9770 = vpop.f32.mrf.mxu0
      %v9771 = vadd.f32 0.0, %v9770
      %9772 = vdwg.mxu0
      %v9773 = vadd.f32 %v9375, %v9694
      %v9774 = vadd.f32 %v9376, %v9696
      %v9775 = vadd.f32 %v9377, %v9699
      %v9776 = vadd.f32 %v9378, %v9701
      %v9777 = vadd.f32 %v9379, %v9704
      %v9778 = vadd.f32 %v9380, %v9706
      %v9779 = vadd.f32 %v9381, %v9709
      %v9780 = vadd.f32 %v9382, %v9711
      %v9781 = vadd.f32 %v9383, %v9714
      %v9782 = vadd.f32 %v9384, %v9716
      %v9783 = vadd.f32 %v9385, %v9719
      %v9784 = vadd.f32 %v9386, %v9721
      %v9785 = vadd.f32 %v9387, %v9724
      %v9786 = vadd.f32 %v9388, %v9726
      %v9787 = vadd.f32 %v9389, %v9729
      %v9788 = vadd.f32 %v9390, %v9731
      %v9789 = vadd.f32 %v9391, %v9734
      %v9790 = vadd.f32 %v9392, %v9736
      %v9791 = vadd.f32 %v9393, %v9739
      %v9792 = vadd.f32 %v9394, %v9741
      %v9793 = vadd.f32 %v9395, %v9744
      %v9794 = vadd.f32 %v9396, %v9746
      %v9795 = vadd.f32 %v9397, %v9749
      %v9796 = vadd.f32 %v9398, %v9751
      %v9797 = vadd.f32 %v9399, %v9754
      %v9798 = vadd.f32 %v9400, %v9756
      %v9799 = vadd.f32 %v9401, %v9759
      %v9800 = vadd.f32 %v9402, %v9761
      %v9801 = vadd.f32 %v9403, %v9764
      %v9802 = vadd.f32 %v9404, %v9766
      %v9803 = vadd.f32 %v9405, %v9769
      %v9804 = vadd.f32 %v9406, %v9771
      %v9805 = vld [vmem:[%s4] sm:$0x1]
      %v9807 = vperm.slane %v9805, 0
      %v9809 = vadd.f32 %v9773, %v9807
      %v9810 = vadd.f32 %v9774, %v9807
      %v9811 = vadd.f32 %v9775, %v9807
      %v9812 = vadd.f32 %v9776, %v9807
      %v9813 = vadd.f32 %v9777, %v9807
      %v9814 = vadd.f32 %v9778, %v9807
      %v9815 = vadd.f32 %v9779, %v9807
      %v9816 = vadd.f32 %v9780, %v9807
      %v9817 = vadd.f32 %v9781, %v9807
      %v9818 = vadd.f32 %v9782, %v9807
      %v9819 = vadd.f32 %v9783, %v9807
      %v9820 = vadd.f32 %v9784, %v9807
      %v9821 = vadd.f32 %v9785, %v9807
      %v9822 = vadd.f32 %v9786, %v9807
      %v9823 = vadd.f32 %v9787, %v9807
      %v9824 = vadd.f32 %v9788, %v9807
      %v9825 = vadd.f32 %v9789, %v9807
      %v9826 = vadd.f32 %v9790, %v9807
      %v9827 = vadd.f32 %v9791, %v9807
      %v9828 = vadd.f32 %v9792, %v9807
      %v9829 = vadd.f32 %v9793, %v9807
      %v9830 = vadd.f32 %v9794, %v9807
      %v9831 = vadd.f32 %v9795, %v9807
      %v9832 = vadd.f32 %v9796, %v9807
      %v9833 = vadd.f32 %v9797, %v9807
      %v9834 = vadd.f32 %v9798, %v9807
      %v9835 = vadd.f32 %v9799, %v9807
      %v9836 = vadd.f32 %v9800, %v9807
      %v9837 = vadd.f32 %v9801, %v9807
      %v9838 = vadd.f32 %v9802, %v9807
      %v9839 = vadd.f32 %v9803, %v9807
      %v9840 = vadd.f32 %v9804, %v9807
      %v9841 = vxor.u32 %v9809, 2147483648
      %v9842 = vxor.u32 %v9810, 2147483648
      %v9843 = vxor.u32 %v9811, 2147483648
      %v9844 = vxor.u32 %v9812, 2147483648
      %v9845 = vxor.u32 %v9813, 2147483648
      %v9846 = vxor.u32 %v9814, 2147483648
      %v9847 = vxor.u32 %v9815, 2147483648
      %v9848 = vxor.u32 %v9816, 2147483648
      %v9849 = vxor.u32 %v9817, 2147483648
      %v9850 = vxor.u32 %v9818, 2147483648
      %v9851 = vxor.u32 %v9819, 2147483648
      %v9852 = vxor.u32 %v9820, 2147483648
      %v9853 = vxor.u32 %v9821, 2147483648
      %v9854 = vxor.u32 %v9822, 2147483648
      %v9855 = vxor.u32 %v9823, 2147483648
      %v9856 = vxor.u32 %v9824, 2147483648
      %v9857 = vxor.u32 %v9825, 2147483648
      %v9858 = vxor.u32 %v9826, 2147483648
      %v9859 = vxor.u32 %v9827, 2147483648
      %v9860 = vxor.u32 %v9828, 2147483648
      %v9861 = vxor.u32 %v9829, 2147483648
      %v9862 = vxor.u32 %v9830, 2147483648
      %v9863 = vxor.u32 %v9831, 2147483648
      %v9864 = vxor.u32 %v9832, 2147483648
      %v9865 = vxor.u32 %v9833, 2147483648
      %v9866 = vxor.u32 %v9834, 2147483648
      %v9867 = vxor.u32 %v9835, 2147483648
      %v9868 = vxor.u32 %v9836, 2147483648
      %v9869 = vxor.u32 %v9837, 2147483648
      %v9870 = vxor.u32 %v9838, 2147483648
      %v9871 = vxor.u32 %v9839, 2147483648
      %v9872 = vxor.u32 %v9840, 2147483648
      %v9873 = vmul.f32 %v9841, 1.442695
      %v9874 = vpow.pop %v9873
      %v9875 = vmul.f32 %v9842, 1.442695
      %v9876 = vpow.pop %v9875
      %v9877 = vmul.f32 %v9843, 1.442695
      %v9878 = vpow.pop %v9877
      %v9879 = vmul.f32 %v9844, 1.442695
      %v9880 = vpow.pop %v9879
      %v9881 = vmul.f32 %v9845, 1.442695
      %v9882 = vpow.pop %v9881
      %v9883 = vmul.f32 %v9846, 1.442695
      %v9884 = vpow.pop %v9883
      %v9885 = vmul.f32 %v9847, 1.442695
      %v9886 = vpow.pop %v9885
      %v9887 = vmul.f32 %v9848, 1.442695
      %v9888 = vpow.pop %v9887
      %v9889 = vmul.f32 %v9849, 1.442695
      %v9890 = vpow.pop %v9889
      %v9891 = vmul.f32 %v9850, 1.442695
      %v9892 = vpow.pop %v9891
      %v9893 = vmul.f32 %v9851, 1.442695
      %v9894 = vpow.pop %v9893
      %v9895 = vmul.f32 %v9852, 1.442695
      %v9896 = vpow.pop %v9895
      %v9897 = vmul.f32 %v9853, 1.442695
      %v9898 = vpow.pop %v9897
      %v9899 = vmul.f32 %v9854, 1.442695
      %v9900 = vpow.pop %v9899
      %v9901 = vmul.f32 %v9855, 1.442695
      %v9902 = vpow.pop %v9901
      %v9903 = vmul.f32 %v9856, 1.442695
      %v9904 = vpow.pop %v9903
      %v9905 = vmul.f32 %v9857, 1.442695
      %v9906 = vpow.pop %v9905
      %v9907 = vmul.f32 %v9858, 1.442695
      %v9908 = vpow.pop %v9907
      %v9909 = vmul.f32 %v9859, 1.442695
      %v9910 = vpow.pop %v9909
      %v9911 = vmul.f32 %v9860, 1.442695
      %v9912 = vpow.pop %v9911
      %v9913 = vmul.f32 %v9861, 1.442695
      %v9914 = vpow.pop %v9913
      %v9915 = vmul.f32 %v9862, 1.442695
      %v9916 = vpow.pop %v9915
      %v9917 = vmul.f32 %v9863, 1.442695
      %v9918 = vpow.pop %v9917
      %v9919 = vmul.f32 %v9864, 1.442695
      %v9920 = vpow.pop %v9919
      %v9921 = vmul.f32 %v9865, 1.442695
      %v9922 = vpow.pop %v9921
      %v9923 = vmul.f32 %v9866, 1.442695
      %v9924 = vpow.pop %v9923
      %v9925 = vmul.f32 %v9867, 1.442695
      %v9926 = vpow.pop %v9925
      %v9927 = vmul.f32 %v9868, 1.442695
      %v9928 = vpow.pop %v9927
      %v9929 = vmul.f32 %v9869, 1.442695
      %v9930 = vpow.pop %v9929
      %v9931 = vmul.f32 %v9870, 1.442695
      %v9932 = vpow.pop %v9931
      %v9933 = vmul.f32 %v9871, 1.442695
      %v9934 = vpow.pop %v9933
      %v9935 = vmul.f32 %v9872, 1.442695
      %v9936 = vpow.pop %v9935
      %v9937 = vadd.f32 %v9874, 1.0
      %v9938 = vadd.f32 %v9876, 1.0
      %v9939 = vadd.f32 %v9878, 1.0
      %v9940 = vadd.f32 %v9880, 1.0
      %v9941 = vadd.f32 %v9882, 1.0
      %v9942 = vadd.f32 %v9884, 1.0
      %v9943 = vadd.f32 %v9886, 1.0
      %v9944 = vadd.f32 %v9888, 1.0
      %v9945 = vadd.f32 %v9890, 1.0
      %v9946 = vadd.f32 %v9892, 1.0
      %v9947 = vadd.f32 %v9894, 1.0
      %v9948 = vadd.f32 %v9896, 1.0
      %v9949 = vadd.f32 %v9898, 1.0
      %v9950 = vadd.f32 %v9900, 1.0
      %v9951 = vadd.f32 %v9902, 1.0
      %v9952 = vadd.f32 %v9904, 1.0
      %v9953 = vadd.f32 %v9906, 1.0
      %v9954 = vadd.f32 %v9908, 1.0
      %v9955 = vadd.f32 %v9910, 1.0
      %v9956 = vadd.f32 %v9912, 1.0
      %v9957 = vadd.f32 %v9914, 1.0
      %v9958 = vadd.f32 %v9916, 1.0
      %v9959 = vadd.f32 %v9918, 1.0
      %v9960 = vadd.f32 %v9920, 1.0
      %v9961 = vadd.f32 %v9922, 1.0
      %v9962 = vadd.f32 %v9924, 1.0
      %v9963 = vadd.f32 %v9926, 1.0
      %v9964 = vadd.f32 %v9928, 1.0
      %v9965 = vadd.f32 %v9930, 1.0
      %v9966 = vadd.f32 %v9932, 1.0
      %v9967 = vadd.f32 %v9934, 1.0
      %v9968 = vadd.f32 %v9936, 1.0
      %v9969 = vrcp.pop %v9937
      %v9970 = vmul.f32 %v9937, %v9969
      %v9971 = vsub.f32 1.0, %v9970
      %v9972 = vmul.f32 %v9969, %v9971
      %v9973 = vadd.f32 %v9969, %v9972
      %vm9974 = vweird.f32 %v9937
      %vm9975 = vweird.f32 %v9969
      %vm9976 = vmor %vm9974, %vm9975
      %v9977 = vsel %vm9976, %v9969, %v9973
      %v9978 = vand.u32 2147483647, %v9937
      %vm9979 = vcmp.eq.f32.partialorder %v9978, 8.507059e+37
      %v9980 = vand.u32 %v9937, 2147483648
      %v9981 = vor.u32 1.1754944e-38, %v9980
      %v9982 = vsel %vm9979, %v9981, %v9977
      %v9983 = vmul.f32 1.0, %v9982
      %v9984 = vrcp.pop %v9938
      %v9985 = vmul.f32 %v9938, %v9984
      %v9986 = vsub.f32 1.0, %v9985
      %v9987 = vmul.f32 %v9984, %v9986
      %v9988 = vadd.f32 %v9984, %v9987
      %vm9989 = vweird.f32 %v9938
      %vm9990 = vweird.f32 %v9984
      %vm9991 = vmor %vm9989, %vm9990
      %v9992 = vsel %vm9991, %v9984, %v9988
      %v9993 = vand.u32 2147483647, %v9938
      %vm9994 = vcmp.eq.f32.partialorder %v9993, 8.507059e+37
      %v9995 = vand.u32 %v9938, 2147483648
      %v9996 = vor.u32 1.1754944e-38, %v9995
      %v9997 = vsel %vm9994, %v9996, %v9992
      %v9998 = vmul.f32 1.0, %v9997
      %v9999 = vrcp.pop %v9939
      %v10000 = vmul.f32 %v9939, %v9999
      %v10001 = vsub.f32 1.0, %v10000
      %v10002 = vmul.f32 %v9999, %v10001
      %v10003 = vadd.f32 %v9999, %v10002
      %vm10004 = vweird.f32 %v9939
      %vm10005 = vweird.f32 %v9999
      %vm10006 = vmor %vm10004, %vm10005
      %v10007 = vsel %vm10006, %v9999, %v10003
      %v10008 = vand.u32 2147483647, %v9939
      %vm10009 = vcmp.eq.f32.partialorder %v10008, 8.507059e+37
      %v10010 = vand.u32 %v9939, 2147483648
      %v10011 = vor.u32 1.1754944e-38, %v10010
      %v10012 = vsel %vm10009, %v10011, %v10007
      %v10013 = vmul.f32 1.0, %v10012
      %v10014 = vrcp.pop %v9940
      %v10015 = vmul.f32 %v9940, %v10014
      %v10016 = vsub.f32 1.0, %v10015
      %v10017 = vmul.f32 %v10014, %v10016
      %v10018 = vadd.f32 %v10014, %v10017
      %vm10019 = vweird.f32 %v9940
      %vm10020 = vweird.f32 %v10014
      %vm10021 = vmor %vm10019, %vm10020
      %v10022 = vsel %vm10021, %v10014, %v10018
      %v10023 = vand.u32 2147483647, %v9940
      %vm10024 = vcmp.eq.f32.partialorder %v10023, 8.507059e+37
      %v10025 = vand.u32 %v9940, 2147483648
      %v10026 = vor.u32 1.1754944e-38, %v10025
      %v10027 = vsel %vm10024, %v10026, %v10022
      %v10028 = vmul.f32 1.0, %v10027
      %v10029 = vrcp.pop %v9941
      %v10030 = vmul.f32 %v9941, %v10029
      %v10031 = vsub.f32 1.0, %v10030
      %v10032 = vmul.f32 %v10029, %v10031
      %v10033 = vadd.f32 %v10029, %v10032
      %vm10034 = vweird.f32 %v9941
      %vm10035 = vweird.f32 %v10029
      %vm10036 = vmor %vm10034, %vm10035
      %v10037 = vsel %vm10036, %v10029, %v10033
      %v10038 = vand.u32 2147483647, %v9941
      %vm10039 = vcmp.eq.f32.partialorder %v10038, 8.507059e+37
      %v10040 = vand.u32 %v9941, 2147483648
      %v10041 = vor.u32 1.1754944e-38, %v10040
      %v10042 = vsel %vm10039, %v10041, %v10037
      %v10043 = vmul.f32 1.0, %v10042
      %v10044 = vrcp.pop %v9942
      %v10045 = vmul.f32 %v9942, %v10044
      %v10046 = vsub.f32 1.0, %v10045
      %v10047 = vmul.f32 %v10044, %v10046
      %v10048 = vadd.f32 %v10044, %v10047
      %vm10049 = vweird.f32 %v9942
      %vm10050 = vweird.f32 %v10044
      %vm10051 = vmor %vm10049, %vm10050
      %v10052 = vsel %vm10051, %v10044, %v10048
      %v10053 = vand.u32 2147483647, %v9942
      %vm10054 = vcmp.eq.f32.partialorder %v10053, 8.507059e+37
      %v10055 = vand.u32 %v9942, 2147483648
      %v10056 = vor.u32 1.1754944e-38, %v10055
      %v10057 = vsel %vm10054, %v10056, %v10052
      %v10058 = vmul.f32 1.0, %v10057
      %v10059 = vrcp.pop %v9943
      %v10060 = vmul.f32 %v9943, %v10059
      %v10061 = vsub.f32 1.0, %v10060
      %v10062 = vmul.f32 %v10059, %v10061
      %v10063 = vadd.f32 %v10059, %v10062
      %vm10064 = vweird.f32 %v9943
      %vm10065 = vweird.f32 %v10059
      %vm10066 = vmor %vm10064, %vm10065
      %v10067 = vsel %vm10066, %v10059, %v10063
      %v10068 = vand.u32 2147483647, %v9943
      %vm10069 = vcmp.eq.f32.partialorder %v10068, 8.507059e+37
      %v10070 = vand.u32 %v9943, 2147483648
      %v10071 = vor.u32 1.1754944e-38, %v10070
      %v10072 = vsel %vm10069, %v10071, %v10067
      %v10073 = vmul.f32 1.0, %v10072
      %v10074 = vrcp.pop %v9944
      %v10075 = vmul.f32 %v9944, %v10074
      %v10076 = vsub.f32 1.0, %v10075
      %v10077 = vmul.f32 %v10074, %v10076
      %v10078 = vadd.f32 %v10074, %v10077
      %vm10079 = vweird.f32 %v9944
      %vm10080 = vweird.f32 %v10074
      %vm10081 = vmor %vm10079, %vm10080
      %v10082 = vsel %vm10081, %v10074, %v10078
      %v10083 = vand.u32 2147483647, %v9944
      %vm10084 = vcmp.eq.f32.partialorder %v10083, 8.507059e+37
      %v10085 = vand.u32 %v9944, 2147483648
      %v10086 = vor.u32 1.1754944e-38, %v10085
      %v10087 = vsel %vm10084, %v10086, %v10082
      %v10088 = vmul.f32 1.0, %v10087
      %v10089 = vrcp.pop %v9945
      %v10090 = vmul.f32 %v9945, %v10089
      %v10091 = vsub.f32 1.0, %v10090
      %v10092 = vmul.f32 %v10089, %v10091
      %v10093 = vadd.f32 %v10089, %v10092
      %vm10094 = vweird.f32 %v9945
      %vm10095 = vweird.f32 %v10089
      %vm10096 = vmor %vm10094, %vm10095
      %v10097 = vsel %vm10096, %v10089, %v10093
      %v10098 = vand.u32 2147483647, %v9945
      %vm10099 = vcmp.eq.f32.partialorder %v10098, 8.507059e+37
      %v10100 = vand.u32 %v9945, 2147483648
      %v10101 = vor.u32 1.1754944e-38, %v10100
      %v10102 = vsel %vm10099, %v10101, %v10097
      %v10103 = vmul.f32 1.0, %v10102
      %v10104 = vrcp.pop %v9946
      %v10105 = vmul.f32 %v9946, %v10104
      %v10106 = vsub.f32 1.0, %v10105
      %v10107 = vmul.f32 %v10104, %v10106
      %v10108 = vadd.f32 %v10104, %v10107
      %vm10109 = vweird.f32 %v9946
      %vm10110 = vweird.f32 %v10104
      %vm10111 = vmor %vm10109, %vm10110
      %v10112 = vsel %vm10111, %v10104, %v10108
      %v10113 = vand.u32 2147483647, %v9946
      %vm10114 = vcmp.eq.f32.partialorder %v10113, 8.507059e+37
      %v10115 = vand.u32 %v9946, 2147483648
      %v10116 = vor.u32 1.1754944e-38, %v10115
      %v10117 = vsel %vm10114, %v10116, %v10112
      %v10118 = vmul.f32 1.0, %v10117
      %v10119 = vrcp.pop %v9947
      %v10120 = vmul.f32 %v9947, %v10119
      %v10121 = vsub.f32 1.0, %v10120
      %v10122 = vmul.f32 %v10119, %v10121
      %v10123 = vadd.f32 %v10119, %v10122
      %vm10124 = vweird.f32 %v9947
      %vm10125 = vweird.f32 %v10119
      %vm10126 = vmor %vm10124, %vm10125
      %v10127 = vsel %vm10126, %v10119, %v10123
      %v10128 = vand.u32 2147483647, %v9947
      %vm10129 = vcmp.eq.f32.partialorder %v10128, 8.507059e+37
      %v10130 = vand.u32 %v9947, 2147483648
      %v10131 = vor.u32 1.1754944e-38, %v10130
      %v10132 = vsel %vm10129, %v10131, %v10127
      %v10133 = vmul.f32 1.0, %v10132
      %v10134 = vrcp.pop %v9948
      %v10135 = vmul.f32 %v9948, %v10134
      %v10136 = vsub.f32 1.0, %v10135
      %v10137 = vmul.f32 %v10134, %v10136
      %v10138 = vadd.f32 %v10134, %v10137
      %vm10139 = vweird.f32 %v9948
      %vm10140 = vweird.f32 %v10134
      %vm10141 = vmor %vm10139, %vm10140
      %v10142 = vsel %vm10141, %v10134, %v10138
      %v10143 = vand.u32 2147483647, %v9948
      %vm10144 = vcmp.eq.f32.partialorder %v10143, 8.507059e+37
      %v10145 = vand.u32 %v9948, 2147483648
      %v10146 = vor.u32 1.1754944e-38, %v10145
      %v10147 = vsel %vm10144, %v10146, %v10142
      %v10148 = vmul.f32 1.0, %v10147
      %v10149 = vrcp.pop %v9949
      %v10150 = vmul.f32 %v9949, %v10149
      %v10151 = vsub.f32 1.0, %v10150
      %v10152 = vmul.f32 %v10149, %v10151
      %v10153 = vadd.f32 %v10149, %v10152
      %vm10154 = vweird.f32 %v9949
      %vm10155 = vweird.f32 %v10149
      %vm10156 = vmor %vm10154, %vm10155
      %v10157 = vsel %vm10156, %v10149, %v10153
      %v10158 = vand.u32 2147483647, %v9949
      %vm10159 = vcmp.eq.f32.partialorder %v10158, 8.507059e+37
      %v10160 = vand.u32 %v9949, 2147483648
      %v10161 = vor.u32 1.1754944e-38, %v10160
      %v10162 = vsel %vm10159, %v10161, %v10157
      %v10163 = vmul.f32 1.0, %v10162
      %v10164 = vrcp.pop %v9950
      %v10165 = vmul.f32 %v9950, %v10164
      %v10166 = vsub.f32 1.0, %v10165
      %v10167 = vmul.f32 %v10164, %v10166
      %v10168 = vadd.f32 %v10164, %v10167
      %vm10169 = vweird.f32 %v9950
      %vm10170 = vweird.f32 %v10164
      %vm10171 = vmor %vm10169, %vm10170
      %v10172 = vsel %vm10171, %v10164, %v10168
      %v10173 = vand.u32 2147483647, %v9950
      %vm10174 = vcmp.eq.f32.partialorder %v10173, 8.507059e+37
      %v10175 = vand.u32 %v9950, 2147483648
      %v10176 = vor.u32 1.1754944e-38, %v10175
      %v10177 = vsel %vm10174, %v10176, %v10172
      %v10178 = vmul.f32 1.0, %v10177
      %v10179 = vrcp.pop %v9951
      %v10180 = vmul.f32 %v9951, %v10179
      %v10181 = vsub.f32 1.0, %v10180
      %v10182 = vmul.f32 %v10179, %v10181
      %v10183 = vadd.f32 %v10179, %v10182
      %vm10184 = vweird.f32 %v9951
      %vm10185 = vweird.f32 %v10179
      %vm10186 = vmor %vm10184, %vm10185
      %v10187 = vsel %vm10186, %v10179, %v10183
      %v10188 = vand.u32 2147483647, %v9951
      %vm10189 = vcmp.eq.f32.partialorder %v10188, 8.507059e+37
      %v10190 = vand.u32 %v9951, 2147483648
      %v10191 = vor.u32 1.1754944e-38, %v10190
      %v10192 = vsel %vm10189, %v10191, %v10187
      %v10193 = vmul.f32 1.0, %v10192
      %v10194 = vrcp.pop %v9952
      %v10195 = vmul.f32 %v9952, %v10194
      %v10196 = vsub.f32 1.0, %v10195
      %v10197 = vmul.f32 %v10194, %v10196
      %v10198 = vadd.f32 %v10194, %v10197
      %vm10199 = vweird.f32 %v9952
      %vm10200 = vweird.f32 %v10194
      %vm10201 = vmor %vm10199, %vm10200
      %v10202 = vsel %vm10201, %v10194, %v10198
      %v10203 = vand.u32 2147483647, %v9952
      %vm10204 = vcmp.eq.f32.partialorder %v10203, 8.507059e+37
      %v10205 = vand.u32 %v9952, 2147483648
      %v10206 = vor.u32 1.1754944e-38, %v10205
      %v10207 = vsel %vm10204, %v10206, %v10202
      %v10208 = vmul.f32 1.0, %v10207
      %v10209 = vrcp.pop %v9953
      %v10210 = vmul.f32 %v9953, %v10209
      %v10211 = vsub.f32 1.0, %v10210
      %v10212 = vmul.f32 %v10209, %v10211
      %v10213 = vadd.f32 %v10209, %v10212
      %vm10214 = vweird.f32 %v9953
      %vm10215 = vweird.f32 %v10209
      %vm10216 = vmor %vm10214, %vm10215
      %v10217 = vsel %vm10216, %v10209, %v10213
      %v10218 = vand.u32 2147483647, %v9953
      %vm10219 = vcmp.eq.f32.partialorder %v10218, 8.507059e+37
      %v10220 = vand.u32 %v9953, 2147483648
      %v10221 = vor.u32 1.1754944e-38, %v10220
      %v10222 = vsel %vm10219, %v10221, %v10217
      %v10223 = vmul.f32 1.0, %v10222
      %v10224 = vrcp.pop %v9954
      %v10225 = vmul.f32 %v9954, %v10224
      %v10226 = vsub.f32 1.0, %v10225
      %v10227 = vmul.f32 %v10224, %v10226
      %v10228 = vadd.f32 %v10224, %v10227
      %vm10229 = vweird.f32 %v9954
      %vm10230 = vweird.f32 %v10224
      %vm10231 = vmor %vm10229, %vm10230
      %v10232 = vsel %vm10231, %v10224, %v10228
      %v10233 = vand.u32 2147483647, %v9954
      %vm10234 = vcmp.eq.f32.partialorder %v10233, 8.507059e+37
      %v10235 = vand.u32 %v9954, 2147483648
      %v10236 = vor.u32 1.1754944e-38, %v10235
      %v10237 = vsel %vm10234, %v10236, %v10232
      %v10238 = vmul.f32 1.0, %v10237
      %v10239 = vrcp.pop %v9955
      %v10240 = vmul.f32 %v9955, %v10239
      %v10241 = vsub.f32 1.0, %v10240
      %v10242 = vmul.f32 %v10239, %v10241
      %v10243 = vadd.f32 %v10239, %v10242
      %vm10244 = vweird.f32 %v9955
      %vm10245 = vweird.f32 %v10239
      %vm10246 = vmor %vm10244, %vm10245
      %v10247 = vsel %vm10246, %v10239, %v10243
      %v10248 = vand.u32 2147483647, %v9955
      %vm10249 = vcmp.eq.f32.partialorder %v10248, 8.507059e+37
      %v10250 = vand.u32 %v9955, 2147483648
      %v10251 = vor.u32 1.1754944e-38, %v10250
      %v10252 = vsel %vm10249, %v10251, %v10247
      %v10253 = vmul.f32 1.0, %v10252
      %v10254 = vrcp.pop %v9956
      %v10255 = vmul.f32 %v9956, %v10254
      %v10256 = vsub.f32 1.0, %v10255
      %v10257 = vmul.f32 %v10254, %v10256
      %v10258 = vadd.f32 %v10254, %v10257
      %vm10259 = vweird.f32 %v9956
      %vm10260 = vweird.f32 %v10254
      %vm10261 = vmor %vm10259, %vm10260
      %v10262 = vsel %vm10261, %v10254, %v10258
      %v10263 = vand.u32 2147483647, %v9956
      %vm10264 = vcmp.eq.f32.partialorder %v10263, 8.507059e+37
      %v10265 = vand.u32 %v9956, 2147483648
      %v10266 = vor.u32 1.1754944e-38, %v10265
      %v10267 = vsel %vm10264, %v10266, %v10262
      %v10268 = vmul.f32 1.0, %v10267
      %v10269 = vrcp.pop %v9957
      %v10270 = vmul.f32 %v9957, %v10269
      %v10271 = vsub.f32 1.0, %v10270
      %v10272 = vmul.f32 %v10269, %v10271
      %v10273 = vadd.f32 %v10269, %v10272
      %vm10274 = vweird.f32 %v9957
      %vm10275 = vweird.f32 %v10269
      %vm10276 = vmor %vm10274, %vm10275
      %v10277 = vsel %vm10276, %v10269, %v10273
      %v10278 = vand.u32 2147483647, %v9957
      %vm10279 = vcmp.eq.f32.partialorder %v10278, 8.507059e+37
      %v10280 = vand.u32 %v9957, 2147483648
      %v10281 = vor.u32 1.1754944e-38, %v10280
      %v10282 = vsel %vm10279, %v10281, %v10277
      %v10283 = vmul.f32 1.0, %v10282
      %v10284 = vrcp.pop %v9958
      %v10285 = vmul.f32 %v9958, %v10284
      %v10286 = vsub.f32 1.0, %v10285
      %v10287 = vmul.f32 %v10284, %v10286
      %v10288 = vadd.f32 %v10284, %v10287
      %vm10289 = vweird.f32 %v9958
      %vm10290 = vweird.f32 %v10284
      %vm10291 = vmor %vm10289, %vm10290
      %v10292 = vsel %vm10291, %v10284, %v10288
      %v10293 = vand.u32 2147483647, %v9958
      %vm10294 = vcmp.eq.f32.partialorder %v10293, 8.507059e+37
      %v10295 = vand.u32 %v9958, 2147483648
      %v10296 = vor.u32 1.1754944e-38, %v10295
      %v10297 = vsel %vm10294, %v10296, %v10292
      %v10298 = vmul.f32 1.0, %v10297
      %v10299 = vrcp.pop %v9959
      %v10300 = vmul.f32 %v9959, %v10299
      %v10301 = vsub.f32 1.0, %v10300
      %v10302 = vmul.f32 %v10299, %v10301
      %v10303 = vadd.f32 %v10299, %v10302
      %vm10304 = vweird.f32 %v9959
      %vm10305 = vweird.f32 %v10299
      %vm10306 = vmor %vm10304, %vm10305
      %v10307 = vsel %vm10306, %v10299, %v10303
      %v10308 = vand.u32 2147483647, %v9959
      %vm10309 = vcmp.eq.f32.partialorder %v10308, 8.507059e+37
      %v10310 = vand.u32 %v9959, 2147483648
      %v10311 = vor.u32 1.1754944e-38, %v10310
      %v10312 = vsel %vm10309, %v10311, %v10307
      %v10313 = vmul.f32 1.0, %v10312
      %v10314 = vrcp.pop %v9960
      %v10315 = vmul.f32 %v9960, %v10314
      %v10316 = vsub.f32 1.0, %v10315
      %v10317 = vmul.f32 %v10314, %v10316
      %v10318 = vadd.f32 %v10314, %v10317
      %vm10319 = vweird.f32 %v9960
      %vm10320 = vweird.f32 %v10314
      %vm10321 = vmor %vm10319, %vm10320
      %v10322 = vsel %vm10321, %v10314, %v10318
      %v10323 = vand.u32 2147483647, %v9960
      %vm10324 = vcmp.eq.f32.partialorder %v10323, 8.507059e+37
      %v10325 = vand.u32 %v9960, 2147483648
      %v10326 = vor.u32 1.1754944e-38, %v10325
      %v10327 = vsel %vm10324, %v10326, %v10322
      %v10328 = vmul.f32 1.0, %v10327
      %v10329 = vrcp.pop %v9961
      %v10330 = vmul.f32 %v9961, %v10329
      %v10331 = vsub.f32 1.0, %v10330
      %v10332 = vmul.f32 %v10329, %v10331
      %v10333 = vadd.f32 %v10329, %v10332
      %vm10334 = vweird.f32 %v9961
      %vm10335 = vweird.f32 %v10329
      %vm10336 = vmor %vm10334, %vm10335
      %v10337 = vsel %vm10336, %v10329, %v10333
      %v10338 = vand.u32 2147483647, %v9961
      %vm10339 = vcmp.eq.f32.partialorder %v10338, 8.507059e+37
      %v10340 = vand.u32 %v9961, 2147483648
      %v10341 = vor.u32 1.1754944e-38, %v10340
      %v10342 = vsel %vm10339, %v10341, %v10337
      %v10343 = vmul.f32 1.0, %v10342
      %v10344 = vrcp.pop %v9962
      %v10345 = vmul.f32 %v9962, %v10344
      %v10346 = vsub.f32 1.0, %v10345
      %v10347 = vmul.f32 %v10344, %v10346
      %v10348 = vadd.f32 %v10344, %v10347
      %vm10349 = vweird.f32 %v9962
      %vm10350 = vweird.f32 %v10344
      %vm10351 = vmor %vm10349, %vm10350
      %v10352 = vsel %vm10351, %v10344, %v10348
      %v10353 = vand.u32 2147483647, %v9962
      %vm10354 = vcmp.eq.f32.partialorder %v10353, 8.507059e+37
      %v10355 = vand.u32 %v9962, 2147483648
      %v10356 = vor.u32 1.1754944e-38, %v10355
      %v10357 = vsel %vm10354, %v10356, %v10352
      %v10358 = vmul.f32 1.0, %v10357
      %v10359 = vrcp.pop %v9963
      %v10360 = vmul.f32 %v9963, %v10359
      %v10361 = vsub.f32 1.0, %v10360
      %v10362 = vmul.f32 %v10359, %v10361
      %v10363 = vadd.f32 %v10359, %v10362
      %vm10364 = vweird.f32 %v9963
      %vm10365 = vweird.f32 %v10359
      %vm10366 = vmor %vm10364, %vm10365
      %v10367 = vsel %vm10366, %v10359, %v10363
      %v10368 = vand.u32 2147483647, %v9963
      %vm10369 = vcmp.eq.f32.partialorder %v10368, 8.507059e+37
      %v10370 = vand.u32 %v9963, 2147483648
      %v10371 = vor.u32 1.1754944e-38, %v10370
      %v10372 = vsel %vm10369, %v10371, %v10367
      %v10373 = vmul.f32 1.0, %v10372
      %v10374 = vrcp.pop %v9964
      %v10375 = vmul.f32 %v9964, %v10374
      %v10376 = vsub.f32 1.0, %v10375
      %v10377 = vmul.f32 %v10374, %v10376
      %v10378 = vadd.f32 %v10374, %v10377
      %vm10379 = vweird.f32 %v9964
      %vm10380 = vweird.f32 %v10374
      %vm10381 = vmor %vm10379, %vm10380
      %v10382 = vsel %vm10381, %v10374, %v10378
      %v10383 = vand.u32 2147483647, %v9964
      %vm10384 = vcmp.eq.f32.partialorder %v10383, 8.507059e+37
      %v10385 = vand.u32 %v9964, 2147483648
      %v10386 = vor.u32 1.1754944e-38, %v10385
      %v10387 = vsel %vm10384, %v10386, %v10382
      %v10388 = vmul.f32 1.0, %v10387
      %v10389 = vrcp.pop %v9965
      %v10390 = vmul.f32 %v9965, %v10389
      %v10391 = vsub.f32 1.0, %v10390
      %v10392 = vmul.f32 %v10389, %v10391
      %v10393 = vadd.f32 %v10389, %v10392
      %vm10394 = vweird.f32 %v9965
      %vm10395 = vweird.f32 %v10389
      %vm10396 = vmor %vm10394, %vm10395
      %v10397 = vsel %vm10396, %v10389, %v10393
      %v10398 = vand.u32 2147483647, %v9965
      %vm10399 = vcmp.eq.f32.partialorder %v10398, 8.507059e+37
      %v10400 = vand.u32 %v9965, 2147483648
      %v10401 = vor.u32 1.1754944e-38, %v10400
      %v10402 = vsel %vm10399, %v10401, %v10397
      %v10403 = vmul.f32 1.0, %v10402
      %v10404 = vrcp.pop %v9966
      %v10405 = vmul.f32 %v9966, %v10404
      %v10406 = vsub.f32 1.0, %v10405
      %v10407 = vmul.f32 %v10404, %v10406
      %v10408 = vadd.f32 %v10404, %v10407
      %vm10409 = vweird.f32 %v9966
      %vm10410 = vweird.f32 %v10404
      %vm10411 = vmor %vm10409, %vm10410
      %v10412 = vsel %vm10411, %v10404, %v10408
      %v10413 = vand.u32 2147483647, %v9966
      %vm10414 = vcmp.eq.f32.partialorder %v10413, 8.507059e+37
      %v10415 = vand.u32 %v9966, 2147483648
      %v10416 = vor.u32 1.1754944e-38, %v10415
      %v10417 = vsel %vm10414, %v10416, %v10412
      %v10418 = vmul.f32 1.0, %v10417
      %v10419 = vrcp.pop %v9967
      %v10420 = vmul.f32 %v9967, %v10419
      %v10421 = vsub.f32 1.0, %v10420
      %v10422 = vmul.f32 %v10419, %v10421
      %v10423 = vadd.f32 %v10419, %v10422
      %vm10424 = vweird.f32 %v9967
      %vm10425 = vweird.f32 %v10419
      %vm10426 = vmor %vm10424, %vm10425
      %v10427 = vsel %vm10426, %v10419, %v10423
      %v10428 = vand.u32 2147483647, %v9967
      %vm10429 = vcmp.eq.f32.partialorder %v10428, 8.507059e+37
      %v10430 = vand.u32 %v9967, 2147483648
      %v10431 = vor.u32 1.1754944e-38, %v10430
      %v10432 = vsel %vm10429, %v10431, %v10427
      %v10433 = vmul.f32 1.0, %v10432
      %v10434 = vrcp.pop %v9968
      %v10435 = vmul.f32 %v9968, %v10434
      %v10436 = vsub.f32 1.0, %v10435
      %v10437 = vmul.f32 %v10434, %v10436
      %v10438 = vadd.f32 %v10434, %v10437
      %vm10439 = vweird.f32 %v9968
      %vm10440 = vweird.f32 %v10434
      %vm10441 = vmor %vm10439, %vm10440
      %v10442 = vsel %vm10441, %v10434, %v10438
      %v10443 = vand.u32 2147483647, %v9968
      %vm10444 = vcmp.eq.f32.partialorder %v10443, 8.507059e+37
      %v10445 = vand.u32 %v9968, 2147483648
      %v10446 = vor.u32 1.1754944e-38, %v10445
      %v10447 = vsel %vm10444, %v10446, %v10442
      %v10448 = vmul.f32 1.0, %v10447
      %v10449 = vmul.f32 %v9809, %v9983
      %v10450 = vmul.f32 %v9810, %v9998
      %v10451 = vmul.f32 %v9811, %v10013
      %v10452 = vmul.f32 %v9812, %v10028
      %v10453 = vmul.f32 %v9813, %v10043
      %v10454 = vmul.f32 %v9814, %v10058
      %v10455 = vmul.f32 %v9815, %v10073
      %v10456 = vmul.f32 %v9816, %v10088
      %v10457 = vmul.f32 %v9817, %v10103
      %v10458 = vmul.f32 %v9818, %v10118
      %v10459 = vmul.f32 %v9819, %v10133
      %v10460 = vmul.f32 %v9820, %v10148
      %v10461 = vmul.f32 %v9821, %v10163
      %v10462 = vmul.f32 %v9822, %v10178
      %v10463 = vmul.f32 %v9823, %v10193
      %v10464 = vmul.f32 %v9824, %v10208
      %v10465 = vmul.f32 %v9825, %v10223
      %v10466 = vmul.f32 %v9826, %v10238
      %v10467 = vmul.f32 %v9827, %v10253
      %v10468 = vmul.f32 %v9828, %v10268
      %v10469 = vmul.f32 %v9829, %v10283
      %v10470 = vmul.f32 %v9830, %v10298
      %v10471 = vmul.f32 %v9831, %v10313
      %v10472 = vmul.f32 %v9832, %v10328
      %v10473 = vmul.f32 %v9833, %v10343
      %v10474 = vmul.f32 %v9834, %v10358
      %v10475 = vmul.f32 %v9835, %v10373
      %v10476 = vmul.f32 %v9836, %v10388
      %v10477 = vmul.f32 %v9837, %v10403
      %v10478 = vmul.f32 %v9838, %v10418
      %v10479 = vmul.f32 %v9839, %v10433
      %v10480 = vmul.f32 %v9840, %v10448
      %v10481 = vld [vmem:[%s219] sm:$0xf]
      %v10482 = vld [vmem:[%s219 + $0x4] sm:$0xf]
      %v10483 = vld [vmem:[%s219 + $0x8] sm:$0xf]
      %v10484 = vld [vmem:[%s219 + $0xc] sm:$0xf]
      %v10485 = vld [vmem:[%s219 + $0x10] sm:$0xf]
      %v10486 = vld [vmem:[%s219 + $0x14] sm:$0xf]
      %v10487 = vld [vmem:[%s219 + $0x18] sm:$0xf]
      %v10488 = vld [vmem:[%s219 + $0x1c] sm:$0xf]
      %v10489 = vld [vmem:[%s219 + $0x20] sm:$0xf]
      %v10490 = vld [vmem:[%s219 + $0x24] sm:$0xf]
      %v10491 = vld [vmem:[%s219 + $0x28] sm:$0xf]
      %v10492 = vld [vmem:[%s219 + $0x2c] sm:$0xf]
      %v10493 = vld [vmem:[%s219 + $0x30] sm:$0xf]
      %v10494 = vld [vmem:[%s219 + $0x34] sm:$0xf]
      %v10495 = vld [vmem:[%s219 + $0x38] sm:$0xf]
      %v10496 = vld [vmem:[%s219 + $0x3c] sm:$0xf]
      %v10497 = vld [vmem:[%s219 + $0x40] sm:$0xf]
      %v10498 = vld [vmem:[%s219 + $0x44] sm:$0xf]
      %v10499 = vld [vmem:[%s219 + $0x48] sm:$0xf]
      %v10500 = vld [vmem:[%s219 + $0x4c] sm:$0xf]
      %v10501 = vld [vmem:[%s219 + $0x50] sm:$0xf]
      %v10502 = vld [vmem:[%s219 + $0x54] sm:$0xf]
      %v10503 = vld [vmem:[%s219 + $0x58] sm:$0xf]
      %v10504 = vld [vmem:[%s219 + $0x5c] sm:$0xf]
      %v10505 = vld [vmem:[%s219 + $0x60] sm:$0xf]
      %v10506 = vld [vmem:[%s219 + $0x64] sm:$0xf]
      %v10507 = vld [vmem:[%s219 + $0x68] sm:$0xf]
      %v10508 = vld [vmem:[%s219 + $0x6c] sm:$0xf]
      %v10509 = vld [vmem:[%s219 + $0x70] sm:$0xf]
      %v10510 = vld [vmem:[%s219 + $0x74] sm:$0xf]
      %v10511 = vld [vmem:[%s219 + $0x78] sm:$0xf]
      %v10512 = vld [vmem:[%s219 + $0x7c] sm:$0xf]
      %v10513 = vunpack.c.l.bf16 %v10481
      %v10514 = vunpack.c.l.bf16 %v10482
      %v10515 = vunpack.c.l.bf16 %v10483
      %v10516 = vunpack.c.l.bf16 %v10484
      %v10517 = vunpack.c.l.bf16 %v10485
      %v10518 = vunpack.c.l.bf16 %v10486
      %v10519 = vunpack.c.l.bf16 %v10487
      %v10520 = vunpack.c.l.bf16 %v10488
      %v10521 = vunpack.c.l.bf16 %v10489
      %v10522 = vunpack.c.l.bf16 %v10490
      %v10523 = vunpack.c.l.bf16 %v10491
      %v10524 = vunpack.c.l.bf16 %v10492
      %v10525 = vunpack.c.l.bf16 %v10493
      %v10526 = vunpack.c.l.bf16 %v10494
      %v10527 = vunpack.c.l.bf16 %v10495
      %v10528 = vunpack.c.l.bf16 %v10496
      %v10529 = vunpack.c.l.bf16 %v10497
      %v10530 = vunpack.c.l.bf16 %v10498
      %v10531 = vunpack.c.l.bf16 %v10499
      %v10532 = vunpack.c.l.bf16 %v10500
      %v10533 = vunpack.c.l.bf16 %v10501
      %v10534 = vunpack.c.l.bf16 %v10502
      %v10535 = vunpack.c.l.bf16 %v10503
      %v10536 = vunpack.c.l.bf16 %v10504
      %v10537 = vunpack.c.l.bf16 %v10505
      %v10538 = vunpack.c.l.bf16 %v10506
      %v10539 = vunpack.c.l.bf16 %v10507
      %v10540 = vunpack.c.l.bf16 %v10508
      %v10541 = vunpack.c.l.bf16 %v10509
      %v10542 = vunpack.c.l.bf16 %v10510
      %v10543 = vunpack.c.l.bf16 %v10511
      %v10544 = vunpack.c.l.bf16 %v10512
      %v10545 = vadd.f32 %v10449, %v10513
      %v10546 = vadd.f32 %v10450, %v10514
      %v10547 = vadd.f32 %v10451, %v10515
      %v10548 = vadd.f32 %v10452, %v10516
      %v10549 = vadd.f32 %v10453, %v10517
      %v10550 = vadd.f32 %v10454, %v10518
      %v10551 = vadd.f32 %v10455, %v10519
      %v10552 = vadd.f32 %v10456, %v10520
      %v10553 = vadd.f32 %v10457, %v10521
      %v10554 = vadd.f32 %v10458, %v10522
      %v10555 = vadd.f32 %v10459, %v10523
      %v10556 = vadd.f32 %v10460, %v10524
      %v10557 = vadd.f32 %v10461, %v10525
      %v10558 = vadd.f32 %v10462, %v10526
      %v10559 = vadd.f32 %v10463, %v10527
      %v10560 = vadd.f32 %v10464, %v10528
      %v10561 = vadd.f32 %v10465, %v10529
      %v10562 = vadd.f32 %v10466, %v10530
      %v10563 = vadd.f32 %v10467, %v10531
      %v10564 = vadd.f32 %v10468, %v10532
      %v10565 = vadd.f32 %v10469, %v10533
      %v10566 = vadd.f32 %v10470, %v10534
      %v10567 = vadd.f32 %v10471, %v10535
      %v10568 = vadd.f32 %v10472, %v10536
      %v10569 = vadd.f32 %v10473, %v10537
      %v10570 = vadd.f32 %v10474, %v10538
      %v10571 = vadd.f32 %v10475, %v10539
      %v10572 = vadd.f32 %v10476, %v10540
      %v10573 = vadd.f32 %v10477, %v10541
      %v10574 = vadd.f32 %v10478, %v10542
      %v10575 = vadd.f32 %v10479, %v10543
      %v10576 = vadd.f32 %v10480, %v10544
      %10577 = vst.msk [vmem:[%s224] sm:$0xff] %vm1305, %v10545
      %10578 = vst.msk [vmem:[%s224 + $0x8] sm:$0xff] %vm1305, %v10546
      %10579 = vst.msk [vmem:[%s224 + $0x10] sm:$0xff] %vm1305, %v10547
      %10580 = vst.msk [vmem:[%s224 + $0x18] sm:$0xff] %vm1305, %v10548
      %10581 = vst.msk [vmem:[%s224 + $0x20] sm:$0xff] %vm1305, %v10549
      %10582 = vst.msk [vmem:[%s224 + $0x28] sm:$0xff] %vm1305, %v10550
      %10583 = vst.msk [vmem:[%s224 + $0x30] sm:$0xff] %vm1305, %v10551
      %10584 = vst.msk [vmem:[%s224 + $0x38] sm:$0xff] %vm1305, %v10552
      %10585 = vst.msk [vmem:[%s224 + $0x40] sm:$0xff] %vm1305, %v10553
      %10586 = vst.msk [vmem:[%s224 + $0x48] sm:$0xff] %vm1305, %v10554
      %10587 = vst.msk [vmem:[%s224 + $0x50] sm:$0xff] %vm1305, %v10555
      %10588 = vst.msk [vmem:[%s224 + $0x58] sm:$0xff] %vm1305, %v10556
      %10589 = vst.msk [vmem:[%s224 + $0x60] sm:$0xff] %vm1305, %v10557
      %10590 = vst.msk [vmem:[%s224 + $0x68] sm:$0xff] %vm1305, %v10558
      %10591 = vst.msk [vmem:[%s224 + $0x70] sm:$0xff] %vm1305, %v10559
      %10592 = vst.msk [vmem:[%s224 + $0x78] sm:$0xff] %vm1305, %v10560
      %10593 = vst.msk [vmem:[%s224 + $0x80] sm:$0xff] %vm1305, %v10561
      %10594 = vst.msk [vmem:[%s224 + $0x88] sm:$0xff] %vm1305, %v10562
      %10595 = vst.msk [vmem:[%s224 + $0x90] sm:$0xff] %vm1305, %v10563
      %10596 = vst.msk [vmem:[%s224 + $0x98] sm:$0xff] %vm1305, %v10564
      %10597 = vst.msk [vmem:[%s224 + $0xa0] sm:$0xff] %vm1305, %v10565
      %10598 = vst.msk [vmem:[%s224 + $0xa8] sm:$0xff] %vm1305, %v10566
      %10599 = vst.msk [vmem:[%s224 + $0xb0] sm:$0xff] %vm1305, %v10567
      %10600 = vst.msk [vmem:[%s224 + $0xb8] sm:$0xff] %vm1305, %v10568
      %10601 = vst.msk [vmem:[%s224 + $0xc0] sm:$0xff] %vm1305, %v10569
      %10602 = vst.msk [vmem:[%s224 + $0xc8] sm:$0xff] %vm1305, %v10570
      %10603 = vst.msk [vmem:[%s224 + $0xd0] sm:$0xff] %vm1305, %v10571
      %10604 = vst.msk [vmem:[%s224 + $0xd8] sm:$0xff] %vm1305, %v10572
      %10605 = vst.msk [vmem:[%s224 + $0xe0] sm:$0xff] %vm1305, %v10573
      %10606 = vst.msk [vmem:[%s224 + $0xe8] sm:$0xff] %vm1305, %v10574
      %10607 = vst.msk [vmem:[%s224 + $0xf0] sm:$0xff] %vm1305, %v10575
      %10608 = vst.msk [vmem:[%s224 + $0xf8] sm:$0xff] %vm1305, %v10576
      %p10609 = scmp.lt.s32.totalorder %s16, 1
      %s10610 = scalar_select %p10609, %s16, 1
      %s10611 = smul.addr %s10610, 32
      %s10612 = smul.addr %s10611, 8
      %s10613 = scalar_lea.vmem %s5, %s10612
      // Predicated region
      $region41: #{c2f_bottleneck_forward.1} parent=39 // pred_check
        %p10614 = pneg %p144
      $region42: #{c2f_bottleneck_forward.1} parent=39 // pred_check_branch
        %10616 = sbr.rel (%p10614) target = $region44
      $region43: #{c2f_bottleneck_forward.1} parent=39 // pred_region
        _
      $region44: #{c2f_bottleneck_forward.1} parent=39 // pred_fallthru
        _
    $region40: #{c2f_bottleneck_forward.1} parent=5 // pred_fallthru
      _
    %p10617 = scmp.le.s32.totalorder 2, %s11
    // Predicated region
    $region45: #{c2f_bottleneck_forward.1} parent=5 // pred_check
      %p10618 = pneg %p10617
    $region46: #{c2f_bottleneck_forward.1} parent=5 // pred_check_branch
      %10620 = sbr.rel (%p10618) target = $region48
    $region47: #{c2f_bottleneck_forward.1} parent=5 // pred_region
      %s10621 = ssub.s32 %s11, 2
      // Predicated region
      $region49: #{c2f_bottleneck_forward.1} parent=47 // pred_check
        %p10622 = pneg %p150
      $region50: #{c2f_bottleneck_forward.1} parent=47 // pred_check_branch
        %10624 = sbr.rel (%p10622) target = $region52
      $region51: #{c2f_bottleneck_forward.1} parent=47 // pred_region
        %p10625 = scmp.lt.s32.totalorder %s17, 1
        %s10626 = scalar_select %p10625, %s17, 1
        %s10627 = smul.addr %s10626, 32
        %s10628 = smul.addr %s10627, 8
        %s10629 = scalar_lea.vmem %s5, %s10628
      $region52: #{c2f_bottleneck_forward.1} parent=47 // pred_fallthru
        _
    $region48: #{c2f_bottleneck_forward.1} parent=5 // pred_fallthru
      _
  $region6: #{c2f_bottleneck_forward.1} parent=0 // loop_footer
    %s15 = sadd.s32 1, %s11
  $region7: #{c2f_bottleneck_forward.1} parent=0 // loop_footer_branch
    %10 = sbr.rel target = $region3
  $region8: #{c2f_bottleneck_forward.1} parent=0 // loop_exit
    _

</llo_original>
